<compile_context>
chip_gen: v6e
topology: v6e:2x2x1
jax: 0.10.0
libtpu: 0.0.40
codegen_flags: <defaults>
</compile_context>

<pallas_src>
import functools
import math

import jax
import jax.numpy as jnp
from jax import lax
from jax.experimental import pallas as pl
from jax.experimental.pallas import tpu as pltpu


def _round_up(x, m):
    return ((x + m - 1) // m) * m


# ------------------------------ linear kernel -------------------------------

def _linear_kernel(x_ref, wt_ref, b_ref, o_ref):
    # o = x @ W^T + b     (wt_ref already holds W^T, b_ref is (1, tn))
    o_ref[...] = (
        jnp.dot(x_ref[...], wt_ref[...], preferred_element_type=jnp.float32)
        + b_ref[...]
    )


def pallas_linear(x, w_t, b_row):
    """x: (M, K) @ w_t: (K, N) + b_row: (1, N) -> (M, N), tiled over (M, N)."""
    M, K = x.shape
    N = w_t.shape[1]
    tm = 128 if M % 128 == 0 else M          # full block if M is small / unaligned
    tn = 128 if N % 128 == 0 else N
    grid = (M // tm, N // tn)
    return pl.pallas_call(
        _linear_kernel,
        out_shape=jax.ShapeDtypeStruct((M, N), jnp.float32),
        grid_spec=pltpu.PrefetchScalarGridSpec(
            num_scalar_prefetch=0,
            grid=grid,
            in_specs=[
                pl.BlockSpec((tm, K), lambda i, j: (i, 0)),
                pl.BlockSpec((K, tn), lambda i, j: (0, j)),
                pl.BlockSpec((1, tn), lambda i, j: (0, j)),
            ],
            out_specs=pl.BlockSpec((tm, tn), lambda i, j: (i, j)),
        ),
        compiler_params=pltpu.CompilerParams(
            dimension_semantics=("parallel", "parallel")),
    )(x, w_t, b_row)


# --------------------------- bidirectional LSTM ------------------------------

def _bilstm_kernel(x_ref, wih_ref, whh_ref, b_ref, out_ref, h_sc, c_sc):
    """Fused input-projection + LSTM recurrence for one (direction, time_chunk).

    x_ref  : (TS, B, In)   time-chunk of the layer input (time-major)
    wih_ref: (1, In, 4Hp)  W_ih^T, gate-lane-padded, resident across chunks
    whh_ref: (1, Hp, 4Hp)  W_hh^T, gate-lane-padded, resident across chunks
    b_ref  : (1, 1, 4Hp)   b_ih + b_hh, gate-lane-padded
    out_ref: (TS, B, Hp)   hidden states for this direction's lane block
    h_sc/c_sc: (B, Hp)     recurrent state; persists across time-chunk grid steps
    """
    d = pl.program_id(0)          # 0 = forward, 1 = backward
    TS = x_ref.shape[0]
    Hp = h_sc.shape[-1]

    @pl.when(pl.program_id(1) == 0)
    def _():
        h_sc[...] = jnp.zeros_like(h_sc)
        c_sc[...] = jnp.zeros_like(c_sc)

    def step(l, carry):
        # forward walks the chunk front-to-back; backward walks it back-to-front
        # (the chunk order itself is reversed by the index_map), so outputs land
        # in natural time order with no jnp.flip.
        t = (1 - d) * l + d * (TS - 1 - l)
        h_prev = h_sc[...]
        c_prev = c_sc[...]
        gates = (
            jnp.dot(x_ref[t], wih_ref[0], preferred_element_type=jnp.float32)
            + jnp.dot(h_prev, whh_ref[0], preferred_element_type=jnp.float32)
            + b_ref[0]
        )
        # Gate slabs are lane-aligned (each gate spans a multiple-of-128 lane block).
        i_g = jax.nn.sigmoid(gates[:, 0 * Hp:1 * Hp])
        f_g = jax.nn.sigmoid(gates[:, 1 * Hp:2 * Hp])
        g_g = jnp.tanh(gates[:, 2 * Hp:3 * Hp])
        o_g = jax.nn.sigmoid(gates[:, 3 * Hp:4 * Hp])
        c_new = f_g * c_prev + i_g * g_g
        h_new = o_g * jnp.tanh(c_new)
        c_sc[...] = c_new
        h_sc[...] = h_new
        out_ref[t] = h_new
        return carry

    lax.fori_loop(0, TS, step, 0, unroll=True)


def _pick_time_block(T):
    """Largest small divisor of T that still yields >= 2 chunks (pipelining)."""
    if T <= 1:
        return 1
    for ts in (8, 4, 2, 1):
        if T % ts == 0 and (T // ts) >= 2:
            return ts
    return 1


def pallas_bilstm_layer(x_tm, wih_t, whh_t, bias):
    """x_tm: (T, B, In); per-direction stacked padded weights.

    Returns (T, B, 2*Hp): forward hidden in lanes [0:Hp], backward in [Hp:2Hp]
    (matches PyTorch's bidirectional concat, modulo zero padding)."""
    T, B, In = x_tm.shape
    Hp = whh_t.shape[1]
    H4p = whh_t.shape[2]
    TS = _pick_time_block(T)
    nc = T // TS

    def time_chunk(d, c):
        # forward: c ; backward: nc-1-c
        return d * (nc - 1) + (1 - 2 * d) * c

    return pl.pallas_call(
        _bilstm_kernel,
        out_shape=jax.ShapeDtypeStruct((T, B, 2 * Hp), jnp.float32),
        grid_spec=pltpu.PrefetchScalarGridSpec(
            num_scalar_prefetch=0,
            grid=(2, nc),                       # (direction, time-chunk)
            in_specs=[
                pl.BlockSpec((TS, B, In), lambda d, c: (time_chunk(d, c), 0, 0)),
                pl.BlockSpec((1, In, H4p), lambda d, c: (d, 0, 0)),
                pl.BlockSpec((1, Hp, H4p), lambda d, c: (d, 0, 0)),
                pl.BlockSpec((1, 1, H4p), lambda d, c: (d, 0, 0)),
            ],
            out_specs=pl.BlockSpec((TS, B, Hp),
                                   lambda d, c: (time_chunk(d, c), 0, d)),
            scratch_shapes=[
                pltpu.VMEM((B, Hp), jnp.float32),
                pltpu.VMEM((B, Hp), jnp.float32),
            ],
        ),
        compiler_params=pltpu.CompilerParams(
            dimension_semantics=("parallel", "arbitrary")),
    )(x_tm, wih_t, whh_t, bias)


# -------------------------- parameter construction ---------------------------

def _scatter_gate_cols(mat_t, H, Hp):
    """mat_t: (rows, 4H) -> (rows, 4Hp); gate g occupies lanes [g*Hp, g*Hp+H)."""
    rows = mat_t.shape[0]
    out = jnp.zeros((rows, 4 * Hp), jnp.float32)
    for g in range(4):
        out = out.at[:, g * Hp:g * Hp + H].set(mat_t[:, g * H:(g + 1) * H])
    return out


def _pad_hh_T(w_hh, H, Hp):
    """w_hh: (4H, H) -> W_hh^T zero-padded to (Hp, 4Hp)."""
    w_t = _scatter_gate_cols(jnp.transpose(w_hh), H, Hp)     # (H, 4Hp)
    return jnp.zeros((Hp, 4 * Hp), jnp.float32).at[:H].set(w_t)


def _pad_ih_T(w_ih, H, Hp, is_first_layer):
    """w_ih: (4H, in_real) -> W_ih^T zero-padded.  Layer 0 keeps raw input rows;
    deeper layers map the [fwd H, bwd H] hidden rows to rows [0:H] and [Hp:Hp+H]."""
    w_t = _scatter_gate_cols(jnp.transpose(w_ih), H, Hp)     # (in_real, 4Hp)
    if is_first_layer:
        return w_t
    out = jnp.zeros((2 * Hp, 4 * Hp), jnp.float32)
    out = out.at[:H].set(w_t[:H])
    out = out.at[Hp:Hp + H].set(w_t[H:2 * H])
    return out


def _pad_gate_bias(b, H, Hp):
    out = jnp.zeros((4 * Hp,), jnp.float32)
    for g in range(4):
        out = out.at[g * Hp:g * Hp + H].set(b[g * H:(g + 1) * H])
    return out


def _pad_fc_wT(fc_w, H, Hp, Cp):
    """fc_w: (C, 2H) -> padded W^T (2Hp, Cp); padded rows/cols are zero."""
    C = fc_w.shape[0]
    w_t = jnp.transpose(fc_w)                                # (2H, C)
    out = jnp.zeros((2 * Hp, Cp), jnp.float32)
    out = out.at[:H, :C].set(w_t[:H])
    out = out.at[Hp:Hp + H, :C].set(w_t[H:2 * H])
    return out


def init_birnn_params(key, input_size, hidden_size, num_layers, num_classes):
    """Deterministic init matching BiRNN.init_params(): U(-stdv, stdv), stdv=1/sqrt(H).
    Weights are stored pre-transposed and zero-padded to lane-aligned gate layouts
    (padding is mathematically exact: padded lanes stay identically zero)."""
    H = hidden_size
    Hp = _round_up(H, 128)
    Cp = _round_up(num_classes, 128)
    stdv = 1.0 / math.sqrt(H)

    def uni(k, shape):
        return jax.random.uniform(k, shape, jnp.float32, minval=-stdv, maxval=stdv)

    keys = iter(jax.random.split(key, 4 + num_layers * 2 * 4))

    inp_w = uni(next(keys), (input_size, input_size))        # (out, in) like nn.Linear
    inp_b = uni(next(keys), (input_size,))
    fc_w = uni(next(keys), (num_classes, 2 * H))
    fc_b = uni(next(keys), (num_classes,))

    params = {
        "inp_wT": jnp.transpose(inp_w),                      # pre-transposed once
        "inp_b": inp_b.reshape(1, input_size),
        "fc_wT": _pad_fc_wT(fc_w, H, Hp, Cp),                # (2Hp, Cp)
        "fc_b": jnp.zeros((1, Cp), jnp.float32).at[0, :num_classes].set(fc_b),
        "lstm": [],
    }
    for layer in range(num_layers):
        in_real = input_size if layer == 0 else 2 * H
        wih_list, whh_list, b_list = [], [], []
        for _direction in range(2):                          # 0 = forward, 1 = backward
            w_ih = uni(next(keys), (4 * H, in_real))
            w_hh = uni(next(keys), (4 * H, H))
            b_ih = uni(next(keys), (4 * H,))
            b_hh = uni(next(keys), (4 * H,))
            wih_list.append(_pad_ih_T(w_ih, H, Hp, layer == 0))
            whh_list.append(_pad_hh_T(w_hh, H, Hp))
            b_list.append(_pad_gate_bias(b_ih + b_hh, H, Hp).reshape(1, 4 * Hp))
        params["lstm"].append({
            "wihT": jnp.stack(wih_list),                     # (2, in_pad, 4Hp)
            "whhT": jnp.stack(whh_list),                     # (2, Hp, 4Hp)
            "b": jnp.stack(b_list),                          # (2, 1, 4Hp)
        })
    return params


# ------------------------------ BiRNN forward --------------------------------

def birnn_forward(params, x, *, hidden_size, num_classes):
    """x: (B, T, input_size) -> (B, T, num_classes)."""
    B, T, D = x.shape
    Hp = _round_up(hidden_size, 128)

    # One small transpose at the boundary; everything stays time-major afterwards.
    x_tm = jnp.transpose(x, (1, 0, 2))                       # (T, B, D)

    # self.inp : Linear(input_size, input_size) on the feature dim.
    h = pallas_linear(x_tm.reshape(T * B, D), params["inp_wT"], params["inp_b"])
    layer_in = h.reshape(T, B, D)

    # Bidirectional multi-layer LSTM (input projection fused into the recurrence;
    # backward direction handled via reversed index maps; no flips / concats).
    for layer in params["lstm"]:
        layer_in = pallas_bilstm_layer(layer_in, layer["wihT"], layer["whhT"], layer["b"])
    # TODO(synk): training-mode inter-layer dropout (p=0.1) not implemented (inference semantics).

    # SequenceWise(Linear(2H, num_classes)) on the lane-padded hidden (exact: pads are zero).
    flat = layer_in.reshape(T * B, 2 * Hp)
    out = pallas_linear(flat, params["fc_wT"], params["fc_b"])   # (T*B, Cp)
    out = out[:, :num_classes].reshape(T, B, num_classes)
    return jnp.transpose(out, (1, 0, 2))                         # (B, T, C)


# ----------------------------------- main ------------------------------------

if __name__ == "__main__":
    input_size = 16
    hidden_size = 32
    num_layers = 2
    num_classes = 10
    batch, seq = 2, 8

    key = jax.random.PRNGKey(0)
    k_param, k_x = jax.random.split(key)
    params = init_birnn_params(k_param, input_size, hidden_size, num_layers, num_classes)
    x = jax.random.normal(k_x, (batch, seq, input_size), jnp.float32)

    fwd = jax.jit(functools.partial(
        birnn_forward, hidden_size=hidden_size, num_classes=num_classes))
    out = jax.block_until_ready(fwd(params, x))
    assert out.shape == (batch, seq, num_classes), out.shape
    print("KERNEL_OK")
</pallas_src>

<mosaic_0001>
module attributes {stable_mosaic.version = 11 : i64} {
  func.func @_linear_kernel(%arg0: i32, %arg1: i32, %arg2: memref<16x16xf32, #tpu.memory_space<vmem>>, %arg3: memref<16x16xf32, #tpu.memory_space<vmem>>, %arg4: memref<1x16xf32, #tpu.memory_space<vmem>>, %arg5: memref<16x16xf32, #tpu.memory_space<vmem>>) attributes {dimension_semantics = [#tpu.dimension_semantics<parallel>, #tpu.dimension_semantics<parallel>], iteration_bounds = array<i64: 1, 1>, scalar_prefetch = 0 : i64, scratch_operands = 0 : i64, tpu.core_type = #tpu.core_type<tc>, window_params = [{transform_indices = @transform_0, window_bounds = array<i64: 16, 16>}, {transform_indices = @transform_1, window_bounds = array<i64: 16, 16>}, {transform_indices = @transform_2, window_bounds = array<i64: 1, 16>}, {transform_indices = @transform_3, window_bounds = array<i64: 16, 16>}]} {
    %c0 = arith.constant 0 : index
    %c0_0 = arith.constant 0 : index
    %0 = vector.load %arg2[%c0, %c0_0] : memref<16x16xf32, #tpu.memory_space<vmem>>, vector<16x16xf32>
    %c0_1 = arith.constant 0 : index
    %c0_2 = arith.constant 0 : index
    %1 = vector.load %arg3[%c0_1, %c0_2] : memref<16x16xf32, #tpu.memory_space<vmem>>, vector<16x16xf32>
    %cst = arith.constant dense<0.000000e+00> : vector<16x16xf32>
    %2 = tpu.matmul %0, %1, %cst {dimension_numbers = #tpu.dot_dimension_numbers<[1], [0], [0], [1], [0, 0, 1, 1], [], []>} : vector<16x16xf32>, vector<16x16xf32>, vector<16x16xf32> -> vector<16x16xf32>
    %c0_3 = arith.constant 0 : index
    %c0_4 = arith.constant 0 : index
    %3 = vector.load %arg4[%c0_3, %c0_4] : memref<1x16xf32, #tpu.memory_space<vmem>>, vector<1x16xf32>
    %4 = vector.broadcast %3 : vector<1x16xf32> to vector<16x16xf32>
    %5 = arith.addf %2, %4 : vector<16x16xf32>
    %c0_5 = arith.constant 0 : index
    %c0_6 = arith.constant 0 : index
    %6 = vector.load %arg5[%c0_5, %c0_6] : memref<16x16xf32, #tpu.memory_space<vmem>>, vector<16x16xf32>
    tpu.vector_store %arg5[%c0_5, %c0_6], %5 {strides = array<i32>} : memref<16x16xf32, #tpu.memory_space<vmem>>, vector<16x16xf32>,
    return
  }
  func.func @transform_0(%arg0: i32, %arg1: i32) -> (i32, i32) {
    %c0_i32 = arith.constant 0 : i32
    %c0_i32_0 = arith.constant 0 : i32
    return %arg0, %c0_i32 : i32, i32
  }
  func.func @transform_1(%arg0: i32, %arg1: i32) -> (i32, i32) {
    %c0_i32 = arith.constant 0 : i32
    %c0_i32_0 = arith.constant 0 : i32
    return %c0_i32, %arg1 : i32, i32
  }
  func.func @transform_2(%arg0: i32, %arg1: i32) -> (i32, i32) {
    %c0_i32 = arith.constant 0 : i32
    %c0_i32_0 = arith.constant 0 : i32
    return %c0_i32, %arg1 : i32, i32
  }
  func.func @transform_3(%arg0: i32, %arg1: i32) -> (i32, i32) {
    %c0_i32 = arith.constant 0 : i32
    return %arg0, %arg1 : i32, i32
  }
}

module attributes {stable_mosaic.version = 11 : i64} {
  func.func @_bilstm_kernel(%arg0: i32, %arg1: i32, %arg2: memref<4x2x256xf32, #tpu.memory_space<vmem>>, %arg3: memref<1x256x512xf32, #tpu.memory_space<vmem>>, %arg4: memref<1x128x512xf32, #tpu.memory_space<vmem>>, %arg5: memref<1x1x512xf32, #tpu.memory_space<vmem>>, %arg6: memref<4x2x128xf32, #tpu.memory_space<vmem>>, %arg7: memref<2x128xf32, #tpu.memory_space<vmem>>, %arg8: memref<2x128xf32, #tpu.memory_space<vmem>>) attributes {dimension_semantics = [#tpu.dimension_semantics<parallel>, #tpu.dimension_semantics<arbitrary>], iteration_bounds = array<i64: 2, 2>, scalar_prefetch = 0 : i64, scratch_operands = 2 : i64, tpu.core_type = #tpu.core_type<tc>, window_params = [{transform_indices = @transform_0, window_bounds = array<i64: 4, 2, 256>}, {transform_indices = @transform_1, window_bounds = array<i64: 1, 256, 512>}, {transform_indices = @transform_2, window_bounds = array<i64: 1, 128, 512>}, {transform_indices = @transform_3, window_bounds = array<i64: 1, 1, 512>}, {transform_indices = @transform_4, window_bounds = array<i64: 4, 2, 128>}]} {
    %c0_i32 = arith.constant 0 : i32
    %0 = arith.cmpi eq, %arg1, %c0_i32 : i32
    %1 = arith.extui %0 : i1 to i32
    %c0_i32_0 = arith.constant 0 : i32
    %2 = arith.cmpi ne, %1, %c0_i32_0 : i32
    scf.if %2 {
      %cst_112 = arith.constant 0.000000e+00 : f32
      %211 = vector.broadcast %cst_112 : f32 to vector<2x128xf32>
      %c0_113 = arith.constant 0 : index
      %c0_114 = arith.constant 0 : index
      %212 = vector.load %arg7[%c0_113, %c0_114] : memref<2x128xf32, #tpu.memory_space<vmem>>, vector<2x128xf32>
      tpu.vector_store %arg7[%c0_113, %c0_114], %211 {strides = array<i32>} : memref<2x128xf32, #tpu.memory_space<vmem>>, vector<2x128xf32>,
      %cst_115 = arith.constant 0.000000e+00 : f32
      %213 = vector.broadcast %cst_115 : f32 to vector<2x128xf32>
      %c0_116 = arith.constant 0 : index
      %c0_117 = arith.constant 0 : index
      %214 = vector.load %arg8[%c0_116, %c0_117] : memref<2x128xf32, #tpu.memory_space<vmem>>, vector<2x128xf32>
      tpu.vector_store %arg8[%c0_116, %c0_117], %213 {strides = array<i32>} : memref<2x128xf32, #tpu.memory_space<vmem>>, vector<2x128xf32>,
    } else {
    }
    %c0_i32_1 = arith.constant 0 : i32
    %c1_i32 = arith.constant 1 : i32
    %3 = arith.subi %c1_i32, %arg0 : i32
    %4 = arith.muli %3, %c0_i32_1 : i32
    %c3_i32 = arith.constant 3 : i32
    %5 = arith.subi %c3_i32, %c0_i32_1 : i32
    %6 = arith.muli %arg0, %5 : i32
    %7 = arith.addi %4, %6 : i32
    %c0 = arith.constant 0 : index
    %c0_2 = arith.constant 0 : index
    %8 = vector.load %arg7[%c0, %c0_2] : memref<2x128xf32, #tpu.memory_space<vmem>>, vector<2x128xf32>
    %c0_3 = arith.constant 0 : index
    %c0_4 = arith.constant 0 : index
    %9 = vector.load %arg8[%c0_3, %c0_4] : memref<2x128xf32, #tpu.memory_space<vmem>>, vector<2x128xf32>
    %10 = arith.index_cast %7 : i32 to index
    %c0_5 = arith.constant 0 : index
    %c0_6 = arith.constant 0 : index
    %11 = vector.load %arg2[%10, %c0_5, %c0_6] : memref<4x2x256xf32, #tpu.memory_space<vmem>>, vector<1x2x256xf32>
    %12 = vector.shape_cast %11 : vector<1x2x256xf32> to vector<2x256xf32>
    %c0_7 = arith.constant 0 : index
    %c0_8 = arith.constant 0 : index
    %c0_9 = arith.constant 0 : index
    %13 = vector.load %arg3[%c0_7, %c0_8, %c0_9] : memref<1x256x512xf32, #tpu.memory_space<vmem>>, vector<1x256x512xf32>
    %14 = vector.shape_cast %13 : vector<1x256x512xf32> to vector<256x512xf32>
    %cst = arith.constant dense<0.000000e+00> : vector<2x512xf32>
    %15 = tpu.matmul %12, %14, %cst {dimension_numbers = #tpu.dot_dimension_numbers<[1], [0], [0], [1], [0, 0, 1, 1], [], []>} : vector<2x256xf32>, vector<256x512xf32>, vector<2x512xf32> -> vector<2x512xf32>
    %c0_10 = arith.constant 0 : index
    %c0_11 = arith.constant 0 : index
    %c0_12 = arith.constant 0 : index
    %16 = vector.load %arg4[%c0_10, %c0_11, %c0_12] : memref<1x128x512xf32, #tpu.memory_space<vmem>>, vector<1x128x512xf32>
    %17 = vector.shape_cast %16 : vector<1x128x512xf32> to vector<128x512xf32>
    %cst_13 = arith.constant dense<0.000000e+00> : vector<2x512xf32>
    %18 = tpu.matmul %8, %17, %cst_13 {dimension_numbers = #tpu.dot_dimension_numbers<[1], [0], [0], [1], [0, 0, 1, 1], [], []>} : vector<2x128xf32>, vector<128x512xf32>, vector<2x512xf32> -> vector<2x512xf32>
    %19 = arith.addf %15, %18 : vector<2x512xf32>
    %c0_14 = arith.constant 0 : index
    %c0_15 = arith.constant 0 : index
    %c0_16 = arith.constant 0 : index
    %20 = vector.load %arg5[%c0_14, %c0_15, %c0_16] : memref<1x1x512xf32, #tpu.memory_space<vmem>>, vector<1x1x512xf32>
    %21 = vector.shape_cast %20 : vector<1x1x512xf32> to vector<1x512xf32>
    %22 = vector.broadcast %21 : vector<1x512xf32> to vector<2x512xf32>
    %23 = arith.addf %19, %22 : vector<2x512xf32>
    %24 = vector.extract_strided_slice %23 {offsets = [0, 0], sizes = [2, 128], strides = [1, 1]} : vector<2x512xf32> to vector<2x128xf32>
    %25 = arith.negf %24 : vector<2x128xf32>
    %26 = math.exp %25 : vector<2x128xf32>
    %cst_17 = arith.constant 1.000000e+00 : f32
    %27 = vector.broadcast %cst_17 : f32 to vector<2x128xf32>
    %28 = arith.addf %27, %26 : vector<2x128xf32>
    %29 = arith.divf %27, %28 : vector<2x128xf32>
    %30 = vector.extract_strided_slice %23 {offsets = [0, 128], sizes = [2, 128], strides = [1, 1]} : vector<2x512xf32> to vector<2x128xf32>
    %31 = arith.negf %30 : vector<2x128xf32>
    %32 = math.exp %31 : vector<2x128xf32>
    %cst_18 = arith.constant 1.000000e+00 : f32
    %33 = vector.broadcast %cst_18 : f32 to vector<2x128xf32>
    %34 = arith.addf %33, %32 : vector<2x128xf32>
    %35 = arith.divf %33, %34 : vector<2x128xf32>
    %36 = vector.extract_strided_slice %23 {offsets = [0, 256], sizes = [2, 128], strides = [1, 1]} : vector<2x512xf32> to vector<2x128xf32>
    %37 = math.tanh %36 : vector<2x128xf32>
    %38 = vector.extract_strided_slice %23 {offsets = [0, 384], sizes = [2, 128], strides = [1, 1]} : vector<2x512xf32> to vector<2x128xf32>
    %39 = arith.negf %38 : vector<2x128xf32>
    %40 = math.exp %39 : vector<2x128xf32>
    %cst_19 = arith.constant 1.000000e+00 : f32
    %41 = vector.broadcast %cst_19 : f32 to vector<2x128xf32>
    %42 = arith.addf %41, %40 : vector<2x128xf32>
    %43 = arith.divf %41, %42 : vector<2x128xf32>
    %44 = arith.mulf %35, %9 : vector<2x128xf32>
    %45 = arith.mulf %29, %37 : vector<2x128xf32>
    %46 = arith.addf %44, %45 : vector<2x128xf32>
    %47 = math.tanh %46 : vector<2x128xf32>
    %48 = arith.mulf %43, %47 : vector<2x128xf32>
    %c0_20 = arith.constant 0 : index
    %c0_21 = arith.constant 0 : index
    %49 = vector.load %arg8[%c0_20, %c0_21] : memref<2x128xf32, #tpu.memory_space<vmem>>, vector<2x128xf32>
    tpu.vector_store %arg8[%c0_20, %c0_21], %46 {strides = array<i32>} : memref<2x128xf32, #tpu.memory_space<vmem>>, vector<2x128xf32>,
    %c0_22 = arith.constant 0 : index
    %c0_23 = arith.constant 0 : index
    %50 = vector.load %arg7[%c0_22, %c0_23] : memref<2x128xf32, #tpu.memory_space<vmem>>, vector<2x128xf32>
    tpu.vector_store %arg7[%c0_22, %c0_23], %48 {strides = array<i32>} : memref<2x128xf32, #tpu.memory_space<vmem>>, vector<2x128xf32>,
    %51 = arith.index_cast %7 : i32 to index
    %c0_24 = arith.constant 0 : index
    %c0_25 = arith.constant 0 : index
    %52 = vector.load %arg6[%51, %c0_24, %c0_25] : memref<4x2x128xf32, #tpu.memory_space<vmem>>, vector<1x2x128xf32>
    %53 = vector.shape_cast %52 : vector<1x2x128xf32> to vector<2x128xf32>
    %54 = vector.shape_cast %48 : vector<2x128xf32> to vector<1x2x128xf32>
    tpu.vector_store %arg6[%51, %c0_24, %c0_25], %54 {strides = array<i32>} : memref<4x2x128xf32, #tpu.memory_space<vmem>>, vector<1x2x128xf32>,
    %c1_i32_26 = arith.constant 1 : i32
    %c1_i32_27 = arith.constant 1 : i32
    %55 = arith.subi %c1_i32_27, %arg0 : i32
    %56 = arith.muli %55, %c1_i32_26 : i32
    %c3_i32_28 = arith.constant 3 : i32
    %57 = arith.subi %c3_i32_28, %c1_i32_26 : i32
    %58 = arith.muli %arg0, %57 : i32
    %59 = arith.addi %56, %58 : i32
    %c0_29 = arith.constant 0 : index
    %c0_30 = arith.constant 0 : index
    %60 = vector.load %arg7[%c0_29, %c0_30] : memref<2x128xf32, #tpu.memory_space<vmem>>, vector<2x128xf32>
    %c0_31 = arith.constant 0 : index
    %c0_32 = arith.constant 0 : index
    %61 = vector.load %arg8[%c0_31, %c0_32] : memref<2x128xf32, #tpu.memory_space<vmem>>, vector<2x128xf32>
    %62 = arith.index_cast %59 : i32 to index
    %c0_33 = arith.constant 0 : index
    %c0_34 = arith.constant 0 : index
    %63 = vector.load %arg2[%62, %c0_33, %c0_34] : memref<4x2x256xf32, #tpu.memory_space<vmem>>, vector<1x2x256xf32>
    %64 = vector.shape_cast %63 : vector<1x2x256xf32> to vector<2x256xf32>
    %c0_35 = arith.constant 0 : index
    %c0_36 = arith.constant 0 : index
    %c0_37 = arith.constant 0 : index
    %65 = vector.load %arg3[%c0_35, %c0_36, %c0_37] : memref<1x256x512xf32, #tpu.memory_space<vmem>>, vector<1x256x512xf32>
    %66 = vector.shape_cast %65 : vector<1x256x512xf32> to vector<256x512xf32>
    %cst_38 = arith.constant dense<0.000000e+00> : vector<2x512xf32>
    %67 = tpu.matmul %64, %66, %cst_38 {dimension_numbers = #tpu.dot_dimension_numbers<[1], [0], [0], [1], [0, 0, 1, 1], [], []>} : vector<2x256xf32>, vector<256x512xf32>, vector<2x512xf32> -> vector<2x512xf32>
    %c0_39 = arith.constant 0 : index
    %c0_40 = arith.constant 0 : index
    %c0_41 = arith.constant 0 : index
    %68 = vector.load %arg4[%c0_39, %c0_40, %c0_41] : memref<1x128x512xf32, #tpu.memory_space<vmem>>, vector<1x128x512xf32>
    %69 = vector.shape_cast %68 : vector<1x128x512xf32> to vector<128x512xf32>
    %cst_42 = arith.constant dense<0.000000e+00> : vector<2x512xf32>
    %70 = tpu.matmul %60, %69, %cst_42 {dimension_numbers = #tpu.dot_dimension_numbers<[1], [0], [0], [1], [0, 0, 1, 1], [], []>} : vector<2x128xf32>, vector<128x512xf32>, vector<2x512xf32> -> vector<2x512xf32>
    %71 = arith.addf %67, %70 : vector<2x512xf32>
    %c0_43 = arith.constant 0 : index
    %c0_44 = arith.constant 0 : index
    %c0_45 = arith.constant 0 : index
    %72 = vector.load %arg5[%c0_43, %c0_44, %c0_45] : memref<1x1x512xf32, #tpu.memory_space<vmem>>, vector<1x1x512xf32>
    %73 = vector.shape_cast %72 : vector<1x1x512xf32> to vector<1x512xf32>
    %74 = vector.broadcast %73 : vector<1x512xf32> to vector<2x512xf32>
    %75 = arith.addf %71, %74 : vector<2x512xf32>
    %76 = vector.extract_strided_slice %75 {offsets = [0, 0], sizes = [2, 128], strides = [1, 1]} : vector<2x512xf32> to vector<2x128xf32>
    %77 = arith.negf %76 : vector<2x128xf32>
    %78 = math.exp %77 : vector<2x128xf32>
    %cst_46 = arith.constant 1.000000e+00 : f32
    %79 = vector.broadcast %cst_46 : f32 to vector<2x128xf32>
    %80 = arith.addf %79, %78 : vector<2x128xf32>
    %81 = arith.divf %79, %80 : vector<2x128xf32>
    %82 = vector.extract_strided_slice %75 {offsets = [0, 128], sizes = [2, 128], strides = [1, 1]} : vector<2x512xf32> to vector<2x128xf32>
    %83 = arith.negf %82 : vector<2x128xf32>
    %84 = math.exp %83 : vector<2x128xf32>
    %cst_47 = arith.constant 1.000000e+00 : f32
    %85 = vector.broadcast %cst_47 : f32 to vector<2x128xf32>
    %86 = arith.addf %85, %84 : vector<2x128xf32>
    %87 = arith.divf %85, %86 : vector<2x128xf32>
    %88 = vector.extract_strided_slice %75 {offsets = [0, 256], sizes = [2, 128], strides = [1, 1]} : vector<2x512xf32> to vector<2x128xf32>
    %89 = math.tanh %88 : vector<2x128xf32>
    %90 = vector.extract_strided_slice %75 {offsets = [0, 384], sizes = [2, 128], strides = [1, 1]} : vector<2x512xf32> to vector<2x128xf32>
    %91 = arith.negf %90 : vector<2x128xf32>
    %92 = math.exp %91 : vector<2x128xf32>
    %cst_48 = arith.constant 1.000000e+00 : f32
    %93 = vector.broadcast %cst_48 : f32 to vector<2x128xf32>
    %94 = arith.addf %93, %92 : vector<2x128xf32>
    %95 = arith.divf %93, %94 : vector<2x128xf32>
    %96 = arith.mulf %87, %61 : vector<2x128xf32>
    %97 = arith.mulf %81, %89 : vector<2x128xf32>
    %98 = arith.addf %96, %97 : vector<2x128xf32>
    %99 = math.tanh %98 : vector<2x128xf32>
    %100 = arith.mulf %95, %99 : vector<2x128xf32>
    %c0_49 = arith.constant 0 : index
    %c0_50 = arith.constant 0 : index
    %101 = vector.load %arg8[%c0_49, %c0_50] : memref<2x128xf32, #tpu.memory_space<vmem>>, vector<2x128xf32>
    tpu.vector_store %arg8[%c0_49, %c0_50], %98 {strides = array<i32>} : memref<2x128xf32, #tpu.memory_space<vmem>>, vector<2x128xf32>,
    %c0_51 = arith.constant 0 : index
    %c0_52 = arith.constant 0 : index
    %102 = vector.load %arg7[%c0_51, %c0_52] : memref<2x128xf32, #tpu.memory_space<vmem>>, vector<2x128xf32>
    tpu.vector_store %arg7[%c0_51, %c0_52], %100 {strides = array<i32>} : memref<2x128xf32, #tpu.memory_space<vmem>>, vector<2x128xf32>,
    %103 = arith.index_cast %59 : i32 to index
    %c0_53 = arith.constant 0 : index
    %c0_54 = arith.constant 0 : index
    %104 = vector.load %arg6[%103, %c0_53, %c0_54] : memref<4x2x128xf32, #tpu.memory_space<vmem>>, vector<1x2x128xf32>
    %105 = vector.shape_cast %104 : vector<1x2x128xf32> to vector<2x128xf32>
    %106 = vector.shape_cast %100 : vector<2x128xf32> to vector<1x2x128xf32>
    tpu.vector_store %arg6[%103, %c0_53, %c0_54], %106 {strides = array<i32>} : memref<4x2x128xf32, #tpu.memory_space<vmem>>, vector<1x2x128xf32>,
    %c2_i32 = arith.constant 2 : i32
    %c1_i32_55 = arith.constant 1 : i32
    %107 = arith.subi %c1_i32_55, %arg0 : i32
    %108 = arith.muli %107, %c2_i32 : i32
    %c3_i32_56 = arith.constant 3 : i32
    %109 = arith.subi %c3_i32_56, %c2_i32 : i32
    %110 = arith.muli %arg0, %109 : i32
    %111 = arith.addi %108, %110 : i32
    %c0_57 = arith.constant 0 : index
    %c0_58 = arith.constant 0 : index
    %112 = vector.load %arg7[%c0_57, %c0_58] : memref<2x128xf32, #tpu.memory_space<vmem>>, vector<2x128xf32>
    %c0_59 = arith.constant 0 : index
    %c0_60 = arith.constant 0 : index
    %113 = vector.load %arg8[%c0_59, %c0_60] : memref<2x128xf32, #tpu.memory_space<vmem>>, vector<2x128xf32>
    %114 = arith.index_cast %111 : i32 to index
    %c0_61 = arith.constant 0 : index
    %c0_62 = arith.constant 0 : index
    %115 = vector.load %arg2[%114, %c0_61, %c0_62] : memref<4x2x256xf32, #tpu.memory_space<vmem>>, vector<1x2x256xf32>
    %116 = vector.shape_cast %115 : vector<1x2x256xf32> to vector<2x256xf32>
    %c0_63 = arith.constant 0 : index
    %c0_64 = arith.constant 0 : index
    %c0_65 = arith.constant 0 : index
    %117 = vector.load %arg3[%c0_63, %c0_64, %c0_65] : memref<1x256x512xf32, #tpu.memory_space<vmem>>, vector<1x256x512xf32>
    %118 = vector.shape_cast %117 : vector<1x256x512xf32> to vector<256x512xf32>
    %cst_66 = arith.constant dense<0.000000e+00> : vector<2x512xf32>
    %119 = tpu.matmul %116, %118, %cst_66 {dimension_numbers = #tpu.dot_dimension_numbers<[1], [0], [0], [1], [0, 0, 1, 1], [], []>} : vector<2x256xf32>, vector<256x512xf32>, vector<2x512xf32> -> vector<2x512xf32>
    %c0_67 = arith.constant 0 : index
    %c0_68 = arith.constant 0 : index
    %c0_69 = arith.constant 0 : index
    %120 = vector.load %arg4[%c0_67, %c0_68, %c0_69] : memref<1x128x512xf32, #tpu.memory_space<vmem>>, vector<1x128x512xf32>
    %121 = vector.shape_cast %120 : vector<1x128x512xf32> to vector<128x512xf32>
    %cst_70 = arith.constant dense<0.000000e+00> : vector<2x512xf32>
    %122 = tpu.matmul %112, %121, %cst_70 {dimension_numbers = #tpu.dot_dimension_numbers<[1], [0], [0], [1], [0, 0, 1, 1], [], []>} : vector<2x128xf32>, vector<128x512xf32>, vector<2x512xf32> -> vector<2x512xf32>
    %123 = arith.addf %119, %122 : vector<2x512xf32>
    %c0_71 = arith.constant 0 : index
    %c0_72 = arith.constant 0 : index
    %c0_73 = arith.constant 0 : index
    %124 = vector.load %arg5[%c0_71, %c0_72, %c0_73] : memref<1x1x512xf32, #tpu.memory_space<vmem>>, vector<1x1x512xf32>
    %125 = vector.shape_cast %124 : vector<1x1x512xf32> to vector<1x512xf32>
    %126 = vector.broadcast %125 : vector<1x512xf32> to vector<2x512xf32>
    %127 = arith.addf %123, %126 : vector<2x512xf32>
    %128 = vector.extract_strided_slice %127 {offsets = [0, 0], sizes = [2, 128], strides = [1, 1]} : vector<2x512xf32> to vector<2x128xf32>
    %129 = arith.negf %128 : vector<2x128xf32>
    %130 = math.exp %129 : vector<2x128xf32>
    %cst_74 = arith.constant 1.000000e+00 : f32
    %131 = vector.broadcast %cst_74 : f32 to vector<2x128xf32>
    %132 = arith.addf %131, %130 : vector<2x128xf32>
    %133 = arith.divf %131, %132 : vector<2x128xf32>
    %134 = vector.extract_strided_slice %127 {offsets = [0, 128], sizes = [2, 128], strides = [1, 1]} : vector<2x512xf32> to vector<2x128xf32>
    %135 = arith.negf %134 : vector<2x128xf32>
    %136 = math.exp %135 : vector<2x128xf32>
    %cst_75 = arith.constant 1.000000e+00 : f32
    %137 = vector.broadcast %cst_75 : f32 to vector<2x128xf32>
    %138 = arith.addf %137, %136 : vector<2x128xf32>
    %139 = arith.divf %137, %138 : vector<2x128xf32>
    %140 = vector.extract_strided_slice %127 {offsets = [0, 256], sizes = [2, 128], strides = [1, 1]} : vector<2x512xf32> to vector<2x128xf32>
    %141 = math.tanh %140 : vector<2x128xf32>
    %142 = vector.extract_strided_slice %127 {offsets = [0, 384], sizes = [2, 128], strides = [1, 1]} : vector<2x512xf32> to vector<2x128xf32>
    %143 = arith.negf %142 : vector<2x128xf32>
    %144 = math.exp %143 : vector<2x128xf32>
    %cst_76 = arith.constant 1.000000e+00 : f32
    %145 = vector.broadcast %cst_76 : f32 to vector<2x128xf32>
    %146 = arith.addf %145, %144 : vector<2x128xf32>
    %147 = arith.divf %145, %146 : vector<2x128xf32>
    %148 = arith.mulf %139, %113 : vector<2x128xf32>
    %149 = arith.mulf %133, %141 : vector<2x128xf32>
    %150 = arith.addf %148, %149 : vector<2x128xf32>
    %151 = math.tanh %150 : vector<2x128xf32>
    %152 = arith.mulf %147, %151 : vector<2x128xf32>
    %c0_77 = arith.constant 0 : index
    %c0_78 = arith.constant 0 : index
    %153 = vector.load %arg8[%c0_77, %c0_78] : memref<2x128xf32, #tpu.memory_space<vmem>>, vector<2x128xf32>
    tpu.vector_store %arg8[%c0_77, %c0_78], %150 {strides = array<i32>} : memref<2x128xf32, #tpu.memory_space<vmem>>, vector<2x128xf32>,
    %c0_79 = arith.constant 0 : index
    %c0_80 = arith.constant 0 : index
    %154 = vector.load %arg7[%c0_79, %c0_80] : memref<2x128xf32, #tpu.memory_space<vmem>>, vector<2x128xf32>
    tpu.vector_store %arg7[%c0_79, %c0_80], %152 {strides = array<i32>} : memref<2x128xf32, #tpu.memory_space<vmem>>, vector<2x128xf32>,
    %155 = arith.index_cast %111 : i32 to index
    %c0_81 = arith.constant 0 : index
    %c0_82 = arith.constant 0 : index
    %156 = vector.load %arg6[%155, %c0_81, %c0_82] : memref<4x2x128xf32, #tpu.memory_space<vmem>>, vector<1x2x128xf32>
    %157 = vector.shape_cast %156 : vector<1x2x128xf32> to vector<2x128xf32>
    %158 = vector.shape_cast %152 : vector<2x128xf32> to vector<1x2x128xf32>
    tpu.vector_store %arg6[%155, %c0_81, %c0_82], %158 {strides = array<i32>} : memref<4x2x128xf32, #tpu.memory_space<vmem>>, vector<1x2x128xf32>,
    %c3_i32_83 = arith.constant 3 : i32
    %c1_i32_84 = arith.constant 1 : i32
    %159 = arith.subi %c1_i32_84, %arg0 : i32
    %160 = arith.muli %159, %c3_i32_83 : i32
    %c3_i32_85 = arith.constant 3 : i32
    %161 = arith.subi %c3_i32_85, %c3_i32_83 : i32
    %162 = arith.muli %arg0, %161 : i32
    %163 = arith.addi %160, %162 : i32
    %c0_86 = arith.constant 0 : index
    %c0_87 = arith.constant 0 : index
    %164 = vector.load %arg7[%c0_86, %c0_87] : memref<2x128xf32, #tpu.memory_space<vmem>>, vector<2x128xf32>
    %c0_88 = arith.constant 0 : index
    %c0_89 = arith.constant 0 : index
    %165 = vector.load %arg8[%c0_88, %c0_89] : memref<2x128xf32, #tpu.memory_space<vmem>>, vector<2x128xf32>
    %166 = arith.index_cast %163 : i32 to index
    %c0_90 = arith.constant 0 : index
    %c0_91 = arith.constant 0 : index
    %167 = vector.load %arg2[%166, %c0_90, %c0_91] : memref<4x2x256xf32, #tpu.memory_space<vmem>>, vector<1x2x256xf32>
    %168 = vector.shape_cast %167 : vector<1x2x256xf32> to vector<2x256xf32>
    %c0_92 = arith.constant 0 : index
    %c0_93 = arith.constant 0 : index
    %c0_94 = arith.constant 0 : index
    %169 = vector.load %arg3[%c0_92, %c0_93, %c0_94] : memref<1x256x512xf32, #tpu.memory_space<vmem>>, vector<1x256x512xf32>
    %170 = vector.shape_cast %169 : vector<1x256x512xf32> to vector<256x512xf32>
    %cst_95 = arith.constant dense<0.000000e+00> : vector<2x512xf32>
    %171 = tpu.matmul %168, %170, %cst_95 {dimension_numbers = #tpu.dot_dimension_numbers<[1], [0], [0], [1], [0, 0, 1, 1], [], []>} : vector<2x256xf32>, vector<256x512xf32>, vector<2x512xf32> -> vector<2x512xf32>
    %c0_96 = arith.constant 0 : index
    %c0_97 = arith.constant 0 : index
    %c0_98 = arith.constant 0 : index
    %172 = vector.load %arg4[%c0_96, %c0_97, %c0_98] : memref<1x128x512xf32, #tpu.memory_space<vmem>>, vector<1x128x512xf32>
    %173 = vector.shape_cast %172 : vector<1x128x512xf32> to vector<128x512xf32>
    %cst_99 = arith.constant dense<0.000000e+00> : vector<2x512xf32>
    %174 = tpu.matmul %164, %173, %cst_99 {dimension_numbers = #tpu.dot_dimension_numbers<[1], [0], [0], [1], [0, 0, 1, 1], [], []>} : vector<2x128xf32>, vector<128x512xf32>, vector<2x512xf32> -> vector<2x512xf32>
    %175 = arith.addf %171, %174 : vector<2x512xf32>
    %c0_100 = arith.constant 0 : index
    %c0_101 = arith.constant 0 : index
    %c0_102 = arith.constant 0 : index
    %176 = vector.load %arg5[%c0_100, %c0_101, %c0_102] : memref<1x1x512xf32, #tpu.memory_space<vmem>>, vector<1x1x512xf32>
    %177 = vector.shape_cast %176 : vector<1x1x512xf32> to vector<1x512xf32>
    %178 = vector.broadcast %177 : vector<1x512xf32> to vector<2x512xf32>
    %179 = arith.addf %175, %178 : vector<2x512xf32>
    %180 = vector.extract_strided_slice %179 {offsets = [0, 0], sizes = [2, 128], strides = [1, 1]} : vector<2x512xf32> to vector<2x128xf32>
    %181 = arith.negf %180 : vector<2x128xf32>
    %182 = math.exp %181 : vector<2x128xf32>
    %cst_103 = arith.constant 1.000000e+00 : f32
    %183 = vector.broadcast %cst_103 : f32 to vector<2x128xf32>
    %184 = arith.addf %183, %182 : vector<2x128xf32>
    %185 = arith.divf %183, %184 : vector<2x128xf32>
    %186 = vector.extract_strided_slice %179 {offsets = [0, 128], sizes = [2, 128], strides = [1, 1]} : vector<2x512xf32> to vector<2x128xf32>
    %187 = arith.negf %186 : vector<2x128xf32>
    %188 = math.exp %187 : vector<2x128xf32>
    %cst_104 = arith.constant 1.000000e+00 : f32
    %189 = vector.broadcast %cst_104 : f32 to vector<2x128xf32>
    %190 = arith.addf %189, %188 : vector<2x128xf32>
    %191 = arith.divf %189, %190 : vector<2x128xf32>
    %192 = vector.extract_strided_slice %179 {offsets = [0, 256], sizes = [2, 128], strides = [1, 1]} : vector<2x512xf32> to vector<2x128xf32>
    %193 = math.tanh %192 : vector<2x128xf32>
    %194 = vector.extract_strided_slice %179 {offsets = [0, 384], sizes = [2, 128], strides = [1, 1]} : vector<2x512xf32> to vector<2x128xf32>
    %195 = arith.negf %194 : vector<2x128xf32>
    %196 = math.exp %195 : vector<2x128xf32>
    %cst_105 = arith.constant 1.000000e+00 : f32
    %197 = vector.broadcast %cst_105 : f32 to vector<2x128xf32>
    %198 = arith.addf %197, %196 : vector<2x128xf32>
    %199 = arith.divf %197, %198 : vector<2x128xf32>
    %200 = arith.mulf %191, %165 : vector<2x128xf32>
    %201 = arith.mulf %185, %193 : vector<2x128xf32>
    %202 = arith.addf %200, %201 : vector<2x128xf32>
    %203 = math.tanh %202 : vector<2x128xf32>
    %204 = arith.mulf %199, %203 : vector<2x128xf32>
    %c0_106 = arith.constant 0 : index
    %c0_107 = arith.constant 0 : index
    %205 = vector.load %arg8[%c0_106, %c0_107] : memref<2x128xf32, #tpu.memory_space<vmem>>, vector<2x128xf32>
    tpu.vector_store %arg8[%c0_106, %c0_107], %202 {strides = array<i32>} : memref<2x128xf32, #tpu.memory_space<vmem>>, vector<2x128xf32>,
    %c0_108 = arith.constant 0 : index
    %c0_109 = arith.constant 0 : index
    %206 = vector.load %arg7[%c0_108, %c0_109] : memref<2x128xf32, #tpu.memory_space<vmem>>, vector<2x128xf32>
    tpu.vector_store %arg7[%c0_108, %c0_109], %204 {strides = array<i32>} : memref<2x128xf32, #tpu.memory_space<vmem>>, vector<2x128xf32>,
    %207 = arith.index_cast %163 : i32 to index
    %c0_110 = arith.constant 0 : index
    %c0_111 = arith.constant 0 : index
    %208 = vector.load %arg6[%207, %c0_110, %c0_111] : memref<4x2x128xf32, #tpu.memory_space<vmem>>, vector<1x2x128xf32>
    %209 = vector.shape_cast %208 : vector<1x2x128xf32> to vector<2x128xf32>
    %210 = vector.shape_cast %204 : vector<2x128xf32> to vector<1x2x128xf32>
    tpu.vector_store %arg6[%207, %c0_110, %c0_111], %210 {strides = array<i32>} : memref<4x2x128xf32, #tpu.memory_space<vmem>>, vector<1x2x128xf32>,
    %c4_i32 = arith.constant 4 : i32
    return
  }
  func.func @transform_0(%arg0: i32, %arg1: i32) -> (i32, i32, i32) {
    %c1_i32 = arith.constant 1 : i32
    %0 = arith.muli %arg0, %c1_i32 : i32
    %c2_i32 = arith.constant 2 : i32
    %1 = arith.muli %c2_i32, %arg0 : i32
    %c1_i32_0 = arith.constant 1 : i32
    %2 = arith.subi %c1_i32_0, %1 : i32
    %3 = arith.muli %2, %arg1 : i32
    %4 = arith.addi %0, %3 : i32
    %c0_i32 = arith.constant 0 : i32
    %c0_i32_1 = arith.constant 0 : i32
    %c0_i32_2 = arith.constant 0 : i32
    return %4, %c0_i32, %c0_i32_1 : i32, i32, i32
  }
  func.func @transform_1(%arg0: i32, %arg1: i32) -> (i32, i32, i32) {
    %c0_i32 = arith.constant 0 : i32
    %c0_i32_0 = arith.constant 0 : i32
    %c0_i32_1 = arith.constant 0 : i32
    return %arg0, %c0_i32, %c0_i32_0 : i32, i32, i32
  }
  func.func @transform_2(%arg0: i32, %arg1: i32) -> (i32, i32, i32) {
    %c0_i32 = arith.constant 0 : i32
    %c0_i32_0 = arith.constant 0 : i32
    %c0_i32_1 = arith.constant 0 : i32
    return %arg0, %c0_i32, %c0_i32_0 : i32, i32, i32
  }
  func.func @transform_3(%arg0: i32, %arg1: i32) -> (i32, i32, i32) {
    %c0_i32 = arith.constant 0 : i32
    %c0_i32_0 = arith.constant 0 : i32
    %c0_i32_1 = arith.constant 0 : i32
    return %arg0, %c0_i32, %c0_i32_0 : i32, i32, i32
  }
  func.func @transform_4(%arg0: i32, %arg1: i32) -> (i32, i32, i32) {
    %c1_i32 = arith.constant 1 : i32
    %0 = arith.muli %arg0, %c1_i32 : i32
    %c2_i32 = arith.constant 2 : i32
    %1 = arith.muli %c2_i32, %arg0 : i32
    %c1_i32_0 = arith.constant 1 : i32
    %2 = arith.subi %c1_i32_0, %1 : i32
    %3 = arith.muli %2, %arg1 : i32
    %4 = arith.addi %0, %3 : i32
    %c0_i32 = arith.constant 0 : i32
    %c0_i32_1 = arith.constant 0 : i32
    return %4, %c0_i32, %arg0 : i32, i32, i32
  }
}

module attributes {stable_mosaic.version = 11 : i64} {
  func.func @_bilstm_kernel(%arg0: i32, %arg1: i32, %arg2: memref<4x2x16xf32, #tpu.memory_space<vmem>>, %arg3: memref<1x16x512xf32, #tpu.memory_space<vmem>>, %arg4: memref<1x128x512xf32, #tpu.memory_space<vmem>>, %arg5: memref<1x1x512xf32, #tpu.memory_space<vmem>>, %arg6: memref<4x2x128xf32, #tpu.memory_space<vmem>>, %arg7: memref<2x128xf32, #tpu.memory_space<vmem>>, %arg8: memref<2x128xf32, #tpu.memory_space<vmem>>) attributes {dimension_semantics = [#tpu.dimension_semantics<parallel>, #tpu.dimension_semantics<arbitrary>], iteration_bounds = array<i64: 2, 2>, scalar_prefetch = 0 : i64, scratch_operands = 2 : i64, tpu.core_type = #tpu.core_type<tc>, window_params = [{transform_indices = @transform_0, window_bounds = array<i64: 4, 2, 16>}, {transform_indices = @transform_1, window_bounds = array<i64: 1, 16, 512>}, {transform_indices = @transform_2, window_bounds = array<i64: 1, 128, 512>}, {transform_indices = @transform_3, window_bounds = array<i64: 1, 1, 512>}, {transform_indices = @transform_4, window_bounds = array<i64: 4, 2, 128>}]} {
    %c0_i32 = arith.constant 0 : i32
    %0 = arith.cmpi eq, %arg1, %c0_i32 : i32
    %1 = arith.extui %0 : i1 to i32
    %c0_i32_0 = arith.constant 0 : i32
    %2 = arith.cmpi ne, %1, %c0_i32_0 : i32
    scf.if %2 {
      %cst_112 = arith.constant 0.000000e+00 : f32
      %211 = vector.broadcast %cst_112 : f32 to vector<2x128xf32>
      %c0_113 = arith.constant 0 : index
      %c0_114 = arith.constant 0 : index
      %212 = vector.load %arg7[%c0_113, %c0_114] : memref<2x128xf32, #tpu.memory_space<vmem>>, vector<2x128xf32>
      tpu.vector_store %arg7[%c0_113, %c0_114], %211 {strides = array<i32>} : memref<2x128xf32, #tpu.memory_space<vmem>>, vector<2x128xf32>,
      %cst_115 = arith.constant 0.000000e+00 : f32
      %213 = vector.broadcast %cst_115 : f32 to vector<2x128xf32>
      %c0_116 = arith.constant 0 : index
      %c0_117 = arith.constant 0 : index
      %214 = vector.load %arg8[%c0_116, %c0_117] : memref<2x128xf32, #tpu.memory_space<vmem>>, vector<2x128xf32>
      tpu.vector_store %arg8[%c0_116, %c0_117], %213 {strides = array<i32>} : memref<2x128xf32, #tpu.memory_space<vmem>>, vector<2x128xf32>,
    } else {
    }
    %c0_i32_1 = arith.constant 0 : i32
    %c1_i32 = arith.constant 1 : i32
    %3 = arith.subi %c1_i32, %arg0 : i32
    %4 = arith.muli %3, %c0_i32_1 : i32
    %c3_i32 = arith.constant 3 : i32
    %5 = arith.subi %c3_i32, %c0_i32_1 : i32
    %6 = arith.muli %arg0, %5 : i32
    %7 = arith.addi %4, %6 : i32
    %c0 = arith.constant 0 : index
    %c0_2 = arith.constant 0 : index
    %8 = vector.load %arg7[%c0, %c0_2] : memref<2x128xf32, #tpu.memory_space<vmem>>, vector<2x128xf32>
    %c0_3 = arith.constant 0 : index
    %c0_4 = arith.constant 0 : index
    %9 = vector.load %arg8[%c0_3, %c0_4] : memref<2x128xf32, #tpu.memory_space<vmem>>, vector<2x128xf32>
    %10 = arith.index_cast %7 : i32 to index
    %c0_5 = arith.constant 0 : index
    %c0_6 = arith.constant 0 : index
    %11 = vector.load %arg2[%10, %c0_5, %c0_6] : memref<4x2x16xf32, #tpu.memory_space<vmem>>, vector<1x2x16xf32>
    %12 = vector.shape_cast %11 : vector<1x2x16xf32> to vector<2x16xf32>
    %c0_7 = arith.constant 0 : index
    %c0_8 = arith.constant 0 : index
    %c0_9 = arith.constant 0 : index
    %13 = vector.load %arg3[%c0_7, %c0_8, %c0_9] : memref<1x16x512xf32, #tpu.memory_space<vmem>>, vector<1x16x512xf32>
    %14 = vector.shape_cast %13 : vector<1x16x512xf32> to vector<16x512xf32>
    %cst = arith.constant dense<0.000000e+00> : vector<2x512xf32>
    %15 = tpu.matmul %12, %14, %cst {dimension_numbers = #tpu.dot_dimension_numbers<[1], [0], [0], [1], [0, 0, 1, 1], [], []>} : vector<2x16xf32>, vector<16x512xf32>, vector<2x512xf32> -> vector<2x512xf32>
    %c0_10 = arith.constant 0 : index
    %c0_11 = arith.constant 0 : index
    %c0_12 = arith.constant 0 : index
    %16 = vector.load %arg4[%c0_10, %c0_11, %c0_12] : memref<1x128x512xf32, #tpu.memory_space<vmem>>, vector<1x128x512xf32>
    %17 = vector.shape_cast %16 : vector<1x128x512xf32> to vector<128x512xf32>
    %cst_13 = arith.constant dense<0.000000e+00> : vector<2x512xf32>
    %18 = tpu.matmul %8, %17, %cst_13 {dimension_numbers = #tpu.dot_dimension_numbers<[1], [0], [0], [1], [0, 0, 1, 1], [], []>} : vector<2x128xf32>, vector<128x512xf32>, vector<2x512xf32> -> vector<2x512xf32>
    %19 = arith.addf %15, %18 : vector<2x512xf32>
    %c0_14 = arith.constant 0 : index
    %c0_15 = arith.constant 0 : index
    %c0_16 = arith.constant 0 : index
    %20 = vector.load %arg5[%c0_14, %c0_15, %c0_16] : memref<1x1x512xf32, #tpu.memory_space<vmem>>, vector<1x1x512xf32>
    %21 = vector.shape_cast %20 : vector<1x1x512xf32> to vector<1x512xf32>
    %22 = vector.broadcast %21 : vector<1x512xf32> to vector<2x512xf32>
    %23 = arith.addf %19, %22 : vector<2x512xf32>
    %24 = vector.extract_strided_slice %23 {offsets = [0, 0], sizes = [2, 128], strides = [1, 1]} : vector<2x512xf32> to vector<2x128xf32>
    %25 = arith.negf %24 : vector<2x128xf32>
    %26 = math.exp %25 : vector<2x128xf32>
    %cst_17 = arith.constant 1.000000e+00 : f32
    %27 = vector.broadcast %cst_17 : f32 to vector<2x128xf32>
    %28 = arith.addf %27, %26 : vector<2x128xf32>
    %29 = arith.divf %27, %28 : vector<2x128xf32>
    %30 = vector.extract_strided_slice %23 {offsets = [0, 128], sizes = [2, 128], strides = [1, 1]} : vector<2x512xf32> to vector<2x128xf32>
    %31 = arith.negf %30 : vector<2x128xf32>
    %32 = math.exp %31 : vector<2x128xf32>
    %cst_18 = arith.constant 1.000000e+00 : f32
    %33 = vector.broadcast %cst_18 : f32 to vector<2x128xf32>
    %34 = arith.addf %33, %32 : vector<2x128xf32>
    %35 = arith.divf %33, %34 : vector<2x128xf32>
    %36 = vector.extract_strided_slice %23 {offsets = [0, 256], sizes = [2, 128], strides = [1, 1]} : vector<2x512xf32> to vector<2x128xf32>
    %37 = math.tanh %36 : vector<2x128xf32>
    %38 = vector.extract_strided_slice %23 {offsets = [0, 384], sizes = [2, 128], strides = [1, 1]} : vector<2x512xf32> to vector<2x128xf32>
    %39 = arith.negf %38 : vector<2x128xf32>
    %40 = math.exp %39 : vector<2x128xf32>
    %cst_19 = arith.constant 1.000000e+00 : f32
    %41 = vector.broadcast %cst_19 : f32 to vector<2x128xf32>
    %42 = arith.addf %41, %40 : vector<2x128xf32>
    %43 = arith.divf %41, %42 : vector<2x128xf32>
    %44 = arith.mulf %35, %9 : vector<2x128xf32>
    %45 = arith.mulf %29, %37 : vector<2x128xf32>
    %46 = arith.addf %44, %45 : vector<2x128xf32>
    %47 = math.tanh %46 : vector<2x128xf32>
    %48 = arith.mulf %43, %47 : vector<2x128xf32>
    %c0_20 = arith.constant 0 : index
    %c0_21 = arith.constant 0 : index
    %49 = vector.load %arg8[%c0_20, %c0_21] : memref<2x128xf32, #tpu.memory_space<vmem>>, vector<2x128xf32>
    tpu.vector_store %arg8[%c0_20, %c0_21], %46 {strides = array<i32>} : memref<2x128xf32, #tpu.memory_space<vmem>>, vector<2x128xf32>,
    %c0_22 = arith.constant 0 : index
    %c0_23 = arith.constant 0 : index
    %50 = vector.load %arg7[%c0_22, %c0_23] : memref<2x128xf32, #tpu.memory_space<vmem>>, vector<2x128xf32>
    tpu.vector_store %arg7[%c0_22, %c0_23], %48 {strides = array<i32>} : memref<2x128xf32, #tpu.memory_space<vmem>>, vector<2x128xf32>,
    %51 = arith.index_cast %7 : i32 to index
    %c0_24 = arith.constant 0 : index
    %c0_25 = arith.constant 0 : index
    %52 = vector.load %arg6[%51, %c0_24, %c0_25] : memref<4x2x128xf32, #tpu.memory_space<vmem>>, vector<1x2x128xf32>
    %53 = vector.shape_cast %52 : vector<1x2x128xf32> to vector<2x128xf32>
    %54 = vector.shape_cast %48 : vector<2x128xf32> to vector<1x2x128xf32>
    tpu.vector_store %arg6[%51, %c0_24, %c0_25], %54 {strides = array<i32>} : memref<4x2x128xf32, #tpu.memory_space<vmem>>, vector<1x2x128xf32>,
    %c1_i32_26 = arith.constant 1 : i32
    %c1_i32_27 = arith.constant 1 : i32
    %55 = arith.subi %c1_i32_27, %arg0 : i32
    %56 = arith.muli %55, %c1_i32_26 : i32
    %c3_i32_28 = arith.constant 3 : i32
    %57 = arith.subi %c3_i32_28, %c1_i32_26 : i32
    %58 = arith.muli %arg0, %57 : i32
    %59 = arith.addi %56, %58 : i32
    %c0_29 = arith.constant 0 : index
    %c0_30 = arith.constant 0 : index
    %60 = vector.load %arg7[%c0_29, %c0_30] : memref<2x128xf32, #tpu.memory_space<vmem>>, vector<2x128xf32>
    %c0_31 = arith.constant 0 : index
    %c0_32 = arith.constant 0 : index
    %61 = vector.load %arg8[%c0_31, %c0_32] : memref<2x128xf32, #tpu.memory_space<vmem>>, vector<2x128xf32>
    %62 = arith.index_cast %59 : i32 to index
    %c0_33 = arith.constant 0 : index
    %c0_34 = arith.constant 0 : index
    %63 = vector.load %arg2[%62, %c0_33, %c0_34] : memref<4x2x16xf32, #tpu.memory_space<vmem>>, vector<1x2x16xf32>
    %64 = vector.shape_cast %63 : vector<1x2x16xf32> to vector<2x16xf32>
    %c0_35 = arith.constant 0 : index
    %c0_36 = arith.constant 0 : index
    %c0_37 = arith.constant 0 : index
    %65 = vector.load %arg3[%c0_35, %c0_36, %c0_37] : memref<1x16x512xf32, #tpu.memory_space<vmem>>, vector<1x16x512xf32>
    %66 = vector.shape_cast %65 : vector<1x16x512xf32> to vector<16x512xf32>
    %cst_38 = arith.constant dense<0.000000e+00> : vector<2x512xf32>
    %67 = tpu.matmul %64, %66, %cst_38 {dimension_numbers = #tpu.dot_dimension_numbers<[1], [0], [0], [1], [0, 0, 1, 1], [], []>} : vector<2x16xf32>, vector<16x512xf32>, vector<2x512xf32> -> vector<2x512xf32>
    %c0_39 = arith.constant 0 : index
    %c0_40 = arith.constant 0 : index
    %c0_41 = arith.constant 0 : index
    %68 = vector.load %arg4[%c0_39, %c0_40, %c0_41] : memref<1x128x512xf32, #tpu.memory_space<vmem>>, vector<1x128x512xf32>
    %69 = vector.shape_cast %68 : vector<1x128x512xf32> to vector<128x512xf32>
    %cst_42 = arith.constant dense<0.000000e+00> : vector<2x512xf32>
    %70 = tpu.matmul %60, %69, %cst_42 {dimension_numbers = #tpu.dot_dimension_numbers<[1], [0], [0], [1], [0, 0, 1, 1], [], []>} : vector<2x128xf32>, vector<128x512xf32>, vector<2x512xf32> -> vector<2x512xf32>
    %71 = arith.addf %67, %70 : vector<2x512xf32>
    %c0_43 = arith.constant 0 : index
    %c0_44 = arith.constant 0 : index
    %c0_45 = arith.constant 0 : index
    %72 = vector.load %arg5[%c0_43, %c0_44, %c0_45] : memref<1x1x512xf32, #tpu.memory_space<vmem>>, vector<1x1x512xf32>
    %73 = vector.shape_cast %72 : vector<1x1x512xf32> to vector<1x512xf32>
    %74 = vector.broadcast %73 : vector<1x512xf32> to vector<2x512xf32>
    %75 = arith.addf %71, %74 : vector<2x512xf32>
    %76 = vector.extract_strided_slice %75 {offsets = [0, 0], sizes = [2, 128], strides = [1, 1]} : vector<2x512xf32> to vector<2x128xf32>
    %77 = arith.negf %76 : vector<2x128xf32>
    %78 = math.exp %77 : vector<2x128xf32>
    %cst_46 = arith.constant 1.000000e+00 : f32
    %79 = vector.broadcast %cst_46 : f32 to vector<2x128xf32>
    %80 = arith.addf %79, %78 : vector<2x128xf32>
    %81 = arith.divf %79, %80 : vector<2x128xf32>
    %82 = vector.extract_strided_slice %75 {offsets = [0, 128], sizes = [2, 128], strides = [1, 1]} : vector<2x512xf32> to vector<2x128xf32>
    %83 = arith.negf %82 : vector<2x128xf32>
    %84 = math.exp %83 : vector<2x128xf32>
    %cst_47 = arith.constant 1.000000e+00 : f32
    %85 = vector.broadcast %cst_47 : f32 to vector<2x128xf32>
    %86 = arith.addf %85, %84 : vector<2x128xf32>
    %87 = arith.divf %85, %86 : vector<2x128xf32>
    %88 = vector.extract_strided_slice %75 {offsets = [0, 256], sizes = [2, 128], strides = [1, 1]} : vector<2x512xf32> to vector<2x128xf32>
    %89 = math.tanh %88 : vector<2x128xf32>
    %90 = vector.extract_strided_slice %75 {offsets = [0, 384], sizes = [2, 128], strides = [1, 1]} : vector<2x512xf32> to vector<2x128xf32>
    %91 = arith.negf %90 : vector<2x128xf32>
    %92 = math.exp %91 : vector<2x128xf32>
    %cst_48 = arith.constant 1.000000e+00 : f32
    %93 = vector.broadcast %cst_48 : f32 to vector<2x128xf32>
    %94 = arith.addf %93, %92 : vector<2x128xf32>
    %95 = arith.divf %93, %94 : vector<2x128xf32>
    %96 = arith.mulf %87, %61 : vector<2x128xf32>
    %97 = arith.mulf %81, %89 : vector<2x128xf32>
    %98 = arith.addf %96, %97 : vector<2x128xf32>
    %99 = math.tanh %98 : vector<2x128xf32>
    %100 = arith.mulf %95, %99 : vector<2x128xf32>
    %c0_49 = arith.constant 0 : index
    %c0_50 = arith.constant 0 : index
    %101 = vector.load %arg8[%c0_49, %c0_50] : memref<2x128xf32, #tpu.memory_space<vmem>>, vector<2x128xf32>
    tpu.vector_store %arg8[%c0_49, %c0_50], %98 {strides = array<i32>} : memref<2x128xf32, #tpu.memory_space<vmem>>, vector<2x128xf32>,
    %c0_51 = arith.constant 0 : index
    %c0_52 = arith.constant 0 : index
    %102 = vector.load %arg7[%c0_51, %c0_52] : memref<2x128xf32, #tpu.memory_space<vmem>>, vector<2x128xf32>
    tpu.vector_store %arg7[%c0_51, %c0_52], %100 {strides = array<i32>} : memref<2x128xf32, #tpu.memory_space<vmem>>, vector<2x128xf32>,
    %103 = arith.index_cast %59 : i32 to index
    %c0_53 = arith.constant 0 : index
    %c0_54 = arith.constant 0 : index
    %104 = vector.load %arg6[%103, %c0_53, %c0_54] : memref<4x2x128xf32, #tpu.memory_space<vmem>>, vector<1x2x128xf32>
    %105 = vector.shape_cast %104 : vector<1x2x128xf32> to vector<2x128xf32>
    %106 = vector.shape_cast %100 : vector<2x128xf32> to vector<1x2x128xf32>
    tpu.vector_store %arg6[%103, %c0_53, %c0_54], %106 {strides = array<i32>} : memref<4x2x128xf32, #tpu.memory_space<vmem>>, vector<1x2x128xf32>,
    %c2_i32 = arith.constant 2 : i32
    %c1_i32_55 = arith.constant 1 : i32
    %107 = arith.subi %c1_i32_55, %arg0 : i32
    %108 = arith.muli %107, %c2_i32 : i32
    %c3_i32_56 = arith.constant 3 : i32
    %109 = arith.subi %c3_i32_56, %c2_i32 : i32
    %110 = arith.muli %arg0, %109 : i32
    %111 = arith.addi %108, %110 : i32
    %c0_57 = arith.constant 0 : index
    %c0_58 = arith.constant 0 : index
    %112 = vector.load %arg7[%c0_57, %c0_58] : memref<2x128xf32, #tpu.memory_space<vmem>>, vector<2x128xf32>
    %c0_59 = arith.constant 0 : index
    %c0_60 = arith.constant 0 : index
    %113 = vector.load %arg8[%c0_59, %c0_60] : memref<2x128xf32, #tpu.memory_space<vmem>>, vector<2x128xf32>
    %114 = arith.index_cast %111 : i32 to index
    %c0_61 = arith.constant 0 : index
    %c0_62 = arith.constant 0 : index
    %115 = vector.load %arg2[%114, %c0_61, %c0_62] : memref<4x2x16xf32, #tpu.memory_space<vmem>>, vector<1x2x16xf32>
    %116 = vector.shape_cast %115 : vector<1x2x16xf32> to vector<2x16xf32>
    %c0_63 = arith.constant 0 : index
    %c0_64 = arith.constant 0 : index
    %c0_65 = arith.constant 0 : index
    %117 = vector.load %arg3[%c0_63, %c0_64, %c0_65] : memref<1x16x512xf32, #tpu.memory_space<vmem>>, vector<1x16x512xf32>
    %118 = vector.shape_cast %117 : vector<1x16x512xf32> to vector<16x512xf32>
    %cst_66 = arith.constant dense<0.000000e+00> : vector<2x512xf32>
    %119 = tpu.matmul %116, %118, %cst_66 {dimension_numbers = #tpu.dot_dimension_numbers<[1], [0], [0], [1], [0, 0, 1, 1], [], []>} : vector<2x16xf32>, vector<16x512xf32>, vector<2x512xf32> -> vector<2x512xf32>
    %c0_67 = arith.constant 0 : index
    %c0_68 = arith.constant 0 : index
    %c0_69 = arith.constant 0 : index
    %120 = vector.load %arg4[%c0_67, %c0_68, %c0_69] : memref<1x128x512xf32, #tpu.memory_space<vmem>>, vector<1x128x512xf32>
    %121 = vector.shape_cast %120 : vector<1x128x512xf32> to vector<128x512xf32>
    %cst_70 = arith.constant dense<0.000000e+00> : vector<2x512xf32>
    %122 = tpu.matmul %112, %121, %cst_70 {dimension_numbers = #tpu.dot_dimension_numbers<[1], [0], [0], [1], [0, 0, 1, 1], [], []>} : vector<2x128xf32>, vector<128x512xf32>, vector<2x512xf32> -> vector<2x512xf32>
    %123 = arith.addf %119, %122 : vector<2x512xf32>
    %c0_71 = arith.constant 0 : index
    %c0_72 = arith.constant 0 : index
    %c0_73 = arith.constant 0 : index
    %124 = vector.load %arg5[%c0_71, %c0_72, %c0_73] : memref<1x1x512xf32, #tpu.memory_space<vmem>>, vector<1x1x512xf32>
    %125 = vector.shape_cast %124 : vector<1x1x512xf32> to vector<1x512xf32>
    %126 = vector.broadcast %125 : vector<1x512xf32> to vector<2x512xf32>
    %127 = arith.addf %123, %126 : vector<2x512xf32>
    %128 = vector.extract_strided_slice %127 {offsets = [0, 0], sizes = [2, 128], strides = [1, 1]} : vector<2x512xf32> to vector<2x128xf32>
    %129 = arith.negf %128 : vector<2x128xf32>
    %130 = math.exp %129 : vector<2x128xf32>
    %cst_74 = arith.constant 1.000000e+00 : f32
    %131 = vector.broadcast %cst_74 : f32 to vector<2x128xf32>
    %132 = arith.addf %131, %130 : vector<2x128xf32>
    %133 = arith.divf %131, %132 : vector<2x128xf32>
    %134 = vector.extract_strided_slice %127 {offsets = [0, 128], sizes = [2, 128], strides = [1, 1]} : vector<2x512xf32> to vector<2x128xf32>
    %135 = arith.negf %134 : vector<2x128xf32>
    %136 = math.exp %135 : vector<2x128xf32>
    %cst_75 = arith.constant 1.000000e+00 : f32
    %137 = vector.broadcast %cst_75 : f32 to vector<2x128xf32>
    %138 = arith.addf %137, %136 : vector<2x128xf32>
    %139 = arith.divf %137, %138 : vector<2x128xf32>
    %140 = vector.extract_strided_slice %127 {offsets = [0, 256], sizes = [2, 128], strides = [1, 1]} : vector<2x512xf32> to vector<2x128xf32>
    %141 = math.tanh %140 : vector<2x128xf32>
    %142 = vector.extract_strided_slice %127 {offsets = [0, 384], sizes = [2, 128], strides = [1, 1]} : vector<2x512xf32> to vector<2x128xf32>
    %143 = arith.negf %142 : vector<2x128xf32>
    %144 = math.exp %143 : vector<2x128xf32>
    %cst_76 = arith.constant 1.000000e+00 : f32
    %145 = vector.broadcast %cst_76 : f32 to vector<2x128xf32>
    %146 = arith.addf %145, %144 : vector<2x128xf32>
    %147 = arith.divf %145, %146 : vector<2x128xf32>
    %148 = arith.mulf %139, %113 : vector<2x128xf32>
    %149 = arith.mulf %133, %141 : vector<2x128xf32>
    %150 = arith.addf %148, %149 : vector<2x128xf32>
    %151 = math.tanh %150 : vector<2x128xf32>
    %152 = arith.mulf %147, %151 : vector<2x128xf32>
    %c0_77 = arith.constant 0 : index
    %c0_78 = arith.constant 0 : index
    %153 = vector.load %arg8[%c0_77, %c0_78] : memref<2x128xf32, #tpu.memory_space<vmem>>, vector<2x128xf32>
    tpu.vector_store %arg8[%c0_77, %c0_78], %150 {strides = array<i32>} : memref<2x128xf32, #tpu.memory_space<vmem>>, vector<2x128xf32>,
    %c0_79 = arith.constant 0 : index
    %c0_80 = arith.constant 0 : index
    %154 = vector.load %arg7[%c0_79, %c0_80] : memref<2x128xf32, #tpu.memory_space<vmem>>, vector<2x128xf32>
    tpu.vector_store %arg7[%c0_79, %c0_80], %152 {strides = array<i32>} : memref<2x128xf32, #tpu.memory_space<vmem>>, vector<2x128xf32>,
    %155 = arith.index_cast %111 : i32 to index
    %c0_81 = arith.constant 0 : index
    %c0_82 = arith.constant 0 : index
    %156 = vector.load %arg6[%155, %c0_81, %c0_82] : memref<4x2x128xf32, #tpu.memory_space<vmem>>, vector<1x2x128xf32>
    %157 = vector.shape_cast %156 : vector<1x2x128xf32> to vector<2x128xf32>
    %158 = vector.shape_cast %152 : vector<2x128xf32> to vector<1x2x128xf32>
    tpu.vector_store %arg6[%155, %c0_81, %c0_82], %158 {strides = array<i32>} : memref<4x2x128xf32, #tpu.memory_space<vmem>>, vector<1x2x128xf32>,
    %c3_i32_83 = arith.constant 3 : i32
    %c1_i32_84 = arith.constant 1 : i32
    %159 = arith.subi %c1_i32_84, %arg0 : i32
    %160 = arith.muli %159, %c3_i32_83 : i32
    %c3_i32_85 = arith.constant 3 : i32
    %161 = arith.subi %c3_i32_85, %c3_i32_83 : i32
    %162 = arith.muli %arg0, %161 : i32
    %163 = arith.addi %160, %162 : i32
    %c0_86 = arith.constant 0 : index
    %c0_87 = arith.constant 0 : index
    %164 = vector.load %arg7[%c0_86, %c0_87] : memref<2x128xf32, #tpu.memory_space<vmem>>, vector<2x128xf32>
    %c0_88 = arith.constant 0 : index
    %c0_89 = arith.constant 0 : index
    %165 = vector.load %arg8[%c0_88, %c0_89] : memref<2x128xf32, #tpu.memory_space<vmem>>, vector<2x128xf32>
    %166 = arith.index_cast %163 : i32 to index
    %c0_90 = arith.constant 0 : index
    %c0_91 = arith.constant 0 : index
    %167 = vector.load %arg2[%166, %c0_90, %c0_91] : memref<4x2x16xf32, #tpu.memory_space<vmem>>, vector<1x2x16xf32>
    %168 = vector.shape_cast %167 : vector<1x2x16xf32> to vector<2x16xf32>
    %c0_92 = arith.constant 0 : index
    %c0_93 = arith.constant 0 : index
    %c0_94 = arith.constant 0 : index
    %169 = vector.load %arg3[%c0_92, %c0_93, %c0_94] : memref<1x16x512xf32, #tpu.memory_space<vmem>>, vector<1x16x512xf32>
    %170 = vector.shape_cast %169 : vector<1x16x512xf32> to vector<16x512xf32>
    %cst_95 = arith.constant dense<0.000000e+00> : vector<2x512xf32>
    %171 = tpu.matmul %168, %170, %cst_95 {dimension_numbers = #tpu.dot_dimension_numbers<[1], [0], [0], [1], [0, 0, 1, 1], [], []>} : vector<2x16xf32>, vector<16x512xf32>, vector<2x512xf32> -> vector<2x512xf32>
    %c0_96 = arith.constant 0 : index
    %c0_97 = arith.constant 0 : index
    %c0_98 = arith.constant 0 : index
    %172 = vector.load %arg4[%c0_96, %c0_97, %c0_98] : memref<1x128x512xf32, #tpu.memory_space<vmem>>, vector<1x128x512xf32>
    %173 = vector.shape_cast %172 : vector<1x128x512xf32> to vector<128x512xf32>
    %cst_99 = arith.constant dense<0.000000e+00> : vector<2x512xf32>
    %174 = tpu.matmul %164, %173, %cst_99 {dimension_numbers = #tpu.dot_dimension_numbers<[1], [0], [0], [1], [0, 0, 1, 1], [], []>} : vector<2x128xf32>, vector<128x512xf32>, vector<2x512xf32> -> vector<2x512xf32>
    %175 = arith.addf %171, %174 : vector<2x512xf32>
    %c0_100 = arith.constant 0 : index
    %c0_101 = arith.constant 0 : index
    %c0_102 = arith.constant 0 : index
    %176 = vector.load %arg5[%c0_100, %c0_101, %c0_102] : memref<1x1x512xf32, #tpu.memory_space<vmem>>, vector<1x1x512xf32>
    %177 = vector.shape_cast %176 : vector<1x1x512xf32> to vector<1x512xf32>
    %178 = vector.broadcast %177 : vector<1x512xf32> to vector<2x512xf32>
    %179 = arith.addf %175, %178 : vector<2x512xf32>
    %180 = vector.extract_strided_slice %179 {offsets = [0, 0], sizes = [2, 128], strides = [1, 1]} : vector<2x512xf32> to vector<2x128xf32>
    %181 = arith.negf %180 : vector<2x128xf32>
    %182 = math.exp %181 : vector<2x128xf32>
    %cst_103 = arith.constant 1.000000e+00 : f32
    %183 = vector.broadcast %cst_103 : f32 to vector<2x128xf32>
    %184 = arith.addf %183, %182 : vector<2x128xf32>
    %185 = arith.divf %183, %184 : vector<2x128xf32>
    %186 = vector.extract_strided_slice %179 {offsets = [0, 128], sizes = [2, 128], strides = [1, 1]} : vector<2x512xf32> to vector<2x128xf32>
    %187 = arith.negf %186 : vector<2x128xf32>
    %188 = math.exp %187 : vector<2x128xf32>
    %cst_104 = arith.constant 1.000000e+00 : f32
    %189 = vector.broadcast %cst_104 : f32 to vector<2x128xf32>
    %190 = arith.addf %189, %188 : vector<2x128xf32>
    %191 = arith.divf %189, %190 : vector<2x128xf32>
    %192 = vector.extract_strided_slice %179 {offsets = [0, 256], sizes = [2, 128], strides = [1, 1]} : vector<2x512xf32> to vector<2x128xf32>
    %193 = math.tanh %192 : vector<2x128xf32>
    %194 = vector.extract_strided_slice %179 {offsets = [0, 384], sizes = [2, 128], strides = [1, 1]} : vector<2x512xf32> to vector<2x128xf32>
    %195 = arith.negf %194 : vector<2x128xf32>
    %196 = math.exp %195 : vector<2x128xf32>
    %cst_105 = arith.constant 1.000000e+00 : f32
    %197 = vector.broadcast %cst_105 : f32 to vector<2x128xf32>
    %198 = arith.addf %197, %196 : vector<2x128xf32>
    %199 = arith.divf %197, %198 : vector<2x128xf32>
    %200 = arith.mulf %191, %165 : vector<2x128xf32>
    %201 = arith.mulf %185, %193 : vector<2x128xf32>
    %202 = arith.addf %200, %201 : vector<2x128xf32>
    %203 = math.tanh %202 : vector<2x128xf32>
    %204 = arith.mulf %199, %203 : vector<2x128xf32>
    %c0_106 = arith.constant 0 : index
    %c0_107 = arith.constant 0 : index
    %205 = vector.load %arg8[%c0_106, %c0_107] : memref<2x128xf32, #tpu.memory_space<vmem>>, vector<2x128xf32>
    tpu.vector_store %arg8[%c0_106, %c0_107], %202 {strides = array<i32>} : memref<2x128xf32, #tpu.memory_space<vmem>>, vector<2x128xf32>,
    %c0_108 = arith.constant 0 : index
    %c0_109 = arith.constant 0 : index
    %206 = vector.load %arg7[%c0_108, %c0_109] : memref<2x128xf32, #tpu.memory_space<vmem>>, vector<2x128xf32>
    tpu.vector_store %arg7[%c0_108, %c0_109], %204 {strides = array<i32>} : memref<2x128xf32, #tpu.memory_space<vmem>>, vector<2x128xf32>,
    %207 = arith.index_cast %163 : i32 to index
    %c0_110 = arith.constant 0 : index
    %c0_111 = arith.constant 0 : index
    %208 = vector.load %arg6[%207, %c0_110, %c0_111] : memref<4x2x128xf32, #tpu.memory_space<vmem>>, vector<1x2x128xf32>
    %209 = vector.shape_cast %208 : vector<1x2x128xf32> to vector<2x128xf32>
    %210 = vector.shape_cast %204 : vector<2x128xf32> to vector<1x2x128xf32>
    tpu.vector_store %arg6[%207, %c0_110, %c0_111], %210 {strides = array<i32>} : memref<4x2x128xf32, #tpu.memory_space<vmem>>, vector<1x2x128xf32>,
    %c4_i32 = arith.constant 4 : i32
    return
  }
  func.func @transform_0(%arg0: i32, %arg1: i32) -> (i32, i32, i32) {
    %c1_i32 = arith.constant 1 : i32
    %0 = arith.muli %arg0, %c1_i32 : i32
    %c2_i32 = arith.constant 2 : i32
    %1 = arith.muli %c2_i32, %arg0 : i32
    %c1_i32_0 = arith.constant 1 : i32
    %2 = arith.subi %c1_i32_0, %1 : i32
    %3 = arith.muli %2, %arg1 : i32
    %4 = arith.addi %0, %3 : i32
    %c0_i32 = arith.constant 0 : i32
    %c0_i32_1 = arith.constant 0 : i32
    %c0_i32_2 = arith.constant 0 : i32
    return %4, %c0_i32, %c0_i32_1 : i32, i32, i32
  }
  func.func @transform_1(%arg0: i32, %arg1: i32) -> (i32, i32, i32) {
    %c0_i32 = arith.constant 0 : i32
    %c0_i32_0 = arith.constant 0 : i32
    %c0_i32_1 = arith.constant 0 : i32
    return %arg0, %c0_i32, %c0_i32_0 : i32, i32, i32
  }
  func.func @transform_2(%arg0: i32, %arg1: i32) -> (i32, i32, i32) {
    %c0_i32 = arith.constant 0 : i32
    %c0_i32_0 = arith.constant 0 : i32
    %c0_i32_1 = arith.constant 0 : i32
    return %arg0, %c0_i32, %c0_i32_0 : i32, i32, i32
  }
  func.func @transform_3(%arg0: i32, %arg1: i32) -> (i32, i32, i32) {
    %c0_i32 = arith.constant 0 : i32
    %c0_i32_0 = arith.constant 0 : i32
    %c0_i32_1 = arith.constant 0 : i32
    return %arg0, %c0_i32, %c0_i32_0 : i32, i32, i32
  }
  func.func @transform_4(%arg0: i32, %arg1: i32) -> (i32, i32, i32) {
    %c1_i32 = arith.constant 1 : i32
    %0 = arith.muli %arg0, %c1_i32 : i32
    %c2_i32 = arith.constant 2 : i32
    %1 = arith.muli %c2_i32, %arg0 : i32
    %c1_i32_0 = arith.constant 1 : i32
    %2 = arith.subi %c1_i32_0, %1 : i32
    %3 = arith.muli %2, %arg1 : i32
    %4 = arith.addi %0, %3 : i32
    %c0_i32 = arith.constant 0 : i32
    %c0_i32_1 = arith.constant 0 : i32
    return %4, %c0_i32, %arg0 : i32, i32, i32
  }
}

module attributes {stable_mosaic.version = 11 : i64} {
  func.func @_linear_kernel(%arg0: i32, %arg1: i32, %arg2: memref<16x256xf32, #tpu.memory_space<vmem>>, %arg3: memref<256x128xf32, #tpu.memory_space<vmem>>, %arg4: memref<1x128xf32, #tpu.memory_space<vmem>>, %arg5: memref<16x128xf32, #tpu.memory_space<vmem>>) attributes {dimension_semantics = [#tpu.dimension_semantics<parallel>, #tpu.dimension_semantics<parallel>], iteration_bounds = array<i64: 1, 1>, scalar_prefetch = 0 : i64, scratch_operands = 0 : i64, tpu.core_type = #tpu.core_type<tc>, window_params = [{transform_indices = @transform_0, window_bounds = array<i64: 16, 256>}, {transform_indices = @transform_1, window_bounds = array<i64: 256, 128>}, {transform_indices = @transform_2, window_bounds = array<i64: 1, 128>}, {transform_indices = @transform_3, window_bounds = array<i64: 16, 128>}]} {
    %c0 = arith.constant 0 : index
    %c0_0 = arith.constant 0 : index
    %0 = vector.load %arg2[%c0, %c0_0] : memref<16x256xf32, #tpu.memory_space<vmem>>, vector<16x256xf32>
    %c0_1 = arith.constant 0 : index
    %c0_2 = arith.constant 0 : index
    %1 = vector.load %arg3[%c0_1, %c0_2] : memref<256x128xf32, #tpu.memory_space<vmem>>, vector<256x128xf32>
    %cst = arith.constant dense<0.000000e+00> : vector<16x128xf32>
    %2 = tpu.matmul %0, %1, %cst {dimension_numbers = #tpu.dot_dimension_numbers<[1], [0], [0], [1], [0, 0, 1, 1], [], []>} : vector<16x256xf32>, vector<256x128xf32>, vector<16x128xf32> -> vector<16x128xf32>
    %c0_3 = arith.constant 0 : index
    %c0_4 = arith.constant 0 : index
    %3 = vector.load %arg4[%c0_3, %c0_4] : memref<1x128xf32, #tpu.memory_space<vmem>>, vector<1x128xf32>
    %4 = vector.broadcast %3 : vector<1x128xf32> to vector<16x128xf32>
    %5 = arith.addf %2, %4 : vector<16x128xf32>
    %c0_5 = arith.constant 0 : index
    %c0_6 = arith.constant 0 : index
    %6 = vector.load %arg5[%c0_5, %c0_6] : memref<16x128xf32, #tpu.memory_space<vmem>>, vector<16x128xf32>
    tpu.vector_store %arg5[%c0_5, %c0_6], %5 {strides = array<i32>} : memref<16x128xf32, #tpu.memory_space<vmem>>, vector<16x128xf32>,
    return
  }
  func.func @transform_0(%arg0: i32, %arg1: i32) -> (i32, i32) {
    %c0_i32 = arith.constant 0 : i32
    %c0_i32_0 = arith.constant 0 : i32
    return %arg0, %c0_i32 : i32, i32
  }
  func.func @transform_1(%arg0: i32, %arg1: i32) -> (i32, i32) {
    %c0_i32 = arith.constant 0 : i32
    %c0_i32_0 = arith.constant 0 : i32
    return %c0_i32, %arg1 : i32, i32
  }
  func.func @transform_2(%arg0: i32, %arg1: i32) -> (i32, i32) {
    %c0_i32 = arith.constant 0 : i32
    %c0_i32_0 = arith.constant 0 : i32
    return %c0_i32, %arg1 : i32, i32
  }
  func.func @transform_3(%arg0: i32, %arg1: i32) -> (i32, i32) {
    %c0_i32 = arith.constant 0 : i32
    return %arg0, %arg1 : i32, i32
  }
}

</mosaic_0001>

<llo_original>
// kernel: birnn_forward.4
$region0: #{birnn_forward.4}
  #allocation0 [shape = 'u32[]', space=smem, size = 0x4, offset = 0x4, fixed_abs, tag = 'smem constant byte address 0x4 - core index']
  #allocation1 [shape = 'u32[144,128]{1,0:T(1,128)}', space=vmem, size = 0x12000, scoped, tag = 'internal scratch']
  %s0 = inlined_call_operand.vmem [shape: f32[16,16], index: 0, kind: input, shape index: {}]
  %s1 = inlined_call_operand.hbm [shape: f32[16,16], index: 1, kind: input, shape index: {}]
  %s2 = inlined_call_operand.hbm [shape: f32[1,16], index: 2, kind: input, shape index: {}]
  %s3 = inlined_call_operand.vmem [shape: f32[16,16], index: 3, kind: output, shape index: {}]
  %s4 = sld [smem:[#allocation0]]
  $region30: #{birnn_forward.4} parent=0
    _
  %s6 = ssub.s32 1, %s4
  %s7 = scalar_select 0, %s6, %s4
  $region1: #{birnn_forward.4} parent=0
    #allocation2 [shape = 'u8[8192]{0}', space=vmem, size = 0x2000, scoped, tag = 'input window, operand 1, single buffered']
    #allocation3 [shape = 's32[1]{0}', space=sflag, size = 0x4, scoped, tag = 'scoped memory for birnn_forward.4']
    #allocation4 [shape = 'u8[512]{0}', space=vmem, size = 0x400, scoped, tag = 'input window, operand 2, single buffered']
    #allocation5 [shape = 's32[1]{0}', space=sflag, size = 0x4, scoped, tag = 'scoped memory for birnn_forward.4']
    %8 = vsyncpa [#allocation3], 0
    %9 = vsyncpa [#allocation5], 0
    // Predicated region
    $region2: #{birnn_forward.4} parent=1 // pred_check
      _
    $region3: #{birnn_forward.4} parent=1 // pred_check_branch
      %11 = sbr.rel (0) target = $region5
    $region4: #{birnn_forward.4} parent=1 // pred_region
      _
    $region5: #{birnn_forward.4} parent=1 // pred_fallthru
      _
    // Predicated region
    $region6: #{birnn_forward.4} parent=1 // pred_check
      _
    $region7: #{birnn_forward.4} parent=1 // pred_check_branch
      %13 = sbr.rel (0) target = $region9
    $region8: #{birnn_forward.4} parent=1 // pred_region
      %s15 = ssub.s32 256, 256
      %16 = vsyncadd [#allocation3], %s15
      %s17 = sshll.u32 [#allocation2], 4
      %s18 = int_to_ptr.vmem [resolvable:$true] %s17
      %23 = dma.hbm_to_vmem [thread:$0]  %s1, 256, %s18, [#allocation3], 128, 128, 8
    $region9: #{birnn_forward.4} parent=1 // pred_fallthru
      _
    // Predicated region
    $region10: #{birnn_forward.4} parent=1 // pred_check
      _
    $region11: #{birnn_forward.4} parent=1 // pred_check_branch
      %25 = sbr.rel (0) target = $region13
    $region12: #{birnn_forward.4} parent=1 // pred_region
      %s27 = ssub.s32 16, 16
      %28 = vsyncadd [#allocation5], %s27
      %s30 = sshll.u32 [#allocation4], 4
      %s31 = int_to_ptr.vmem [resolvable:$true] %s30
      %33 = dma.hbm_to_vmem [thread:$0]  %s2, 16, %s31, [#allocation5]
    $region13: #{birnn_forward.4} parent=1 // pred_fallthru
      _
    // Predicated region
    $region14: #{birnn_forward.4} parent=1 // pred_check
      _
    $region15: #{birnn_forward.4} parent=1 // pred_check_branch
      %35 = sbr.rel (0) target = $region17
    $region16: #{birnn_forward.4} parent=1 // pred_region
      %36 = dma.done [#allocation3], 256
    $region17: #{birnn_forward.4} parent=1 // pred_fallthru
      _
    // Predicated region
    $region18: #{birnn_forward.4} parent=1 // pred_check
      _
    $region19: #{birnn_forward.4} parent=1 // pred_check_branch
      %38 = sbr.rel (0) target = $region21
    $region20: #{birnn_forward.4} parent=1 // pred_region
      %39 = dma.done [#allocation5], 16
    $region21: #{birnn_forward.4} parent=1 // pred_fallthru
      _
    %v40 = vld [vmem:[%s0] sm:$0xff]
    %v41 = vld [vmem:[%s0 + $0x8] sm:$0xff]
    %v42 = vld [vmem:[#allocation2] sm:$0xff]
    %v43 = vld [vmem:[#allocation2 + $0x8] sm:$0xff]
    %v44 = vld [vmem:[#allocation4] sm:$0x1]
    %v46 = vlaneseq
    %v47 = vshrl.u32 %v46, 7
    %v48 = vsub.s32 0, %v47
    %v49 = vrot.slane %v44, %v48
    %vm51 = vcmask 130048
    %v53 = vsel %vm51, %v40, 0
    %v56 = vsel %vm51, %v41, 0
    %58 = vmatprep.subr.mxu0 0.0
    %59 = vmatpush1.msra.mxu0 0.0
    %60 = vmatprep.subr.mxu0 0.0
    %61 = vmatpush1.msra.mxu0 0.0
    %62 = vmatprep.subr.mxu0 0.0
    %63 = vmatpush1.msra.mxu0 0.0
    %64 = vmatprep.subr.mxu0 0.0
    %65 = vmatpush1.msra.mxu0 0.0
    %66 = vmatprep.subr.mxu0 0.0
    %67 = vmatpush1.msra.mxu0 0.0
    %68 = vmatprep.subr.mxu0 0.0
    %69 = vmatpush1.msra.mxu0 0.0
    %70 = vmatprep.subr.mxu0 0.0
    %71 = vmatpush1.msra.mxu0 0.0
    %72 = vmatprep.subr.mxu0 0.0
    %73 = vmatpush1.msra.mxu0 0.0
    %74 = vmatprep.subr.mxu0 0.0
    %75 = vmatpush1.msra.mxu0 0.0
    %76 = vmatprep.subr.mxu0 0.0
    %77 = vmatpush1.msra.mxu0 0.0
    %78 = vmatprep.subr.mxu0 0.0
    %79 = vmatpush1.msra.mxu0 0.0
    %80 = vmatprep.subr.mxu0 0.0
    %81 = vmatpush1.msra.mxu0 0.0
    %82 = vmatprep.subr.mxu0 0.0
    %83 = vmatpush1.msra.mxu0 0.0
    %84 = vmatprep.subr.mxu0 0.0
    %85 = vmatpush1.msra.mxu0 0.0
    %86 = vmatprep.subr.mxu0 0.0
    %87 = vmatpush1.msra.mxu0 %v43
    %88 = vmatprep.subr.mxu0 0.0
    %89 = vmatpush1.msra.mxu0 %v42
    %90 = vmatprep.subr.mxu0 0.0
    %91 = vmatpush2.msra.mxu0 0.0
    %92 = vmatprep.subr.mxu0 0.0
    %93 = vmatpush2.msra.mxu0 0.0
    %94 = vmatprep.subr.mxu0 0.0
    %95 = vmatpush2.msra.mxu0 0.0
    %96 = vmatprep.subr.mxu0 0.0
    %97 = vmatpush2.msra.mxu0 0.0
    %98 = vmatprep.subr.mxu0 0.0
    %99 = vmatpush2.msra.mxu0 0.0
    %100 = vmatprep.subr.mxu0 0.0
    %101 = vmatpush2.msra.mxu0 0.0
    %102 = vmatprep.subr.mxu0 0.0
    %103 = vmatpush2.msra.mxu0 0.0
    %104 = vmatprep.subr.mxu0 0.0
    %105 = vmatpush2.msra.mxu0 0.0
    %106 = vmatprep.subr.mxu0 0.0
    %107 = vmatpush2.msra.mxu0 0.0
    %108 = vmatprep.subr.mxu0 0.0
    %109 = vmatpush2.msra.mxu0 0.0
    %110 = vmatprep.subr.mxu0 0.0
    %111 = vmatpush2.msra.mxu0 0.0
    %112 = vmatprep.subr.mxu0 0.0
    %113 = vmatpush2.msra.mxu0 0.0
    %114 = vmatprep.subr.mxu0 0.0
    %115 = vmatpush2.msra.mxu0 0.0
    %116 = vmatprep.subr.mxu0 0.0
    %117 = vmatpush2.msra.mxu0 0.0
    %118 = vmatprep.subr.mxu0 0.0
    %119 = vmatpush2.msra.mxu0 0.0
    %120 = vmatprep.subr.mxu0 0.0
    %121 = vmatpush2.msra.mxu0 0.0
    %122 = vmatprep.mubr.f32.mxu0 0.0
    %123 = vmatmul.mubr.f32.gmra.mxu0 %v53
    %v124 = vpop.f32.mrf.mxu0
    %v125 = vadd.f32 %v49, %v124
    %v126 = vpop.f32.mrf.mxu0
    %127 = vmatprep.mubr.f32.mxu0 0.0
    %128 = vmatmul.mubr.f32.gmra.mxu0 %v56
    %v129 = vpop.f32.mrf.mxu0
    %v130 = vadd.f32 %v49, %v129
    %v131 = vpop.f32.mrf.mxu0
    %132 = vdwg.mxu0
    %133 = vst.msk [vmem:[%s3] sm:$0xff] %vm51, %v125
    %134 = vst.msk [vmem:[%s3 + $0x8] sm:$0xff] %vm51, %v130
    // Predicated region
    $region22: #{birnn_forward.4} parent=1 // pred_check
      _
    $region23: #{birnn_forward.4} parent=1 // pred_check_branch
      %136 = sbr.rel (0) target = $region25
    $region24: #{birnn_forward.4} parent=1 // pred_region
      _
    $region25: #{birnn_forward.4} parent=1 // pred_fallthru
      _
    // Predicated region
    $region26: #{birnn_forward.4} parent=1 // pred_check
      _
    $region27: #{birnn_forward.4} parent=1 // pred_check_branch
      %138 = sbr.rel (0) target = $region29
    $region28: #{birnn_forward.4} parent=1 // pred_region
      _
    $region29: #{birnn_forward.4} parent=1 // pred_fallthru
      _
    %139 = vsyncpa [#allocation3], 1
    %140 = vsyncpa [#allocation5], 1

// kernel: birnn_forward.7
$region0: #{birnn_forward.7}
  #allocation0 [shape = 'u32[]', space=smem, size = 0x4, offset = 0x4, fixed_abs, tag = 'smem constant byte address 0x4 - core index']
  #allocation1 [shape = 'u32[144,128]{1,0:T(1,128)}', space=vmem, size = 0x12000, scoped, tag = 'internal scratch']
  %s0 = inlined_call_operand.vmem [shape: f32[16,256], index: 0, kind: input, shape index: {}]
  %s1 = inlined_call_operand.vmem [shape: f32[256,128], index: 1, kind: input, shape index: {}]
  %s2 = inlined_call_operand.vmem [shape: f32[1,128], index: 2, kind: input, shape index: {}]
  %s3 = inlined_call_operand.vmem [shape: f32[16,128], index: 3, kind: output, shape index: {}]
  %s4 = sld [smem:[#allocation0]]
  $region22: #{birnn_forward.7} parent=0
    _
  %s6 = ssub.s32 1, %s4
  %s7 = scalar_select 0, %s6, %s4
  // Predicated region
  $region2: #{birnn_forward.7} parent=0 // pred_check
    _
  $region3: #{birnn_forward.7} parent=0 // pred_check_branch
    %9 = sbr.rel (0) target = $region5
  $region4: #{birnn_forward.7} parent=0 // pred_region
    _
  $region5: #{birnn_forward.7} parent=0 // pred_fallthru
    _
  // Predicated region
  $region6: #{birnn_forward.7} parent=0 // pred_check
    _
  $region7: #{birnn_forward.7} parent=0 // pred_check_branch
    %11 = sbr.rel (0) target = $region9
  $region8: #{birnn_forward.7} parent=0 // pred_region
    _
  $region9: #{birnn_forward.7} parent=0 // pred_fallthru
    _
  // Predicated region
  $region10: #{birnn_forward.7} parent=0 // pred_check
    _
  $region11: #{birnn_forward.7} parent=0 // pred_check_branch
    %13 = sbr.rel (0) target = $region13
  $region12: #{birnn_forward.7} parent=0 // pred_region
    _
  $region13: #{birnn_forward.7} parent=0 // pred_fallthru
    _
  %v14 = vld [vmem:[%s0] sm:$0xff]
  %v15 = vld [vmem:[%s0 + $0x8] sm:$0xff]
  %v16 = vld [vmem:[%s0 + $0x10] sm:$0xff]
  %v17 = vld [vmem:[%s0 + $0x18] sm:$0xff]
  %v18 = vld [vmem:[%s1] sm:$0xff]
  %v19 = vld [vmem:[%s1 + $0x8] sm:$0xff]
  %v20 = vld [vmem:[%s1 + $0x10] sm:$0xff]
  %v21 = vld [vmem:[%s1 + $0x18] sm:$0xff]
  %v22 = vld [vmem:[%s1 + $0x20] sm:$0xff]
  %v23 = vld [vmem:[%s1 + $0x28] sm:$0xff]
  %v24 = vld [vmem:[%s1 + $0x30] sm:$0xff]
  %v25 = vld [vmem:[%s1 + $0x38] sm:$0xff]
  %v26 = vld [vmem:[%s1 + $0x40] sm:$0xff]
  %v27 = vld [vmem:[%s1 + $0x48] sm:$0xff]
  %v28 = vld [vmem:[%s1 + $0x50] sm:$0xff]
  %v29 = vld [vmem:[%s1 + $0x58] sm:$0xff]
  %v30 = vld [vmem:[%s1 + $0x60] sm:$0xff]
  %v31 = vld [vmem:[%s1 + $0x68] sm:$0xff]
  %v32 = vld [vmem:[%s1 + $0x70] sm:$0xff]
  %v33 = vld [vmem:[%s1 + $0x78] sm:$0xff]
  %v34 = vld [vmem:[%s1 + $0x80] sm:$0xff]
  %v35 = vld [vmem:[%s1 + $0x88] sm:$0xff]
  %v36 = vld [vmem:[%s1 + $0x90] sm:$0xff]
  %v37 = vld [vmem:[%s1 + $0x98] sm:$0xff]
  %v38 = vld [vmem:[%s1 + $0xa0] sm:$0xff]
  %v39 = vld [vmem:[%s1 + $0xa8] sm:$0xff]
  %v40 = vld [vmem:[%s1 + $0xb0] sm:$0xff]
  %v41 = vld [vmem:[%s1 + $0xb8] sm:$0xff]
  %v42 = vld [vmem:[%s1 + $0xc0] sm:$0xff]
  %v43 = vld [vmem:[%s1 + $0xc8] sm:$0xff]
  %v44 = vld [vmem:[%s1 + $0xd0] sm:$0xff]
  %v45 = vld [vmem:[%s1 + $0xd8] sm:$0xff]
  %v46 = vld [vmem:[%s1 + $0xe0] sm:$0xff]
  %v47 = vld [vmem:[%s1 + $0xe8] sm:$0xff]
  %v48 = vld [vmem:[%s1 + $0xf0] sm:$0xff]
  %v49 = vld [vmem:[%s1 + $0xf8] sm:$0xff]
  %v50 = vld [vmem:[%s2] sm:$0x1]
  %v52 = vlaneseq
  %v53 = vshrl.u32 %v52, 7
  %v54 = vsub.s32 0, %v53
  %v55 = vrot.slane %v50, %v54
  %57 = vmatprep.subr.mxu0 0.0
  %58 = vmatpush1.msra.mxu0 %v33
  %59 = vmatprep.subr.mxu0 0.0
  %60 = vmatpush1.msra.mxu0 %v32
  %61 = vmatprep.subr.mxu0 0.0
  %62 = vmatpush1.msra.mxu0 %v31
  %63 = vmatprep.subr.mxu0 0.0
  %64 = vmatpush1.msra.mxu0 %v30
  %65 = vmatprep.subr.mxu0 0.0
  %66 = vmatpush1.msra.mxu0 %v29
  %67 = vmatprep.subr.mxu0 0.0
  %68 = vmatpush1.msra.mxu0 %v28
  %69 = vmatprep.subr.mxu0 0.0
  %70 = vmatpush1.msra.mxu0 %v27
  %71 = vmatprep.subr.mxu0 0.0
  %72 = vmatpush1.msra.mxu0 %v26
  %73 = vmatprep.subr.mxu0 0.0
  %74 = vmatpush1.msra.mxu0 %v25
  %75 = vmatprep.subr.mxu0 0.0
  %76 = vmatpush1.msra.mxu0 %v24
  %77 = vmatprep.subr.mxu0 0.0
  %78 = vmatpush1.msra.mxu0 %v23
  %79 = vmatprep.subr.mxu0 0.0
  %80 = vmatpush1.msra.mxu0 %v22
  %81 = vmatprep.subr.mxu0 0.0
  %82 = vmatpush1.msra.mxu0 %v21
  %83 = vmatprep.subr.mxu0 0.0
  %84 = vmatpush1.msra.mxu0 %v20
  %85 = vmatprep.subr.mxu0 0.0
  %86 = vmatpush1.msra.mxu0 %v19
  %87 = vmatprep.subr.mxu0 0.0
  %88 = vmatpush1.msra.mxu0 %v18
  %89 = vmatprep.subr.mxu0 0.0
  %90 = vmatpush2.msra.mxu0 %v49
  %91 = vmatprep.subr.mxu0 0.0
  %92 = vmatpush2.msra.mxu0 %v48
  %93 = vmatprep.subr.mxu0 0.0
  %94 = vmatpush2.msra.mxu0 %v47
  %95 = vmatprep.subr.mxu0 0.0
  %96 = vmatpush2.msra.mxu0 %v46
  %97 = vmatprep.subr.mxu0 0.0
  %98 = vmatpush2.msra.mxu0 %v45
  %99 = vmatprep.subr.mxu0 0.0
  %100 = vmatpush2.msra.mxu0 %v44
  %101 = vmatprep.subr.mxu0 0.0
  %102 = vmatpush2.msra.mxu0 %v43
  %103 = vmatprep.subr.mxu0 0.0
  %104 = vmatpush2.msra.mxu0 %v42
  %105 = vmatprep.subr.mxu0 0.0
  %106 = vmatpush2.msra.mxu0 %v41
  %107 = vmatprep.subr.mxu0 0.0
  %108 = vmatpush2.msra.mxu0 %v40
  %109 = vmatprep.subr.mxu0 0.0
  %110 = vmatpush2.msra.mxu0 %v39
  %111 = vmatprep.subr.mxu0 0.0
  %112 = vmatpush2.msra.mxu0 %v38
  %113 = vmatprep.subr.mxu0 0.0
  %114 = vmatpush2.msra.mxu0 %v37
  %115 = vmatprep.subr.mxu0 0.0
  %116 = vmatpush2.msra.mxu0 %v36
  %117 = vmatprep.subr.mxu0 0.0
  %118 = vmatpush2.msra.mxu0 %v35
  %119 = vmatprep.subr.mxu0 0.0
  %120 = vmatpush2.msra.mxu0 %v34
  %121 = vmatprep.mubr.f32.mxu0 %v15
  %122 = vmatmul.mubr.f32.gmra.mxu0 %v14
  %v123 = vpop.f32.mrf.mxu0
  %v124 = vadd.f32 %v55, %v123
  %v125 = vpop.f32.mrf.mxu0
  %126 = vmatprep.mubr.f32.mxu0 %v17
  %127 = vmatmul.mubr.f32.gmra.mxu0 %v16
  %v128 = vpop.f32.mrf.mxu0
  %v129 = vadd.f32 %v55, %v128
  %v130 = vpop.f32.mrf.mxu0
  %131 = vdwg.mxu0
  %132 = vst [vmem:[%s3] sm:$0xff] %v124
  %133 = vst [vmem:[%s3 + $0x8] sm:$0xff] %v129
  // Predicated region
  $region14: #{birnn_forward.7} parent=0 // pred_check
    _
  $region15: #{birnn_forward.7} parent=0 // pred_check_branch
    %135 = sbr.rel (0) target = $region17
  $region16: #{birnn_forward.7} parent=0 // pred_region
    _
  $region17: #{birnn_forward.7} parent=0 // pred_fallthru
    _
  // Predicated region
  $region18: #{birnn_forward.7} parent=0 // pred_check
    _
  $region19: #{birnn_forward.7} parent=0 // pred_check_branch
    %137 = sbr.rel (0) target = $region21
  $region20: #{birnn_forward.7} parent=0 // pred_region
    _
  $region21: #{birnn_forward.7} parent=0 // pred_fallthru
    _

// kernel: birnn_forward.5
$region0: #{birnn_forward.5}
  #allocation0 [shape = 'u32[]', space=smem, size = 0x4, offset = 0x4, fixed_abs, tag = 'smem constant byte address 0x4 - core index']
  #allocation1 [shape = 'u32[144,128]{1,0:T(1,128)}', space=vmem, size = 0x12000, scoped, tag = 'internal scratch']
  #allocation2 [shape = 'f32[2,128]{1,0:T(2,128)}', space=vmem, size = 0x400, scoped, tag = 'scratch operand']
  #allocation3 [shape = 'f32[2,128]{1,0:T(2,128)}', space=vmem, size = 0x400, scoped, tag = 'scratch operand']
  %s0 = inlined_call_operand.vmem [shape: f32[8,2,16], index: 0, kind: input, shape index: {}]
  %s1 = inlined_call_operand.hbm [shape: f32[2,16,512], index: 1, kind: input, shape index: {}]
  %s2 = inlined_call_operand.hbm [shape: f32[2,128,512], index: 2, kind: input, shape index: {}]
  %s3 = inlined_call_operand.hbm [shape: f32[2,1,512], index: 3, kind: input, shape index: {}]
  %s4 = inlined_call_operand.vmem [shape: f32[8,2,256], index: 4, kind: output, shape index: {}]
  %s5 = sld [smem:[#allocation0]]
  $region102: #{birnn_forward.5} parent=0
    _
  %s7 = ssub.s32 1, %s5
  %s8 = scalar_select 0, %s7, %s5
  $region1: #{birnn_forward.5} parent=0
    #allocation4 [shape = 'u8[65536]{0}', space=vmem, size = 0x10000, scoped, tag = 'input window, operand 1']
    #allocation5 [shape = 's32[2]{0}', space=sflag, size = 0x8, scoped, tag = 'scoped memory for birnn_forward.5']
    #allocation6 [shape = 'u8[524288]{0}', space=vmem, size = 0x80000, scoped, tag = 'input window, operand 2']
    #allocation7 [shape = 's32[2]{0}', space=sflag, size = 0x8, scoped, tag = 'scoped memory for birnn_forward.5']
    #allocation8 [shape = 'u8[4096]{0}', space=vmem, size = 0x1000, scoped, tag = 'input window, operand 3']
    #allocation9 [shape = 'u8[8192]{0}', space=vmem, size = 0x2000, scoped, tag = 'output window, operand 0']
    %9 = vsyncpa [#allocation5], 0
    %s10 = scalar_lea.sflag [#allocation5], 1
    %11 = vsyncpa %s10, 0
    %12 = vsyncpa [#allocation7], 0
    %s13 = scalar_lea.sflag [#allocation7], 1
    %14 = vsyncpa %s13, 0
    loop: start=0, step=1, limit=6
    $region2: #{birnn_forward.5} parent=1 // loop_pre_header
      _
    $region3: #{birnn_forward.5} parent=1 // loop_header
      %s16 = sphi 0, %s20
      %p17 = scmp.ge.s32.totalorder %s16, 6
      %s23 = sphi 0, %s35
      %s24 = sphi 0, %s31
      %s25 = sphi 0, %s23
      %s26 = sphi 0, %s24
      %s27 = sphi 0, %s25
      %s28 = sphi 0, %s26
      %s46 = sphi 0, %s48
      %s49 = sphi 0, %s46
      %s50 = sphi 0, %s49
      %s66 = sphi 0, %s50
      %s72 = sphi 0, %s74
      %s75 = sphi 0, %s72
      %s76 = sphi 0, %s75
      %s92 = sphi 0, %s76
      %s98 = sphi 0, %s100
      %s101 = sphi 0, %s98
      %s102 = sphi 0, %s101
      %s118 = sphi 0, %s102
      %s124 = sphi 0, %s126
      %s127 = sphi 0, %s124
      %s128 = sphi 0, %s127
      %s144 = sphi 0, %s128
      %s160 = sphi 0, %s162
      %s163 = sphi 0, %s160
      %s164 = sphi 0, %s163
      %s180 = sphi 0, %s164
    $region4: #{birnn_forward.5} parent=1 // loop_header_branch
      %19 = sbr.rel (%p17) target = $region8
    $region5: #{birnn_forward.5} parent=1 // loop_body
      %s21 = ssub.s32 %s16, 1
      %s22 = ssub.s32 %s16, 2
      %s29 = sadd.s32 1, %s24
      %p30 = scmp.ge.s32.totalorder %s29, 2
      %s31 = scalar_select %p30, 0, %s29
      %s32 = sadd.s32 1, %s23
      %s33 = scalar_select %p30, %s32, %s23
      %p34 = scmp.ge.s32.totalorder %s33, 2
      %s35 = scalar_select %p34, 0, %s33
      %s36 = smul.u32 %s23, 2
      %s37 = ssub.s32 1, %s36
      %s38 = smul.u32 %s37, %s24
      %s39 = sadd.s32 %s23, %s38
      %s40 = smul.u32 %s35, 2
      %s41 = ssub.s32 1, %s40
      %s42 = smul.u32 %s41, %s31
      %s43 = sadd.s32 %s35, %s42
      %s44 = ssub.s32 %s39, %s43
      %p45 = scmp.eq.s32.totalorder %s44, 0
      %s47 = sadd.s32 %s46, 1
      %s48 = scalar_select %p45, %s46, %s47
      %p51 = pneg %p45
      %p52 = scmp.eq.s32.totalorder %s16, 3
      %p53 = por %p51, %p52
      %p54 = scmp.ne.s32.totalorder %s46, %s49
      %p55 = scmp.eq.s32.totalorder %s16, 0
      %p56 = por %p54, %p55
      %p57 = scmp.ne.s32.totalorder %s46, %s49
      %p58 = scmp.eq.s32.totalorder %s21, 3
      %p59 = por %p57, %p58
      %p60 = scmp.ne.s32.totalorder %s49, %s50
      %p61 = scmp.eq.s32.totalorder %s21, 0
      %p62 = por %p60, %p61
      %p63 = scmp.ne.s32.totalorder %s49, %s50
      %p64 = scmp.eq.s32.totalorder %s22, 3
      %p65 = por %p63, %p64
      %p67 = scmp.ne.s32.totalorder %s50, %s66
      %p68 = scmp.eq.s32.totalorder %s22, 0
      %p69 = por %p67, %p68
      %s70 = ssub.s32 %s23, %s35
      %p71 = scmp.eq.s32.totalorder %s70, 0
      %s73 = sadd.s32 %s72, 1
      %s74 = scalar_select %p71, %s72, %s73
      %p77 = pneg %p71
      %p78 = scmp.eq.s32.totalorder %s16, 3
      %p79 = por %p77, %p78
      %p80 = scmp.ne.s32.totalorder %s72, %s75
      %p81 = scmp.eq.s32.totalorder %s16, 0
      %p82 = por %p80, %p81
      %p83 = scmp.ne.s32.totalorder %s72, %s75
      %p84 = scmp.eq.s32.totalorder %s21, 3
      %p85 = por %p83, %p84
      %p86 = scmp.ne.s32.totalorder %s75, %s76
      %p87 = scmp.eq.s32.totalorder %s21, 0
      %p88 = por %p86, %p87
      %p89 = scmp.ne.s32.totalorder %s75, %s76
      %p90 = scmp.eq.s32.totalorder %s22, 3
      %p91 = por %p89, %p90
      %p93 = scmp.ne.s32.totalorder %s76, %s92
      %p94 = scmp.eq.s32.totalorder %s22, 0
      %p95 = por %p93, %p94
      %s96 = ssub.s32 %s23, %s35
      %p97 = scmp.eq.s32.totalorder %s96, 0
      %s99 = sadd.s32 %s98, 1
      %s100 = scalar_select %p97, %s98, %s99
      %p103 = pneg %p97
      %p104 = scmp.eq.s32.totalorder %s16, 3
      %p105 = por %p103, %p104
      %p106 = scmp.ne.s32.totalorder %s98, %s101
      %p107 = scmp.eq.s32.totalorder %s16, 0
      %p108 = por %p106, %p107
      %p109 = scmp.ne.s32.totalorder %s98, %s101
      %p110 = scmp.eq.s32.totalorder %s21, 3
      %p111 = por %p109, %p110
      %p112 = scmp.ne.s32.totalorder %s101, %s102
      %p113 = scmp.eq.s32.totalorder %s21, 0
      %p114 = por %p112, %p113
      %p115 = scmp.ne.s32.totalorder %s101, %s102
      %p116 = scmp.eq.s32.totalorder %s22, 3
      %p117 = por %p115, %p116
      %p119 = scmp.ne.s32.totalorder %s102, %s118
      %p120 = scmp.eq.s32.totalorder %s22, 0
      %p121 = por %p119, %p120
      %s122 = ssub.s32 %s23, %s35
      %p123 = scmp.eq.s32.totalorder %s122, 0
      %s125 = sadd.s32 %s124, 1
      %s126 = scalar_select %p123, %s124, %s125
      %p129 = pneg %p123
      %p130 = scmp.eq.s32.totalorder %s16, 3
      %p131 = por %p129, %p130
      %p132 = scmp.ne.s32.totalorder %s124, %s127
      %p133 = scmp.eq.s32.totalorder %s16, 0
      %p134 = por %p132, %p133
      %p135 = scmp.ne.s32.totalorder %s124, %s127
      %p136 = scmp.eq.s32.totalorder %s21, 3
      %p137 = por %p135, %p136
      %p138 = scmp.ne.s32.totalorder %s127, %s128
      %p139 = scmp.eq.s32.totalorder %s21, 0
      %p140 = por %p138, %p139
      %p141 = scmp.ne.s32.totalorder %s127, %s128
      %p142 = scmp.eq.s32.totalorder %s22, 3
      %p143 = por %p141, %p142
      %p145 = scmp.ne.s32.totalorder %s128, %s144
      %p146 = scmp.eq.s32.totalorder %s22, 0
      %p147 = por %p145, %p146
      %s148 = smul.u32 %s23, 2
      %s149 = ssub.s32 1, %s148
      %s150 = smul.u32 %s149, %s24
      %s151 = sadd.s32 %s23, %s150
      %s152 = smul.u32 %s35, 2
      %s153 = ssub.s32 1, %s152
      %s154 = smul.u32 %s153, %s31
      %s155 = sadd.s32 %s35, %s154
      %s156 = ssub.s32 %s151, %s155
      %s157 = ssub.s32 %s23, %s35
      %s158 = sor.u32 %s156, %s157
      %p159 = scmp.eq.s32.totalorder %s158, 0
      %s161 = sadd.s32 %s160, 1
      %s162 = scalar_select %p159, %s160, %s161
      %p165 = pneg %p159
      %p166 = scmp.eq.s32.totalorder %s16, 3
      %p167 = por %p165, %p166
      %p168 = scmp.ne.s32.totalorder %s160, %s163
      %p169 = scmp.eq.s32.totalorder %s16, 0
      %p170 = por %p168, %p169
      %p171 = scmp.ne.s32.totalorder %s160, %s163
      %p172 = scmp.eq.s32.totalorder %s21, 3
      %p173 = por %p171, %p172
      %p174 = scmp.ne.s32.totalorder %s163, %s164
      %p175 = scmp.eq.s32.totalorder %s21, 0
      %p176 = por %p174, %p175
      %p177 = scmp.ne.s32.totalorder %s163, %s164
      %p178 = scmp.eq.s32.totalorder %s22, 3
      %p179 = por %p177, %p178
      %p181 = scmp.ne.s32.totalorder %s164, %s180
      %p182 = scmp.eq.s32.totalorder %s22, 0
      %p183 = por %p181, %p182
      %p184 = scmp.le.s32.totalorder 1, %s16
      %p185 = scmp.lt.s32.totalorder %s16, 5
      %p186 = pnand %p184, %p185
      %p187 = pneg %p186
      // Predicated region
      $region9: #{birnn_forward.5} parent=5 // pred_check
        _
      $region10: #{birnn_forward.5} parent=5 // pred_check_branch
        %189 = sbr.rel (%p186) target = $region12
      $region11: #{birnn_forward.5} parent=5 // pred_region
        %s190 = ssub.s32 %s16, 1
      $region12: #{birnn_forward.5} parent=5 // pred_fallthru
        _
      %p191 = scmp.lt.s32.totalorder %s16, 4
      // Predicated region
      $region13: #{birnn_forward.5} parent=5 // pred_check
        %p192 = pneg %p191
      $region14: #{birnn_forward.5} parent=5 // pred_check_branch
        %194 = sbr.rel (%p192) target = $region16
      $region15: #{birnn_forward.5} parent=5 // pred_region
        // Predicated region
        $region17: #{birnn_forward.5} parent=15 // pred_check
          %p195 = pneg %p56
        $region18: #{birnn_forward.5} parent=15 // pred_check_branch
          %197 = sbr.rel (%p195) target = $region20
        $region19: #{birnn_forward.5} parent=15 // pred_region
          %s198 = smul.u32 %s23, 2
          %s199 = ssub.s32 1, %s198
          %s200 = smul.u32 %s199, %s24
          %s201 = sadd.s32 %s23, %s200
          %s202 = smul.u32 4, %s201
          %p203 = scmp.lt.s32.totalorder %s202, 7
          %s204 = scalar_select %p203, %s202, 7
          %s205 = smul.addr %s204, 2
          %s206 = scalar_lea.vmem %s0, %s205
          %s207 = smul.u32 %s23, 2
          %s208 = ssub.s32 1, %s207
          %s209 = smul.u32 %s208, %s24
          %s210 = sadd.s32 %s23, %s209
          %s211 = smul.u32 4, %s210
        $region20: #{birnn_forward.5} parent=15 // pred_fallthru
          _
        // Predicated region
        $region21: #{birnn_forward.5} parent=15 // pred_check
          %p212 = pneg %p82
        $region22: #{birnn_forward.5} parent=15 // pred_check_branch
          %214 = sbr.rel (%p212) target = $region24
        $region23: #{birnn_forward.5} parent=15 // pred_region
          %s215 = sand.u32 %s72, 1
          %s216 = scalar_lea.sflag [#allocation5], %s215
          %s217 = sand.u32 %s72, 1
          %s218 = smul.addr %s217, 64
          %s219 = scalar_lea.vmem [#allocation4], %s218
          %s221 = ssub.s32 1024, 1024
          %222 = vsyncadd %s216, %s221
          %s223 = smul.addr %s23, 8
          %s224 = smul.addr %s223, 128
          %s225 = scalar_lea.hbm %s1, %s224
          %s226 = sshll.u32 %s219, 4
          %s227 = int_to_ptr.vmem [resolvable:$true] %s226
          %232 = dma.hbm_to_vmem [thread:$0]  %s225, 1024, %s227, %s216, 512, 512, 32
        $region24: #{birnn_forward.5} parent=15 // pred_fallthru
          _
        // Predicated region
        $region25: #{birnn_forward.5} parent=15 // pred_check
          %p233 = pneg %p108
        $region26: #{birnn_forward.5} parent=15 // pred_check_branch
          %235 = sbr.rel (%p233) target = $region28
        $region27: #{birnn_forward.5} parent=15 // pred_region
          %s236 = sand.u32 %s16, 1
          %s237 = scalar_lea.sflag [#allocation7], %s236
          %s238 = sand.u32 %s98, 1
          %s239 = smul.addr %s238, 512
          %s240 = scalar_lea.vmem [#allocation6], %s239
          %s242 = ssub.s32 8192, 8192
          %243 = vsyncadd %s237, %s242
          %s244 = smul.addr %s23, 64
          %s245 = smul.addr %s244, 128
          %s246 = scalar_lea.hbm %s2, %s245
          %s247 = sshll.u32 %s240, 4
          %s248 = int_to_ptr.vmem [resolvable:$true] %s247
          %253 = dma.hbm_to_vmem [thread:$0]  %s246, 8192, %s248, %s237, 512, 512, 32
        $region28: #{birnn_forward.5} parent=15 // pred_fallthru
          _
        // Predicated region
        $region29: #{birnn_forward.5} parent=15 // pred_check
          %p254 = pneg %p134
        $region30: #{birnn_forward.5} parent=15 // pred_check_branch
          %256 = sbr.rel (%p254) target = $region32
        $region31: #{birnn_forward.5} parent=15 // pred_region
          %s257 = sand.u32 %s16, 1
          %s258 = scalar_lea.sflag [#allocation7], %s257
          %s259 = sand.u32 %s124, 1
          %s260 = smul.addr %s259, 4
          %s261 = scalar_lea.vmem [#allocation8], %s260
          %s263 = ssub.s32 64, 64
          %264 = vsyncadd %s258, %s263
          %s265 = smul.addr %s23, 4
          %s266 = smul.addr %s265, 16
          %s267 = scalar_lea.hbm %s3, %s266
          %s269 = sshll.u32 %s261, 4
          %s270 = int_to_ptr.vmem [resolvable:$true] %s269
          %272 = dma.hbm_to_vmem [thread:$0]  %s267, 64, %s270, %s258
        $region32: #{birnn_forward.5} parent=15 // pred_fallthru
          _
      $region16: #{birnn_forward.5} parent=5 // pred_fallthru
        _
      %p273 = scmp.le.s32.totalorder 1, %s16
      %p274 = scmp.lt.s32.totalorder %s16, 5
      %p275 = pnand %p273, %p274
      %p276 = pneg %p275
      // Predicated region
      $region33: #{birnn_forward.5} parent=5 // pred_check
        _
      $region34: #{birnn_forward.5} parent=5 // pred_check_branch
        %278 = sbr.rel (%p275) target = $region36
      $region35: #{birnn_forward.5} parent=5 // pred_region
        %s279 = ssub.s32 %s16, 1
        %s280 = sand.u32 %s75, 1
        %s281 = scalar_lea.sflag [#allocation5], %s280
        %s282 = sand.u32 %s75, 1
        %s283 = smul.addr %s282, 64
        %s284 = scalar_lea.vmem [#allocation4], %s283
        // Predicated region
        $region37: #{birnn_forward.5} parent=35 // pred_check
          %p285 = pneg %p88
        $region38: #{birnn_forward.5} parent=35 // pred_check_branch
          %287 = sbr.rel (%p285) target = $region40
        $region39: #{birnn_forward.5} parent=35 // pred_region
          %288 = dma.done %s281, 1024
        $region40: #{birnn_forward.5} parent=35 // pred_fallthru
          _
        %s289 = sand.u32 %s21, 1
        %s290 = scalar_lea.sflag [#allocation7], %s289
        %s291 = sand.u32 %s101, 1
        %s292 = smul.addr %s291, 512
        %s293 = scalar_lea.vmem [#allocation6], %s292
        // Predicated region
        $region41: #{birnn_forward.5} parent=35 // pred_check
          %p294 = pneg %p114
        $region42: #{birnn_forward.5} parent=35 // pred_check_branch
          %296 = sbr.rel (%p294) target = $region44
        $region43: #{birnn_forward.5} parent=35 // pred_region
          %297 = dma.done %s290, 8192
        $region44: #{birnn_forward.5} parent=35 // pred_fallthru
          _
        %s298 = sand.u32 %s21, 1
        %s299 = scalar_lea.sflag [#allocation7], %s298
        %s300 = sand.u32 %s127, 1
        %s301 = smul.addr %s300, 4
        %s302 = scalar_lea.vmem [#allocation8], %s301
        // Predicated region
        $region45: #{birnn_forward.5} parent=35 // pred_check
          %p303 = pneg %p140
        $region46: #{birnn_forward.5} parent=35 // pred_check_branch
          %305 = sbr.rel (%p303) target = $region48
        $region47: #{birnn_forward.5} parent=35 // pred_region
          %306 = dma.done %s299, 64
        $region48: #{birnn_forward.5} parent=35 // pred_fallthru
          _
        %s307 = smul.u32 %s25, 2
        %s308 = ssub.s32 1, %s307
        %s309 = smul.u32 %s308, %s26
        %s310 = sadd.s32 %s25, %s309
        %s311 = smul.u32 4, %s310
        %p312 = scmp.lt.s32.totalorder %s311, 7
        %s313 = scalar_select %p312, %s311, 7
        %s314 = smul.addr %s313, 2
        %s315 = scalar_lea.vmem %s0, %s314
        %p316 = pneg %p62
        %p317 = pneg %p59
        %s318 = sand.u32 %s75, 1
        %s319 = scalar_lea.sflag [#allocation5], %s318
        %s320 = sand.u32 %s75, 1
        %s321 = smul.addr %s320, 64
        %s322 = scalar_lea.vmem [#allocation4], %s321
        %p323 = pneg %p88
        %p324 = pneg %p85
        %s325 = sand.u32 %s21, 1
        %s326 = scalar_lea.sflag [#allocation7], %s325
        %s327 = sand.u32 %s101, 1
        %s328 = smul.addr %s327, 512
        %s329 = scalar_lea.vmem [#allocation6], %s328
        %p330 = pneg %p114
        %p331 = pneg %p111
        %s332 = sand.u32 %s21, 1
        %s333 = scalar_lea.sflag [#allocation7], %s332
        %s334 = sand.u32 %s127, 1
        %s335 = smul.addr %s334, 4
        %s336 = scalar_lea.vmem [#allocation8], %s335
        %p337 = pneg %p140
        %p338 = pneg %p137
        %p339 = pneg %p176
        %p340 = pneg %p173
        %s341 = sand.u32 %s163, 1
        %s342 = sand.u32 %s163, 1
        %s343 = smul.addr %s342, 8
        %s344 = scalar_lea.vmem [#allocation9], %s343
        %s345 = smul.u32 %s25, 2
        %s346 = ssub.s32 1, %s345
        %s347 = smul.u32 %s346, %s26
        %s348 = sadd.s32 %s25, %s347
        %s349 = smul.u32 4, %s348
        %p350 = scmp.lt.s32.totalorder %s349, 7
        %s351 = scalar_select %p350, %s349, 7
        %s352 = smul.addr %s351, 2
        %s353 = scalar_lea.vmem %s0, %s352
        %s354 = smul.u32 %s25, 2
        %s355 = ssub.s32 1, %s354
        %s356 = smul.u32 %s355, %s26
        %s357 = sadd.s32 %s25, %s356
        %s358 = smul.u32 4, %s357
        %s359 = smul.u32 %s25, 2
        %s360 = ssub.s32 1, %s359
        %s361 = smul.u32 %s360, %s26
        %s362 = sadd.s32 %s25, %s361
        %s363 = smul.u32 4, %s362
        %p364 = scmp.eq.s32.totalorder %s26, 0
        // Predicated region
        $region49: #{birnn_forward.5} parent=35 // pred_check
          %p365 = pneg %p364
        $region50: #{birnn_forward.5} parent=35 // pred_check_branch
          %367 = sbr.rel (%p365) target = $region52
        $region51: #{birnn_forward.5} parent=35 // pred_region
          %368 = vst [vmem:[#allocation2] sm:$0x3] 0.0
          %369 = vst [vmem:[#allocation3] sm:$0x3] 0.0
        $region52: #{birnn_forward.5} parent=35 // pred_fallthru
          _
        %s370 = smul.u32 %s25, 3
        %v371 = vld [vmem:[#allocation2] sm:$0x3]
        %v372 = vld [vmem:[#allocation3] sm:$0x3]
        %s373 = smul.u32 %s370, 2
        %s374 = scalar_lea.vmem %s353, %s373
        %v375 = vld [vmem:[%s374] sm:$0x3]
        %v376 = vld [vmem:[%s284] sm:$0xff]
        %v377 = vld [vmem:[%s284 + $0x8] sm:$0xff]
        %v378 = vld [vmem:[%s284 + $0x10] sm:$0xff]
        %v379 = vld [vmem:[%s284 + $0x18] sm:$0xff]
        %v380 = vld [vmem:[%s284 + $0x20] sm:$0xff]
        %v381 = vld [vmem:[%s284 + $0x28] sm:$0xff]
        %v382 = vld [vmem:[%s284 + $0x30] sm:$0xff]
        %v383 = vld [vmem:[%s284 + $0x38] sm:$0xff]
        %v384 = vld [vmem:[%s293] sm:$0xff]
        %v385 = vld [vmem:[%s293 + $0x8] sm:$0xff]
        %v386 = vld [vmem:[%s293 + $0x10] sm:$0xff]
        %v387 = vld [vmem:[%s293 + $0x18] sm:$0xff]
        %v388 = vld [vmem:[%s293 + $0x20] sm:$0xff]
        %v389 = vld [vmem:[%s293 + $0x28] sm:$0xff]
        %v390 = vld [vmem:[%s293 + $0x30] sm:$0xff]
        %v391 = vld [vmem:[%s293 + $0x38] sm:$0xff]
        %v392 = vld [vmem:[%s293 + $0x40] sm:$0xff]
        %v393 = vld [vmem:[%s293 + $0x48] sm:$0xff]
        %v394 = vld [vmem:[%s293 + $0x50] sm:$0xff]
        %v395 = vld [vmem:[%s293 + $0x58] sm:$0xff]
        %v396 = vld [vmem:[%s293 + $0x60] sm:$0xff]
        %v397 = vld [vmem:[%s293 + $0x68] sm:$0xff]
        %v398 = vld [vmem:[%s293 + $0x70] sm:$0xff]
        %v399 = vld [vmem:[%s293 + $0x78] sm:$0xff]
        %v400 = vld [vmem:[%s293 + $0x80] sm:$0xff]
        %v401 = vld [vmem:[%s293 + $0x88] sm:$0xff]
        %v402 = vld [vmem:[%s293 + $0x90] sm:$0xff]
        %v403 = vld [vmem:[%s293 + $0x98] sm:$0xff]
        %v404 = vld [vmem:[%s293 + $0xa0] sm:$0xff]
        %v405 = vld [vmem:[%s293 + $0xa8] sm:$0xff]
        %v406 = vld [vmem:[%s293 + $0xb0] sm:$0xff]
        %v407 = vld [vmem:[%s293 + $0xb8] sm:$0xff]
        %v408 = vld [vmem:[%s293 + $0xc0] sm:$0xff]
        %v409 = vld [vmem:[%s293 + $0xc8] sm:$0xff]
        %v410 = vld [vmem:[%s293 + $0xd0] sm:$0xff]
        %v411 = vld [vmem:[%s293 + $0xd8] sm:$0xff]
        %v412 = vld [vmem:[%s293 + $0xe0] sm:$0xff]
        %v413 = vld [vmem:[%s293 + $0xe8] sm:$0xff]
        %v414 = vld [vmem:[%s293 + $0xf0] sm:$0xff]
        %v415 = vld [vmem:[%s293 + $0xf8] sm:$0xff]
        %v416 = vld [vmem:[%s293 + $0x100] sm:$0xff]
        %v417 = vld [vmem:[%s293 + $0x108] sm:$0xff]
        %v418 = vld [vmem:[%s293 + $0x110] sm:$0xff]
        %v419 = vld [vmem:[%s293 + $0x118] sm:$0xff]
        %v420 = vld [vmem:[%s293 + $0x120] sm:$0xff]
        %v421 = vld [vmem:[%s293 + $0x128] sm:$0xff]
        %v422 = vld [vmem:[%s293 + $0x130] sm:$0xff]
        %v423 = vld [vmem:[%s293 + $0x138] sm:$0xff]
        %v424 = vld [vmem:[%s293 + $0x140] sm:$0xff]
        %v425 = vld [vmem:[%s293 + $0x148] sm:$0xff]
        %v426 = vld [vmem:[%s293 + $0x150] sm:$0xff]
        %v427 = vld [vmem:[%s293 + $0x158] sm:$0xff]
        %v428 = vld [vmem:[%s293 + $0x160] sm:$0xff]
        %v429 = vld [vmem:[%s293 + $0x168] sm:$0xff]
        %v430 = vld [vmem:[%s293 + $0x170] sm:$0xff]
        %v431 = vld [vmem:[%s293 + $0x178] sm:$0xff]
        %v432 = vld [vmem:[%s293 + $0x180] sm:$0xff]
        %v433 = vld [vmem:[%s293 + $0x188] sm:$0xff]
        %v434 = vld [vmem:[%s293 + $0x190] sm:$0xff]
        %v435 = vld [vmem:[%s293 + $0x198] sm:$0xff]
        %v436 = vld [vmem:[%s293 + $0x1a0] sm:$0xff]
        %v437 = vld [vmem:[%s293 + $0x1a8] sm:$0xff]
        %v438 = vld [vmem:[%s293 + $0x1b0] sm:$0xff]
        %v439 = vld [vmem:[%s293 + $0x1b8] sm:$0xff]
        %v440 = vld [vmem:[%s293 + $0x1c0] sm:$0xff]
        %v441 = vld [vmem:[%s293 + $0x1c8] sm:$0xff]
        %v442 = vld [vmem:[%s293 + $0x1d0] sm:$0xff]
        %v443 = vld [vmem:[%s293 + $0x1d8] sm:$0xff]
        %v444 = vld [vmem:[%s293 + $0x1e0] sm:$0xff]
        %v445 = vld [vmem:[%s293 + $0x1e8] sm:$0xff]
        %v446 = vld [vmem:[%s293 + $0x1f0] sm:$0xff]
        %v447 = vld [vmem:[%s293 + $0x1f8] sm:$0xff]
        %448 = vmatprep.subr.mxu0 %v445
        %449 = vmatpush1.msra.mxu0 %v444
        %450 = vmatprep.subr.mxu0 %v441
        %451 = vmatpush1.msra.mxu0 %v440
        %452 = vmatprep.subr.mxu0 %v437
        %453 = vmatpush1.msra.mxu0 %v436
        %454 = vmatprep.subr.mxu0 %v433
        %455 = vmatpush1.msra.mxu0 %v432
        %456 = vmatprep.subr.mxu0 %v429
        %457 = vmatpush1.msra.mxu0 %v428
        %458 = vmatprep.subr.mxu0 %v425
        %459 = vmatpush1.msra.mxu0 %v424
        %460 = vmatprep.subr.mxu0 %v421
        %461 = vmatpush1.msra.mxu0 %v420
        %462 = vmatprep.subr.mxu0 %v417
        %463 = vmatpush1.msra.mxu0 %v416
        %464 = vmatprep.subr.mxu0 %v413
        %465 = vmatpush1.msra.mxu0 %v412
        %466 = vmatprep.subr.mxu0 %v409
        %467 = vmatpush1.msra.mxu0 %v408
        %468 = vmatprep.subr.mxu0 %v405
        %469 = vmatpush1.msra.mxu0 %v404
        %470 = vmatprep.subr.mxu0 %v401
        %471 = vmatpush1.msra.mxu0 %v400
        %472 = vmatprep.subr.mxu0 %v397
        %473 = vmatpush1.msra.mxu0 %v396
        %474 = vmatprep.subr.mxu0 %v393
        %475 = vmatpush1.msra.mxu0 %v392
        %476 = vmatprep.subr.mxu0 %v389
        %477 = vmatpush1.msra.mxu0 %v388
        %478 = vmatprep.subr.mxu0 %v385
        %479 = vmatpush1.msra.mxu0 %v384
        %480 = vmatprep.subr.mxu0 0.0
        %481 = vmatpush2.msra.mxu0 0.0
        %482 = vmatprep.subr.mxu0 0.0
        %483 = vmatpush2.msra.mxu0 0.0
        %484 = vmatprep.subr.mxu0 0.0
        %485 = vmatpush2.msra.mxu0 0.0
        %486 = vmatprep.subr.mxu0 0.0
        %487 = vmatpush2.msra.mxu0 0.0
        %488 = vmatprep.subr.mxu0 0.0
        %489 = vmatpush2.msra.mxu0 0.0
        %490 = vmatprep.subr.mxu0 0.0
        %491 = vmatpush2.msra.mxu0 0.0
        %492 = vmatprep.subr.mxu0 0.0
        %493 = vmatpush2.msra.mxu0 0.0
        %494 = vmatprep.subr.mxu0 0.0
        %495 = vmatpush2.msra.mxu0 0.0
        %496 = vmatprep.subr.mxu0 0.0
        %497 = vmatpush2.msra.mxu0 0.0
        %498 = vmatprep.subr.mxu0 0.0
        %499 = vmatpush2.msra.mxu0 0.0
        %500 = vmatprep.subr.mxu0 0.0
        %501 = vmatpush2.msra.mxu0 0.0
        %502 = vmatprep.subr.mxu0 0.0
        %503 = vmatpush2.msra.mxu0 0.0
        %504 = vmatprep.subr.mxu0 0.0
        %505 = vmatpush2.msra.mxu0 0.0
        %506 = vmatprep.subr.mxu0 0.0
        %507 = vmatpush2.msra.mxu0 0.0
        %508 = vmatprep.subr.mxu0 0.0
        %509 = vmatpush2.msra.mxu0 0.0
        %510 = vmatprep.subr.mxu0 0.0
        %511 = vmatpush2.msra.mxu0 0.0
        %512 = vmatprep.mubr.f32.mxu0 0.0
        %513 = vmatmul.mubr.f32.gmra.mxu0 %v371
        %v514 = vpop.f32.mrf.mxu0
        %v515 = vadd.f32 0.0, %v514
        %v516 = vpop.f32.mrf.mxu0
        %v517 = vadd.f32 0.0, %v516
        %518 = vdwg.mxu0
        %519 = vmatprep.subr.mxu0 %v447
        %520 = vmatpush1.msra.mxu0 %v446
        %521 = vmatprep.subr.mxu0 %v443
        %522 = vmatpush1.msra.mxu0 %v442
        %523 = vmatprep.subr.mxu0 %v439
        %524 = vmatpush1.msra.mxu0 %v438
        %525 = vmatprep.subr.mxu0 %v435
        %526 = vmatpush1.msra.mxu0 %v434
        %527 = vmatprep.subr.mxu0 %v431
        %528 = vmatpush1.msra.mxu0 %v430
        %529 = vmatprep.subr.mxu0 %v427
        %530 = vmatpush1.msra.mxu0 %v426
        %531 = vmatprep.subr.mxu0 %v423
        %532 = vmatpush1.msra.mxu0 %v422
        %533 = vmatprep.subr.mxu0 %v419
        %534 = vmatpush1.msra.mxu0 %v418
        %535 = vmatprep.subr.mxu0 %v415
        %536 = vmatpush1.msra.mxu0 %v414
        %537 = vmatprep.subr.mxu0 %v411
        %538 = vmatpush1.msra.mxu0 %v410
        %539 = vmatprep.subr.mxu0 %v407
        %540 = vmatpush1.msra.mxu0 %v406
        %541 = vmatprep.subr.mxu0 %v403
        %542 = vmatpush1.msra.mxu0 %v402
        %543 = vmatprep.subr.mxu0 %v399
        %544 = vmatpush1.msra.mxu0 %v398
        %545 = vmatprep.subr.mxu0 %v395
        %546 = vmatpush1.msra.mxu0 %v394
        %547 = vmatprep.subr.mxu0 %v391
        %548 = vmatpush1.msra.mxu0 %v390
        %549 = vmatprep.subr.mxu0 %v387
        %550 = vmatpush1.msra.mxu0 %v386
        %551 = vmatprep.subr.mxu0 0.0
        %552 = vmatpush2.msra.mxu0 0.0
        %553 = vmatprep.subr.mxu0 0.0
        %554 = vmatpush2.msra.mxu0 0.0
        %555 = vmatprep.subr.mxu0 0.0
        %556 = vmatpush2.msra.mxu0 0.0
        %557 = vmatprep.subr.mxu0 0.0
        %558 = vmatpush2.msra.mxu0 0.0
        %559 = vmatprep.subr.mxu0 0.0
        %560 = vmatpush2.msra.mxu0 0.0
        %561 = vmatprep.subr.mxu0 0.0
        %562 = vmatpush2.msra.mxu0 0.0
        %563 = vmatprep.subr.mxu0 0.0
        %564 = vmatpush2.msra.mxu0 0.0
        %565 = vmatprep.subr.mxu0 0.0
        %566 = vmatpush2.msra.mxu0 0.0
        %567 = vmatprep.subr.mxu0 0.0
        %568 = vmatpush2.msra.mxu0 0.0
        %569 = vmatprep.subr.mxu0 0.0
        %570 = vmatpush2.msra.mxu0 0.0
        %571 = vmatprep.subr.mxu0 0.0
        %572 = vmatpush2.msra.mxu0 0.0
        %573 = vmatprep.subr.mxu0 0.0
        %574 = vmatpush2.msra.mxu0 0.0
        %575 = vmatprep.subr.mxu0 0.0
        %576 = vmatpush2.msra.mxu0 0.0
        %577 = vmatprep.subr.mxu0 0.0
        %578 = vmatpush2.msra.mxu0 0.0
        %579 = vmatprep.subr.mxu0 0.0
        %580 = vmatpush2.msra.mxu0 0.0
        %581 = vmatprep.subr.mxu0 0.0
        %582 = vmatpush2.msra.mxu0 0.0
        %583 = vmatprep.mubr.f32.mxu0 0.0
        %584 = vmatmul.mubr.f32.gmra.mxu0 %v371
        %v585 = vpop.f32.mrf.mxu0
        %v586 = vadd.f32 0.0, %v585
        %v587 = vpop.f32.mrf.mxu0
        %v588 = vadd.f32 0.0, %v587
        %589 = vdwg.mxu0
        %vm590 = vcmask 130048
        %v592 = vsel %vm590, %v375, 0
        %594 = vmatprep.subr.mxu0 0.0
        %595 = vmatpush1.msra.mxu0 0.0
        %596 = vmatprep.subr.mxu0 0.0
        %597 = vmatpush1.msra.mxu0 0.0
        %598 = vmatprep.subr.mxu0 0.0
        %599 = vmatpush1.msra.mxu0 0.0
        %600 = vmatprep.subr.mxu0 0.0
        %601 = vmatpush1.msra.mxu0 0.0
        %602 = vmatprep.subr.mxu0 0.0
        %603 = vmatpush1.msra.mxu0 0.0
        %604 = vmatprep.subr.mxu0 0.0
        %605 = vmatpush1.msra.mxu0 0.0
        %606 = vmatprep.subr.mxu0 0.0
        %607 = vmatpush1.msra.mxu0 0.0
        %608 = vmatprep.subr.mxu0 0.0
        %609 = vmatpush1.msra.mxu0 0.0
        %610 = vmatprep.subr.mxu0 0.0
        %611 = vmatpush1.msra.mxu0 0.0
        %612 = vmatprep.subr.mxu0 0.0
        %613 = vmatpush1.msra.mxu0 0.0
        %614 = vmatprep.subr.mxu0 0.0
        %615 = vmatpush1.msra.mxu0 0.0
        %616 = vmatprep.subr.mxu0 0.0
        %617 = vmatpush1.msra.mxu0 0.0
        %618 = vmatprep.subr.mxu0 0.0
        %619 = vmatpush1.msra.mxu0 0.0
        %620 = vmatprep.subr.mxu0 0.0
        %621 = vmatpush1.msra.mxu0 0.0
        %622 = vmatprep.subr.mxu0 %v381
        %623 = vmatpush1.msra.mxu0 %v380
        %624 = vmatprep.subr.mxu0 %v377
        %625 = vmatpush1.msra.mxu0 %v376
        %626 = vmatprep.subr.mxu0 0.0
        %627 = vmatpush2.msra.mxu0 0.0
        %628 = vmatprep.subr.mxu0 0.0
        %629 = vmatpush2.msra.mxu0 0.0
        %630 = vmatprep.subr.mxu0 0.0
        %631 = vmatpush2.msra.mxu0 0.0
        %632 = vmatprep.subr.mxu0 0.0
        %633 = vmatpush2.msra.mxu0 0.0
        %634 = vmatprep.subr.mxu0 0.0
        %635 = vmatpush2.msra.mxu0 0.0
        %636 = vmatprep.subr.mxu0 0.0
        %637 = vmatpush2.msra.mxu0 0.0
        %638 = vmatprep.subr.mxu0 0.0
        %639 = vmatpush2.msra.mxu0 0.0
        %640 = vmatprep.subr.mxu0 0.0
        %641 = vmatpush2.msra.mxu0 0.0
        %642 = vmatprep.subr.mxu0 0.0
        %643 = vmatpush2.msra.mxu0 0.0
        %644 = vmatprep.subr.mxu0 0.0
        %645 = vmatpush2.msra.mxu0 0.0
        %646 = vmatprep.subr.mxu0 0.0
        %647 = vmatpush2.msra.mxu0 0.0
        %648 = vmatprep.subr.mxu0 0.0
        %649 = vmatpush2.msra.mxu0 0.0
        %650 = vmatprep.subr.mxu0 0.0
        %651 = vmatpush2.msra.mxu0 0.0
        %652 = vmatprep.subr.mxu0 0.0
        %653 = vmatpush2.msra.mxu0 0.0
        %654 = vmatprep.subr.mxu0 0.0
        %655 = vmatpush2.msra.mxu0 0.0
        %656 = vmatprep.subr.mxu0 0.0
        %657 = vmatpush2.msra.mxu0 0.0
        %658 = vmatprep.mubr.f32.mxu0 0.0
        %659 = vmatmul.mubr.f32.gmra.mxu0 %v592
        %v660 = vpop.f32.mrf.mxu0
        %v661 = vadd.f32 %v515, %v660
        %v662 = vpop.f32.mrf.mxu0
        %v663 = vadd.f32 %v517, %v662
        %664 = vdwg.mxu0
        %665 = vmatprep.subr.mxu0 0.0
        %666 = vmatpush1.msra.mxu0 0.0
        %667 = vmatprep.subr.mxu0 0.0
        %668 = vmatpush1.msra.mxu0 0.0
        %669 = vmatprep.subr.mxu0 0.0
        %670 = vmatpush1.msra.mxu0 0.0
        %671 = vmatprep.subr.mxu0 0.0
        %672 = vmatpush1.msra.mxu0 0.0
        %673 = vmatprep.subr.mxu0 0.0
        %674 = vmatpush1.msra.mxu0 0.0
        %675 = vmatprep.subr.mxu0 0.0
        %676 = vmatpush1.msra.mxu0 0.0
        %677 = vmatprep.subr.mxu0 0.0
        %678 = vmatpush1.msra.mxu0 0.0
        %679 = vmatprep.subr.mxu0 0.0
        %680 = vmatpush1.msra.mxu0 0.0
        %681 = vmatprep.subr.mxu0 0.0
        %682 = vmatpush1.msra.mxu0 0.0
        %683 = vmatprep.subr.mxu0 0.0
        %684 = vmatpush1.msra.mxu0 0.0
        %685 = vmatprep.subr.mxu0 0.0
        %686 = vmatpush1.msra.mxu0 0.0
        %687 = vmatprep.subr.mxu0 0.0
        %688 = vmatpush1.msra.mxu0 0.0
        %689 = vmatprep.subr.mxu0 0.0
        %690 = vmatpush1.msra.mxu0 0.0
        %691 = vmatprep.subr.mxu0 0.0
        %692 = vmatpush1.msra.mxu0 0.0
        %693 = vmatprep.subr.mxu0 %v383
        %694 = vmatpush1.msra.mxu0 %v382
        %695 = vmatprep.subr.mxu0 %v379
        %696 = vmatpush1.msra.mxu0 %v378
        %697 = vmatprep.subr.mxu0 0.0
        %698 = vmatpush2.msra.mxu0 0.0
        %699 = vmatprep.subr.mxu0 0.0
        %700 = vmatpush2.msra.mxu0 0.0
        %701 = vmatprep.subr.mxu0 0.0
        %702 = vmatpush2.msra.mxu0 0.0
        %703 = vmatprep.subr.mxu0 0.0
        %704 = vmatpush2.msra.mxu0 0.0
        %705 = vmatprep.subr.mxu0 0.0
        %706 = vmatpush2.msra.mxu0 0.0
        %707 = vmatprep.subr.mxu0 0.0
        %708 = vmatpush2.msra.mxu0 0.0
        %709 = vmatprep.subr.mxu0 0.0
        %710 = vmatpush2.msra.mxu0 0.0
        %711 = vmatprep.subr.mxu0 0.0
        %712 = vmatpush2.msra.mxu0 0.0
        %713 = vmatprep.subr.mxu0 0.0
        %714 = vmatpush2.msra.mxu0 0.0
        %715 = vmatprep.subr.mxu0 0.0
        %716 = vmatpush2.msra.mxu0 0.0
        %717 = vmatprep.subr.mxu0 0.0
        %718 = vmatpush2.msra.mxu0 0.0
        %719 = vmatprep.subr.mxu0 0.0
        %720 = vmatpush2.msra.mxu0 0.0
        %721 = vmatprep.subr.mxu0 0.0
        %722 = vmatpush2.msra.mxu0 0.0
        %723 = vmatprep.subr.mxu0 0.0
        %724 = vmatpush2.msra.mxu0 0.0
        %725 = vmatprep.subr.mxu0 0.0
        %726 = vmatpush2.msra.mxu0 0.0
        %727 = vmatprep.subr.mxu0 0.0
        %728 = vmatpush2.msra.mxu0 0.0
        %729 = vmatprep.mubr.f32.mxu0 0.0
        %730 = vmatmul.mubr.f32.gmra.mxu0 %v592
        %v731 = vpop.f32.mrf.mxu0
        %v732 = vadd.f32 %v586, %v731
        %v733 = vpop.f32.mrf.mxu0
        %v734 = vadd.f32 %v588, %v733
        %735 = vdwg.mxu0
        %v736 = vld [vmem:[%s302] sm:$0xf]
        %v738 = vlaneseq
        %v739 = vshrl.u32 %v738, 7
        %v740 = vsub.s32 0, %v739
        %v741 = vrot.slane %v736, %v740
        %v742 = vlaneseq
        %v743 = vshrl.u32 %v742, 7
        %v744 = vsub.s32 1, %v743
        %v745 = vrot.slane %v736, %v744
        %v746 = vlaneseq
        %v747 = vshrl.u32 %v746, 7
        %v748 = vsub.s32 2, %v747
        %v749 = vrot.slane %v736, %v748
        %v750 = vlaneseq
        %v751 = vshrl.u32 %v750, 7
        %v752 = vsub.s32 3, %v751
        %v753 = vrot.slane %v736, %v752
        %v758 = vadd.f32 %v661, %v741
        %v759 = vadd.f32 %v663, %v745
        %v760 = vadd.f32 %v732, %v749
        %v761 = vadd.f32 %v734, %v753
        %v762 = vxor.u32 %v758, 2147483648
        %v763 = vmul.f32 %v762, 1.442695
        %v764 = vpow.pop %v763
        %v765 = vadd.f32 %v764, 1.0
        %v766 = vrcp.pop %v765
        %v767 = vmul.f32 1.0, %v766
        %v768 = vxor.u32 %v759, 2147483648
        %v769 = vmul.f32 %v768, 1.442695
        %v770 = vpow.pop %v769
        %v771 = vadd.f32 %v770, 1.0
        %v772 = vrcp.pop %v771
        %v773 = vmul.f32 1.0, %v772
        %v774 = vtanh.pop %v760
        %v775 = vxor.u32 %v761, 2147483648
        %v776 = vmul.f32 %v775, 1.442695
        %v777 = vpow.pop %v776
        %v778 = vadd.f32 %v777, 1.0
        %v779 = vrcp.pop %v778
        %v780 = vmul.f32 1.0, %v779
        %v781 = vmul.f32 %v773, %v372
        %v782 = vmul.f32 %v767, %v774
        %v783 = vadd.f32 %v781, %v782
        %v784 = vtanh.pop %v783
        %v785 = vmul.f32 %v780, %v784
        %786 = vst [vmem:[#allocation3] sm:$0x3] %v783
        %787 = vst [vmem:[#allocation2] sm:$0x3] %v785
        %s788 = scalar_lea.vmem %s344, %s373 [#allocation9]
        %789 = vst [vmem:[%s788] sm:$0x3] %v785
        %s790 = ssub.s32 1, %s25
        %s791 = smul.u32 %s25, 2
        %s792 = sadd.s32 %s790, %s791
        %v793 = vld [vmem:[#allocation2] sm:$0x3]
        %v794 = vld [vmem:[#allocation3] sm:$0x3]
        %s795 = smul.u32 %s792, 2
        %s796 = scalar_lea.vmem %s353, %s795
        %v797 = vld [vmem:[%s796] sm:$0x3]
        %v798 = vld [vmem:[%s284] sm:$0xff]
        %v799 = vld [vmem:[%s284 + $0x8] sm:$0xff]
        %v800 = vld [vmem:[%s284 + $0x10] sm:$0xff]
        %v801 = vld [vmem:[%s284 + $0x18] sm:$0xff]
        %v802 = vld [vmem:[%s284 + $0x20] sm:$0xff]
        %v803 = vld [vmem:[%s284 + $0x28] sm:$0xff]
        %v804 = vld [vmem:[%s284 + $0x30] sm:$0xff]
        %v805 = vld [vmem:[%s284 + $0x38] sm:$0xff]
        %v806 = vld [vmem:[%s293] sm:$0xff]
        %v807 = vld [vmem:[%s293 + $0x8] sm:$0xff]
        %v808 = vld [vmem:[%s293 + $0x10] sm:$0xff]
        %v809 = vld [vmem:[%s293 + $0x18] sm:$0xff]
        %v810 = vld [vmem:[%s293 + $0x20] sm:$0xff]
        %v811 = vld [vmem:[%s293 + $0x28] sm:$0xff]
        %v812 = vld [vmem:[%s293 + $0x30] sm:$0xff]
        %v813 = vld [vmem:[%s293 + $0x38] sm:$0xff]
        %v814 = vld [vmem:[%s293 + $0x40] sm:$0xff]
        %v815 = vld [vmem:[%s293 + $0x48] sm:$0xff]
        %v816 = vld [vmem:[%s293 + $0x50] sm:$0xff]
        %v817 = vld [vmem:[%s293 + $0x58] sm:$0xff]
        %v818 = vld [vmem:[%s293 + $0x60] sm:$0xff]
        %v819 = vld [vmem:[%s293 + $0x68] sm:$0xff]
        %v820 = vld [vmem:[%s293 + $0x70] sm:$0xff]
        %v821 = vld [vmem:[%s293 + $0x78] sm:$0xff]
        %v822 = vld [vmem:[%s293 + $0x80] sm:$0xff]
        %v823 = vld [vmem:[%s293 + $0x88] sm:$0xff]
        %v824 = vld [vmem:[%s293 + $0x90] sm:$0xff]
        %v825 = vld [vmem:[%s293 + $0x98] sm:$0xff]
        %v826 = vld [vmem:[%s293 + $0xa0] sm:$0xff]
        %v827 = vld [vmem:[%s293 + $0xa8] sm:$0xff]
        %v828 = vld [vmem:[%s293 + $0xb0] sm:$0xff]
        %v829 = vld [vmem:[%s293 + $0xb8] sm:$0xff]
        %v830 = vld [vmem:[%s293 + $0xc0] sm:$0xff]
        %v831 = vld [vmem:[%s293 + $0xc8] sm:$0xff]
        %v832 = vld [vmem:[%s293 + $0xd0] sm:$0xff]
        %v833 = vld [vmem:[%s293 + $0xd8] sm:$0xff]
        %v834 = vld [vmem:[%s293 + $0xe0] sm:$0xff]
        %v835 = vld [vmem:[%s293 + $0xe8] sm:$0xff]
        %v836 = vld [vmem:[%s293 + $0xf0] sm:$0xff]
        %v837 = vld [vmem:[%s293 + $0xf8] sm:$0xff]
        %v838 = vld [vmem:[%s293 + $0x100] sm:$0xff]
        %v839 = vld [vmem:[%s293 + $0x108] sm:$0xff]
        %v840 = vld [vmem:[%s293 + $0x110] sm:$0xff]
        %v841 = vld [vmem:[%s293 + $0x118] sm:$0xff]
        %v842 = vld [vmem:[%s293 + $0x120] sm:$0xff]
        %v843 = vld [vmem:[%s293 + $0x128] sm:$0xff]
        %v844 = vld [vmem:[%s293 + $0x130] sm:$0xff]
        %v845 = vld [vmem:[%s293 + $0x138] sm:$0xff]
        %v846 = vld [vmem:[%s293 + $0x140] sm:$0xff]
        %v847 = vld [vmem:[%s293 + $0x148] sm:$0xff]
        %v848 = vld [vmem:[%s293 + $0x150] sm:$0xff]
        %v849 = vld [vmem:[%s293 + $0x158] sm:$0xff]
        %v850 = vld [vmem:[%s293 + $0x160] sm:$0xff]
        %v851 = vld [vmem:[%s293 + $0x168] sm:$0xff]
        %v852 = vld [vmem:[%s293 + $0x170] sm:$0xff]
        %v853 = vld [vmem:[%s293 + $0x178] sm:$0xff]
        %v854 = vld [vmem:[%s293 + $0x180] sm:$0xff]
        %v855 = vld [vmem:[%s293 + $0x188] sm:$0xff]
        %v856 = vld [vmem:[%s293 + $0x190] sm:$0xff]
        %v857 = vld [vmem:[%s293 + $0x198] sm:$0xff]
        %v858 = vld [vmem:[%s293 + $0x1a0] sm:$0xff]
        %v859 = vld [vmem:[%s293 + $0x1a8] sm:$0xff]
        %v860 = vld [vmem:[%s293 + $0x1b0] sm:$0xff]
        %v861 = vld [vmem:[%s293 + $0x1b8] sm:$0xff]
        %v862 = vld [vmem:[%s293 + $0x1c0] sm:$0xff]
        %v863 = vld [vmem:[%s293 + $0x1c8] sm:$0xff]
        %v864 = vld [vmem:[%s293 + $0x1d0] sm:$0xff]
        %v865 = vld [vmem:[%s293 + $0x1d8] sm:$0xff]
        %v866 = vld [vmem:[%s293 + $0x1e0] sm:$0xff]
        %v867 = vld [vmem:[%s293 + $0x1e8] sm:$0xff]
        %v868 = vld [vmem:[%s293 + $0x1f0] sm:$0xff]
        %v869 = vld [vmem:[%s293 + $0x1f8] sm:$0xff]
        %870 = vmatprep.subr.mxu0 %v867
        %871 = vmatpush1.msra.mxu0 %v866
        %872 = vmatprep.subr.mxu0 %v863
        %873 = vmatpush1.msra.mxu0 %v862
        %874 = vmatprep.subr.mxu0 %v859
        %875 = vmatpush1.msra.mxu0 %v858
        %876 = vmatprep.subr.mxu0 %v855
        %877 = vmatpush1.msra.mxu0 %v854
        %878 = vmatprep.subr.mxu0 %v851
        %879 = vmatpush1.msra.mxu0 %v850
        %880 = vmatprep.subr.mxu0 %v847
        %881 = vmatpush1.msra.mxu0 %v846
        %882 = vmatprep.subr.mxu0 %v843
        %883 = vmatpush1.msra.mxu0 %v842
        %884 = vmatprep.subr.mxu0 %v839
        %885 = vmatpush1.msra.mxu0 %v838
        %886 = vmatprep.subr.mxu0 %v835
        %887 = vmatpush1.msra.mxu0 %v834
        %888 = vmatprep.subr.mxu0 %v831
        %889 = vmatpush1.msra.mxu0 %v830
        %890 = vmatprep.subr.mxu0 %v827
        %891 = vmatpush1.msra.mxu0 %v826
        %892 = vmatprep.subr.mxu0 %v823
        %893 = vmatpush1.msra.mxu0 %v822
        %894 = vmatprep.subr.mxu0 %v819
        %895 = vmatpush1.msra.mxu0 %v818
        %896 = vmatprep.subr.mxu0 %v815
        %897 = vmatpush1.msra.mxu0 %v814
        %898 = vmatprep.subr.mxu0 %v811
        %899 = vmatpush1.msra.mxu0 %v810
        %900 = vmatprep.subr.mxu0 %v807
        %901 = vmatpush1.msra.mxu0 %v806
        %902 = vmatprep.subr.mxu0 0.0
        %903 = vmatpush2.msra.mxu0 0.0
        %904 = vmatprep.subr.mxu0 0.0
        %905 = vmatpush2.msra.mxu0 0.0
        %906 = vmatprep.subr.mxu0 0.0
        %907 = vmatpush2.msra.mxu0 0.0
        %908 = vmatprep.subr.mxu0 0.0
        %909 = vmatpush2.msra.mxu0 0.0
        %910 = vmatprep.subr.mxu0 0.0
        %911 = vmatpush2.msra.mxu0 0.0
        %912 = vmatprep.subr.mxu0 0.0
        %913 = vmatpush2.msra.mxu0 0.0
        %914 = vmatprep.subr.mxu0 0.0
        %915 = vmatpush2.msra.mxu0 0.0
        %916 = vmatprep.subr.mxu0 0.0
        %917 = vmatpush2.msra.mxu0 0.0
        %918 = vmatprep.subr.mxu0 0.0
        %919 = vmatpush2.msra.mxu0 0.0
        %920 = vmatprep.subr.mxu0 0.0
        %921 = vmatpush2.msra.mxu0 0.0
        %922 = vmatprep.subr.mxu0 0.0
        %923 = vmatpush2.msra.mxu0 0.0
        %924 = vmatprep.subr.mxu0 0.0
        %925 = vmatpush2.msra.mxu0 0.0
        %926 = vmatprep.subr.mxu0 0.0
        %927 = vmatpush2.msra.mxu0 0.0
        %928 = vmatprep.subr.mxu0 0.0
        %929 = vmatpush2.msra.mxu0 0.0
        %930 = vmatprep.subr.mxu0 0.0
        %931 = vmatpush2.msra.mxu0 0.0
        %932 = vmatprep.subr.mxu0 0.0
        %933 = vmatpush2.msra.mxu0 0.0
        %934 = vmatprep.mubr.f32.mxu0 0.0
        %935 = vmatmul.mubr.f32.gmra.mxu0 %v793
        %v936 = vpop.f32.mrf.mxu0
        %v937 = vadd.f32 0.0, %v936
        %v938 = vpop.f32.mrf.mxu0
        %v939 = vadd.f32 0.0, %v938
        %940 = vdwg.mxu0
        %941 = vmatprep.subr.mxu0 %v869
        %942 = vmatpush1.msra.mxu0 %v868
        %943 = vmatprep.subr.mxu0 %v865
        %944 = vmatpush1.msra.mxu0 %v864
        %945 = vmatprep.subr.mxu0 %v861
        %946 = vmatpush1.msra.mxu0 %v860
        %947 = vmatprep.subr.mxu0 %v857
        %948 = vmatpush1.msra.mxu0 %v856
        %949 = vmatprep.subr.mxu0 %v853
        %950 = vmatpush1.msra.mxu0 %v852
        %951 = vmatprep.subr.mxu0 %v849
        %952 = vmatpush1.msra.mxu0 %v848
        %953 = vmatprep.subr.mxu0 %v845
        %954 = vmatpush1.msra.mxu0 %v844
        %955 = vmatprep.subr.mxu0 %v841
        %956 = vmatpush1.msra.mxu0 %v840
        %957 = vmatprep.subr.mxu0 %v837
        %958 = vmatpush1.msra.mxu0 %v836
        %959 = vmatprep.subr.mxu0 %v833
        %960 = vmatpush1.msra.mxu0 %v832
        %961 = vmatprep.subr.mxu0 %v829
        %962 = vmatpush1.msra.mxu0 %v828
        %963 = vmatprep.subr.mxu0 %v825
        %964 = vmatpush1.msra.mxu0 %v824
        %965 = vmatprep.subr.mxu0 %v821
        %966 = vmatpush1.msra.mxu0 %v820
        %967 = vmatprep.subr.mxu0 %v817
        %968 = vmatpush1.msra.mxu0 %v816
        %969 = vmatprep.subr.mxu0 %v813
        %970 = vmatpush1.msra.mxu0 %v812
        %971 = vmatprep.subr.mxu0 %v809
        %972 = vmatpush1.msra.mxu0 %v808
        %973 = vmatprep.subr.mxu0 0.0
        %974 = vmatpush2.msra.mxu0 0.0
        %975 = vmatprep.subr.mxu0 0.0
        %976 = vmatpush2.msra.mxu0 0.0
        %977 = vmatprep.subr.mxu0 0.0
        %978 = vmatpush2.msra.mxu0 0.0
        %979 = vmatprep.subr.mxu0 0.0
        %980 = vmatpush2.msra.mxu0 0.0
        %981 = vmatprep.subr.mxu0 0.0
        %982 = vmatpush2.msra.mxu0 0.0
        %983 = vmatprep.subr.mxu0 0.0
        %984 = vmatpush2.msra.mxu0 0.0
        %985 = vmatprep.subr.mxu0 0.0
        %986 = vmatpush2.msra.mxu0 0.0
        %987 = vmatprep.subr.mxu0 0.0
        %988 = vmatpush2.msra.mxu0 0.0
        %989 = vmatprep.subr.mxu0 0.0
        %990 = vmatpush2.msra.mxu0 0.0
        %991 = vmatprep.subr.mxu0 0.0
        %992 = vmatpush2.msra.mxu0 0.0
        %993 = vmatprep.subr.mxu0 0.0
        %994 = vmatpush2.msra.mxu0 0.0
        %995 = vmatprep.subr.mxu0 0.0
        %996 = vmatpush2.msra.mxu0 0.0
        %997 = vmatprep.subr.mxu0 0.0
        %998 = vmatpush2.msra.mxu0 0.0
        %999 = vmatprep.subr.mxu0 0.0
        %1000 = vmatpush2.msra.mxu0 0.0
        %1001 = vmatprep.subr.mxu0 0.0
        %1002 = vmatpush2.msra.mxu0 0.0
        %1003 = vmatprep.subr.mxu0 0.0
        %1004 = vmatpush2.msra.mxu0 0.0
        %1005 = vmatprep.mubr.f32.mxu0 0.0
        %1006 = vmatmul.mubr.f32.gmra.mxu0 %v793
        %v1007 = vpop.f32.mrf.mxu0
        %v1008 = vadd.f32 0.0, %v1007
        %v1009 = vpop.f32.mrf.mxu0
        %v1010 = vadd.f32 0.0, %v1009
        %1011 = vdwg.mxu0
        %v1013 = vsel %vm590, %v797, 0
        %1015 = vmatprep.subr.mxu0 0.0
        %1016 = vmatpush1.msra.mxu0 0.0
        %1017 = vmatprep.subr.mxu0 0.0
        %1018 = vmatpush1.msra.mxu0 0.0
        %1019 = vmatprep.subr.mxu0 0.0
        %1020 = vmatpush1.msra.mxu0 0.0
        %1021 = vmatprep.subr.mxu0 0.0
        %1022 = vmatpush1.msra.mxu0 0.0
        %1023 = vmatprep.subr.mxu0 0.0
        %1024 = vmatpush1.msra.mxu0 0.0
        %1025 = vmatprep.subr.mxu0 0.0
        %1026 = vmatpush1.msra.mxu0 0.0
        %1027 = vmatprep.subr.mxu0 0.0
        %1028 = vmatpush1.msra.mxu0 0.0
        %1029 = vmatprep.subr.mxu0 0.0
        %1030 = vmatpush1.msra.mxu0 0.0
        %1031 = vmatprep.subr.mxu0 0.0
        %1032 = vmatpush1.msra.mxu0 0.0
        %1033 = vmatprep.subr.mxu0 0.0
        %1034 = vmatpush1.msra.mxu0 0.0
        %1035 = vmatprep.subr.mxu0 0.0
        %1036 = vmatpush1.msra.mxu0 0.0
        %1037 = vmatprep.subr.mxu0 0.0
        %1038 = vmatpush1.msra.mxu0 0.0
        %1039 = vmatprep.subr.mxu0 0.0
        %1040 = vmatpush1.msra.mxu0 0.0
        %1041 = vmatprep.subr.mxu0 0.0
        %1042 = vmatpush1.msra.mxu0 0.0
        %1043 = vmatprep.subr.mxu0 %v803
        %1044 = vmatpush1.msra.mxu0 %v802
        %1045 = vmatprep.subr.mxu0 %v799
        %1046 = vmatpush1.msra.mxu0 %v798
        %1047 = vmatprep.subr.mxu0 0.0
        %1048 = vmatpush2.msra.mxu0 0.0
        %1049 = vmatprep.subr.mxu0 0.0
        %1050 = vmatpush2.msra.mxu0 0.0
        %1051 = vmatprep.subr.mxu0 0.0
        %1052 = vmatpush2.msra.mxu0 0.0
        %1053 = vmatprep.subr.mxu0 0.0
        %1054 = vmatpush2.msra.mxu0 0.0
        %1055 = vmatprep.subr.mxu0 0.0
        %1056 = vmatpush2.msra.mxu0 0.0
        %1057 = vmatprep.subr.mxu0 0.0
        %1058 = vmatpush2.msra.mxu0 0.0
        %1059 = vmatprep.subr.mxu0 0.0
        %1060 = vmatpush2.msra.mxu0 0.0
        %1061 = vmatprep.subr.mxu0 0.0
        %1062 = vmatpush2.msra.mxu0 0.0
        %1063 = vmatprep.subr.mxu0 0.0
        %1064 = vmatpush2.msra.mxu0 0.0
        %1065 = vmatprep.subr.mxu0 0.0
        %1066 = vmatpush2.msra.mxu0 0.0
        %1067 = vmatprep.subr.mxu0 0.0
        %1068 = vmatpush2.msra.mxu0 0.0
        %1069 = vmatprep.subr.mxu0 0.0
        %1070 = vmatpush2.msra.mxu0 0.0
        %1071 = vmatprep.subr.mxu0 0.0
        %1072 = vmatpush2.msra.mxu0 0.0
        %1073 = vmatprep.subr.mxu0 0.0
        %1074 = vmatpush2.msra.mxu0 0.0
        %1075 = vmatprep.subr.mxu0 0.0
        %1076 = vmatpush2.msra.mxu0 0.0
        %1077 = vmatprep.subr.mxu0 0.0
        %1078 = vmatpush2.msra.mxu0 0.0
        %1079 = vmatprep.mubr.f32.mxu0 0.0
        %1080 = vmatmul.mubr.f32.gmra.mxu0 %v1013
        %v1081 = vpop.f32.mrf.mxu0
        %v1082 = vadd.f32 %v937, %v1081
        %v1083 = vpop.f32.mrf.mxu0
        %v1084 = vadd.f32 %v939, %v1083
        %1085 = vdwg.mxu0
        %1086 = vmatprep.subr.mxu0 0.0
        %1087 = vmatpush1.msra.mxu0 0.0
        %1088 = vmatprep.subr.mxu0 0.0
        %1089 = vmatpush1.msra.mxu0 0.0
        %1090 = vmatprep.subr.mxu0 0.0
        %1091 = vmatpush1.msra.mxu0 0.0
        %1092 = vmatprep.subr.mxu0 0.0
        %1093 = vmatpush1.msra.mxu0 0.0
        %1094 = vmatprep.subr.mxu0 0.0
        %1095 = vmatpush1.msra.mxu0 0.0
        %1096 = vmatprep.subr.mxu0 0.0
        %1097 = vmatpush1.msra.mxu0 0.0
        %1098 = vmatprep.subr.mxu0 0.0
        %1099 = vmatpush1.msra.mxu0 0.0
        %1100 = vmatprep.subr.mxu0 0.0
        %1101 = vmatpush1.msra.mxu0 0.0
        %1102 = vmatprep.subr.mxu0 0.0
        %1103 = vmatpush1.msra.mxu0 0.0
        %1104 = vmatprep.subr.mxu0 0.0
        %1105 = vmatpush1.msra.mxu0 0.0
        %1106 = vmatprep.subr.mxu0 0.0
        %1107 = vmatpush1.msra.mxu0 0.0
        %1108 = vmatprep.subr.mxu0 0.0
        %1109 = vmatpush1.msra.mxu0 0.0
        %1110 = vmatprep.subr.mxu0 0.0
        %1111 = vmatpush1.msra.mxu0 0.0
        %1112 = vmatprep.subr.mxu0 0.0
        %1113 = vmatpush1.msra.mxu0 0.0
        %1114 = vmatprep.subr.mxu0 %v805
        %1115 = vmatpush1.msra.mxu0 %v804
        %1116 = vmatprep.subr.mxu0 %v801
        %1117 = vmatpush1.msra.mxu0 %v800
        %1118 = vmatprep.subr.mxu0 0.0
        %1119 = vmatpush2.msra.mxu0 0.0
        %1120 = vmatprep.subr.mxu0 0.0
        %1121 = vmatpush2.msra.mxu0 0.0
        %1122 = vmatprep.subr.mxu0 0.0
        %1123 = vmatpush2.msra.mxu0 0.0
        %1124 = vmatprep.subr.mxu0 0.0
        %1125 = vmatpush2.msra.mxu0 0.0
        %1126 = vmatprep.subr.mxu0 0.0
        %1127 = vmatpush2.msra.mxu0 0.0
        %1128 = vmatprep.subr.mxu0 0.0
        %1129 = vmatpush2.msra.mxu0 0.0
        %1130 = vmatprep.subr.mxu0 0.0
        %1131 = vmatpush2.msra.mxu0 0.0
        %1132 = vmatprep.subr.mxu0 0.0
        %1133 = vmatpush2.msra.mxu0 0.0
        %1134 = vmatprep.subr.mxu0 0.0
        %1135 = vmatpush2.msra.mxu0 0.0
        %1136 = vmatprep.subr.mxu0 0.0
        %1137 = vmatpush2.msra.mxu0 0.0
        %1138 = vmatprep.subr.mxu0 0.0
        %1139 = vmatpush2.msra.mxu0 0.0
        %1140 = vmatprep.subr.mxu0 0.0
        %1141 = vmatpush2.msra.mxu0 0.0
        %1142 = vmatprep.subr.mxu0 0.0
        %1143 = vmatpush2.msra.mxu0 0.0
        %1144 = vmatprep.subr.mxu0 0.0
        %1145 = vmatpush2.msra.mxu0 0.0
        %1146 = vmatprep.subr.mxu0 0.0
        %1147 = vmatpush2.msra.mxu0 0.0
        %1148 = vmatprep.subr.mxu0 0.0
        %1149 = vmatpush2.msra.mxu0 0.0
        %1150 = vmatprep.mubr.f32.mxu0 0.0
        %1151 = vmatmul.mubr.f32.gmra.mxu0 %v1013
        %v1152 = vpop.f32.mrf.mxu0
        %v1153 = vadd.f32 %v1008, %v1152
        %v1154 = vpop.f32.mrf.mxu0
        %v1155 = vadd.f32 %v1010, %v1154
        %1156 = vdwg.mxu0
        %v1157 = vld [vmem:[%s302] sm:$0xf]
        %v1159 = vlaneseq
        %v1160 = vshrl.u32 %v1159, 7
        %v1161 = vsub.s32 0, %v1160
        %v1162 = vrot.slane %v1157, %v1161
        %v1163 = vlaneseq
        %v1164 = vshrl.u32 %v1163, 7
        %v1165 = vsub.s32 1, %v1164
        %v1166 = vrot.slane %v1157, %v1165
        %v1167 = vlaneseq
        %v1168 = vshrl.u32 %v1167, 7
        %v1169 = vsub.s32 2, %v1168
        %v1170 = vrot.slane %v1157, %v1169
        %v1171 = vlaneseq
        %v1172 = vshrl.u32 %v1171, 7
        %v1173 = vsub.s32 3, %v1172
        %v1174 = vrot.slane %v1157, %v1173
        %v1179 = vadd.f32 %v1082, %v1162
        %v1180 = vadd.f32 %v1084, %v1166
        %v1181 = vadd.f32 %v1153, %v1170
        %v1182 = vadd.f32 %v1155, %v1174
        %v1183 = vxor.u32 %v1179, 2147483648
        %v1184 = vmul.f32 %v1183, 1.442695
        %v1185 = vpow.pop %v1184
        %v1186 = vadd.f32 %v1185, 1.0
        %v1187 = vrcp.pop %v1186
        %v1188 = vmul.f32 1.0, %v1187
        %v1189 = vxor.u32 %v1180, 2147483648
        %v1190 = vmul.f32 %v1189, 1.442695
        %v1191 = vpow.pop %v1190
        %v1192 = vadd.f32 %v1191, 1.0
        %v1193 = vrcp.pop %v1192
        %v1194 = vmul.f32 1.0, %v1193
        %v1195 = vtanh.pop %v1181
        %v1196 = vxor.u32 %v1182, 2147483648
        %v1197 = vmul.f32 %v1196, 1.442695
        %v1198 = vpow.pop %v1197
        %v1199 = vadd.f32 %v1198, 1.0
        %v1200 = vrcp.pop %v1199
        %v1201 = vmul.f32 1.0, %v1200
        %v1202 = vmul.f32 %v1194, %v794
        %v1203 = vmul.f32 %v1188, %v1195
        %v1204 = vadd.f32 %v1202, %v1203
        %v1205 = vtanh.pop %v1204
        %v1206 = vmul.f32 %v1201, %v1205
        %1207 = vst [vmem:[#allocation3] sm:$0x3] %v1204
        %1208 = vst [vmem:[#allocation2] sm:$0x3] %v1206
        %s1209 = scalar_lea.vmem %s344, %s795 [#allocation9]
        %1210 = vst [vmem:[%s1209] sm:$0x3] %v1206
        %s1211 = smul.u32 %s790, 2
        %s1212 = sadd.s32 %s1211, %s25
        %v1213 = vld [vmem:[#allocation2] sm:$0x3]
        %v1214 = vld [vmem:[#allocation3] sm:$0x3]
        %s1215 = smul.u32 %s1212, 2
        %s1216 = scalar_lea.vmem %s353, %s1215
        %v1217 = vld [vmem:[%s1216] sm:$0x3]
        %v1218 = vld [vmem:[%s284] sm:$0xff]
        %v1219 = vld [vmem:[%s284 + $0x8] sm:$0xff]
        %v1220 = vld [vmem:[%s284 + $0x10] sm:$0xff]
        %v1221 = vld [vmem:[%s284 + $0x18] sm:$0xff]
        %v1222 = vld [vmem:[%s284 + $0x20] sm:$0xff]
        %v1223 = vld [vmem:[%s284 + $0x28] sm:$0xff]
        %v1224 = vld [vmem:[%s284 + $0x30] sm:$0xff]
        %v1225 = vld [vmem:[%s284 + $0x38] sm:$0xff]
        %v1226 = vld [vmem:[%s293] sm:$0xff]
        %v1227 = vld [vmem:[%s293 + $0x8] sm:$0xff]
        %v1228 = vld [vmem:[%s293 + $0x10] sm:$0xff]
        %v1229 = vld [vmem:[%s293 + $0x18] sm:$0xff]
        %v1230 = vld [vmem:[%s293 + $0x20] sm:$0xff]
        %v1231 = vld [vmem:[%s293 + $0x28] sm:$0xff]
        %v1232 = vld [vmem:[%s293 + $0x30] sm:$0xff]
        %v1233 = vld [vmem:[%s293 + $0x38] sm:$0xff]
        %v1234 = vld [vmem:[%s293 + $0x40] sm:$0xff]
        %v1235 = vld [vmem:[%s293 + $0x48] sm:$0xff]
        %v1236 = vld [vmem:[%s293 + $0x50] sm:$0xff]
        %v1237 = vld [vmem:[%s293 + $0x58] sm:$0xff]
        %v1238 = vld [vmem:[%s293 + $0x60] sm:$0xff]
        %v1239 = vld [vmem:[%s293 + $0x68] sm:$0xff]
        %v1240 = vld [vmem:[%s293 + $0x70] sm:$0xff]
        %v1241 = vld [vmem:[%s293 + $0x78] sm:$0xff]
        %v1242 = vld [vmem:[%s293 + $0x80] sm:$0xff]
        %v1243 = vld [vmem:[%s293 + $0x88] sm:$0xff]
        %v1244 = vld [vmem:[%s293 + $0x90] sm:$0xff]
        %v1245 = vld [vmem:[%s293 + $0x98] sm:$0xff]
        %v1246 = vld [vmem:[%s293 + $0xa0] sm:$0xff]
        %v1247 = vld [vmem:[%s293 + $0xa8] sm:$0xff]
        %v1248 = vld [vmem:[%s293 + $0xb0] sm:$0xff]
        %v1249 = vld [vmem:[%s293 + $0xb8] sm:$0xff]
        %v1250 = vld [vmem:[%s293 + $0xc0] sm:$0xff]
        %v1251 = vld [vmem:[%s293 + $0xc8] sm:$0xff]
        %v1252 = vld [vmem:[%s293 + $0xd0] sm:$0xff]
        %v1253 = vld [vmem:[%s293 + $0xd8] sm:$0xff]
        %v1254 = vld [vmem:[%s293 + $0xe0] sm:$0xff]
        %v1255 = vld [vmem:[%s293 + $0xe8] sm:$0xff]
        %v1256 = vld [vmem:[%s293 + $0xf0] sm:$0xff]
        %v1257 = vld [vmem:[%s293 + $0xf8] sm:$0xff]
        %v1258 = vld [vmem:[%s293 + $0x100] sm:$0xff]
        %v1259 = vld [vmem:[%s293 + $0x108] sm:$0xff]
        %v1260 = vld [vmem:[%s293 + $0x110] sm:$0xff]
        %v1261 = vld [vmem:[%s293 + $0x118] sm:$0xff]
        %v1262 = vld [vmem:[%s293 + $0x120] sm:$0xff]
        %v1263 = vld [vmem:[%s293 + $0x128] sm:$0xff]
        %v1264 = vld [vmem:[%s293 + $0x130] sm:$0xff]
        %v1265 = vld [vmem:[%s293 + $0x138] sm:$0xff]
        %v1266 = vld [vmem:[%s293 + $0x140] sm:$0xff]
        %v1267 = vld [vmem:[%s293 + $0x148] sm:$0xff]
        %v1268 = vld [vmem:[%s293 + $0x150] sm:$0xff]
        %v1269 = vld [vmem:[%s293 + $0x158] sm:$0xff]
        %v1270 = vld [vmem:[%s293 + $0x160] sm:$0xff]
        %v1271 = vld [vmem:[%s293 + $0x168] sm:$0xff]
        %v1272 = vld [vmem:[%s293 + $0x170] sm:$0xff]
        %v1273 = vld [vmem:[%s293 + $0x178] sm:$0xff]
        %v1274 = vld [vmem:[%s293 + $0x180] sm:$0xff]
        %v1275 = vld [vmem:[%s293 + $0x188] sm:$0xff]
        %v1276 = vld [vmem:[%s293 + $0x190] sm:$0xff]
        %v1277 = vld [vmem:[%s293 + $0x198] sm:$0xff]
        %v1278 = vld [vmem:[%s293 + $0x1a0] sm:$0xff]
        %v1279 = vld [vmem:[%s293 + $0x1a8] sm:$0xff]
        %v1280 = vld [vmem:[%s293 + $0x1b0] sm:$0xff]
        %v1281 = vld [vmem:[%s293 + $0x1b8] sm:$0xff]
        %v1282 = vld [vmem:[%s293 + $0x1c0] sm:$0xff]
        %v1283 = vld [vmem:[%s293 + $0x1c8] sm:$0xff]
        %v1284 = vld [vmem:[%s293 + $0x1d0] sm:$0xff]
        %v1285 = vld [vmem:[%s293 + $0x1d8] sm:$0xff]
        %v1286 = vld [vmem:[%s293 + $0x1e0] sm:$0xff]
        %v1287 = vld [vmem:[%s293 + $0x1e8] sm:$0xff]
        %v1288 = vld [vmem:[%s293 + $0x1f0] sm:$0xff]
        %v1289 = vld [vmem:[%s293 + $0x1f8] sm:$0xff]
        %1290 = vmatprep.subr.mxu0 %v1287
        %1291 = vmatpush1.msra.mxu0 %v1286
        %1292 = vmatprep.subr.mxu0 %v1283
        %1293 = vmatpush1.msra.mxu0 %v1282
        %1294 = vmatprep.subr.mxu0 %v1279
        %1295 = vmatpush1.msra.mxu0 %v1278
        %1296 = vmatprep.subr.mxu0 %v1275
        %1297 = vmatpush1.msra.mxu0 %v1274
        %1298 = vmatprep.subr.mxu0 %v1271
        %1299 = vmatpush1.msra.mxu0 %v1270
        %1300 = vmatprep.subr.mxu0 %v1267
        %1301 = vmatpush1.msra.mxu0 %v1266
        %1302 = vmatprep.subr.mxu0 %v1263
        %1303 = vmatpush1.msra.mxu0 %v1262
        %1304 = vmatprep.subr.mxu0 %v1259
        %1305 = vmatpush1.msra.mxu0 %v1258
        %1306 = vmatprep.subr.mxu0 %v1255
        %1307 = vmatpush1.msra.mxu0 %v1254
        %1308 = vmatprep.subr.mxu0 %v1251
        %1309 = vmatpush1.msra.mxu0 %v1250
        %1310 = vmatprep.subr.mxu0 %v1247
        %1311 = vmatpush1.msra.mxu0 %v1246
        %1312 = vmatprep.subr.mxu0 %v1243
        %1313 = vmatpush1.msra.mxu0 %v1242
        %1314 = vmatprep.subr.mxu0 %v1239
        %1315 = vmatpush1.msra.mxu0 %v1238
        %1316 = vmatprep.subr.mxu0 %v1235
        %1317 = vmatpush1.msra.mxu0 %v1234
        %1318 = vmatprep.subr.mxu0 %v1231
        %1319 = vmatpush1.msra.mxu0 %v1230
        %1320 = vmatprep.subr.mxu0 %v1227
        %1321 = vmatpush1.msra.mxu0 %v1226
        %1322 = vmatprep.subr.mxu0 0.0
        %1323 = vmatpush2.msra.mxu0 0.0
        %1324 = vmatprep.subr.mxu0 0.0
        %1325 = vmatpush2.msra.mxu0 0.0
        %1326 = vmatprep.subr.mxu0 0.0
        %1327 = vmatpush2.msra.mxu0 0.0
        %1328 = vmatprep.subr.mxu0 0.0
        %1329 = vmatpush2.msra.mxu0 0.0
        %1330 = vmatprep.subr.mxu0 0.0
        %1331 = vmatpush2.msra.mxu0 0.0
        %1332 = vmatprep.subr.mxu0 0.0
        %1333 = vmatpush2.msra.mxu0 0.0
        %1334 = vmatprep.subr.mxu0 0.0
        %1335 = vmatpush2.msra.mxu0 0.0
        %1336 = vmatprep.subr.mxu0 0.0
        %1337 = vmatpush2.msra.mxu0 0.0
        %1338 = vmatprep.subr.mxu0 0.0
        %1339 = vmatpush2.msra.mxu0 0.0
        %1340 = vmatprep.subr.mxu0 0.0
        %1341 = vmatpush2.msra.mxu0 0.0
        %1342 = vmatprep.subr.mxu0 0.0
        %1343 = vmatpush2.msra.mxu0 0.0
        %1344 = vmatprep.subr.mxu0 0.0
        %1345 = vmatpush2.msra.mxu0 0.0
        %1346 = vmatprep.subr.mxu0 0.0
        %1347 = vmatpush2.msra.mxu0 0.0
        %1348 = vmatprep.subr.mxu0 0.0
        %1349 = vmatpush2.msra.mxu0 0.0
        %1350 = vmatprep.subr.mxu0 0.0
        %1351 = vmatpush2.msra.mxu0 0.0
        %1352 = vmatprep.subr.mxu0 0.0
        %1353 = vmatpush2.msra.mxu0 0.0
        %1354 = vmatprep.mubr.f32.mxu0 0.0
        %1355 = vmatmul.mubr.f32.gmra.mxu0 %v1213
        %v1356 = vpop.f32.mrf.mxu0
        %v1357 = vadd.f32 0.0, %v1356
        %v1358 = vpop.f32.mrf.mxu0
        %v1359 = vadd.f32 0.0, %v1358
        %1360 = vdwg.mxu0
        %1361 = vmatprep.subr.mxu0 %v1289
        %1362 = vmatpush1.msra.mxu0 %v1288
        %1363 = vmatprep.subr.mxu0 %v1285
        %1364 = vmatpush1.msra.mxu0 %v1284
        %1365 = vmatprep.subr.mxu0 %v1281
        %1366 = vmatpush1.msra.mxu0 %v1280
        %1367 = vmatprep.subr.mxu0 %v1277
        %1368 = vmatpush1.msra.mxu0 %v1276
        %1369 = vmatprep.subr.mxu0 %v1273
        %1370 = vmatpush1.msra.mxu0 %v1272
        %1371 = vmatprep.subr.mxu0 %v1269
        %1372 = vmatpush1.msra.mxu0 %v1268
        %1373 = vmatprep.subr.mxu0 %v1265
        %1374 = vmatpush1.msra.mxu0 %v1264
        %1375 = vmatprep.subr.mxu0 %v1261
        %1376 = vmatpush1.msra.mxu0 %v1260
        %1377 = vmatprep.subr.mxu0 %v1257
        %1378 = vmatpush1.msra.mxu0 %v1256
        %1379 = vmatprep.subr.mxu0 %v1253
        %1380 = vmatpush1.msra.mxu0 %v1252
        %1381 = vmatprep.subr.mxu0 %v1249
        %1382 = vmatpush1.msra.mxu0 %v1248
        %1383 = vmatprep.subr.mxu0 %v1245
        %1384 = vmatpush1.msra.mxu0 %v1244
        %1385 = vmatprep.subr.mxu0 %v1241
        %1386 = vmatpush1.msra.mxu0 %v1240
        %1387 = vmatprep.subr.mxu0 %v1237
        %1388 = vmatpush1.msra.mxu0 %v1236
        %1389 = vmatprep.subr.mxu0 %v1233
        %1390 = vmatpush1.msra.mxu0 %v1232
        %1391 = vmatprep.subr.mxu0 %v1229
        %1392 = vmatpush1.msra.mxu0 %v1228
        %1393 = vmatprep.subr.mxu0 0.0
        %1394 = vmatpush2.msra.mxu0 0.0
        %1395 = vmatprep.subr.mxu0 0.0
        %1396 = vmatpush2.msra.mxu0 0.0
        %1397 = vmatprep.subr.mxu0 0.0
        %1398 = vmatpush2.msra.mxu0 0.0
        %1399 = vmatprep.subr.mxu0 0.0
        %1400 = vmatpush2.msra.mxu0 0.0
        %1401 = vmatprep.subr.mxu0 0.0
        %1402 = vmatpush2.msra.mxu0 0.0
        %1403 = vmatprep.subr.mxu0 0.0
        %1404 = vmatpush2.msra.mxu0 0.0
        %1405 = vmatprep.subr.mxu0 0.0
        %1406 = vmatpush2.msra.mxu0 0.0
        %1407 = vmatprep.subr.mxu0 0.0
        %1408 = vmatpush2.msra.mxu0 0.0
        %1409 = vmatprep.subr.mxu0 0.0
        %1410 = vmatpush2.msra.mxu0 0.0
        %1411 = vmatprep.subr.mxu0 0.0
        %1412 = vmatpush2.msra.mxu0 0.0
        %1413 = vmatprep.subr.mxu0 0.0
        %1414 = vmatpush2.msra.mxu0 0.0
        %1415 = vmatprep.subr.mxu0 0.0
        %1416 = vmatpush2.msra.mxu0 0.0
        %1417 = vmatprep.subr.mxu0 0.0
        %1418 = vmatpush2.msra.mxu0 0.0
        %1419 = vmatprep.subr.mxu0 0.0
        %1420 = vmatpush2.msra.mxu0 0.0
        %1421 = vmatprep.subr.mxu0 0.0
        %1422 = vmatpush2.msra.mxu0 0.0
        %1423 = vmatprep.subr.mxu0 0.0
        %1424 = vmatpush2.msra.mxu0 0.0
        %1425 = vmatprep.mubr.f32.mxu0 0.0
        %1426 = vmatmul.mubr.f32.gmra.mxu0 %v1213
        %v1427 = vpop.f32.mrf.mxu0
        %v1428 = vadd.f32 0.0, %v1427
        %v1429 = vpop.f32.mrf.mxu0
        %v1430 = vadd.f32 0.0, %v1429
        %1431 = vdwg.mxu0
        %v1433 = vsel %vm590, %v1217, 0
        %1435 = vmatprep.subr.mxu0 0.0
        %1436 = vmatpush1.msra.mxu0 0.0
        %1437 = vmatprep.subr.mxu0 0.0
        %1438 = vmatpush1.msra.mxu0 0.0
        %1439 = vmatprep.subr.mxu0 0.0
        %1440 = vmatpush1.msra.mxu0 0.0
        %1441 = vmatprep.subr.mxu0 0.0
        %1442 = vmatpush1.msra.mxu0 0.0
        %1443 = vmatprep.subr.mxu0 0.0
        %1444 = vmatpush1.msra.mxu0 0.0
        %1445 = vmatprep.subr.mxu0 0.0
        %1446 = vmatpush1.msra.mxu0 0.0
        %1447 = vmatprep.subr.mxu0 0.0
        %1448 = vmatpush1.msra.mxu0 0.0
        %1449 = vmatprep.subr.mxu0 0.0
        %1450 = vmatpush1.msra.mxu0 0.0
        %1451 = vmatprep.subr.mxu0 0.0
        %1452 = vmatpush1.msra.mxu0 0.0
        %1453 = vmatprep.subr.mxu0 0.0
        %1454 = vmatpush1.msra.mxu0 0.0
        %1455 = vmatprep.subr.mxu0 0.0
        %1456 = vmatpush1.msra.mxu0 0.0
        %1457 = vmatprep.subr.mxu0 0.0
        %1458 = vmatpush1.msra.mxu0 0.0
        %1459 = vmatprep.subr.mxu0 0.0
        %1460 = vmatpush1.msra.mxu0 0.0
        %1461 = vmatprep.subr.mxu0 0.0
        %1462 = vmatpush1.msra.mxu0 0.0
        %1463 = vmatprep.subr.mxu0 %v1223
        %1464 = vmatpush1.msra.mxu0 %v1222
        %1465 = vmatprep.subr.mxu0 %v1219
        %1466 = vmatpush1.msra.mxu0 %v1218
        %1467 = vmatprep.subr.mxu0 0.0
        %1468 = vmatpush2.msra.mxu0 0.0
        %1469 = vmatprep.subr.mxu0 0.0
        %1470 = vmatpush2.msra.mxu0 0.0
        %1471 = vmatprep.subr.mxu0 0.0
        %1472 = vmatpush2.msra.mxu0 0.0
        %1473 = vmatprep.subr.mxu0 0.0
        %1474 = vmatpush2.msra.mxu0 0.0
        %1475 = vmatprep.subr.mxu0 0.0
        %1476 = vmatpush2.msra.mxu0 0.0
        %1477 = vmatprep.subr.mxu0 0.0
        %1478 = vmatpush2.msra.mxu0 0.0
        %1479 = vmatprep.subr.mxu0 0.0
        %1480 = vmatpush2.msra.mxu0 0.0
        %1481 = vmatprep.subr.mxu0 0.0
        %1482 = vmatpush2.msra.mxu0 0.0
        %1483 = vmatprep.subr.mxu0 0.0
        %1484 = vmatpush2.msra.mxu0 0.0
        %1485 = vmatprep.subr.mxu0 0.0
        %1486 = vmatpush2.msra.mxu0 0.0
        %1487 = vmatprep.subr.mxu0 0.0
        %1488 = vmatpush2.msra.mxu0 0.0
        %1489 = vmatprep.subr.mxu0 0.0
        %1490 = vmatpush2.msra.mxu0 0.0
        %1491 = vmatprep.subr.mxu0 0.0
        %1492 = vmatpush2.msra.mxu0 0.0
        %1493 = vmatprep.subr.mxu0 0.0
        %1494 = vmatpush2.msra.mxu0 0.0
        %1495 = vmatprep.subr.mxu0 0.0
        %1496 = vmatpush2.msra.mxu0 0.0
        %1497 = vmatprep.subr.mxu0 0.0
        %1498 = vmatpush2.msra.mxu0 0.0
        %1499 = vmatprep.mubr.f32.mxu0 0.0
        %1500 = vmatmul.mubr.f32.gmra.mxu0 %v1433
        %v1501 = vpop.f32.mrf.mxu0
        %v1502 = vadd.f32 %v1357, %v1501
        %v1503 = vpop.f32.mrf.mxu0
        %v1504 = vadd.f32 %v1359, %v1503
        %1505 = vdwg.mxu0
        %1506 = vmatprep.subr.mxu0 0.0
        %1507 = vmatpush1.msra.mxu0 0.0
        %1508 = vmatprep.subr.mxu0 0.0
        %1509 = vmatpush1.msra.mxu0 0.0
        %1510 = vmatprep.subr.mxu0 0.0
        %1511 = vmatpush1.msra.mxu0 0.0
        %1512 = vmatprep.subr.mxu0 0.0
        %1513 = vmatpush1.msra.mxu0 0.0
        %1514 = vmatprep.subr.mxu0 0.0
        %1515 = vmatpush1.msra.mxu0 0.0
        %1516 = vmatprep.subr.mxu0 0.0
        %1517 = vmatpush1.msra.mxu0 0.0
        %1518 = vmatprep.subr.mxu0 0.0
        %1519 = vmatpush1.msra.mxu0 0.0
        %1520 = vmatprep.subr.mxu0 0.0
        %1521 = vmatpush1.msra.mxu0 0.0
        %1522 = vmatprep.subr.mxu0 0.0
        %1523 = vmatpush1.msra.mxu0 0.0
        %1524 = vmatprep.subr.mxu0 0.0
        %1525 = vmatpush1.msra.mxu0 0.0
        %1526 = vmatprep.subr.mxu0 0.0
        %1527 = vmatpush1.msra.mxu0 0.0
        %1528 = vmatprep.subr.mxu0 0.0
        %1529 = vmatpush1.msra.mxu0 0.0
        %1530 = vmatprep.subr.mxu0 0.0
        %1531 = vmatpush1.msra.mxu0 0.0
        %1532 = vmatprep.subr.mxu0 0.0
        %1533 = vmatpush1.msra.mxu0 0.0
        %1534 = vmatprep.subr.mxu0 %v1225
        %1535 = vmatpush1.msra.mxu0 %v1224
        %1536 = vmatprep.subr.mxu0 %v1221
        %1537 = vmatpush1.msra.mxu0 %v1220
        %1538 = vmatprep.subr.mxu0 0.0
        %1539 = vmatpush2.msra.mxu0 0.0
        %1540 = vmatprep.subr.mxu0 0.0
        %1541 = vmatpush2.msra.mxu0 0.0
        %1542 = vmatprep.subr.mxu0 0.0
        %1543 = vmatpush2.msra.mxu0 0.0
        %1544 = vmatprep.subr.mxu0 0.0
        %1545 = vmatpush2.msra.mxu0 0.0
        %1546 = vmatprep.subr.mxu0 0.0
        %1547 = vmatpush2.msra.mxu0 0.0
        %1548 = vmatprep.subr.mxu0 0.0
        %1549 = vmatpush2.msra.mxu0 0.0
        %1550 = vmatprep.subr.mxu0 0.0
        %1551 = vmatpush2.msra.mxu0 0.0
        %1552 = vmatprep.subr.mxu0 0.0
        %1553 = vmatpush2.msra.mxu0 0.0
        %1554 = vmatprep.subr.mxu0 0.0
        %1555 = vmatpush2.msra.mxu0 0.0
        %1556 = vmatprep.subr.mxu0 0.0
        %1557 = vmatpush2.msra.mxu0 0.0
        %1558 = vmatprep.subr.mxu0 0.0
        %1559 = vmatpush2.msra.mxu0 0.0
        %1560 = vmatprep.subr.mxu0 0.0
        %1561 = vmatpush2.msra.mxu0 0.0
        %1562 = vmatprep.subr.mxu0 0.0
        %1563 = vmatpush2.msra.mxu0 0.0
        %1564 = vmatprep.subr.mxu0 0.0
        %1565 = vmatpush2.msra.mxu0 0.0
        %1566 = vmatprep.subr.mxu0 0.0
        %1567 = vmatpush2.msra.mxu0 0.0
        %1568 = vmatprep.subr.mxu0 0.0
        %1569 = vmatpush2.msra.mxu0 0.0
        %1570 = vmatprep.mubr.f32.mxu0 0.0
        %1571 = vmatmul.mubr.f32.gmra.mxu0 %v1433
        %v1572 = vpop.f32.mrf.mxu0
        %v1573 = vadd.f32 %v1428, %v1572
        %v1574 = vpop.f32.mrf.mxu0
        %v1575 = vadd.f32 %v1430, %v1574
        %1576 = vdwg.mxu0
        %v1577 = vld [vmem:[%s302] sm:$0xf]
        %v1579 = vlaneseq
        %v1580 = vshrl.u32 %v1579, 7
        %v1581 = vsub.s32 0, %v1580
        %v1582 = vrot.slane %v1577, %v1581
        %v1583 = vlaneseq
        %v1584 = vshrl.u32 %v1583, 7
        %v1585 = vsub.s32 1, %v1584
        %v1586 = vrot.slane %v1577, %v1585
        %v1587 = vlaneseq
        %v1588 = vshrl.u32 %v1587, 7
        %v1589 = vsub.s32 2, %v1588
        %v1590 = vrot.slane %v1577, %v1589
        %v1591 = vlaneseq
        %v1592 = vshrl.u32 %v1591, 7
        %v1593 = vsub.s32 3, %v1592
        %v1594 = vrot.slane %v1577, %v1593
        %v1599 = vadd.f32 %v1502, %v1582
        %v1600 = vadd.f32 %v1504, %v1586
        %v1601 = vadd.f32 %v1573, %v1590
        %v1602 = vadd.f32 %v1575, %v1594
        %v1603 = vxor.u32 %v1599, 2147483648
        %v1604 = vmul.f32 %v1603, 1.442695
        %v1605 = vpow.pop %v1604
        %v1606 = vadd.f32 %v1605, 1.0
        %v1607 = vrcp.pop %v1606
        %v1608 = vmul.f32 1.0, %v1607
        %v1609 = vxor.u32 %v1600, 2147483648
        %v1610 = vmul.f32 %v1609, 1.442695
        %v1611 = vpow.pop %v1610
        %v1612 = vadd.f32 %v1611, 1.0
        %v1613 = vrcp.pop %v1612
        %v1614 = vmul.f32 1.0, %v1613
        %v1615 = vtanh.pop %v1601
        %v1616 = vxor.u32 %v1602, 2147483648
        %v1617 = vmul.f32 %v1616, 1.442695
        %v1618 = vpow.pop %v1617
        %v1619 = vadd.f32 %v1618, 1.0
        %v1620 = vrcp.pop %v1619
        %v1621 = vmul.f32 1.0, %v1620
        %v1622 = vmul.f32 %v1614, %v1214
        %v1623 = vmul.f32 %v1608, %v1615
        %v1624 = vadd.f32 %v1622, %v1623
        %v1625 = vtanh.pop %v1624
        %v1626 = vmul.f32 %v1621, %v1625
        %1627 = vst [vmem:[#allocation3] sm:$0x3] %v1624
        %1628 = vst [vmem:[#allocation2] sm:$0x3] %v1626
        %s1629 = scalar_lea.vmem %s344, %s1215 [#allocation9]
        %1630 = vst [vmem:[%s1629] sm:$0x3] %v1626
        %s1631 = smul.u32 %s790, 3
        %v1632 = vld [vmem:[#allocation2] sm:$0x3]
        %v1633 = vld [vmem:[#allocation3] sm:$0x3]
        %s1634 = smul.u32 %s1631, 2
        %s1635 = scalar_lea.vmem %s353, %s1634
        %v1636 = vld [vmem:[%s1635] sm:$0x3]
        %v1637 = vld [vmem:[%s284] sm:$0xff]
        %v1638 = vld [vmem:[%s284 + $0x8] sm:$0xff]
        %v1639 = vld [vmem:[%s284 + $0x10] sm:$0xff]
        %v1640 = vld [vmem:[%s284 + $0x18] sm:$0xff]
        %v1641 = vld [vmem:[%s284 + $0x20] sm:$0xff]
        %v1642 = vld [vmem:[%s284 + $0x28] sm:$0xff]
        %v1643 = vld [vmem:[%s284 + $0x30] sm:$0xff]
        %v1644 = vld [vmem:[%s284 + $0x38] sm:$0xff]
        %v1645 = vld [vmem:[%s293] sm:$0xff]
        %v1646 = vld [vmem:[%s293 + $0x8] sm:$0xff]
        %v1647 = vld [vmem:[%s293 + $0x10] sm:$0xff]
        %v1648 = vld [vmem:[%s293 + $0x18] sm:$0xff]
        %v1649 = vld [vmem:[%s293 + $0x20] sm:$0xff]
        %v1650 = vld [vmem:[%s293 + $0x28] sm:$0xff]
        %v1651 = vld [vmem:[%s293 + $0x30] sm:$0xff]
        %v1652 = vld [vmem:[%s293 + $0x38] sm:$0xff]
        %v1653 = vld [vmem:[%s293 + $0x40] sm:$0xff]
        %v1654 = vld [vmem:[%s293 + $0x48] sm:$0xff]
        %v1655 = vld [vmem:[%s293 + $0x50] sm:$0xff]
        %v1656 = vld [vmem:[%s293 + $0x58] sm:$0xff]
        %v1657 = vld [vmem:[%s293 + $0x60] sm:$0xff]
        %v1658 = vld [vmem:[%s293 + $0x68] sm:$0xff]
        %v1659 = vld [vmem:[%s293 + $0x70] sm:$0xff]
        %v1660 = vld [vmem:[%s293 + $0x78] sm:$0xff]
        %v1661 = vld [vmem:[%s293 + $0x80] sm:$0xff]
        %v1662 = vld [vmem:[%s293 + $0x88] sm:$0xff]
        %v1663 = vld [vmem:[%s293 + $0x90] sm:$0xff]
        %v1664 = vld [vmem:[%s293 + $0x98] sm:$0xff]
        %v1665 = vld [vmem:[%s293 + $0xa0] sm:$0xff]
        %v1666 = vld [vmem:[%s293 + $0xa8] sm:$0xff]
        %v1667 = vld [vmem:[%s293 + $0xb0] sm:$0xff]
        %v1668 = vld [vmem:[%s293 + $0xb8] sm:$0xff]
        %v1669 = vld [vmem:[%s293 + $0xc0] sm:$0xff]
        %v1670 = vld [vmem:[%s293 + $0xc8] sm:$0xff]
        %v1671 = vld [vmem:[%s293 + $0xd0] sm:$0xff]
        %v1672 = vld [vmem:[%s293 + $0xd8] sm:$0xff]
        %v1673 = vld [vmem:[%s293 + $0xe0] sm:$0xff]
        %v1674 = vld [vmem:[%s293 + $0xe8] sm:$0xff]
        %v1675 = vld [vmem:[%s293 + $0xf0] sm:$0xff]
        %v1676 = vld [vmem:[%s293 + $0xf8] sm:$0xff]
        %v1677 = vld [vmem:[%s293 + $0x100] sm:$0xff]
        %v1678 = vld [vmem:[%s293 + $0x108] sm:$0xff]
        %v1679 = vld [vmem:[%s293 + $0x110] sm:$0xff]
        %v1680 = vld [vmem:[%s293 + $0x118] sm:$0xff]
        %v1681 = vld [vmem:[%s293 + $0x120] sm:$0xff]
        %v1682 = vld [vmem:[%s293 + $0x128] sm:$0xff]
        %v1683 = vld [vmem:[%s293 + $0x130] sm:$0xff]
        %v1684 = vld [vmem:[%s293 + $0x138] sm:$0xff]
        %v1685 = vld [vmem:[%s293 + $0x140] sm:$0xff]
        %v1686 = vld [vmem:[%s293 + $0x148] sm:$0xff]
        %v1687 = vld [vmem:[%s293 + $0x150] sm:$0xff]
        %v1688 = vld [vmem:[%s293 + $0x158] sm:$0xff]
        %v1689 = vld [vmem:[%s293 + $0x160] sm:$0xff]
        %v1690 = vld [vmem:[%s293 + $0x168] sm:$0xff]
        %v1691 = vld [vmem:[%s293 + $0x170] sm:$0xff]
        %v1692 = vld [vmem:[%s293 + $0x178] sm:$0xff]
        %v1693 = vld [vmem:[%s293 + $0x180] sm:$0xff]
        %v1694 = vld [vmem:[%s293 + $0x188] sm:$0xff]
        %v1695 = vld [vmem:[%s293 + $0x190] sm:$0xff]
        %v1696 = vld [vmem:[%s293 + $0x198] sm:$0xff]
        %v1697 = vld [vmem:[%s293 + $0x1a0] sm:$0xff]
        %v1698 = vld [vmem:[%s293 + $0x1a8] sm:$0xff]
        %v1699 = vld [vmem:[%s293 + $0x1b0] sm:$0xff]
        %v1700 = vld [vmem:[%s293 + $0x1b8] sm:$0xff]
        %v1701 = vld [vmem:[%s293 + $0x1c0] sm:$0xff]
        %v1702 = vld [vmem:[%s293 + $0x1c8] sm:$0xff]
        %v1703 = vld [vmem:[%s293 + $0x1d0] sm:$0xff]
        %v1704 = vld [vmem:[%s293 + $0x1d8] sm:$0xff]
        %v1705 = vld [vmem:[%s293 + $0x1e0] sm:$0xff]
        %v1706 = vld [vmem:[%s293 + $0x1e8] sm:$0xff]
        %v1707 = vld [vmem:[%s293 + $0x1f0] sm:$0xff]
        %v1708 = vld [vmem:[%s293 + $0x1f8] sm:$0xff]
        %1709 = vmatprep.subr.mxu0 %v1706
        %1710 = vmatpush1.msra.mxu0 %v1705
        %1711 = vmatprep.subr.mxu0 %v1702
        %1712 = vmatpush1.msra.mxu0 %v1701
        %1713 = vmatprep.subr.mxu0 %v1698
        %1714 = vmatpush1.msra.mxu0 %v1697
        %1715 = vmatprep.subr.mxu0 %v1694
        %1716 = vmatpush1.msra.mxu0 %v1693
        %1717 = vmatprep.subr.mxu0 %v1690
        %1718 = vmatpush1.msra.mxu0 %v1689
        %1719 = vmatprep.subr.mxu0 %v1686
        %1720 = vmatpush1.msra.mxu0 %v1685
        %1721 = vmatprep.subr.mxu0 %v1682
        %1722 = vmatpush1.msra.mxu0 %v1681
        %1723 = vmatprep.subr.mxu0 %v1678
        %1724 = vmatpush1.msra.mxu0 %v1677
        %1725 = vmatprep.subr.mxu0 %v1674
        %1726 = vmatpush1.msra.mxu0 %v1673
        %1727 = vmatprep.subr.mxu0 %v1670
        %1728 = vmatpush1.msra.mxu0 %v1669
        %1729 = vmatprep.subr.mxu0 %v1666
        %1730 = vmatpush1.msra.mxu0 %v1665
        %1731 = vmatprep.subr.mxu0 %v1662
        %1732 = vmatpush1.msra.mxu0 %v1661
        %1733 = vmatprep.subr.mxu0 %v1658
        %1734 = vmatpush1.msra.mxu0 %v1657
        %1735 = vmatprep.subr.mxu0 %v1654
        %1736 = vmatpush1.msra.mxu0 %v1653
        %1737 = vmatprep.subr.mxu0 %v1650
        %1738 = vmatpush1.msra.mxu0 %v1649
        %1739 = vmatprep.subr.mxu0 %v1646
        %1740 = vmatpush1.msra.mxu0 %v1645
        %1741 = vmatprep.subr.mxu0 0.0
        %1742 = vmatpush2.msra.mxu0 0.0
        %1743 = vmatprep.subr.mxu0 0.0
        %1744 = vmatpush2.msra.mxu0 0.0
        %1745 = vmatprep.subr.mxu0 0.0
        %1746 = vmatpush2.msra.mxu0 0.0
        %1747 = vmatprep.subr.mxu0 0.0
        %1748 = vmatpush2.msra.mxu0 0.0
        %1749 = vmatprep.subr.mxu0 0.0
        %1750 = vmatpush2.msra.mxu0 0.0
        %1751 = vmatprep.subr.mxu0 0.0
        %1752 = vmatpush2.msra.mxu0 0.0
        %1753 = vmatprep.subr.mxu0 0.0
        %1754 = vmatpush2.msra.mxu0 0.0
        %1755 = vmatprep.subr.mxu0 0.0
        %1756 = vmatpush2.msra.mxu0 0.0
        %1757 = vmatprep.subr.mxu0 0.0
        %1758 = vmatpush2.msra.mxu0 0.0
        %1759 = vmatprep.subr.mxu0 0.0
        %1760 = vmatpush2.msra.mxu0 0.0
        %1761 = vmatprep.subr.mxu0 0.0
        %1762 = vmatpush2.msra.mxu0 0.0
        %1763 = vmatprep.subr.mxu0 0.0
        %1764 = vmatpush2.msra.mxu0 0.0
        %1765 = vmatprep.subr.mxu0 0.0
        %1766 = vmatpush2.msra.mxu0 0.0
        %1767 = vmatprep.subr.mxu0 0.0
        %1768 = vmatpush2.msra.mxu0 0.0
        %1769 = vmatprep.subr.mxu0 0.0
        %1770 = vmatpush2.msra.mxu0 0.0
        %1771 = vmatprep.subr.mxu0 0.0
        %1772 = vmatpush2.msra.mxu0 0.0
        %1773 = vmatprep.mubr.f32.mxu0 0.0
        %1774 = vmatmul.mubr.f32.gmra.mxu0 %v1632
        %v1775 = vpop.f32.mrf.mxu0
        %v1776 = vadd.f32 0.0, %v1775
        %v1777 = vpop.f32.mrf.mxu0
        %v1778 = vadd.f32 0.0, %v1777
        %1779 = vdwg.mxu0
        %1780 = vmatprep.subr.mxu0 %v1708
        %1781 = vmatpush1.msra.mxu0 %v1707
        %1782 = vmatprep.subr.mxu0 %v1704
        %1783 = vmatpush1.msra.mxu0 %v1703
        %1784 = vmatprep.subr.mxu0 %v1700
        %1785 = vmatpush1.msra.mxu0 %v1699
        %1786 = vmatprep.subr.mxu0 %v1696
        %1787 = vmatpush1.msra.mxu0 %v1695
        %1788 = vmatprep.subr.mxu0 %v1692
        %1789 = vmatpush1.msra.mxu0 %v1691
        %1790 = vmatprep.subr.mxu0 %v1688
        %1791 = vmatpush1.msra.mxu0 %v1687
        %1792 = vmatprep.subr.mxu0 %v1684
        %1793 = vmatpush1.msra.mxu0 %v1683
        %1794 = vmatprep.subr.mxu0 %v1680
        %1795 = vmatpush1.msra.mxu0 %v1679
        %1796 = vmatprep.subr.mxu0 %v1676
        %1797 = vmatpush1.msra.mxu0 %v1675
        %1798 = vmatprep.subr.mxu0 %v1672
        %1799 = vmatpush1.msra.mxu0 %v1671
        %1800 = vmatprep.subr.mxu0 %v1668
        %1801 = vmatpush1.msra.mxu0 %v1667
        %1802 = vmatprep.subr.mxu0 %v1664
        %1803 = vmatpush1.msra.mxu0 %v1663
        %1804 = vmatprep.subr.mxu0 %v1660
        %1805 = vmatpush1.msra.mxu0 %v1659
        %1806 = vmatprep.subr.mxu0 %v1656
        %1807 = vmatpush1.msra.mxu0 %v1655
        %1808 = vmatprep.subr.mxu0 %v1652
        %1809 = vmatpush1.msra.mxu0 %v1651
        %1810 = vmatprep.subr.mxu0 %v1648
        %1811 = vmatpush1.msra.mxu0 %v1647
        %1812 = vmatprep.subr.mxu0 0.0
        %1813 = vmatpush2.msra.mxu0 0.0
        %1814 = vmatprep.subr.mxu0 0.0
        %1815 = vmatpush2.msra.mxu0 0.0
        %1816 = vmatprep.subr.mxu0 0.0
        %1817 = vmatpush2.msra.mxu0 0.0
        %1818 = vmatprep.subr.mxu0 0.0
        %1819 = vmatpush2.msra.mxu0 0.0
        %1820 = vmatprep.subr.mxu0 0.0
        %1821 = vmatpush2.msra.mxu0 0.0
        %1822 = vmatprep.subr.mxu0 0.0
        %1823 = vmatpush2.msra.mxu0 0.0
        %1824 = vmatprep.subr.mxu0 0.0
        %1825 = vmatpush2.msra.mxu0 0.0
        %1826 = vmatprep.subr.mxu0 0.0
        %1827 = vmatpush2.msra.mxu0 0.0
        %1828 = vmatprep.subr.mxu0 0.0
        %1829 = vmatpush2.msra.mxu0 0.0
        %1830 = vmatprep.subr.mxu0 0.0
        %1831 = vmatpush2.msra.mxu0 0.0
        %1832 = vmatprep.subr.mxu0 0.0
        %1833 = vmatpush2.msra.mxu0 0.0
        %1834 = vmatprep.subr.mxu0 0.0
        %1835 = vmatpush2.msra.mxu0 0.0
        %1836 = vmatprep.subr.mxu0 0.0
        %1837 = vmatpush2.msra.mxu0 0.0
        %1838 = vmatprep.subr.mxu0 0.0
        %1839 = vmatpush2.msra.mxu0 0.0
        %1840 = vmatprep.subr.mxu0 0.0
        %1841 = vmatpush2.msra.mxu0 0.0
        %1842 = vmatprep.subr.mxu0 0.0
        %1843 = vmatpush2.msra.mxu0 0.0
        %1844 = vmatprep.mubr.f32.mxu0 0.0
        %1845 = vmatmul.mubr.f32.gmra.mxu0 %v1632
        %v1846 = vpop.f32.mrf.mxu0
        %v1847 = vadd.f32 0.0, %v1846
        %v1848 = vpop.f32.mrf.mxu0
        %v1849 = vadd.f32 0.0, %v1848
        %1850 = vdwg.mxu0
        %v1852 = vsel %vm590, %v1636, 0
        %1854 = vmatprep.subr.mxu0 0.0
        %1855 = vmatpush1.msra.mxu0 0.0
        %1856 = vmatprep.subr.mxu0 0.0
        %1857 = vmatpush1.msra.mxu0 0.0
        %1858 = vmatprep.subr.mxu0 0.0
        %1859 = vmatpush1.msra.mxu0 0.0
        %1860 = vmatprep.subr.mxu0 0.0
        %1861 = vmatpush1.msra.mxu0 0.0
        %1862 = vmatprep.subr.mxu0 0.0
        %1863 = vmatpush1.msra.mxu0 0.0
        %1864 = vmatprep.subr.mxu0 0.0
        %1865 = vmatpush1.msra.mxu0 0.0
        %1866 = vmatprep.subr.mxu0 0.0
        %1867 = vmatpush1.msra.mxu0 0.0
        %1868 = vmatprep.subr.mxu0 0.0
        %1869 = vmatpush1.msra.mxu0 0.0
        %1870 = vmatprep.subr.mxu0 0.0
        %1871 = vmatpush1.msra.mxu0 0.0
        %1872 = vmatprep.subr.mxu0 0.0
        %1873 = vmatpush1.msra.mxu0 0.0
        %1874 = vmatprep.subr.mxu0 0.0
        %1875 = vmatpush1.msra.mxu0 0.0
        %1876 = vmatprep.subr.mxu0 0.0
        %1877 = vmatpush1.msra.mxu0 0.0
        %1878 = vmatprep.subr.mxu0 0.0
        %1879 = vmatpush1.msra.mxu0 0.0
        %1880 = vmatprep.subr.mxu0 0.0
        %1881 = vmatpush1.msra.mxu0 0.0
        %1882 = vmatprep.subr.mxu0 %v1642
        %1883 = vmatpush1.msra.mxu0 %v1641
        %1884 = vmatprep.subr.mxu0 %v1638
        %1885 = vmatpush1.msra.mxu0 %v1637
        %1886 = vmatprep.subr.mxu0 0.0
        %1887 = vmatpush2.msra.mxu0 0.0
        %1888 = vmatprep.subr.mxu0 0.0
        %1889 = vmatpush2.msra.mxu0 0.0
        %1890 = vmatprep.subr.mxu0 0.0
        %1891 = vmatpush2.msra.mxu0 0.0
        %1892 = vmatprep.subr.mxu0 0.0
        %1893 = vmatpush2.msra.mxu0 0.0
        %1894 = vmatprep.subr.mxu0 0.0
        %1895 = vmatpush2.msra.mxu0 0.0
        %1896 = vmatprep.subr.mxu0 0.0
        %1897 = vmatpush2.msra.mxu0 0.0
        %1898 = vmatprep.subr.mxu0 0.0
        %1899 = vmatpush2.msra.mxu0 0.0
        %1900 = vmatprep.subr.mxu0 0.0
        %1901 = vmatpush2.msra.mxu0 0.0
        %1902 = vmatprep.subr.mxu0 0.0
        %1903 = vmatpush2.msra.mxu0 0.0
        %1904 = vmatprep.subr.mxu0 0.0
        %1905 = vmatpush2.msra.mxu0 0.0
        %1906 = vmatprep.subr.mxu0 0.0
        %1907 = vmatpush2.msra.mxu0 0.0
        %1908 = vmatprep.subr.mxu0 0.0
        %1909 = vmatpush2.msra.mxu0 0.0
        %1910 = vmatprep.subr.mxu0 0.0
        %1911 = vmatpush2.msra.mxu0 0.0
        %1912 = vmatprep.subr.mxu0 0.0
        %1913 = vmatpush2.msra.mxu0 0.0
        %1914 = vmatprep.subr.mxu0 0.0
        %1915 = vmatpush2.msra.mxu0 0.0
        %1916 = vmatprep.subr.mxu0 0.0
        %1917 = vmatpush2.msra.mxu0 0.0
        %1918 = vmatprep.mubr.f32.mxu0 0.0
        %1919 = vmatmul.mubr.f32.gmra.mxu0 %v1852
        %v1920 = vpop.f32.mrf.mxu0
        %v1921 = vadd.f32 %v1776, %v1920
        %v1922 = vpop.f32.mrf.mxu0
        %v1923 = vadd.f32 %v1778, %v1922
        %1924 = vdwg.mxu0
        %1925 = vmatprep.subr.mxu0 0.0
        %1926 = vmatpush1.msra.mxu0 0.0
        %1927 = vmatprep.subr.mxu0 0.0
        %1928 = vmatpush1.msra.mxu0 0.0
        %1929 = vmatprep.subr.mxu0 0.0
        %1930 = vmatpush1.msra.mxu0 0.0
        %1931 = vmatprep.subr.mxu0 0.0
        %1932 = vmatpush1.msra.mxu0 0.0
        %1933 = vmatprep.subr.mxu0 0.0
        %1934 = vmatpush1.msra.mxu0 0.0
        %1935 = vmatprep.subr.mxu0 0.0
        %1936 = vmatpush1.msra.mxu0 0.0
        %1937 = vmatprep.subr.mxu0 0.0
        %1938 = vmatpush1.msra.mxu0 0.0
        %1939 = vmatprep.subr.mxu0 0.0
        %1940 = vmatpush1.msra.mxu0 0.0
        %1941 = vmatprep.subr.mxu0 0.0
        %1942 = vmatpush1.msra.mxu0 0.0
        %1943 = vmatprep.subr.mxu0 0.0
        %1944 = vmatpush1.msra.mxu0 0.0
        %1945 = vmatprep.subr.mxu0 0.0
        %1946 = vmatpush1.msra.mxu0 0.0
        %1947 = vmatprep.subr.mxu0 0.0
        %1948 = vmatpush1.msra.mxu0 0.0
        %1949 = vmatprep.subr.mxu0 0.0
        %1950 = vmatpush1.msra.mxu0 0.0
        %1951 = vmatprep.subr.mxu0 0.0
        %1952 = vmatpush1.msra.mxu0 0.0
        %1953 = vmatprep.subr.mxu0 %v1644
        %1954 = vmatpush1.msra.mxu0 %v1643
        %1955 = vmatprep.subr.mxu0 %v1640
        %1956 = vmatpush1.msra.mxu0 %v1639
        %1957 = vmatprep.subr.mxu0 0.0
        %1958 = vmatpush2.msra.mxu0 0.0
        %1959 = vmatprep.subr.mxu0 0.0
        %1960 = vmatpush2.msra.mxu0 0.0
        %1961 = vmatprep.subr.mxu0 0.0
        %1962 = vmatpush2.msra.mxu0 0.0
        %1963 = vmatprep.subr.mxu0 0.0
        %1964 = vmatpush2.msra.mxu0 0.0
        %1965 = vmatprep.subr.mxu0 0.0
        %1966 = vmatpush2.msra.mxu0 0.0
        %1967 = vmatprep.subr.mxu0 0.0
        %1968 = vmatpush2.msra.mxu0 0.0
        %1969 = vmatprep.subr.mxu0 0.0
        %1970 = vmatpush2.msra.mxu0 0.0
        %1971 = vmatprep.subr.mxu0 0.0
        %1972 = vmatpush2.msra.mxu0 0.0
        %1973 = vmatprep.subr.mxu0 0.0
        %1974 = vmatpush2.msra.mxu0 0.0
        %1975 = vmatprep.subr.mxu0 0.0
        %1976 = vmatpush2.msra.mxu0 0.0
        %1977 = vmatprep.subr.mxu0 0.0
        %1978 = vmatpush2.msra.mxu0 0.0
        %1979 = vmatprep.subr.mxu0 0.0
        %1980 = vmatpush2.msra.mxu0 0.0
        %1981 = vmatprep.subr.mxu0 0.0
        %1982 = vmatpush2.msra.mxu0 0.0
        %1983 = vmatprep.subr.mxu0 0.0
        %1984 = vmatpush2.msra.mxu0 0.0
        %1985 = vmatprep.subr.mxu0 0.0
        %1986 = vmatpush2.msra.mxu0 0.0
        %1987 = vmatprep.subr.mxu0 0.0
        %1988 = vmatpush2.msra.mxu0 0.0
        %1989 = vmatprep.mubr.f32.mxu0 0.0
        %1990 = vmatmul.mubr.f32.gmra.mxu0 %v1852
        %v1991 = vpop.f32.mrf.mxu0
        %v1992 = vadd.f32 %v1847, %v1991
        %v1993 = vpop.f32.mrf.mxu0
        %v1994 = vadd.f32 %v1849, %v1993
        %1995 = vdwg.mxu0
        %v1996 = vld [vmem:[%s302] sm:$0xf]
        %v1998 = vlaneseq
        %v1999 = vshrl.u32 %v1998, 7
        %v2000 = vsub.s32 0, %v1999
        %v2001 = vrot.slane %v1996, %v2000
        %v2002 = vlaneseq
        %v2003 = vshrl.u32 %v2002, 7
        %v2004 = vsub.s32 1, %v2003
        %v2005 = vrot.slane %v1996, %v2004
        %v2006 = vlaneseq
        %v2007 = vshrl.u32 %v2006, 7
        %v2008 = vsub.s32 2, %v2007
        %v2009 = vrot.slane %v1996, %v2008
        %v2010 = vlaneseq
        %v2011 = vshrl.u32 %v2010, 7
        %v2012 = vsub.s32 3, %v2011
        %v2013 = vrot.slane %v1996, %v2012
        %v2018 = vadd.f32 %v1921, %v2001
        %v2019 = vadd.f32 %v1923, %v2005
        %v2020 = vadd.f32 %v1992, %v2009
        %v2021 = vadd.f32 %v1994, %v2013
        %v2022 = vxor.u32 %v2018, 2147483648
        %v2023 = vmul.f32 %v2022, 1.442695
        %v2024 = vpow.pop %v2023
        %v2025 = vadd.f32 %v2024, 1.0
        %v2026 = vrcp.pop %v2025
        %v2027 = vmul.f32 1.0, %v2026
        %v2028 = vxor.u32 %v2019, 2147483648
        %v2029 = vmul.f32 %v2028, 1.442695
        %v2030 = vpow.pop %v2029
        %v2031 = vadd.f32 %v2030, 1.0
        %v2032 = vrcp.pop %v2031
        %v2033 = vmul.f32 1.0, %v2032
        %v2034 = vtanh.pop %v2020
        %v2035 = vxor.u32 %v2021, 2147483648
        %v2036 = vmul.f32 %v2035, 1.442695
        %v2037 = vpow.pop %v2036
        %v2038 = vadd.f32 %v2037, 1.0
        %v2039 = vrcp.pop %v2038
        %v2040 = vmul.f32 1.0, %v2039
        %v2041 = vmul.f32 %v2033, %v1633
        %v2042 = vmul.f32 %v2027, %v2034
        %v2043 = vadd.f32 %v2041, %v2042
        %v2044 = vtanh.pop %v2043
        %v2045 = vmul.f32 %v2040, %v2044
        %2046 = vst [vmem:[#allocation3] sm:$0x3] %v2043
        %2047 = vst [vmem:[#allocation2] sm:$0x3] %v2045
        %s2048 = scalar_lea.vmem %s344, %s1634 [#allocation9]
        %2049 = vst [vmem:[%s2048] sm:$0x3] %v2045
        %s2050 = sand.u32 %s163, 1
        %s2051 = sand.u32 %s163, 1
        %s2052 = smul.addr %s2051, 8
        %s2053 = scalar_lea.vmem [#allocation9], %s2052
        // Predicated region
        $region53: #{birnn_forward.5} parent=35 // pred_check
          %p2054 = pneg %p173
        $region54: #{birnn_forward.5} parent=35 // pred_check_branch
          %2056 = sbr.rel (%p2054) target = $region56
        $region55: #{birnn_forward.5} parent=35 // pred_region
          %s2057 = smul.u32 %s25, 2
          %s2058 = ssub.s32 1, %s2057
          %s2059 = smul.u32 %s2058, %s26
          %s2060 = sadd.s32 %s25, %s2059
          %s2061 = smul.u32 4, %s2060
          %s2062 = smul.addr %s2061, 2
          %s2063 = sadd.s32 %s25, %s2062
          %s2064 = smul.addr %s2063, 2
          %s2065 = scalar_lea.vmem %s4, %s2064
          // Predicated region
          $region57: #{birnn_forward.5} parent=55 // pred_check
            _
          $region58: #{birnn_forward.5} parent=55 // pred_check_branch
            %2067 = sbr.rel (0) target = $region60
          $region59: #{birnn_forward.5} parent=55 // pred_region
            // Predicated region
            $region61: #{birnn_forward.5} parent=59 // pred_check
              _
            $region62: #{birnn_forward.5} parent=59 // pred_check_branch
              %2069 = sbr.rel target = $region64
            $region63: #{birnn_forward.5} parent=59 // pred_region
              // Predicated region
              $region76: #{birnn_forward.5} parent=63 // pred_check
                _
              $region77: #{birnn_forward.5} parent=63 // pred_check_branch
                %2091 = sbr.rel (0) target = $region79
              $region78: #{birnn_forward.5} parent=63 // pred_region
                loop: start=0, step=1, limit=1
                $region80: #{birnn_forward.5} parent=78 // loop_pre_header
                  _
                $region81: #{birnn_forward.5} parent=78 // loop_header
                  %s2093 = sphi 0, %s2097
                  %p2094 = scmp.ge.s32.totalorder %s2093, 1
                  %s2098 = sphi %s2053, %s2053
                  %s2099 = sphi %s2065, %s2065
                $region82: #{birnn_forward.5} parent=78 // loop_header_branch
                  %2096 = sbr.rel (%p2094) target = $region86
                $region83: #{birnn_forward.5} parent=78 // loop_body
                  _
                $region84: #{birnn_forward.5} parent=78 // loop_footer
                  %s2097 = sadd.s32 1, %s2093
                $region85: #{birnn_forward.5} parent=78 // loop_footer_branch
                  %2092 = sbr.rel target = $region81
                $region86: #{birnn_forward.5} parent=78 // loop_exit
                  _
                %s2101 = ssub.s32 4, 1
                loop: start=0, step=1, limit=1
                $region87: #{birnn_forward.5} parent=78 // loop_pre_header
                  _
                $region88: #{birnn_forward.5} parent=78 // loop_header
                  %s2103 = sphi 0, %s2107
                  %p2104 = scmp.ge.s32.totalorder %s2103, 1
                  %s2108 = sphi %s2053, %s2053
                  %s2109 = sphi %s2065, %s2065
                $region89: #{birnn_forward.5} parent=78 // loop_header_branch
                  %2106 = sbr.rel (%p2104) target = $region93
                $region90: #{birnn_forward.5} parent=78 // loop_body
                  %v2110 = vld [vmem:[%s2108] sm:%s2101]
                  %2111 = vst [vmem:[%s2109] sm:%s2101] %v2110
                  %v2112 = vld [vmem:[%s2108 + $0x2] sm:%s2101]
                  %2113 = vst [vmem:[%s2109 + $0x4] sm:%s2101] %v2112
                  %v2114 = vld [vmem:[%s2108 + $0x4] sm:%s2101]
                  %2115 = vst [vmem:[%s2109 + $0x8] sm:%s2101] %v2114
                  %v2116 = vld [vmem:[%s2108 + $0x6] sm:%s2101]
                  %2117 = vst [vmem:[%s2109 + $0xc] sm:%s2101] %v2116
                $region91: #{birnn_forward.5} parent=78 // loop_footer
                  %s2107 = sadd.s32 1, %s2103
                $region92: #{birnn_forward.5} parent=78 // loop_footer_branch
                  %2102 = sbr.rel target = $region88
                $region93: #{birnn_forward.5} parent=78 // loop_exit
                  _
              $region79: #{birnn_forward.5} parent=63 // pred_fallthru
                _
            $region64: #{birnn_forward.5} parent=59 // pred_fallthru
              _
            // Predicated region
            $region65: #{birnn_forward.5} parent=59 // pred_check
              _
            $region66: #{birnn_forward.5} parent=59 // pred_check_branch
              %2071 = sbr.rel (0) target = $region68
            $region67: #{birnn_forward.5} parent=59 // pred_region
              %s2073 = ssub.s32 4, 1
              loop: start=0, step=1, limit=1
              $region69: #{birnn_forward.5} parent=67 // loop_pre_header
                _
              $region70: #{birnn_forward.5} parent=67 // loop_header
                %s2075 = sphi 0, %s2079
                %p2076 = scmp.ge.s32.totalorder %s2075, 1
                %s2080 = sphi %s2053, %s2053
                %s2081 = sphi %s2065, %s2065
              $region71: #{birnn_forward.5} parent=67 // loop_header_branch
                %2078 = sbr.rel (%p2076) target = $region75
              $region72: #{birnn_forward.5} parent=67 // loop_body
                %v2082 = vld [vmem:[%s2080] sm:%s2073]
                %2083 = vst [vmem:[%s2081] sm:%s2073] %v2082
                %v2084 = vld [vmem:[%s2080 + $0x2] sm:%s2073]
                %2085 = vst [vmem:[%s2081 + $0x4] sm:%s2073] %v2084
                %v2086 = vld [vmem:[%s2080 + $0x4] sm:%s2073]
                %2087 = vst [vmem:[%s2081 + $0x8] sm:%s2073] %v2086
                %v2088 = vld [vmem:[%s2080 + $0x6] sm:%s2073]
                %2089 = vst [vmem:[%s2081 + $0xc] sm:%s2073] %v2088
              $region73: #{birnn_forward.5} parent=67 // loop_footer
                %s2079 = sadd.s32 1, %s2075
              $region74: #{birnn_forward.5} parent=67 // loop_footer_branch
                %2074 = sbr.rel target = $region70
              $region75: #{birnn_forward.5} parent=67 // loop_exit
                _
            $region68: #{birnn_forward.5} parent=59 // pred_fallthru
              _
          $region60: #{birnn_forward.5} parent=55 // pred_fallthru
            _
          %2118 = vnop
        $region56: #{birnn_forward.5} parent=35 // pred_fallthru
          _
      $region36: #{birnn_forward.5} parent=5 // pred_fallthru
        _
      %p2119 = scmp.le.s32.totalorder 2, %s16
      // Predicated region
      $region94: #{birnn_forward.5} parent=5 // pred_check
        %p2120 = pneg %p2119
      $region95: #{birnn_forward.5} parent=5 // pred_check_branch
        %2122 = sbr.rel (%p2120) target = $region97
      $region96: #{birnn_forward.5} parent=5 // pred_region
        %s2123 = ssub.s32 %s16, 2
        // Predicated region
        $region98: #{birnn_forward.5} parent=96 // pred_check
          %p2124 = pneg %p179
        $region99: #{birnn_forward.5} parent=96 // pred_check_branch
          %2126 = sbr.rel (%p2124) target = $region101
        $region100: #{birnn_forward.5} parent=96 // pred_region
          %s2127 = sand.u32 %s164, 1
          %s2128 = sand.u32 %s164, 1
          %s2129 = smul.addr %s2128, 8
          %s2130 = scalar_lea.vmem [#allocation9], %s2129
        $region101: #{birnn_forward.5} parent=96 // pred_fallthru
          _
      $region97: #{birnn_forward.5} parent=5 // pred_fallthru
        _
    $region6: #{birnn_forward.5} parent=1 // loop_footer
      %s20 = sadd.s32 1, %s16
    $region7: #{birnn_forward.5} parent=1 // loop_footer_branch
      %15 = sbr.rel target = $region3
    $region8: #{birnn_forward.5} parent=1 // loop_exit
      _
    %2131 = vsyncpa [#allocation5], 1
    %s2132 = scalar_lea.sflag [#allocation5], 1
    %2133 = vsyncpa %s2132, 1
    %2134 = vsyncpa [#allocation7], 1
    %s2135 = scalar_lea.sflag [#allocation7], 1
    %2136 = vsyncpa %s2135, 1

// kernel: birnn_forward.6
$region0: #{birnn_forward.6}
  #allocation0 [shape = 'u32[]', space=smem, size = 0x4, offset = 0x4, fixed_abs, tag = 'smem constant byte address 0x4 - core index']
  #allocation1 [shape = 'u32[144,128]{1,0:T(1,128)}', space=vmem, size = 0x12000, scoped, tag = 'internal scratch']
  #allocation2 [shape = 'f32[2,128]{1,0:T(2,128)}', space=vmem, size = 0x400, scoped, tag = 'scratch operand']
  #allocation3 [shape = 'f32[2,128]{1,0:T(2,128)}', space=vmem, size = 0x400, scoped, tag = 'scratch operand']
  %s0 = inlined_call_operand.vmem [shape: f32[8,2,256], index: 0, kind: input, shape index: {}]
  %s1 = inlined_call_operand.hbm [shape: f32[2,256,512], index: 1, kind: input, shape index: {}]
  %s2 = inlined_call_operand.vmem [shape: f32[2,128,512], index: 2, kind: input, shape index: {}]
  %s3 = inlined_call_operand.vmem [shape: f32[2,1,512], index: 3, kind: input, shape index: {}]
  %s4 = inlined_call_operand.vmem [shape: f32[8,2,256], index: 4, kind: output, shape index: {}]
  %s5 = sld [smem:[#allocation0]]
  $region94: #{birnn_forward.6} parent=0
    _
  %s7 = ssub.s32 1, %s5
  %s8 = scalar_select 0, %s7, %s5
  $region1: #{birnn_forward.6} parent=0
    #allocation4 [shape = 'u8[1048576]{0}', space=vmem, size = 0x100000, scoped, tag = 'input window, operand 1']
    #allocation5 [shape = 's32[2]{0}', space=sflag, size = 0x8, scoped, tag = 'scoped memory for birnn_forward.6']
    #allocation6 [shape = 'u8[8192]{0}', space=vmem, size = 0x2000, scoped, tag = 'output window, operand 0']
    %9 = vsyncpa [#allocation5], 0
    %s10 = scalar_lea.sflag [#allocation5], 1
    %11 = vsyncpa %s10, 0
    loop: start=0, step=1, limit=6
    $region2: #{birnn_forward.6} parent=1 // loop_pre_header
      _
    $region3: #{birnn_forward.6} parent=1 // loop_header
      %s13 = sphi 0, %s17
      %p14 = scmp.ge.s32.totalorder %s13, 6
      %s20 = sphi 0, %s32
      %s21 = sphi 0, %s28
      %s22 = sphi 0, %s20
      %s23 = sphi 0, %s21
      %s24 = sphi 0, %s22
      %s25 = sphi 0, %s23
      %s43 = sphi 0, %s45
      %s46 = sphi 0, %s43
      %s47 = sphi 0, %s46
      %s63 = sphi 0, %s47
      %s69 = sphi 0, %s71
      %s72 = sphi 0, %s69
      %s73 = sphi 0, %s72
      %s89 = sphi 0, %s73
      %s95 = sphi 0, %s97
      %s98 = sphi 0, %s95
      %s99 = sphi 0, %s98
      %s115 = sphi 0, %s99
      %s121 = sphi 0, %s123
      %s124 = sphi 0, %s121
      %s125 = sphi 0, %s124
      %s141 = sphi 0, %s125
      %s157 = sphi 0, %s159
      %s160 = sphi 0, %s157
      %s161 = sphi 0, %s160
      %s177 = sphi 0, %s161
    $region4: #{birnn_forward.6} parent=1 // loop_header_branch
      %16 = sbr.rel (%p14) target = $region8
    $region5: #{birnn_forward.6} parent=1 // loop_body
      %s18 = ssub.s32 %s13, 1
      %s19 = ssub.s32 %s13, 2
      %s26 = sadd.s32 1, %s21
      %p27 = scmp.ge.s32.totalorder %s26, 2
      %s28 = scalar_select %p27, 0, %s26
      %s29 = sadd.s32 1, %s20
      %s30 = scalar_select %p27, %s29, %s20
      %p31 = scmp.ge.s32.totalorder %s30, 2
      %s32 = scalar_select %p31, 0, %s30
      %s33 = smul.u32 %s20, 2
      %s34 = ssub.s32 1, %s33
      %s35 = smul.u32 %s34, %s21
      %s36 = sadd.s32 %s20, %s35
      %s37 = smul.u32 %s32, 2
      %s38 = ssub.s32 1, %s37
      %s39 = smul.u32 %s38, %s28
      %s40 = sadd.s32 %s32, %s39
      %s41 = ssub.s32 %s36, %s40
      %p42 = scmp.eq.s32.totalorder %s41, 0
      %s44 = sadd.s32 %s43, 1
      %s45 = scalar_select %p42, %s43, %s44
      %p48 = pneg %p42
      %p49 = scmp.eq.s32.totalorder %s13, 3
      %p50 = por %p48, %p49
      %p51 = scmp.ne.s32.totalorder %s43, %s46
      %p52 = scmp.eq.s32.totalorder %s13, 0
      %p53 = por %p51, %p52
      %p54 = scmp.ne.s32.totalorder %s43, %s46
      %p55 = scmp.eq.s32.totalorder %s18, 3
      %p56 = por %p54, %p55
      %p57 = scmp.ne.s32.totalorder %s46, %s47
      %p58 = scmp.eq.s32.totalorder %s18, 0
      %p59 = por %p57, %p58
      %p60 = scmp.ne.s32.totalorder %s46, %s47
      %p61 = scmp.eq.s32.totalorder %s19, 3
      %p62 = por %p60, %p61
      %p64 = scmp.ne.s32.totalorder %s47, %s63
      %p65 = scmp.eq.s32.totalorder %s19, 0
      %p66 = por %p64, %p65
      %s67 = ssub.s32 %s20, %s32
      %p68 = scmp.eq.s32.totalorder %s67, 0
      %s70 = sadd.s32 %s69, 1
      %s71 = scalar_select %p68, %s69, %s70
      %p74 = pneg %p68
      %p75 = scmp.eq.s32.totalorder %s13, 3
      %p76 = por %p74, %p75
      %p77 = scmp.ne.s32.totalorder %s69, %s72
      %p78 = scmp.eq.s32.totalorder %s13, 0
      %p79 = por %p77, %p78
      %p80 = scmp.ne.s32.totalorder %s69, %s72
      %p81 = scmp.eq.s32.totalorder %s18, 3
      %p82 = por %p80, %p81
      %p83 = scmp.ne.s32.totalorder %s72, %s73
      %p84 = scmp.eq.s32.totalorder %s18, 0
      %p85 = por %p83, %p84
      %p86 = scmp.ne.s32.totalorder %s72, %s73
      %p87 = scmp.eq.s32.totalorder %s19, 3
      %p88 = por %p86, %p87
      %p90 = scmp.ne.s32.totalorder %s73, %s89
      %p91 = scmp.eq.s32.totalorder %s19, 0
      %p92 = por %p90, %p91
      %s93 = ssub.s32 %s20, %s32
      %p94 = scmp.eq.s32.totalorder %s93, 0
      %s96 = sadd.s32 %s95, 1
      %s97 = scalar_select %p94, %s95, %s96
      %p100 = pneg %p94
      %p101 = scmp.eq.s32.totalorder %s13, 3
      %p102 = por %p100, %p101
      %p103 = scmp.ne.s32.totalorder %s95, %s98
      %p104 = scmp.eq.s32.totalorder %s13, 0
      %p105 = por %p103, %p104
      %p106 = scmp.ne.s32.totalorder %s95, %s98
      %p107 = scmp.eq.s32.totalorder %s18, 3
      %p108 = por %p106, %p107
      %p109 = scmp.ne.s32.totalorder %s98, %s99
      %p110 = scmp.eq.s32.totalorder %s18, 0
      %p111 = por %p109, %p110
      %p112 = scmp.ne.s32.totalorder %s98, %s99
      %p113 = scmp.eq.s32.totalorder %s19, 3
      %p114 = por %p112, %p113
      %p116 = scmp.ne.s32.totalorder %s99, %s115
      %p117 = scmp.eq.s32.totalorder %s19, 0
      %p118 = por %p116, %p117
      %s119 = ssub.s32 %s20, %s32
      %p120 = scmp.eq.s32.totalorder %s119, 0
      %s122 = sadd.s32 %s121, 1
      %s123 = scalar_select %p120, %s121, %s122
      %p126 = pneg %p120
      %p127 = scmp.eq.s32.totalorder %s13, 3
      %p128 = por %p126, %p127
      %p129 = scmp.ne.s32.totalorder %s121, %s124
      %p130 = scmp.eq.s32.totalorder %s13, 0
      %p131 = por %p129, %p130
      %p132 = scmp.ne.s32.totalorder %s121, %s124
      %p133 = scmp.eq.s32.totalorder %s18, 3
      %p134 = por %p132, %p133
      %p135 = scmp.ne.s32.totalorder %s124, %s125
      %p136 = scmp.eq.s32.totalorder %s18, 0
      %p137 = por %p135, %p136
      %p138 = scmp.ne.s32.totalorder %s124, %s125
      %p139 = scmp.eq.s32.totalorder %s19, 3
      %p140 = por %p138, %p139
      %p142 = scmp.ne.s32.totalorder %s125, %s141
      %p143 = scmp.eq.s32.totalorder %s19, 0
      %p144 = por %p142, %p143
      %s145 = smul.u32 %s20, 2
      %s146 = ssub.s32 1, %s145
      %s147 = smul.u32 %s146, %s21
      %s148 = sadd.s32 %s20, %s147
      %s149 = smul.u32 %s32, 2
      %s150 = ssub.s32 1, %s149
      %s151 = smul.u32 %s150, %s28
      %s152 = sadd.s32 %s32, %s151
      %s153 = ssub.s32 %s148, %s152
      %s154 = ssub.s32 %s20, %s32
      %s155 = sor.u32 %s153, %s154
      %p156 = scmp.eq.s32.totalorder %s155, 0
      %s158 = sadd.s32 %s157, 1
      %s159 = scalar_select %p156, %s157, %s158
      %p162 = pneg %p156
      %p163 = scmp.eq.s32.totalorder %s13, 3
      %p164 = por %p162, %p163
      %p165 = scmp.ne.s32.totalorder %s157, %s160
      %p166 = scmp.eq.s32.totalorder %s13, 0
      %p167 = por %p165, %p166
      %p168 = scmp.ne.s32.totalorder %s157, %s160
      %p169 = scmp.eq.s32.totalorder %s18, 3
      %p170 = por %p168, %p169
      %p171 = scmp.ne.s32.totalorder %s160, %s161
      %p172 = scmp.eq.s32.totalorder %s18, 0
      %p173 = por %p171, %p172
      %p174 = scmp.ne.s32.totalorder %s160, %s161
      %p175 = scmp.eq.s32.totalorder %s19, 3
      %p176 = por %p174, %p175
      %p178 = scmp.ne.s32.totalorder %s161, %s177
      %p179 = scmp.eq.s32.totalorder %s19, 0
      %p180 = por %p178, %p179
      %p181 = scmp.le.s32.totalorder 1, %s13
      %p182 = scmp.lt.s32.totalorder %s13, 5
      %p183 = pnand %p181, %p182
      %p184 = pneg %p183
      // Predicated region
      $region9: #{birnn_forward.6} parent=5 // pred_check
        _
      $region10: #{birnn_forward.6} parent=5 // pred_check_branch
        %186 = sbr.rel (%p183) target = $region12
      $region11: #{birnn_forward.6} parent=5 // pred_region
        %s187 = ssub.s32 %s13, 1
      $region12: #{birnn_forward.6} parent=5 // pred_fallthru
        _
      %p188 = scmp.lt.s32.totalorder %s13, 4
      // Predicated region
      $region13: #{birnn_forward.6} parent=5 // pred_check
        %p189 = pneg %p188
      $region14: #{birnn_forward.6} parent=5 // pred_check_branch
        %191 = sbr.rel (%p189) target = $region16
      $region15: #{birnn_forward.6} parent=5 // pred_region
        // Predicated region
        $region17: #{birnn_forward.6} parent=15 // pred_check
          %p192 = pneg %p53
        $region18: #{birnn_forward.6} parent=15 // pred_check_branch
          %194 = sbr.rel (%p192) target = $region20
        $region19: #{birnn_forward.6} parent=15 // pred_region
          %s195 = smul.u32 %s20, 2
          %s196 = ssub.s32 1, %s195
          %s197 = smul.u32 %s196, %s21
          %s198 = sadd.s32 %s20, %s197
          %s199 = smul.u32 4, %s198
          %p200 = scmp.lt.s32.totalorder %s199, 7
          %s201 = scalar_select %p200, %s199, 7
          %s202 = smul.addr %s201, 2
          %s203 = smul.addr %s202, 2
          %s204 = scalar_lea.vmem %s0, %s203
          %s205 = smul.u32 %s20, 2
          %s206 = ssub.s32 1, %s205
          %s207 = smul.u32 %s206, %s21
          %s208 = sadd.s32 %s20, %s207
          %s209 = smul.u32 4, %s208
        $region20: #{birnn_forward.6} parent=15 // pred_fallthru
          _
        // Predicated region
        $region21: #{birnn_forward.6} parent=15 // pred_check
          %p210 = pneg %p79
        $region22: #{birnn_forward.6} parent=15 // pred_check_branch
          %212 = sbr.rel (%p210) target = $region24
        $region23: #{birnn_forward.6} parent=15 // pred_region
          %s213 = sand.u32 %s69, 1
          %s214 = scalar_lea.sflag [#allocation5], %s213
          %s215 = sand.u32 %s69, 1
          %s216 = smul.addr %s215, 1024
          %s217 = scalar_lea.vmem [#allocation4], %s216
          %s219 = ssub.s32 16384, 16384
          %220 = vsyncadd %s214, %s219
          %s221 = smul.addr %s20, 128
          %s222 = smul.addr %s221, 128
          %s223 = scalar_lea.hbm %s1, %s222
          %s224 = sshll.u32 %s217, 4
          %s225 = int_to_ptr.vmem [resolvable:$true] %s224
          %230 = dma.hbm_to_vmem [thread:$0]  %s223, 16384, %s225, %s214, 512, 512, 32
        $region24: #{birnn_forward.6} parent=15 // pred_fallthru
          _
        // Predicated region
        $region25: #{birnn_forward.6} parent=15 // pred_check
          %p231 = pneg %p105
        $region26: #{birnn_forward.6} parent=15 // pred_check_branch
          %233 = sbr.rel (%p231) target = $region28
        $region27: #{birnn_forward.6} parent=15 // pred_region
          %p234 = scmp.lt.s32.totalorder %s20, 1
          %s235 = scalar_select %p234, %s20, 1
          %s236 = smul.addr %s235, 64
          %s237 = smul.addr %s236, 8
          %s238 = scalar_lea.vmem %s2, %s237
        $region28: #{birnn_forward.6} parent=15 // pred_fallthru
          _
        // Predicated region
        $region29: #{birnn_forward.6} parent=15 // pred_check
          %p239 = pneg %p131
        $region30: #{birnn_forward.6} parent=15 // pred_check_branch
          %241 = sbr.rel (%p239) target = $region32
        $region31: #{birnn_forward.6} parent=15 // pred_region
          %p242 = scmp.lt.s32.totalorder %s20, 1
          %s243 = scalar_select %p242, %s20, 1
          %s244 = smul.addr %s243, 4
          %s245 = scalar_lea.vmem %s3, %s244
        $region32: #{birnn_forward.6} parent=15 // pred_fallthru
          _
      $region16: #{birnn_forward.6} parent=5 // pred_fallthru
        _
      %p246 = scmp.le.s32.totalorder 1, %s13
      %p247 = scmp.lt.s32.totalorder %s13, 5
      %p248 = pnand %p246, %p247
      %p249 = pneg %p248
      // Predicated region
      $region33: #{birnn_forward.6} parent=5 // pred_check
        _
      $region34: #{birnn_forward.6} parent=5 // pred_check_branch
        %251 = sbr.rel (%p248) target = $region36
      $region35: #{birnn_forward.6} parent=5 // pred_region
        %s252 = ssub.s32 %s13, 1
        %s253 = sand.u32 %s72, 1
        %s254 = scalar_lea.sflag [#allocation5], %s253
        %s255 = sand.u32 %s72, 1
        %s256 = smul.addr %s255, 1024
        %s257 = scalar_lea.vmem [#allocation4], %s256
        // Predicated region
        $region37: #{birnn_forward.6} parent=35 // pred_check
          %p258 = pneg %p85
        $region38: #{birnn_forward.6} parent=35 // pred_check_branch
          %260 = sbr.rel (%p258) target = $region40
        $region39: #{birnn_forward.6} parent=35 // pred_region
          %261 = dma.done %s254, 16384
        $region40: #{birnn_forward.6} parent=35 // pred_fallthru
          _
        %s262 = smul.u32 %s22, 2
        %s263 = ssub.s32 1, %s262
        %s264 = smul.u32 %s263, %s23
        %s265 = sadd.s32 %s22, %s264
        %s266 = smul.u32 4, %s265
        %p267 = scmp.lt.s32.totalorder %s266, 7
        %s268 = scalar_select %p267, %s266, 7
        %s269 = smul.addr %s268, 2
        %s270 = smul.addr %s269, 2
        %s271 = scalar_lea.vmem %s0, %s270
        %p272 = pneg %p59
        %p273 = pneg %p56
        %s274 = sand.u32 %s72, 1
        %s275 = scalar_lea.sflag [#allocation5], %s274
        %s276 = sand.u32 %s72, 1
        %s277 = smul.addr %s276, 1024
        %s278 = scalar_lea.vmem [#allocation4], %s277
        %p279 = pneg %p85
        %p280 = pneg %p82
        %p281 = scmp.lt.s32.totalorder %s22, 1
        %s282 = scalar_select %p281, %s22, 1
        %s283 = smul.addr %s282, 64
        %s284 = smul.addr %s283, 8
        %s285 = scalar_lea.vmem %s2, %s284
        %p286 = pneg %p111
        %p287 = pneg %p108
        %p288 = scmp.lt.s32.totalorder %s22, 1
        %s289 = scalar_select %p288, %s22, 1
        %s290 = smul.addr %s289, 4
        %s291 = scalar_lea.vmem %s3, %s290
        %p292 = pneg %p137
        %p293 = pneg %p134
        %p294 = pneg %p173
        %p295 = pneg %p170
        %s296 = sand.u32 %s160, 1
        %s297 = sand.u32 %s160, 1
        %s298 = smul.addr %s297, 8
        %s299 = scalar_lea.vmem [#allocation6], %s298
        %s300 = smul.u32 %s22, 2
        %s301 = ssub.s32 1, %s300
        %s302 = smul.u32 %s301, %s23
        %s303 = sadd.s32 %s22, %s302
        %s304 = smul.u32 4, %s303
        %p305 = scmp.lt.s32.totalorder %s304, 7
        %s306 = scalar_select %p305, %s304, 7
        %s307 = smul.addr %s306, 2
        %s308 = smul.addr %s307, 2
        %s309 = scalar_lea.vmem %s0, %s308
        %s310 = smul.u32 %s22, 2
        %s311 = ssub.s32 1, %s310
        %s312 = smul.u32 %s311, %s23
        %s313 = sadd.s32 %s22, %s312
        %s314 = smul.u32 4, %s313
        %p315 = scmp.lt.s32.totalorder %s22, 1
        %s316 = scalar_select %p315, %s22, 1
        %s317 = smul.addr %s316, 64
        %s318 = smul.addr %s317, 8
        %s319 = scalar_lea.vmem %s2, %s318
        %p320 = scmp.lt.s32.totalorder %s22, 1
        %s321 = scalar_select %p320, %s22, 1
        %s322 = smul.addr %s321, 4
        %s323 = scalar_lea.vmem %s3, %s322
        %s324 = smul.u32 %s22, 2
        %s325 = ssub.s32 1, %s324
        %s326 = smul.u32 %s325, %s23
        %s327 = sadd.s32 %s22, %s326
        %s328 = smul.u32 4, %s327
        %p329 = scmp.eq.s32.totalorder %s23, 0
        // Predicated region
        $region41: #{birnn_forward.6} parent=35 // pred_check
          %p330 = pneg %p329
        $region42: #{birnn_forward.6} parent=35 // pred_check_branch
          %332 = sbr.rel (%p330) target = $region44
        $region43: #{birnn_forward.6} parent=35 // pred_region
          %333 = vst [vmem:[#allocation2] sm:$0x3] 0.0
          %334 = vst [vmem:[#allocation3] sm:$0x3] 0.0
        $region44: #{birnn_forward.6} parent=35 // pred_fallthru
          _
        %s335 = smul.u32 %s22, 3
        %v336 = vld [vmem:[#allocation2] sm:$0x3]
        %v337 = vld [vmem:[#allocation3] sm:$0x3]
        %s338 = smul.u32 %s335, 2
        %s339 = smul.addr %s338, 2
        %s340 = scalar_lea.vmem %s309, %s339
        %v341 = vld [vmem:[%s340] sm:$0xf]
        %v342 = vld [vmem:[%s257] sm:$0xff]
        %v343 = vld [vmem:[%s257 + $0x8] sm:$0xff]
        %v344 = vld [vmem:[%s257 + $0x10] sm:$0xff]
        %v345 = vld [vmem:[%s257 + $0x18] sm:$0xff]
        %v346 = vld [vmem:[%s257 + $0x20] sm:$0xff]
        %v347 = vld [vmem:[%s257 + $0x28] sm:$0xff]
        %v348 = vld [vmem:[%s257 + $0x30] sm:$0xff]
        %v349 = vld [vmem:[%s257 + $0x38] sm:$0xff]
        %v350 = vld [vmem:[%s257 + $0x40] sm:$0xff]
        %v351 = vld [vmem:[%s257 + $0x48] sm:$0xff]
        %v352 = vld [vmem:[%s257 + $0x50] sm:$0xff]
        %v353 = vld [vmem:[%s257 + $0x58] sm:$0xff]
        %v354 = vld [vmem:[%s257 + $0x60] sm:$0xff]
        %v355 = vld [vmem:[%s257 + $0x68] sm:$0xff]
        %v356 = vld [vmem:[%s257 + $0x70] sm:$0xff]
        %v357 = vld [vmem:[%s257 + $0x78] sm:$0xff]
        %v358 = vld [vmem:[%s257 + $0x80] sm:$0xff]
        %v359 = vld [vmem:[%s257 + $0x88] sm:$0xff]
        %v360 = vld [vmem:[%s257 + $0x90] sm:$0xff]
        %v361 = vld [vmem:[%s257 + $0x98] sm:$0xff]
        %v362 = vld [vmem:[%s257 + $0xa0] sm:$0xff]
        %v363 = vld [vmem:[%s257 + $0xa8] sm:$0xff]
        %v364 = vld [vmem:[%s257 + $0xb0] sm:$0xff]
        %v365 = vld [vmem:[%s257 + $0xb8] sm:$0xff]
        %v366 = vld [vmem:[%s257 + $0xc0] sm:$0xff]
        %v367 = vld [vmem:[%s257 + $0xc8] sm:$0xff]
        %v368 = vld [vmem:[%s257 + $0xd0] sm:$0xff]
        %v369 = vld [vmem:[%s257 + $0xd8] sm:$0xff]
        %v370 = vld [vmem:[%s257 + $0xe0] sm:$0xff]
        %v371 = vld [vmem:[%s257 + $0xe8] sm:$0xff]
        %v372 = vld [vmem:[%s257 + $0xf0] sm:$0xff]
        %v373 = vld [vmem:[%s257 + $0xf8] sm:$0xff]
        %v374 = vld [vmem:[%s257 + $0x100] sm:$0xff]
        %v375 = vld [vmem:[%s257 + $0x108] sm:$0xff]
        %v376 = vld [vmem:[%s257 + $0x110] sm:$0xff]
        %v377 = vld [vmem:[%s257 + $0x118] sm:$0xff]
        %v378 = vld [vmem:[%s257 + $0x120] sm:$0xff]
        %v379 = vld [vmem:[%s257 + $0x128] sm:$0xff]
        %v380 = vld [vmem:[%s257 + $0x130] sm:$0xff]
        %v381 = vld [vmem:[%s257 + $0x138] sm:$0xff]
        %v382 = vld [vmem:[%s257 + $0x140] sm:$0xff]
        %v383 = vld [vmem:[%s257 + $0x148] sm:$0xff]
        %v384 = vld [vmem:[%s257 + $0x150] sm:$0xff]
        %v385 = vld [vmem:[%s257 + $0x158] sm:$0xff]
        %v386 = vld [vmem:[%s257 + $0x160] sm:$0xff]
        %v387 = vld [vmem:[%s257 + $0x168] sm:$0xff]
        %v388 = vld [vmem:[%s257 + $0x170] sm:$0xff]
        %v389 = vld [vmem:[%s257 + $0x178] sm:$0xff]
        %v390 = vld [vmem:[%s257 + $0x180] sm:$0xff]
        %v391 = vld [vmem:[%s257 + $0x188] sm:$0xff]
        %v392 = vld [vmem:[%s257 + $0x190] sm:$0xff]
        %v393 = vld [vmem:[%s257 + $0x198] sm:$0xff]
        %v394 = vld [vmem:[%s257 + $0x1a0] sm:$0xff]
        %v395 = vld [vmem:[%s257 + $0x1a8] sm:$0xff]
        %v396 = vld [vmem:[%s257 + $0x1b0] sm:$0xff]
        %v397 = vld [vmem:[%s257 + $0x1b8] sm:$0xff]
        %v398 = vld [vmem:[%s257 + $0x1c0] sm:$0xff]
        %v399 = vld [vmem:[%s257 + $0x1c8] sm:$0xff]
        %v400 = vld [vmem:[%s257 + $0x1d0] sm:$0xff]
        %v401 = vld [vmem:[%s257 + $0x1d8] sm:$0xff]
        %v402 = vld [vmem:[%s257 + $0x1e0] sm:$0xff]
        %v403 = vld [vmem:[%s257 + $0x1e8] sm:$0xff]
        %v404 = vld [vmem:[%s257 + $0x1f0] sm:$0xff]
        %v405 = vld [vmem:[%s257 + $0x1f8] sm:$0xff]
        %v406 = vld [vmem:[%s257 + $0x200] sm:$0xff]
        %v407 = vld [vmem:[%s257 + $0x208] sm:$0xff]
        %v408 = vld [vmem:[%s257 + $0x210] sm:$0xff]
        %v409 = vld [vmem:[%s257 + $0x218] sm:$0xff]
        %v410 = vld [vmem:[%s257 + $0x220] sm:$0xff]
        %v411 = vld [vmem:[%s257 + $0x228] sm:$0xff]
        %v412 = vld [vmem:[%s257 + $0x230] sm:$0xff]
        %v413 = vld [vmem:[%s257 + $0x238] sm:$0xff]
        %v414 = vld [vmem:[%s257 + $0x240] sm:$0xff]
        %v415 = vld [vmem:[%s257 + $0x248] sm:$0xff]
        %v416 = vld [vmem:[%s257 + $0x250] sm:$0xff]
        %v417 = vld [vmem:[%s257 + $0x258] sm:$0xff]
        %v418 = vld [vmem:[%s257 + $0x260] sm:$0xff]
        %v419 = vld [vmem:[%s257 + $0x268] sm:$0xff]
        %v420 = vld [vmem:[%s257 + $0x270] sm:$0xff]
        %v421 = vld [vmem:[%s257 + $0x278] sm:$0xff]
        %v422 = vld [vmem:[%s257 + $0x280] sm:$0xff]
        %v423 = vld [vmem:[%s257 + $0x288] sm:$0xff]
        %v424 = vld [vmem:[%s257 + $0x290] sm:$0xff]
        %v425 = vld [vmem:[%s257 + $0x298] sm:$0xff]
        %v426 = vld [vmem:[%s257 + $0x2a0] sm:$0xff]
        %v427 = vld [vmem:[%s257 + $0x2a8] sm:$0xff]
        %v428 = vld [vmem:[%s257 + $0x2b0] sm:$0xff]
        %v429 = vld [vmem:[%s257 + $0x2b8] sm:$0xff]
        %v430 = vld [vmem:[%s257 + $0x2c0] sm:$0xff]
        %v431 = vld [vmem:[%s257 + $0x2c8] sm:$0xff]
        %v432 = vld [vmem:[%s257 + $0x2d0] sm:$0xff]
        %v433 = vld [vmem:[%s257 + $0x2d8] sm:$0xff]
        %v434 = vld [vmem:[%s257 + $0x2e0] sm:$0xff]
        %v435 = vld [vmem:[%s257 + $0x2e8] sm:$0xff]
        %v436 = vld [vmem:[%s257 + $0x2f0] sm:$0xff]
        %v437 = vld [vmem:[%s257 + $0x2f8] sm:$0xff]
        %v438 = vld [vmem:[%s257 + $0x300] sm:$0xff]
        %v439 = vld [vmem:[%s257 + $0x308] sm:$0xff]
        %v440 = vld [vmem:[%s257 + $0x310] sm:$0xff]
        %v441 = vld [vmem:[%s257 + $0x318] sm:$0xff]
        %v442 = vld [vmem:[%s257 + $0x320] sm:$0xff]
        %v443 = vld [vmem:[%s257 + $0x328] sm:$0xff]
        %v444 = vld [vmem:[%s257 + $0x330] sm:$0xff]
        %v445 = vld [vmem:[%s257 + $0x338] sm:$0xff]
        %v446 = vld [vmem:[%s257 + $0x340] sm:$0xff]
        %v447 = vld [vmem:[%s257 + $0x348] sm:$0xff]
        %v448 = vld [vmem:[%s257 + $0x350] sm:$0xff]
        %v449 = vld [vmem:[%s257 + $0x358] sm:$0xff]
        %v450 = vld [vmem:[%s257 + $0x360] sm:$0xff]
        %v451 = vld [vmem:[%s257 + $0x368] sm:$0xff]
        %v452 = vld [vmem:[%s257 + $0x370] sm:$0xff]
        %v453 = vld [vmem:[%s257 + $0x378] sm:$0xff]
        %v454 = vld [vmem:[%s257 + $0x380] sm:$0xff]
        %v455 = vld [vmem:[%s257 + $0x388] sm:$0xff]
        %v456 = vld [vmem:[%s257 + $0x390] sm:$0xff]
        %v457 = vld [vmem:[%s257 + $0x398] sm:$0xff]
        %v458 = vld [vmem:[%s257 + $0x3a0] sm:$0xff]
        %v459 = vld [vmem:[%s257 + $0x3a8] sm:$0xff]
        %v460 = vld [vmem:[%s257 + $0x3b0] sm:$0xff]
        %v461 = vld [vmem:[%s257 + $0x3b8] sm:$0xff]
        %v462 = vld [vmem:[%s257 + $0x3c0] sm:$0xff]
        %v463 = vld [vmem:[%s257 + $0x3c8] sm:$0xff]
        %v464 = vld [vmem:[%s257 + $0x3d0] sm:$0xff]
        %v465 = vld [vmem:[%s257 + $0x3d8] sm:$0xff]
        %v466 = vld [vmem:[%s257 + $0x3e0] sm:$0xff]
        %v467 = vld [vmem:[%s257 + $0x3e8] sm:$0xff]
        %v468 = vld [vmem:[%s257 + $0x3f0] sm:$0xff]
        %v469 = vld [vmem:[%s257 + $0x3f8] sm:$0xff]
        %v470 = vld [vmem:[%s319] sm:$0xff]
        %v471 = vld [vmem:[%s319 + $0x8] sm:$0xff]
        %v472 = vld [vmem:[%s319 + $0x10] sm:$0xff]
        %v473 = vld [vmem:[%s319 + $0x18] sm:$0xff]
        %v474 = vld [vmem:[%s319 + $0x20] sm:$0xff]
        %v475 = vld [vmem:[%s319 + $0x28] sm:$0xff]
        %v476 = vld [vmem:[%s319 + $0x30] sm:$0xff]
        %v477 = vld [vmem:[%s319 + $0x38] sm:$0xff]
        %v478 = vld [vmem:[%s319 + $0x40] sm:$0xff]
        %v479 = vld [vmem:[%s319 + $0x48] sm:$0xff]
        %v480 = vld [vmem:[%s319 + $0x50] sm:$0xff]
        %v481 = vld [vmem:[%s319 + $0x58] sm:$0xff]
        %v482 = vld [vmem:[%s319 + $0x60] sm:$0xff]
        %v483 = vld [vmem:[%s319 + $0x68] sm:$0xff]
        %v484 = vld [vmem:[%s319 + $0x70] sm:$0xff]
        %v485 = vld [vmem:[%s319 + $0x78] sm:$0xff]
        %v486 = vld [vmem:[%s319 + $0x80] sm:$0xff]
        %v487 = vld [vmem:[%s319 + $0x88] sm:$0xff]
        %v488 = vld [vmem:[%s319 + $0x90] sm:$0xff]
        %v489 = vld [vmem:[%s319 + $0x98] sm:$0xff]
        %v490 = vld [vmem:[%s319 + $0xa0] sm:$0xff]
        %v491 = vld [vmem:[%s319 + $0xa8] sm:$0xff]
        %v492 = vld [vmem:[%s319 + $0xb0] sm:$0xff]
        %v493 = vld [vmem:[%s319 + $0xb8] sm:$0xff]
        %v494 = vld [vmem:[%s319 + $0xc0] sm:$0xff]
        %v495 = vld [vmem:[%s319 + $0xc8] sm:$0xff]
        %v496 = vld [vmem:[%s319 + $0xd0] sm:$0xff]
        %v497 = vld [vmem:[%s319 + $0xd8] sm:$0xff]
        %v498 = vld [vmem:[%s319 + $0xe0] sm:$0xff]
        %v499 = vld [vmem:[%s319 + $0xe8] sm:$0xff]
        %v500 = vld [vmem:[%s319 + $0xf0] sm:$0xff]
        %v501 = vld [vmem:[%s319 + $0xf8] sm:$0xff]
        %v502 = vld [vmem:[%s319 + $0x100] sm:$0xff]
        %v503 = vld [vmem:[%s319 + $0x108] sm:$0xff]
        %v504 = vld [vmem:[%s319 + $0x110] sm:$0xff]
        %v505 = vld [vmem:[%s319 + $0x118] sm:$0xff]
        %v506 = vld [vmem:[%s319 + $0x120] sm:$0xff]
        %v507 = vld [vmem:[%s319 + $0x128] sm:$0xff]
        %v508 = vld [vmem:[%s319 + $0x130] sm:$0xff]
        %v509 = vld [vmem:[%s319 + $0x138] sm:$0xff]
        %v510 = vld [vmem:[%s319 + $0x140] sm:$0xff]
        %v511 = vld [vmem:[%s319 + $0x148] sm:$0xff]
        %v512 = vld [vmem:[%s319 + $0x150] sm:$0xff]
        %v513 = vld [vmem:[%s319 + $0x158] sm:$0xff]
        %v514 = vld [vmem:[%s319 + $0x160] sm:$0xff]
        %v515 = vld [vmem:[%s319 + $0x168] sm:$0xff]
        %v516 = vld [vmem:[%s319 + $0x170] sm:$0xff]
        %v517 = vld [vmem:[%s319 + $0x178] sm:$0xff]
        %v518 = vld [vmem:[%s319 + $0x180] sm:$0xff]
        %v519 = vld [vmem:[%s319 + $0x188] sm:$0xff]
        %v520 = vld [vmem:[%s319 + $0x190] sm:$0xff]
        %v521 = vld [vmem:[%s319 + $0x198] sm:$0xff]
        %v522 = vld [vmem:[%s319 + $0x1a0] sm:$0xff]
        %v523 = vld [vmem:[%s319 + $0x1a8] sm:$0xff]
        %v524 = vld [vmem:[%s319 + $0x1b0] sm:$0xff]
        %v525 = vld [vmem:[%s319 + $0x1b8] sm:$0xff]
        %v526 = vld [vmem:[%s319 + $0x1c0] sm:$0xff]
        %v527 = vld [vmem:[%s319 + $0x1c8] sm:$0xff]
        %v528 = vld [vmem:[%s319 + $0x1d0] sm:$0xff]
        %v529 = vld [vmem:[%s319 + $0x1d8] sm:$0xff]
        %v530 = vld [vmem:[%s319 + $0x1e0] sm:$0xff]
        %v531 = vld [vmem:[%s319 + $0x1e8] sm:$0xff]
        %v532 = vld [vmem:[%s319 + $0x1f0] sm:$0xff]
        %v533 = vld [vmem:[%s319 + $0x1f8] sm:$0xff]
        %534 = vmatprep.subr.mxu0 %v531
        %535 = vmatpush1.msra.mxu0 %v530
        %536 = vmatprep.subr.mxu0 %v527
        %537 = vmatpush1.msra.mxu0 %v526
        %538 = vmatprep.subr.mxu0 %v523
        %539 = vmatpush1.msra.mxu0 %v522
        %540 = vmatprep.subr.mxu0 %v519
        %541 = vmatpush1.msra.mxu0 %v518
        %542 = vmatprep.subr.mxu0 %v515
        %543 = vmatpush1.msra.mxu0 %v514
        %544 = vmatprep.subr.mxu0 %v511
        %545 = vmatpush1.msra.mxu0 %v510
        %546 = vmatprep.subr.mxu0 %v507
        %547 = vmatpush1.msra.mxu0 %v506
        %548 = vmatprep.subr.mxu0 %v503
        %549 = vmatpush1.msra.mxu0 %v502
        %550 = vmatprep.subr.mxu0 %v499
        %551 = vmatpush1.msra.mxu0 %v498
        %552 = vmatprep.subr.mxu0 %v495
        %553 = vmatpush1.msra.mxu0 %v494
        %554 = vmatprep.subr.mxu0 %v491
        %555 = vmatpush1.msra.mxu0 %v490
        %556 = vmatprep.subr.mxu0 %v487
        %557 = vmatpush1.msra.mxu0 %v486
        %558 = vmatprep.subr.mxu0 %v483
        %559 = vmatpush1.msra.mxu0 %v482
        %560 = vmatprep.subr.mxu0 %v479
        %561 = vmatpush1.msra.mxu0 %v478
        %562 = vmatprep.subr.mxu0 %v475
        %563 = vmatpush1.msra.mxu0 %v474
        %564 = vmatprep.subr.mxu0 %v471
        %565 = vmatpush1.msra.mxu0 %v470
        %566 = vmatprep.subr.mxu0 0.0
        %567 = vmatpush2.msra.mxu0 0.0
        %568 = vmatprep.subr.mxu0 0.0
        %569 = vmatpush2.msra.mxu0 0.0
        %570 = vmatprep.subr.mxu0 0.0
        %571 = vmatpush2.msra.mxu0 0.0
        %572 = vmatprep.subr.mxu0 0.0
        %573 = vmatpush2.msra.mxu0 0.0
        %574 = vmatprep.subr.mxu0 0.0
        %575 = vmatpush2.msra.mxu0 0.0
        %576 = vmatprep.subr.mxu0 0.0
        %577 = vmatpush2.msra.mxu0 0.0
        %578 = vmatprep.subr.mxu0 0.0
        %579 = vmatpush2.msra.mxu0 0.0
        %580 = vmatprep.subr.mxu0 0.0
        %581 = vmatpush2.msra.mxu0 0.0
        %582 = vmatprep.subr.mxu0 0.0
        %583 = vmatpush2.msra.mxu0 0.0
        %584 = vmatprep.subr.mxu0 0.0
        %585 = vmatpush2.msra.mxu0 0.0
        %586 = vmatprep.subr.mxu0 0.0
        %587 = vmatpush2.msra.mxu0 0.0
        %588 = vmatprep.subr.mxu0 0.0
        %589 = vmatpush2.msra.mxu0 0.0
        %590 = vmatprep.subr.mxu0 0.0
        %591 = vmatpush2.msra.mxu0 0.0
        %592 = vmatprep.subr.mxu0 0.0
        %593 = vmatpush2.msra.mxu0 0.0
        %594 = vmatprep.subr.mxu0 0.0
        %595 = vmatpush2.msra.mxu0 0.0
        %596 = vmatprep.subr.mxu0 0.0
        %597 = vmatpush2.msra.mxu0 0.0
        %598 = vmatprep.mubr.f32.mxu0 0.0
        %599 = vmatmul.mubr.f32.gmra.mxu0 %v336
        %v600 = vpop.f32.mrf.mxu0
        %v601 = vadd.f32 0.0, %v600
        %v602 = vpop.f32.mrf.mxu0
        %v603 = vadd.f32 0.0, %v602
        %604 = vdwg.mxu0
        %605 = vmatprep.subr.mxu0 %v533
        %606 = vmatpush1.msra.mxu0 %v532
        %607 = vmatprep.subr.mxu0 %v529
        %608 = vmatpush1.msra.mxu0 %v528
        %609 = vmatprep.subr.mxu0 %v525
        %610 = vmatpush1.msra.mxu0 %v524
        %611 = vmatprep.subr.mxu0 %v521
        %612 = vmatpush1.msra.mxu0 %v520
        %613 = vmatprep.subr.mxu0 %v517
        %614 = vmatpush1.msra.mxu0 %v516
        %615 = vmatprep.subr.mxu0 %v513
        %616 = vmatpush1.msra.mxu0 %v512
        %617 = vmatprep.subr.mxu0 %v509
        %618 = vmatpush1.msra.mxu0 %v508
        %619 = vmatprep.subr.mxu0 %v505
        %620 = vmatpush1.msra.mxu0 %v504
        %621 = vmatprep.subr.mxu0 %v501
        %622 = vmatpush1.msra.mxu0 %v500
        %623 = vmatprep.subr.mxu0 %v497
        %624 = vmatpush1.msra.mxu0 %v496
        %625 = vmatprep.subr.mxu0 %v493
        %626 = vmatpush1.msra.mxu0 %v492
        %627 = vmatprep.subr.mxu0 %v489
        %628 = vmatpush1.msra.mxu0 %v488
        %629 = vmatprep.subr.mxu0 %v485
        %630 = vmatpush1.msra.mxu0 %v484
        %631 = vmatprep.subr.mxu0 %v481
        %632 = vmatpush1.msra.mxu0 %v480
        %633 = vmatprep.subr.mxu0 %v477
        %634 = vmatpush1.msra.mxu0 %v476
        %635 = vmatprep.subr.mxu0 %v473
        %636 = vmatpush1.msra.mxu0 %v472
        %637 = vmatprep.subr.mxu0 0.0
        %638 = vmatpush2.msra.mxu0 0.0
        %639 = vmatprep.subr.mxu0 0.0
        %640 = vmatpush2.msra.mxu0 0.0
        %641 = vmatprep.subr.mxu0 0.0
        %642 = vmatpush2.msra.mxu0 0.0
        %643 = vmatprep.subr.mxu0 0.0
        %644 = vmatpush2.msra.mxu0 0.0
        %645 = vmatprep.subr.mxu0 0.0
        %646 = vmatpush2.msra.mxu0 0.0
        %647 = vmatprep.subr.mxu0 0.0
        %648 = vmatpush2.msra.mxu0 0.0
        %649 = vmatprep.subr.mxu0 0.0
        %650 = vmatpush2.msra.mxu0 0.0
        %651 = vmatprep.subr.mxu0 0.0
        %652 = vmatpush2.msra.mxu0 0.0
        %653 = vmatprep.subr.mxu0 0.0
        %654 = vmatpush2.msra.mxu0 0.0
        %655 = vmatprep.subr.mxu0 0.0
        %656 = vmatpush2.msra.mxu0 0.0
        %657 = vmatprep.subr.mxu0 0.0
        %658 = vmatpush2.msra.mxu0 0.0
        %659 = vmatprep.subr.mxu0 0.0
        %660 = vmatpush2.msra.mxu0 0.0
        %661 = vmatprep.subr.mxu0 0.0
        %662 = vmatpush2.msra.mxu0 0.0
        %663 = vmatprep.subr.mxu0 0.0
        %664 = vmatpush2.msra.mxu0 0.0
        %665 = vmatprep.subr.mxu0 0.0
        %666 = vmatpush2.msra.mxu0 0.0
        %667 = vmatprep.subr.mxu0 0.0
        %668 = vmatpush2.msra.mxu0 0.0
        %669 = vmatprep.mubr.f32.mxu0 0.0
        %670 = vmatmul.mubr.f32.gmra.mxu0 %v336
        %v671 = vpop.f32.mrf.mxu0
        %v672 = vadd.f32 0.0, %v671
        %v673 = vpop.f32.mrf.mxu0
        %v674 = vadd.f32 0.0, %v673
        %675 = vdwg.mxu0
        %v678 = vunpack.c.l.s4 1983009808
        %v679 = vunpack.c.0.s8 %v678
        %v680 = vlaneseq
        %v681 = vshrl.u32 %v680, 7
        %v682 = vsub.s32 %v679, %v681
        %v683 = vrot.slane %v341, %v682
        %v684 = vcombine.high %v683, %v683
        %687 = vmatprep.subr.mxu0 %v403
        %688 = vmatpush1.msra.mxu0 %v402
        %689 = vmatprep.subr.mxu0 %v399
        %690 = vmatpush1.msra.mxu0 %v398
        %691 = vmatprep.subr.mxu0 %v395
        %692 = vmatpush1.msra.mxu0 %v394
        %693 = vmatprep.subr.mxu0 %v391
        %694 = vmatpush1.msra.mxu0 %v390
        %695 = vmatprep.subr.mxu0 %v387
        %696 = vmatpush1.msra.mxu0 %v386
        %697 = vmatprep.subr.mxu0 %v383
        %698 = vmatpush1.msra.mxu0 %v382
        %699 = vmatprep.subr.mxu0 %v379
        %700 = vmatpush1.msra.mxu0 %v378
        %701 = vmatprep.subr.mxu0 %v375
        %702 = vmatpush1.msra.mxu0 %v374
        %703 = vmatprep.subr.mxu0 %v371
        %704 = vmatpush1.msra.mxu0 %v370
        %705 = vmatprep.subr.mxu0 %v367
        %706 = vmatpush1.msra.mxu0 %v366
        %707 = vmatprep.subr.mxu0 %v363
        %708 = vmatpush1.msra.mxu0 %v362
        %709 = vmatprep.subr.mxu0 %v359
        %710 = vmatpush1.msra.mxu0 %v358
        %711 = vmatprep.subr.mxu0 %v355
        %712 = vmatpush1.msra.mxu0 %v354
        %713 = vmatprep.subr.mxu0 %v351
        %714 = vmatpush1.msra.mxu0 %v350
        %715 = vmatprep.subr.mxu0 %v347
        %716 = vmatpush1.msra.mxu0 %v346
        %717 = vmatprep.subr.mxu0 %v343
        %718 = vmatpush1.msra.mxu0 %v342
        %719 = vmatprep.subr.mxu0 %v467
        %720 = vmatpush2.msra.mxu0 %v466
        %721 = vmatprep.subr.mxu0 %v463
        %722 = vmatpush2.msra.mxu0 %v462
        %723 = vmatprep.subr.mxu0 %v459
        %724 = vmatpush2.msra.mxu0 %v458
        %725 = vmatprep.subr.mxu0 %v455
        %726 = vmatpush2.msra.mxu0 %v454
        %727 = vmatprep.subr.mxu0 %v451
        %728 = vmatpush2.msra.mxu0 %v450
        %729 = vmatprep.subr.mxu0 %v447
        %730 = vmatpush2.msra.mxu0 %v446
        %731 = vmatprep.subr.mxu0 %v443
        %732 = vmatpush2.msra.mxu0 %v442
        %733 = vmatprep.subr.mxu0 %v439
        %734 = vmatpush2.msra.mxu0 %v438
        %735 = vmatprep.subr.mxu0 %v435
        %736 = vmatpush2.msra.mxu0 %v434
        %737 = vmatprep.subr.mxu0 %v431
        %738 = vmatpush2.msra.mxu0 %v430
        %739 = vmatprep.subr.mxu0 %v427
        %740 = vmatpush2.msra.mxu0 %v426
        %741 = vmatprep.subr.mxu0 %v423
        %742 = vmatpush2.msra.mxu0 %v422
        %743 = vmatprep.subr.mxu0 %v419
        %744 = vmatpush2.msra.mxu0 %v418
        %745 = vmatprep.subr.mxu0 %v415
        %746 = vmatpush2.msra.mxu0 %v414
        %747 = vmatprep.subr.mxu0 %v411
        %748 = vmatpush2.msra.mxu0 %v410
        %749 = vmatprep.subr.mxu0 %v407
        %750 = vmatpush2.msra.mxu0 %v406
        %751 = vmatprep.mubr.f32.mxu0 %v684
        %752 = vmatmul.mubr.f32.gmra.mxu0 %v683
        %v753 = vpop.f32.mrf.mxu0
        %v754 = vadd.f32 %v601, %v753
        %v755 = vpop.f32.mrf.mxu0
        %v756 = vadd.f32 %v603, %v755
        %757 = vdwg.mxu0
        %758 = vmatprep.subr.mxu0 %v405
        %759 = vmatpush1.msra.mxu0 %v404
        %760 = vmatprep.subr.mxu0 %v401
        %761 = vmatpush1.msra.mxu0 %v400
        %762 = vmatprep.subr.mxu0 %v397
        %763 = vmatpush1.msra.mxu0 %v396
        %764 = vmatprep.subr.mxu0 %v393
        %765 = vmatpush1.msra.mxu0 %v392
        %766 = vmatprep.subr.mxu0 %v389
        %767 = vmatpush1.msra.mxu0 %v388
        %768 = vmatprep.subr.mxu0 %v385
        %769 = vmatpush1.msra.mxu0 %v384
        %770 = vmatprep.subr.mxu0 %v381
        %771 = vmatpush1.msra.mxu0 %v380
        %772 = vmatprep.subr.mxu0 %v377
        %773 = vmatpush1.msra.mxu0 %v376
        %774 = vmatprep.subr.mxu0 %v373
        %775 = vmatpush1.msra.mxu0 %v372
        %776 = vmatprep.subr.mxu0 %v369
        %777 = vmatpush1.msra.mxu0 %v368
        %778 = vmatprep.subr.mxu0 %v365
        %779 = vmatpush1.msra.mxu0 %v364
        %780 = vmatprep.subr.mxu0 %v361
        %781 = vmatpush1.msra.mxu0 %v360
        %782 = vmatprep.subr.mxu0 %v357
        %783 = vmatpush1.msra.mxu0 %v356
        %784 = vmatprep.subr.mxu0 %v353
        %785 = vmatpush1.msra.mxu0 %v352
        %786 = vmatprep.subr.mxu0 %v349
        %787 = vmatpush1.msra.mxu0 %v348
        %788 = vmatprep.subr.mxu0 %v345
        %789 = vmatpush1.msra.mxu0 %v344
        %790 = vmatprep.subr.mxu0 %v469
        %791 = vmatpush2.msra.mxu0 %v468
        %792 = vmatprep.subr.mxu0 %v465
        %793 = vmatpush2.msra.mxu0 %v464
        %794 = vmatprep.subr.mxu0 %v461
        %795 = vmatpush2.msra.mxu0 %v460
        %796 = vmatprep.subr.mxu0 %v457
        %797 = vmatpush2.msra.mxu0 %v456
        %798 = vmatprep.subr.mxu0 %v453
        %799 = vmatpush2.msra.mxu0 %v452
        %800 = vmatprep.subr.mxu0 %v449
        %801 = vmatpush2.msra.mxu0 %v448
        %802 = vmatprep.subr.mxu0 %v445
        %803 = vmatpush2.msra.mxu0 %v444
        %804 = vmatprep.subr.mxu0 %v441
        %805 = vmatpush2.msra.mxu0 %v440
        %806 = vmatprep.subr.mxu0 %v437
        %807 = vmatpush2.msra.mxu0 %v436
        %808 = vmatprep.subr.mxu0 %v433
        %809 = vmatpush2.msra.mxu0 %v432
        %810 = vmatprep.subr.mxu0 %v429
        %811 = vmatpush2.msra.mxu0 %v428
        %812 = vmatprep.subr.mxu0 %v425
        %813 = vmatpush2.msra.mxu0 %v424
        %814 = vmatprep.subr.mxu0 %v421
        %815 = vmatpush2.msra.mxu0 %v420
        %816 = vmatprep.subr.mxu0 %v417
        %817 = vmatpush2.msra.mxu0 %v416
        %818 = vmatprep.subr.mxu0 %v413
        %819 = vmatpush2.msra.mxu0 %v412
        %820 = vmatprep.subr.mxu0 %v409
        %821 = vmatpush2.msra.mxu0 %v408
        %822 = vmatprep.mubr.f32.mxu0 %v684
        %823 = vmatmul.mubr.f32.gmra.mxu0 %v683
        %v824 = vpop.f32.mrf.mxu0
        %v825 = vadd.f32 %v672, %v824
        %v826 = vpop.f32.mrf.mxu0
        %v827 = vadd.f32 %v674, %v826
        %828 = vdwg.mxu0
        %v829 = vld [vmem:[%s323] sm:$0xf]
        %v831 = vlaneseq
        %v832 = vshrl.u32 %v831, 7
        %v833 = vsub.s32 0, %v832
        %v834 = vrot.slane %v829, %v833
        %v835 = vlaneseq
        %v836 = vshrl.u32 %v835, 7
        %v837 = vsub.s32 1, %v836
        %v838 = vrot.slane %v829, %v837
        %v839 = vlaneseq
        %v840 = vshrl.u32 %v839, 7
        %v841 = vsub.s32 2, %v840
        %v842 = vrot.slane %v829, %v841
        %v843 = vlaneseq
        %v844 = vshrl.u32 %v843, 7
        %v845 = vsub.s32 3, %v844
        %v846 = vrot.slane %v829, %v845
        %v851 = vadd.f32 %v754, %v834
        %v852 = vadd.f32 %v756, %v838
        %v853 = vadd.f32 %v825, %v842
        %v854 = vadd.f32 %v827, %v846
        %v855 = vxor.u32 %v851, 2147483648
        %v856 = vmul.f32 %v855, 1.442695
        %v857 = vpow.pop %v856
        %v858 = vadd.f32 %v857, 1.0
        %v859 = vrcp.pop %v858
        %v860 = vmul.f32 1.0, %v859
        %v861 = vxor.u32 %v852, 2147483648
        %v862 = vmul.f32 %v861, 1.442695
        %v863 = vpow.pop %v862
        %v864 = vadd.f32 %v863, 1.0
        %v865 = vrcp.pop %v864
        %v866 = vmul.f32 1.0, %v865
        %v867 = vtanh.pop %v853
        %v868 = vxor.u32 %v854, 2147483648
        %v869 = vmul.f32 %v868, 1.442695
        %v870 = vpow.pop %v869
        %v871 = vadd.f32 %v870, 1.0
        %v872 = vrcp.pop %v871
        %v873 = vmul.f32 1.0, %v872
        %v874 = vmul.f32 %v866, %v337
        %v875 = vmul.f32 %v860, %v867
        %v876 = vadd.f32 %v874, %v875
        %v877 = vtanh.pop %v876
        %v878 = vmul.f32 %v873, %v877
        %879 = vst [vmem:[#allocation3] sm:$0x3] %v876
        %880 = vst [vmem:[#allocation2] sm:$0x3] %v878
        %s881 = scalar_lea.vmem %s299, %s338 [#allocation6]
        %882 = vst [vmem:[%s881] sm:$0x3] %v878
        %s883 = ssub.s32 1, %s22
        %s884 = smul.u32 %s22, 2
        %s885 = sadd.s32 %s883, %s884
        %v886 = vld [vmem:[#allocation2] sm:$0x3]
        %v887 = vld [vmem:[#allocation3] sm:$0x3]
        %s888 = smul.u32 %s885, 2
        %s889 = smul.addr %s888, 2
        %s890 = scalar_lea.vmem %s309, %s889
        %v891 = vld [vmem:[%s890] sm:$0xf]
        %v892 = vld [vmem:[%s257] sm:$0xff]
        %v893 = vld [vmem:[%s257 + $0x8] sm:$0xff]
        %v894 = vld [vmem:[%s257 + $0x10] sm:$0xff]
        %v895 = vld [vmem:[%s257 + $0x18] sm:$0xff]
        %v896 = vld [vmem:[%s257 + $0x20] sm:$0xff]
        %v897 = vld [vmem:[%s257 + $0x28] sm:$0xff]
        %v898 = vld [vmem:[%s257 + $0x30] sm:$0xff]
        %v899 = vld [vmem:[%s257 + $0x38] sm:$0xff]
        %v900 = vld [vmem:[%s257 + $0x40] sm:$0xff]
        %v901 = vld [vmem:[%s257 + $0x48] sm:$0xff]
        %v902 = vld [vmem:[%s257 + $0x50] sm:$0xff]
        %v903 = vld [vmem:[%s257 + $0x58] sm:$0xff]
        %v904 = vld [vmem:[%s257 + $0x60] sm:$0xff]
        %v905 = vld [vmem:[%s257 + $0x68] sm:$0xff]
        %v906 = vld [vmem:[%s257 + $0x70] sm:$0xff]
        %v907 = vld [vmem:[%s257 + $0x78] sm:$0xff]
        %v908 = vld [vmem:[%s257 + $0x80] sm:$0xff]
        %v909 = vld [vmem:[%s257 + $0x88] sm:$0xff]
        %v910 = vld [vmem:[%s257 + $0x90] sm:$0xff]
        %v911 = vld [vmem:[%s257 + $0x98] sm:$0xff]
        %v912 = vld [vmem:[%s257 + $0xa0] sm:$0xff]
        %v913 = vld [vmem:[%s257 + $0xa8] sm:$0xff]
        %v914 = vld [vmem:[%s257 + $0xb0] sm:$0xff]
        %v915 = vld [vmem:[%s257 + $0xb8] sm:$0xff]
        %v916 = vld [vmem:[%s257 + $0xc0] sm:$0xff]
        %v917 = vld [vmem:[%s257 + $0xc8] sm:$0xff]
        %v918 = vld [vmem:[%s257 + $0xd0] sm:$0xff]
        %v919 = vld [vmem:[%s257 + $0xd8] sm:$0xff]
        %v920 = vld [vmem:[%s257 + $0xe0] sm:$0xff]
        %v921 = vld [vmem:[%s257 + $0xe8] sm:$0xff]
        %v922 = vld [vmem:[%s257 + $0xf0] sm:$0xff]
        %v923 = vld [vmem:[%s257 + $0xf8] sm:$0xff]
        %v924 = vld [vmem:[%s257 + $0x100] sm:$0xff]
        %v925 = vld [vmem:[%s257 + $0x108] sm:$0xff]
        %v926 = vld [vmem:[%s257 + $0x110] sm:$0xff]
        %v927 = vld [vmem:[%s257 + $0x118] sm:$0xff]
        %v928 = vld [vmem:[%s257 + $0x120] sm:$0xff]
        %v929 = vld [vmem:[%s257 + $0x128] sm:$0xff]
        %v930 = vld [vmem:[%s257 + $0x130] sm:$0xff]
        %v931 = vld [vmem:[%s257 + $0x138] sm:$0xff]
        %v932 = vld [vmem:[%s257 + $0x140] sm:$0xff]
        %v933 = vld [vmem:[%s257 + $0x148] sm:$0xff]
        %v934 = vld [vmem:[%s257 + $0x150] sm:$0xff]
        %v935 = vld [vmem:[%s257 + $0x158] sm:$0xff]
        %v936 = vld [vmem:[%s257 + $0x160] sm:$0xff]
        %v937 = vld [vmem:[%s257 + $0x168] sm:$0xff]
        %v938 = vld [vmem:[%s257 + $0x170] sm:$0xff]
        %v939 = vld [vmem:[%s257 + $0x178] sm:$0xff]
        %v940 = vld [vmem:[%s257 + $0x180] sm:$0xff]
        %v941 = vld [vmem:[%s257 + $0x188] sm:$0xff]
        %v942 = vld [vmem:[%s257 + $0x190] sm:$0xff]
        %v943 = vld [vmem:[%s257 + $0x198] sm:$0xff]
        %v944 = vld [vmem:[%s257 + $0x1a0] sm:$0xff]
        %v945 = vld [vmem:[%s257 + $0x1a8] sm:$0xff]
        %v946 = vld [vmem:[%s257 + $0x1b0] sm:$0xff]
        %v947 = vld [vmem:[%s257 + $0x1b8] sm:$0xff]
        %v948 = vld [vmem:[%s257 + $0x1c0] sm:$0xff]
        %v949 = vld [vmem:[%s257 + $0x1c8] sm:$0xff]
        %v950 = vld [vmem:[%s257 + $0x1d0] sm:$0xff]
        %v951 = vld [vmem:[%s257 + $0x1d8] sm:$0xff]
        %v952 = vld [vmem:[%s257 + $0x1e0] sm:$0xff]
        %v953 = vld [vmem:[%s257 + $0x1e8] sm:$0xff]
        %v954 = vld [vmem:[%s257 + $0x1f0] sm:$0xff]
        %v955 = vld [vmem:[%s257 + $0x1f8] sm:$0xff]
        %v956 = vld [vmem:[%s257 + $0x200] sm:$0xff]
        %v957 = vld [vmem:[%s257 + $0x208] sm:$0xff]
        %v958 = vld [vmem:[%s257 + $0x210] sm:$0xff]
        %v959 = vld [vmem:[%s257 + $0x218] sm:$0xff]
        %v960 = vld [vmem:[%s257 + $0x220] sm:$0xff]
        %v961 = vld [vmem:[%s257 + $0x228] sm:$0xff]
        %v962 = vld [vmem:[%s257 + $0x230] sm:$0xff]
        %v963 = vld [vmem:[%s257 + $0x238] sm:$0xff]
        %v964 = vld [vmem:[%s257 + $0x240] sm:$0xff]
        %v965 = vld [vmem:[%s257 + $0x248] sm:$0xff]
        %v966 = vld [vmem:[%s257 + $0x250] sm:$0xff]
        %v967 = vld [vmem:[%s257 + $0x258] sm:$0xff]
        %v968 = vld [vmem:[%s257 + $0x260] sm:$0xff]
        %v969 = vld [vmem:[%s257 + $0x268] sm:$0xff]
        %v970 = vld [vmem:[%s257 + $0x270] sm:$0xff]
        %v971 = vld [vmem:[%s257 + $0x278] sm:$0xff]
        %v972 = vld [vmem:[%s257 + $0x280] sm:$0xff]
        %v973 = vld [vmem:[%s257 + $0x288] sm:$0xff]
        %v974 = vld [vmem:[%s257 + $0x290] sm:$0xff]
        %v975 = vld [vmem:[%s257 + $0x298] sm:$0xff]
        %v976 = vld [vmem:[%s257 + $0x2a0] sm:$0xff]
        %v977 = vld [vmem:[%s257 + $0x2a8] sm:$0xff]
        %v978 = vld [vmem:[%s257 + $0x2b0] sm:$0xff]
        %v979 = vld [vmem:[%s257 + $0x2b8] sm:$0xff]
        %v980 = vld [vmem:[%s257 + $0x2c0] sm:$0xff]
        %v981 = vld [vmem:[%s257 + $0x2c8] sm:$0xff]
        %v982 = vld [vmem:[%s257 + $0x2d0] sm:$0xff]
        %v983 = vld [vmem:[%s257 + $0x2d8] sm:$0xff]
        %v984 = vld [vmem:[%s257 + $0x2e0] sm:$0xff]
        %v985 = vld [vmem:[%s257 + $0x2e8] sm:$0xff]
        %v986 = vld [vmem:[%s257 + $0x2f0] sm:$0xff]
        %v987 = vld [vmem:[%s257 + $0x2f8] sm:$0xff]
        %v988 = vld [vmem:[%s257 + $0x300] sm:$0xff]
        %v989 = vld [vmem:[%s257 + $0x308] sm:$0xff]
        %v990 = vld [vmem:[%s257 + $0x310] sm:$0xff]
        %v991 = vld [vmem:[%s257 + $0x318] sm:$0xff]
        %v992 = vld [vmem:[%s257 + $0x320] sm:$0xff]
        %v993 = vld [vmem:[%s257 + $0x328] sm:$0xff]
        %v994 = vld [vmem:[%s257 + $0x330] sm:$0xff]
        %v995 = vld [vmem:[%s257 + $0x338] sm:$0xff]
        %v996 = vld [vmem:[%s257 + $0x340] sm:$0xff]
        %v997 = vld [vmem:[%s257 + $0x348] sm:$0xff]
        %v998 = vld [vmem:[%s257 + $0x350] sm:$0xff]
        %v999 = vld [vmem:[%s257 + $0x358] sm:$0xff]
        %v1000 = vld [vmem:[%s257 + $0x360] sm:$0xff]
        %v1001 = vld [vmem:[%s257 + $0x368] sm:$0xff]
        %v1002 = vld [vmem:[%s257 + $0x370] sm:$0xff]
        %v1003 = vld [vmem:[%s257 + $0x378] sm:$0xff]
        %v1004 = vld [vmem:[%s257 + $0x380] sm:$0xff]
        %v1005 = vld [vmem:[%s257 + $0x388] sm:$0xff]
        %v1006 = vld [vmem:[%s257 + $0x390] sm:$0xff]
        %v1007 = vld [vmem:[%s257 + $0x398] sm:$0xff]
        %v1008 = vld [vmem:[%s257 + $0x3a0] sm:$0xff]
        %v1009 = vld [vmem:[%s257 + $0x3a8] sm:$0xff]
        %v1010 = vld [vmem:[%s257 + $0x3b0] sm:$0xff]
        %v1011 = vld [vmem:[%s257 + $0x3b8] sm:$0xff]
        %v1012 = vld [vmem:[%s257 + $0x3c0] sm:$0xff]
        %v1013 = vld [vmem:[%s257 + $0x3c8] sm:$0xff]
        %v1014 = vld [vmem:[%s257 + $0x3d0] sm:$0xff]
        %v1015 = vld [vmem:[%s257 + $0x3d8] sm:$0xff]
        %v1016 = vld [vmem:[%s257 + $0x3e0] sm:$0xff]
        %v1017 = vld [vmem:[%s257 + $0x3e8] sm:$0xff]
        %v1018 = vld [vmem:[%s257 + $0x3f0] sm:$0xff]
        %v1019 = vld [vmem:[%s257 + $0x3f8] sm:$0xff]
        %v1020 = vld [vmem:[%s319] sm:$0xff]
        %v1021 = vld [vmem:[%s319 + $0x8] sm:$0xff]
        %v1022 = vld [vmem:[%s319 + $0x10] sm:$0xff]
        %v1023 = vld [vmem:[%s319 + $0x18] sm:$0xff]
        %v1024 = vld [vmem:[%s319 + $0x20] sm:$0xff]
        %v1025 = vld [vmem:[%s319 + $0x28] sm:$0xff]
        %v1026 = vld [vmem:[%s319 + $0x30] sm:$0xff]
        %v1027 = vld [vmem:[%s319 + $0x38] sm:$0xff]
        %v1028 = vld [vmem:[%s319 + $0x40] sm:$0xff]
        %v1029 = vld [vmem:[%s319 + $0x48] sm:$0xff]
        %v1030 = vld [vmem:[%s319 + $0x50] sm:$0xff]
        %v1031 = vld [vmem:[%s319 + $0x58] sm:$0xff]
        %v1032 = vld [vmem:[%s319 + $0x60] sm:$0xff]
        %v1033 = vld [vmem:[%s319 + $0x68] sm:$0xff]
        %v1034 = vld [vmem:[%s319 + $0x70] sm:$0xff]
        %v1035 = vld [vmem:[%s319 + $0x78] sm:$0xff]
        %v1036 = vld [vmem:[%s319 + $0x80] sm:$0xff]
        %v1037 = vld [vmem:[%s319 + $0x88] sm:$0xff]
        %v1038 = vld [vmem:[%s319 + $0x90] sm:$0xff]
        %v1039 = vld [vmem:[%s319 + $0x98] sm:$0xff]
        %v1040 = vld [vmem:[%s319 + $0xa0] sm:$0xff]
        %v1041 = vld [vmem:[%s319 + $0xa8] sm:$0xff]
        %v1042 = vld [vmem:[%s319 + $0xb0] sm:$0xff]
        %v1043 = vld [vmem:[%s319 + $0xb8] sm:$0xff]
        %v1044 = vld [vmem:[%s319 + $0xc0] sm:$0xff]
        %v1045 = vld [vmem:[%s319 + $0xc8] sm:$0xff]
        %v1046 = vld [vmem:[%s319 + $0xd0] sm:$0xff]
        %v1047 = vld [vmem:[%s319 + $0xd8] sm:$0xff]
        %v1048 = vld [vmem:[%s319 + $0xe0] sm:$0xff]
        %v1049 = vld [vmem:[%s319 + $0xe8] sm:$0xff]
        %v1050 = vld [vmem:[%s319 + $0xf0] sm:$0xff]
        %v1051 = vld [vmem:[%s319 + $0xf8] sm:$0xff]
        %v1052 = vld [vmem:[%s319 + $0x100] sm:$0xff]
        %v1053 = vld [vmem:[%s319 + $0x108] sm:$0xff]
        %v1054 = vld [vmem:[%s319 + $0x110] sm:$0xff]
        %v1055 = vld [vmem:[%s319 + $0x118] sm:$0xff]
        %v1056 = vld [vmem:[%s319 + $0x120] sm:$0xff]
        %v1057 = vld [vmem:[%s319 + $0x128] sm:$0xff]
        %v1058 = vld [vmem:[%s319 + $0x130] sm:$0xff]
        %v1059 = vld [vmem:[%s319 + $0x138] sm:$0xff]
        %v1060 = vld [vmem:[%s319 + $0x140] sm:$0xff]
        %v1061 = vld [vmem:[%s319 + $0x148] sm:$0xff]
        %v1062 = vld [vmem:[%s319 + $0x150] sm:$0xff]
        %v1063 = vld [vmem:[%s319 + $0x158] sm:$0xff]
        %v1064 = vld [vmem:[%s319 + $0x160] sm:$0xff]
        %v1065 = vld [vmem:[%s319 + $0x168] sm:$0xff]
        %v1066 = vld [vmem:[%s319 + $0x170] sm:$0xff]
        %v1067 = vld [vmem:[%s319 + $0x178] sm:$0xff]
        %v1068 = vld [vmem:[%s319 + $0x180] sm:$0xff]
        %v1069 = vld [vmem:[%s319 + $0x188] sm:$0xff]
        %v1070 = vld [vmem:[%s319 + $0x190] sm:$0xff]
        %v1071 = vld [vmem:[%s319 + $0x198] sm:$0xff]
        %v1072 = vld [vmem:[%s319 + $0x1a0] sm:$0xff]
        %v1073 = vld [vmem:[%s319 + $0x1a8] sm:$0xff]
        %v1074 = vld [vmem:[%s319 + $0x1b0] sm:$0xff]
        %v1075 = vld [vmem:[%s319 + $0x1b8] sm:$0xff]
        %v1076 = vld [vmem:[%s319 + $0x1c0] sm:$0xff]
        %v1077 = vld [vmem:[%s319 + $0x1c8] sm:$0xff]
        %v1078 = vld [vmem:[%s319 + $0x1d0] sm:$0xff]
        %v1079 = vld [vmem:[%s319 + $0x1d8] sm:$0xff]
        %v1080 = vld [vmem:[%s319 + $0x1e0] sm:$0xff]
        %v1081 = vld [vmem:[%s319 + $0x1e8] sm:$0xff]
        %v1082 = vld [vmem:[%s319 + $0x1f0] sm:$0xff]
        %v1083 = vld [vmem:[%s319 + $0x1f8] sm:$0xff]
        %1084 = vmatprep.subr.mxu0 %v1081
        %1085 = vmatpush1.msra.mxu0 %v1080
        %1086 = vmatprep.subr.mxu0 %v1077
        %1087 = vmatpush1.msra.mxu0 %v1076
        %1088 = vmatprep.subr.mxu0 %v1073
        %1089 = vmatpush1.msra.mxu0 %v1072
        %1090 = vmatprep.subr.mxu0 %v1069
        %1091 = vmatpush1.msra.mxu0 %v1068
        %1092 = vmatprep.subr.mxu0 %v1065
        %1093 = vmatpush1.msra.mxu0 %v1064
        %1094 = vmatprep.subr.mxu0 %v1061
        %1095 = vmatpush1.msra.mxu0 %v1060
        %1096 = vmatprep.subr.mxu0 %v1057
        %1097 = vmatpush1.msra.mxu0 %v1056
        %1098 = vmatprep.subr.mxu0 %v1053
        %1099 = vmatpush1.msra.mxu0 %v1052
        %1100 = vmatprep.subr.mxu0 %v1049
        %1101 = vmatpush1.msra.mxu0 %v1048
        %1102 = vmatprep.subr.mxu0 %v1045
        %1103 = vmatpush1.msra.mxu0 %v1044
        %1104 = vmatprep.subr.mxu0 %v1041
        %1105 = vmatpush1.msra.mxu0 %v1040
        %1106 = vmatprep.subr.mxu0 %v1037
        %1107 = vmatpush1.msra.mxu0 %v1036
        %1108 = vmatprep.subr.mxu0 %v1033
        %1109 = vmatpush1.msra.mxu0 %v1032
        %1110 = vmatprep.subr.mxu0 %v1029
        %1111 = vmatpush1.msra.mxu0 %v1028
        %1112 = vmatprep.subr.mxu0 %v1025
        %1113 = vmatpush1.msra.mxu0 %v1024
        %1114 = vmatprep.subr.mxu0 %v1021
        %1115 = vmatpush1.msra.mxu0 %v1020
        %1116 = vmatprep.subr.mxu0 0.0
        %1117 = vmatpush2.msra.mxu0 0.0
        %1118 = vmatprep.subr.mxu0 0.0
        %1119 = vmatpush2.msra.mxu0 0.0
        %1120 = vmatprep.subr.mxu0 0.0
        %1121 = vmatpush2.msra.mxu0 0.0
        %1122 = vmatprep.subr.mxu0 0.0
        %1123 = vmatpush2.msra.mxu0 0.0
        %1124 = vmatprep.subr.mxu0 0.0
        %1125 = vmatpush2.msra.mxu0 0.0
        %1126 = vmatprep.subr.mxu0 0.0
        %1127 = vmatpush2.msra.mxu0 0.0
        %1128 = vmatprep.subr.mxu0 0.0
        %1129 = vmatpush2.msra.mxu0 0.0
        %1130 = vmatprep.subr.mxu0 0.0
        %1131 = vmatpush2.msra.mxu0 0.0
        %1132 = vmatprep.subr.mxu0 0.0
        %1133 = vmatpush2.msra.mxu0 0.0
        %1134 = vmatprep.subr.mxu0 0.0
        %1135 = vmatpush2.msra.mxu0 0.0
        %1136 = vmatprep.subr.mxu0 0.0
        %1137 = vmatpush2.msra.mxu0 0.0
        %1138 = vmatprep.subr.mxu0 0.0
        %1139 = vmatpush2.msra.mxu0 0.0
        %1140 = vmatprep.subr.mxu0 0.0
        %1141 = vmatpush2.msra.mxu0 0.0
        %1142 = vmatprep.subr.mxu0 0.0
        %1143 = vmatpush2.msra.mxu0 0.0
        %1144 = vmatprep.subr.mxu0 0.0
        %1145 = vmatpush2.msra.mxu0 0.0
        %1146 = vmatprep.subr.mxu0 0.0
        %1147 = vmatpush2.msra.mxu0 0.0
        %1148 = vmatprep.mubr.f32.mxu0 0.0
        %1149 = vmatmul.mubr.f32.gmra.mxu0 %v886
        %v1150 = vpop.f32.mrf.mxu0
        %v1151 = vadd.f32 0.0, %v1150
        %v1152 = vpop.f32.mrf.mxu0
        %v1153 = vadd.f32 0.0, %v1152
        %1154 = vdwg.mxu0
        %1155 = vmatprep.subr.mxu0 %v1083
        %1156 = vmatpush1.msra.mxu0 %v1082
        %1157 = vmatprep.subr.mxu0 %v1079
        %1158 = vmatpush1.msra.mxu0 %v1078
        %1159 = vmatprep.subr.mxu0 %v1075
        %1160 = vmatpush1.msra.mxu0 %v1074
        %1161 = vmatprep.subr.mxu0 %v1071
        %1162 = vmatpush1.msra.mxu0 %v1070
        %1163 = vmatprep.subr.mxu0 %v1067
        %1164 = vmatpush1.msra.mxu0 %v1066
        %1165 = vmatprep.subr.mxu0 %v1063
        %1166 = vmatpush1.msra.mxu0 %v1062
        %1167 = vmatprep.subr.mxu0 %v1059
        %1168 = vmatpush1.msra.mxu0 %v1058
        %1169 = vmatprep.subr.mxu0 %v1055
        %1170 = vmatpush1.msra.mxu0 %v1054
        %1171 = vmatprep.subr.mxu0 %v1051
        %1172 = vmatpush1.msra.mxu0 %v1050
        %1173 = vmatprep.subr.mxu0 %v1047
        %1174 = vmatpush1.msra.mxu0 %v1046
        %1175 = vmatprep.subr.mxu0 %v1043
        %1176 = vmatpush1.msra.mxu0 %v1042
        %1177 = vmatprep.subr.mxu0 %v1039
        %1178 = vmatpush1.msra.mxu0 %v1038
        %1179 = vmatprep.subr.mxu0 %v1035
        %1180 = vmatpush1.msra.mxu0 %v1034
        %1181 = vmatprep.subr.mxu0 %v1031
        %1182 = vmatpush1.msra.mxu0 %v1030
        %1183 = vmatprep.subr.mxu0 %v1027
        %1184 = vmatpush1.msra.mxu0 %v1026
        %1185 = vmatprep.subr.mxu0 %v1023
        %1186 = vmatpush1.msra.mxu0 %v1022
        %1187 = vmatprep.subr.mxu0 0.0
        %1188 = vmatpush2.msra.mxu0 0.0
        %1189 = vmatprep.subr.mxu0 0.0
        %1190 = vmatpush2.msra.mxu0 0.0
        %1191 = vmatprep.subr.mxu0 0.0
        %1192 = vmatpush2.msra.mxu0 0.0
        %1193 = vmatprep.subr.mxu0 0.0
        %1194 = vmatpush2.msra.mxu0 0.0
        %1195 = vmatprep.subr.mxu0 0.0
        %1196 = vmatpush2.msra.mxu0 0.0
        %1197 = vmatprep.subr.mxu0 0.0
        %1198 = vmatpush2.msra.mxu0 0.0
        %1199 = vmatprep.subr.mxu0 0.0
        %1200 = vmatpush2.msra.mxu0 0.0
        %1201 = vmatprep.subr.mxu0 0.0
        %1202 = vmatpush2.msra.mxu0 0.0
        %1203 = vmatprep.subr.mxu0 0.0
        %1204 = vmatpush2.msra.mxu0 0.0
        %1205 = vmatprep.subr.mxu0 0.0
        %1206 = vmatpush2.msra.mxu0 0.0
        %1207 = vmatprep.subr.mxu0 0.0
        %1208 = vmatpush2.msra.mxu0 0.0
        %1209 = vmatprep.subr.mxu0 0.0
        %1210 = vmatpush2.msra.mxu0 0.0
        %1211 = vmatprep.subr.mxu0 0.0
        %1212 = vmatpush2.msra.mxu0 0.0
        %1213 = vmatprep.subr.mxu0 0.0
        %1214 = vmatpush2.msra.mxu0 0.0
        %1215 = vmatprep.subr.mxu0 0.0
        %1216 = vmatpush2.msra.mxu0 0.0
        %1217 = vmatprep.subr.mxu0 0.0
        %1218 = vmatpush2.msra.mxu0 0.0
        %1219 = vmatprep.mubr.f32.mxu0 0.0
        %1220 = vmatmul.mubr.f32.gmra.mxu0 %v886
        %v1221 = vpop.f32.mrf.mxu0
        %v1222 = vadd.f32 0.0, %v1221
        %v1223 = vpop.f32.mrf.mxu0
        %v1224 = vadd.f32 0.0, %v1223
        %1225 = vdwg.mxu0
        %v1228 = vunpack.c.l.s4 1983009808
        %v1229 = vunpack.c.0.s8 %v1228
        %v1230 = vlaneseq
        %v1231 = vshrl.u32 %v1230, 7
        %v1232 = vsub.s32 %v1229, %v1231
        %v1233 = vrot.slane %v891, %v1232
        %v1234 = vcombine.high %v1233, %v1233
        %1237 = vmatprep.subr.mxu0 %v953
        %1238 = vmatpush1.msra.mxu0 %v952
        %1239 = vmatprep.subr.mxu0 %v949
        %1240 = vmatpush1.msra.mxu0 %v948
        %1241 = vmatprep.subr.mxu0 %v945
        %1242 = vmatpush1.msra.mxu0 %v944
        %1243 = vmatprep.subr.mxu0 %v941
        %1244 = vmatpush1.msra.mxu0 %v940
        %1245 = vmatprep.subr.mxu0 %v937
        %1246 = vmatpush1.msra.mxu0 %v936
        %1247 = vmatprep.subr.mxu0 %v933
        %1248 = vmatpush1.msra.mxu0 %v932
        %1249 = vmatprep.subr.mxu0 %v929
        %1250 = vmatpush1.msra.mxu0 %v928
        %1251 = vmatprep.subr.mxu0 %v925
        %1252 = vmatpush1.msra.mxu0 %v924
        %1253 = vmatprep.subr.mxu0 %v921
        %1254 = vmatpush1.msra.mxu0 %v920
        %1255 = vmatprep.subr.mxu0 %v917
        %1256 = vmatpush1.msra.mxu0 %v916
        %1257 = vmatprep.subr.mxu0 %v913
        %1258 = vmatpush1.msra.mxu0 %v912
        %1259 = vmatprep.subr.mxu0 %v909
        %1260 = vmatpush1.msra.mxu0 %v908
        %1261 = vmatprep.subr.mxu0 %v905
        %1262 = vmatpush1.msra.mxu0 %v904
        %1263 = vmatprep.subr.mxu0 %v901
        %1264 = vmatpush1.msra.mxu0 %v900
        %1265 = vmatprep.subr.mxu0 %v897
        %1266 = vmatpush1.msra.mxu0 %v896
        %1267 = vmatprep.subr.mxu0 %v893
        %1268 = vmatpush1.msra.mxu0 %v892
        %1269 = vmatprep.subr.mxu0 %v1017
        %1270 = vmatpush2.msra.mxu0 %v1016
        %1271 = vmatprep.subr.mxu0 %v1013
        %1272 = vmatpush2.msra.mxu0 %v1012
        %1273 = vmatprep.subr.mxu0 %v1009
        %1274 = vmatpush2.msra.mxu0 %v1008
        %1275 = vmatprep.subr.mxu0 %v1005
        %1276 = vmatpush2.msra.mxu0 %v1004
        %1277 = vmatprep.subr.mxu0 %v1001
        %1278 = vmatpush2.msra.mxu0 %v1000
        %1279 = vmatprep.subr.mxu0 %v997
        %1280 = vmatpush2.msra.mxu0 %v996
        %1281 = vmatprep.subr.mxu0 %v993
        %1282 = vmatpush2.msra.mxu0 %v992
        %1283 = vmatprep.subr.mxu0 %v989
        %1284 = vmatpush2.msra.mxu0 %v988
        %1285 = vmatprep.subr.mxu0 %v985
        %1286 = vmatpush2.msra.mxu0 %v984
        %1287 = vmatprep.subr.mxu0 %v981
        %1288 = vmatpush2.msra.mxu0 %v980
        %1289 = vmatprep.subr.mxu0 %v977
        %1290 = vmatpush2.msra.mxu0 %v976
        %1291 = vmatprep.subr.mxu0 %v973
        %1292 = vmatpush2.msra.mxu0 %v972
        %1293 = vmatprep.subr.mxu0 %v969
        %1294 = vmatpush2.msra.mxu0 %v968
        %1295 = vmatprep.subr.mxu0 %v965
        %1296 = vmatpush2.msra.mxu0 %v964
        %1297 = vmatprep.subr.mxu0 %v961
        %1298 = vmatpush2.msra.mxu0 %v960
        %1299 = vmatprep.subr.mxu0 %v957
        %1300 = vmatpush2.msra.mxu0 %v956
        %1301 = vmatprep.mubr.f32.mxu0 %v1234
        %1302 = vmatmul.mubr.f32.gmra.mxu0 %v1233
        %v1303 = vpop.f32.mrf.mxu0
        %v1304 = vadd.f32 %v1151, %v1303
        %v1305 = vpop.f32.mrf.mxu0
        %v1306 = vadd.f32 %v1153, %v1305
        %1307 = vdwg.mxu0
        %1308 = vmatprep.subr.mxu0 %v955
        %1309 = vmatpush1.msra.mxu0 %v954
        %1310 = vmatprep.subr.mxu0 %v951
        %1311 = vmatpush1.msra.mxu0 %v950
        %1312 = vmatprep.subr.mxu0 %v947
        %1313 = vmatpush1.msra.mxu0 %v946
        %1314 = vmatprep.subr.mxu0 %v943
        %1315 = vmatpush1.msra.mxu0 %v942
        %1316 = vmatprep.subr.mxu0 %v939
        %1317 = vmatpush1.msra.mxu0 %v938
        %1318 = vmatprep.subr.mxu0 %v935
        %1319 = vmatpush1.msra.mxu0 %v934
        %1320 = vmatprep.subr.mxu0 %v931
        %1321 = vmatpush1.msra.mxu0 %v930
        %1322 = vmatprep.subr.mxu0 %v927
        %1323 = vmatpush1.msra.mxu0 %v926
        %1324 = vmatprep.subr.mxu0 %v923
        %1325 = vmatpush1.msra.mxu0 %v922
        %1326 = vmatprep.subr.mxu0 %v919
        %1327 = vmatpush1.msra.mxu0 %v918
        %1328 = vmatprep.subr.mxu0 %v915
        %1329 = vmatpush1.msra.mxu0 %v914
        %1330 = vmatprep.subr.mxu0 %v911
        %1331 = vmatpush1.msra.mxu0 %v910
        %1332 = vmatprep.subr.mxu0 %v907
        %1333 = vmatpush1.msra.mxu0 %v906
        %1334 = vmatprep.subr.mxu0 %v903
        %1335 = vmatpush1.msra.mxu0 %v902
        %1336 = vmatprep.subr.mxu0 %v899
        %1337 = vmatpush1.msra.mxu0 %v898
        %1338 = vmatprep.subr.mxu0 %v895
        %1339 = vmatpush1.msra.mxu0 %v894
        %1340 = vmatprep.subr.mxu0 %v1019
        %1341 = vmatpush2.msra.mxu0 %v1018
        %1342 = vmatprep.subr.mxu0 %v1015
        %1343 = vmatpush2.msra.mxu0 %v1014
        %1344 = vmatprep.subr.mxu0 %v1011
        %1345 = vmatpush2.msra.mxu0 %v1010
        %1346 = vmatprep.subr.mxu0 %v1007
        %1347 = vmatpush2.msra.mxu0 %v1006
        %1348 = vmatprep.subr.mxu0 %v1003
        %1349 = vmatpush2.msra.mxu0 %v1002
        %1350 = vmatprep.subr.mxu0 %v999
        %1351 = vmatpush2.msra.mxu0 %v998
        %1352 = vmatprep.subr.mxu0 %v995
        %1353 = vmatpush2.msra.mxu0 %v994
        %1354 = vmatprep.subr.mxu0 %v991
        %1355 = vmatpush2.msra.mxu0 %v990
        %1356 = vmatprep.subr.mxu0 %v987
        %1357 = vmatpush2.msra.mxu0 %v986
        %1358 = vmatprep.subr.mxu0 %v983
        %1359 = vmatpush2.msra.mxu0 %v982
        %1360 = vmatprep.subr.mxu0 %v979
        %1361 = vmatpush2.msra.mxu0 %v978
        %1362 = vmatprep.subr.mxu0 %v975
        %1363 = vmatpush2.msra.mxu0 %v974
        %1364 = vmatprep.subr.mxu0 %v971
        %1365 = vmatpush2.msra.mxu0 %v970
        %1366 = vmatprep.subr.mxu0 %v967
        %1367 = vmatpush2.msra.mxu0 %v966
        %1368 = vmatprep.subr.mxu0 %v963
        %1369 = vmatpush2.msra.mxu0 %v962
        %1370 = vmatprep.subr.mxu0 %v959
        %1371 = vmatpush2.msra.mxu0 %v958
        %1372 = vmatprep.mubr.f32.mxu0 %v1234
        %1373 = vmatmul.mubr.f32.gmra.mxu0 %v1233
        %v1374 = vpop.f32.mrf.mxu0
        %v1375 = vadd.f32 %v1222, %v1374
        %v1376 = vpop.f32.mrf.mxu0
        %v1377 = vadd.f32 %v1224, %v1376
        %1378 = vdwg.mxu0
        %v1379 = vld [vmem:[%s323] sm:$0xf]
        %v1381 = vlaneseq
        %v1382 = vshrl.u32 %v1381, 7
        %v1383 = vsub.s32 0, %v1382
        %v1384 = vrot.slane %v1379, %v1383
        %v1385 = vlaneseq
        %v1386 = vshrl.u32 %v1385, 7
        %v1387 = vsub.s32 1, %v1386
        %v1388 = vrot.slane %v1379, %v1387
        %v1389 = vlaneseq
        %v1390 = vshrl.u32 %v1389, 7
        %v1391 = vsub.s32 2, %v1390
        %v1392 = vrot.slane %v1379, %v1391
        %v1393 = vlaneseq
        %v1394 = vshrl.u32 %v1393, 7
        %v1395 = vsub.s32 3, %v1394
        %v1396 = vrot.slane %v1379, %v1395
        %v1401 = vadd.f32 %v1304, %v1384
        %v1402 = vadd.f32 %v1306, %v1388
        %v1403 = vadd.f32 %v1375, %v1392
        %v1404 = vadd.f32 %v1377, %v1396
        %v1405 = vxor.u32 %v1401, 2147483648
        %v1406 = vmul.f32 %v1405, 1.442695
        %v1407 = vpow.pop %v1406
        %v1408 = vadd.f32 %v1407, 1.0
        %v1409 = vrcp.pop %v1408
        %v1410 = vmul.f32 1.0, %v1409
        %v1411 = vxor.u32 %v1402, 2147483648
        %v1412 = vmul.f32 %v1411, 1.442695
        %v1413 = vpow.pop %v1412
        %v1414 = vadd.f32 %v1413, 1.0
        %v1415 = vrcp.pop %v1414
        %v1416 = vmul.f32 1.0, %v1415
        %v1417 = vtanh.pop %v1403
        %v1418 = vxor.u32 %v1404, 2147483648
        %v1419 = vmul.f32 %v1418, 1.442695
        %v1420 = vpow.pop %v1419
        %v1421 = vadd.f32 %v1420, 1.0
        %v1422 = vrcp.pop %v1421
        %v1423 = vmul.f32 1.0, %v1422
        %v1424 = vmul.f32 %v1416, %v887
        %v1425 = vmul.f32 %v1410, %v1417
        %v1426 = vadd.f32 %v1424, %v1425
        %v1427 = vtanh.pop %v1426
        %v1428 = vmul.f32 %v1423, %v1427
        %1429 = vst [vmem:[#allocation3] sm:$0x3] %v1426
        %1430 = vst [vmem:[#allocation2] sm:$0x3] %v1428
        %s1431 = scalar_lea.vmem %s299, %s888 [#allocation6]
        %1432 = vst [vmem:[%s1431] sm:$0x3] %v1428
        %s1433 = smul.u32 %s883, 2
        %s1434 = sadd.s32 %s1433, %s22
        %v1435 = vld [vmem:[#allocation2] sm:$0x3]
        %v1436 = vld [vmem:[#allocation3] sm:$0x3]
        %s1437 = smul.u32 %s1434, 2
        %s1438 = smul.addr %s1437, 2
        %s1439 = scalar_lea.vmem %s309, %s1438
        %v1440 = vld [vmem:[%s1439] sm:$0xf]
        %v1441 = vld [vmem:[%s257] sm:$0xff]
        %v1442 = vld [vmem:[%s257 + $0x8] sm:$0xff]
        %v1443 = vld [vmem:[%s257 + $0x10] sm:$0xff]
        %v1444 = vld [vmem:[%s257 + $0x18] sm:$0xff]
        %v1445 = vld [vmem:[%s257 + $0x20] sm:$0xff]
        %v1446 = vld [vmem:[%s257 + $0x28] sm:$0xff]
        %v1447 = vld [vmem:[%s257 + $0x30] sm:$0xff]
        %v1448 = vld [vmem:[%s257 + $0x38] sm:$0xff]
        %v1449 = vld [vmem:[%s257 + $0x40] sm:$0xff]
        %v1450 = vld [vmem:[%s257 + $0x48] sm:$0xff]
        %v1451 = vld [vmem:[%s257 + $0x50] sm:$0xff]
        %v1452 = vld [vmem:[%s257 + $0x58] sm:$0xff]
        %v1453 = vld [vmem:[%s257 + $0x60] sm:$0xff]
        %v1454 = vld [vmem:[%s257 + $0x68] sm:$0xff]
        %v1455 = vld [vmem:[%s257 + $0x70] sm:$0xff]
        %v1456 = vld [vmem:[%s257 + $0x78] sm:$0xff]
        %v1457 = vld [vmem:[%s257 + $0x80] sm:$0xff]
        %v1458 = vld [vmem:[%s257 + $0x88] sm:$0xff]
        %v1459 = vld [vmem:[%s257 + $0x90] sm:$0xff]
        %v1460 = vld [vmem:[%s257 + $0x98] sm:$0xff]
        %v1461 = vld [vmem:[%s257 + $0xa0] sm:$0xff]
        %v1462 = vld [vmem:[%s257 + $0xa8] sm:$0xff]
        %v1463 = vld [vmem:[%s257 + $0xb0] sm:$0xff]
        %v1464 = vld [vmem:[%s257 + $0xb8] sm:$0xff]
        %v1465 = vld [vmem:[%s257 + $0xc0] sm:$0xff]
        %v1466 = vld [vmem:[%s257 + $0xc8] sm:$0xff]
        %v1467 = vld [vmem:[%s257 + $0xd0] sm:$0xff]
        %v1468 = vld [vmem:[%s257 + $0xd8] sm:$0xff]
        %v1469 = vld [vmem:[%s257 + $0xe0] sm:$0xff]
        %v1470 = vld [vmem:[%s257 + $0xe8] sm:$0xff]
        %v1471 = vld [vmem:[%s257 + $0xf0] sm:$0xff]
        %v1472 = vld [vmem:[%s257 + $0xf8] sm:$0xff]
        %v1473 = vld [vmem:[%s257 + $0x100] sm:$0xff]
        %v1474 = vld [vmem:[%s257 + $0x108] sm:$0xff]
        %v1475 = vld [vmem:[%s257 + $0x110] sm:$0xff]
        %v1476 = vld [vmem:[%s257 + $0x118] sm:$0xff]
        %v1477 = vld [vmem:[%s257 + $0x120] sm:$0xff]
        %v1478 = vld [vmem:[%s257 + $0x128] sm:$0xff]
        %v1479 = vld [vmem:[%s257 + $0x130] sm:$0xff]
        %v1480 = vld [vmem:[%s257 + $0x138] sm:$0xff]
        %v1481 = vld [vmem:[%s257 + $0x140] sm:$0xff]
        %v1482 = vld [vmem:[%s257 + $0x148] sm:$0xff]
        %v1483 = vld [vmem:[%s257 + $0x150] sm:$0xff]
        %v1484 = vld [vmem:[%s257 + $0x158] sm:$0xff]
        %v1485 = vld [vmem:[%s257 + $0x160] sm:$0xff]
        %v1486 = vld [vmem:[%s257 + $0x168] sm:$0xff]
        %v1487 = vld [vmem:[%s257 + $0x170] sm:$0xff]
        %v1488 = vld [vmem:[%s257 + $0x178] sm:$0xff]
        %v1489 = vld [vmem:[%s257 + $0x180] sm:$0xff]
        %v1490 = vld [vmem:[%s257 + $0x188] sm:$0xff]
        %v1491 = vld [vmem:[%s257 + $0x190] sm:$0xff]
        %v1492 = vld [vmem:[%s257 + $0x198] sm:$0xff]
        %v1493 = vld [vmem:[%s257 + $0x1a0] sm:$0xff]
        %v1494 = vld [vmem:[%s257 + $0x1a8] sm:$0xff]
        %v1495 = vld [vmem:[%s257 + $0x1b0] sm:$0xff]
        %v1496 = vld [vmem:[%s257 + $0x1b8] sm:$0xff]
        %v1497 = vld [vmem:[%s257 + $0x1c0] sm:$0xff]
        %v1498 = vld [vmem:[%s257 + $0x1c8] sm:$0xff]
        %v1499 = vld [vmem:[%s257 + $0x1d0] sm:$0xff]
        %v1500 = vld [vmem:[%s257 + $0x1d8] sm:$0xff]
        %v1501 = vld [vmem:[%s257 + $0x1e0] sm:$0xff]
        %v1502 = vld [vmem:[%s257 + $0x1e8] sm:$0xff]
        %v1503 = vld [vmem:[%s257 + $0x1f0] sm:$0xff]
        %v1504 = vld [vmem:[%s257 + $0x1f8] sm:$0xff]
        %v1505 = vld [vmem:[%s257 + $0x200] sm:$0xff]
        %v1506 = vld [vmem:[%s257 + $0x208] sm:$0xff]
        %v1507 = vld [vmem:[%s257 + $0x210] sm:$0xff]
        %v1508 = vld [vmem:[%s257 + $0x218] sm:$0xff]
        %v1509 = vld [vmem:[%s257 + $0x220] sm:$0xff]
        %v1510 = vld [vmem:[%s257 + $0x228] sm:$0xff]
        %v1511 = vld [vmem:[%s257 + $0x230] sm:$0xff]
        %v1512 = vld [vmem:[%s257 + $0x238] sm:$0xff]
        %v1513 = vld [vmem:[%s257 + $0x240] sm:$0xff]
        %v1514 = vld [vmem:[%s257 + $0x248] sm:$0xff]
        %v1515 = vld [vmem:[%s257 + $0x250] sm:$0xff]
        %v1516 = vld [vmem:[%s257 + $0x258] sm:$0xff]
        %v1517 = vld [vmem:[%s257 + $0x260] sm:$0xff]
        %v1518 = vld [vmem:[%s257 + $0x268] sm:$0xff]
        %v1519 = vld [vmem:[%s257 + $0x270] sm:$0xff]
        %v1520 = vld [vmem:[%s257 + $0x278] sm:$0xff]
        %v1521 = vld [vmem:[%s257 + $0x280] sm:$0xff]
        %v1522 = vld [vmem:[%s257 + $0x288] sm:$0xff]
        %v1523 = vld [vmem:[%s257 + $0x290] sm:$0xff]
        %v1524 = vld [vmem:[%s257 + $0x298] sm:$0xff]
        %v1525 = vld [vmem:[%s257 + $0x2a0] sm:$0xff]
        %v1526 = vld [vmem:[%s257 + $0x2a8] sm:$0xff]
        %v1527 = vld [vmem:[%s257 + $0x2b0] sm:$0xff]
        %v1528 = vld [vmem:[%s257 + $0x2b8] sm:$0xff]
        %v1529 = vld [vmem:[%s257 + $0x2c0] sm:$0xff]
        %v1530 = vld [vmem:[%s257 + $0x2c8] sm:$0xff]
        %v1531 = vld [vmem:[%s257 + $0x2d0] sm:$0xff]
        %v1532 = vld [vmem:[%s257 + $0x2d8] sm:$0xff]
        %v1533 = vld [vmem:[%s257 + $0x2e0] sm:$0xff]
        %v1534 = vld [vmem:[%s257 + $0x2e8] sm:$0xff]
        %v1535 = vld [vmem:[%s257 + $0x2f0] sm:$0xff]
        %v1536 = vld [vmem:[%s257 + $0x2f8] sm:$0xff]
        %v1537 = vld [vmem:[%s257 + $0x300] sm:$0xff]
        %v1538 = vld [vmem:[%s257 + $0x308] sm:$0xff]
        %v1539 = vld [vmem:[%s257 + $0x310] sm:$0xff]
        %v1540 = vld [vmem:[%s257 + $0x318] sm:$0xff]
        %v1541 = vld [vmem:[%s257 + $0x320] sm:$0xff]
        %v1542 = vld [vmem:[%s257 + $0x328] sm:$0xff]
        %v1543 = vld [vmem:[%s257 + $0x330] sm:$0xff]
        %v1544 = vld [vmem:[%s257 + $0x338] sm:$0xff]
        %v1545 = vld [vmem:[%s257 + $0x340] sm:$0xff]
        %v1546 = vld [vmem:[%s257 + $0x348] sm:$0xff]
        %v1547 = vld [vmem:[%s257 + $0x350] sm:$0xff]
        %v1548 = vld [vmem:[%s257 + $0x358] sm:$0xff]
        %v1549 = vld [vmem:[%s257 + $0x360] sm:$0xff]
        %v1550 = vld [vmem:[%s257 + $0x368] sm:$0xff]
        %v1551 = vld [vmem:[%s257 + $0x370] sm:$0xff]
        %v1552 = vld [vmem:[%s257 + $0x378] sm:$0xff]
        %v1553 = vld [vmem:[%s257 + $0x380] sm:$0xff]
        %v1554 = vld [vmem:[%s257 + $0x388] sm:$0xff]
        %v1555 = vld [vmem:[%s257 + $0x390] sm:$0xff]
        %v1556 = vld [vmem:[%s257 + $0x398] sm:$0xff]
        %v1557 = vld [vmem:[%s257 + $0x3a0] sm:$0xff]
        %v1558 = vld [vmem:[%s257 + $0x3a8] sm:$0xff]
        %v1559 = vld [vmem:[%s257 + $0x3b0] sm:$0xff]
        %v1560 = vld [vmem:[%s257 + $0x3b8] sm:$0xff]
        %v1561 = vld [vmem:[%s257 + $0x3c0] sm:$0xff]
        %v1562 = vld [vmem:[%s257 + $0x3c8] sm:$0xff]
        %v1563 = vld [vmem:[%s257 + $0x3d0] sm:$0xff]
        %v1564 = vld [vmem:[%s257 + $0x3d8] sm:$0xff]
        %v1565 = vld [vmem:[%s257 + $0x3e0] sm:$0xff]
        %v1566 = vld [vmem:[%s257 + $0x3e8] sm:$0xff]
        %v1567 = vld [vmem:[%s257 + $0x3f0] sm:$0xff]
        %v1568 = vld [vmem:[%s257 + $0x3f8] sm:$0xff]
        %v1569 = vld [vmem:[%s319] sm:$0xff]
        %v1570 = vld [vmem:[%s319 + $0x8] sm:$0xff]
        %v1571 = vld [vmem:[%s319 + $0x10] sm:$0xff]
        %v1572 = vld [vmem:[%s319 + $0x18] sm:$0xff]
        %v1573 = vld [vmem:[%s319 + $0x20] sm:$0xff]
        %v1574 = vld [vmem:[%s319 + $0x28] sm:$0xff]
        %v1575 = vld [vmem:[%s319 + $0x30] sm:$0xff]
        %v1576 = vld [vmem:[%s319 + $0x38] sm:$0xff]
        %v1577 = vld [vmem:[%s319 + $0x40] sm:$0xff]
        %v1578 = vld [vmem:[%s319 + $0x48] sm:$0xff]
        %v1579 = vld [vmem:[%s319 + $0x50] sm:$0xff]
        %v1580 = vld [vmem:[%s319 + $0x58] sm:$0xff]
        %v1581 = vld [vmem:[%s319 + $0x60] sm:$0xff]
        %v1582 = vld [vmem:[%s319 + $0x68] sm:$0xff]
        %v1583 = vld [vmem:[%s319 + $0x70] sm:$0xff]
        %v1584 = vld [vmem:[%s319 + $0x78] sm:$0xff]
        %v1585 = vld [vmem:[%s319 + $0x80] sm:$0xff]
        %v1586 = vld [vmem:[%s319 + $0x88] sm:$0xff]
        %v1587 = vld [vmem:[%s319 + $0x90] sm:$0xff]
        %v1588 = vld [vmem:[%s319 + $0x98] sm:$0xff]
        %v1589 = vld [vmem:[%s319 + $0xa0] sm:$0xff]
        %v1590 = vld [vmem:[%s319 + $0xa8] sm:$0xff]
        %v1591 = vld [vmem:[%s319 + $0xb0] sm:$0xff]
        %v1592 = vld [vmem:[%s319 + $0xb8] sm:$0xff]
        %v1593 = vld [vmem:[%s319 + $0xc0] sm:$0xff]
        %v1594 = vld [vmem:[%s319 + $0xc8] sm:$0xff]
        %v1595 = vld [vmem:[%s319 + $0xd0] sm:$0xff]
        %v1596 = vld [vmem:[%s319 + $0xd8] sm:$0xff]
        %v1597 = vld [vmem:[%s319 + $0xe0] sm:$0xff]
        %v1598 = vld [vmem:[%s319 + $0xe8] sm:$0xff]
        %v1599 = vld [vmem:[%s319 + $0xf0] sm:$0xff]
        %v1600 = vld [vmem:[%s319 + $0xf8] sm:$0xff]
        %v1601 = vld [vmem:[%s319 + $0x100] sm:$0xff]
        %v1602 = vld [vmem:[%s319 + $0x108] sm:$0xff]
        %v1603 = vld [vmem:[%s319 + $0x110] sm:$0xff]
        %v1604 = vld [vmem:[%s319 + $0x118] sm:$0xff]
        %v1605 = vld [vmem:[%s319 + $0x120] sm:$0xff]
        %v1606 = vld [vmem:[%s319 + $0x128] sm:$0xff]
        %v1607 = vld [vmem:[%s319 + $0x130] sm:$0xff]
        %v1608 = vld [vmem:[%s319 + $0x138] sm:$0xff]
        %v1609 = vld [vmem:[%s319 + $0x140] sm:$0xff]
        %v1610 = vld [vmem:[%s319 + $0x148] sm:$0xff]
        %v1611 = vld [vmem:[%s319 + $0x150] sm:$0xff]
        %v1612 = vld [vmem:[%s319 + $0x158] sm:$0xff]
        %v1613 = vld [vmem:[%s319 + $0x160] sm:$0xff]
        %v1614 = vld [vmem:[%s319 + $0x168] sm:$0xff]
        %v1615 = vld [vmem:[%s319 + $0x170] sm:$0xff]
        %v1616 = vld [vmem:[%s319 + $0x178] sm:$0xff]
        %v1617 = vld [vmem:[%s319 + $0x180] sm:$0xff]
        %v1618 = vld [vmem:[%s319 + $0x188] sm:$0xff]
        %v1619 = vld [vmem:[%s319 + $0x190] sm:$0xff]
        %v1620 = vld [vmem:[%s319 + $0x198] sm:$0xff]
        %v1621 = vld [vmem:[%s319 + $0x1a0] sm:$0xff]
        %v1622 = vld [vmem:[%s319 + $0x1a8] sm:$0xff]
        %v1623 = vld [vmem:[%s319 + $0x1b0] sm:$0xff]
        %v1624 = vld [vmem:[%s319 + $0x1b8] sm:$0xff]
        %v1625 = vld [vmem:[%s319 + $0x1c0] sm:$0xff]
        %v1626 = vld [vmem:[%s319 + $0x1c8] sm:$0xff]
        %v1627 = vld [vmem:[%s319 + $0x1d0] sm:$0xff]
        %v1628 = vld [vmem:[%s319 + $0x1d8] sm:$0xff]
        %v1629 = vld [vmem:[%s319 + $0x1e0] sm:$0xff]
        %v1630 = vld [vmem:[%s319 + $0x1e8] sm:$0xff]
        %v1631 = vld [vmem:[%s319 + $0x1f0] sm:$0xff]
        %v1632 = vld [vmem:[%s319 + $0x1f8] sm:$0xff]
        %1633 = vmatprep.subr.mxu0 %v1630
        %1634 = vmatpush1.msra.mxu0 %v1629
        %1635 = vmatprep.subr.mxu0 %v1626
        %1636 = vmatpush1.msra.mxu0 %v1625
        %1637 = vmatprep.subr.mxu0 %v1622
        %1638 = vmatpush1.msra.mxu0 %v1621
        %1639 = vmatprep.subr.mxu0 %v1618
        %1640 = vmatpush1.msra.mxu0 %v1617
        %1641 = vmatprep.subr.mxu0 %v1614
        %1642 = vmatpush1.msra.mxu0 %v1613
        %1643 = vmatprep.subr.mxu0 %v1610
        %1644 = vmatpush1.msra.mxu0 %v1609
        %1645 = vmatprep.subr.mxu0 %v1606
        %1646 = vmatpush1.msra.mxu0 %v1605
        %1647 = vmatprep.subr.mxu0 %v1602
        %1648 = vmatpush1.msra.mxu0 %v1601
        %1649 = vmatprep.subr.mxu0 %v1598
        %1650 = vmatpush1.msra.mxu0 %v1597
        %1651 = vmatprep.subr.mxu0 %v1594
        %1652 = vmatpush1.msra.mxu0 %v1593
        %1653 = vmatprep.subr.mxu0 %v1590
        %1654 = vmatpush1.msra.mxu0 %v1589
        %1655 = vmatprep.subr.mxu0 %v1586
        %1656 = vmatpush1.msra.mxu0 %v1585
        %1657 = vmatprep.subr.mxu0 %v1582
        %1658 = vmatpush1.msra.mxu0 %v1581
        %1659 = vmatprep.subr.mxu0 %v1578
        %1660 = vmatpush1.msra.mxu0 %v1577
        %1661 = vmatprep.subr.mxu0 %v1574
        %1662 = vmatpush1.msra.mxu0 %v1573
        %1663 = vmatprep.subr.mxu0 %v1570
        %1664 = vmatpush1.msra.mxu0 %v1569
        %1665 = vmatprep.subr.mxu0 0.0
        %1666 = vmatpush2.msra.mxu0 0.0
        %1667 = vmatprep.subr.mxu0 0.0
        %1668 = vmatpush2.msra.mxu0 0.0
        %1669 = vmatprep.subr.mxu0 0.0
        %1670 = vmatpush2.msra.mxu0 0.0
        %1671 = vmatprep.subr.mxu0 0.0
        %1672 = vmatpush2.msra.mxu0 0.0
        %1673 = vmatprep.subr.mxu0 0.0
        %1674 = vmatpush2.msra.mxu0 0.0
        %1675 = vmatprep.subr.mxu0 0.0
        %1676 = vmatpush2.msra.mxu0 0.0
        %1677 = vmatprep.subr.mxu0 0.0
        %1678 = vmatpush2.msra.mxu0 0.0
        %1679 = vmatprep.subr.mxu0 0.0
        %1680 = vmatpush2.msra.mxu0 0.0
        %1681 = vmatprep.subr.mxu0 0.0
        %1682 = vmatpush2.msra.mxu0 0.0
        %1683 = vmatprep.subr.mxu0 0.0
        %1684 = vmatpush2.msra.mxu0 0.0
        %1685 = vmatprep.subr.mxu0 0.0
        %1686 = vmatpush2.msra.mxu0 0.0
        %1687 = vmatprep.subr.mxu0 0.0
        %1688 = vmatpush2.msra.mxu0 0.0
        %1689 = vmatprep.subr.mxu0 0.0
        %1690 = vmatpush2.msra.mxu0 0.0
        %1691 = vmatprep.subr.mxu0 0.0
        %1692 = vmatpush2.msra.mxu0 0.0
        %1693 = vmatprep.subr.mxu0 0.0
        %1694 = vmatpush2.msra.mxu0 0.0
        %1695 = vmatprep.subr.mxu0 0.0
        %1696 = vmatpush2.msra.mxu0 0.0
        %1697 = vmatprep.mubr.f32.mxu0 0.0
        %1698 = vmatmul.mubr.f32.gmra.mxu0 %v1435
        %v1699 = vpop.f32.mrf.mxu0
        %v1700 = vadd.f32 0.0, %v1699
        %v1701 = vpop.f32.mrf.mxu0
        %v1702 = vadd.f32 0.0, %v1701
        %1703 = vdwg.mxu0
        %1704 = vmatprep.subr.mxu0 %v1632
        %1705 = vmatpush1.msra.mxu0 %v1631
        %1706 = vmatprep.subr.mxu0 %v1628
        %1707 = vmatpush1.msra.mxu0 %v1627
        %1708 = vmatprep.subr.mxu0 %v1624
        %1709 = vmatpush1.msra.mxu0 %v1623
        %1710 = vmatprep.subr.mxu0 %v1620
        %1711 = vmatpush1.msra.mxu0 %v1619
        %1712 = vmatprep.subr.mxu0 %v1616
        %1713 = vmatpush1.msra.mxu0 %v1615
        %1714 = vmatprep.subr.mxu0 %v1612
        %1715 = vmatpush1.msra.mxu0 %v1611
        %1716 = vmatprep.subr.mxu0 %v1608
        %1717 = vmatpush1.msra.mxu0 %v1607
        %1718 = vmatprep.subr.mxu0 %v1604
        %1719 = vmatpush1.msra.mxu0 %v1603
        %1720 = vmatprep.subr.mxu0 %v1600
        %1721 = vmatpush1.msra.mxu0 %v1599
        %1722 = vmatprep.subr.mxu0 %v1596
        %1723 = vmatpush1.msra.mxu0 %v1595
        %1724 = vmatprep.subr.mxu0 %v1592
        %1725 = vmatpush1.msra.mxu0 %v1591
        %1726 = vmatprep.subr.mxu0 %v1588
        %1727 = vmatpush1.msra.mxu0 %v1587
        %1728 = vmatprep.subr.mxu0 %v1584
        %1729 = vmatpush1.msra.mxu0 %v1583
        %1730 = vmatprep.subr.mxu0 %v1580
        %1731 = vmatpush1.msra.mxu0 %v1579
        %1732 = vmatprep.subr.mxu0 %v1576
        %1733 = vmatpush1.msra.mxu0 %v1575
        %1734 = vmatprep.subr.mxu0 %v1572
        %1735 = vmatpush1.msra.mxu0 %v1571
        %1736 = vmatprep.subr.mxu0 0.0
        %1737 = vmatpush2.msra.mxu0 0.0
        %1738 = vmatprep.subr.mxu0 0.0
        %1739 = vmatpush2.msra.mxu0 0.0
        %1740 = vmatprep.subr.mxu0 0.0
        %1741 = vmatpush2.msra.mxu0 0.0
        %1742 = vmatprep.subr.mxu0 0.0
        %1743 = vmatpush2.msra.mxu0 0.0
        %1744 = vmatprep.subr.mxu0 0.0
        %1745 = vmatpush2.msra.mxu0 0.0
        %1746 = vmatprep.subr.mxu0 0.0
        %1747 = vmatpush2.msra.mxu0 0.0
        %1748 = vmatprep.subr.mxu0 0.0
        %1749 = vmatpush2.msra.mxu0 0.0
        %1750 = vmatprep.subr.mxu0 0.0
        %1751 = vmatpush2.msra.mxu0 0.0
        %1752 = vmatprep.subr.mxu0 0.0
        %1753 = vmatpush2.msra.mxu0 0.0
        %1754 = vmatprep.subr.mxu0 0.0
        %1755 = vmatpush2.msra.mxu0 0.0
        %1756 = vmatprep.subr.mxu0 0.0
        %1757 = vmatpush2.msra.mxu0 0.0
        %1758 = vmatprep.subr.mxu0 0.0
        %1759 = vmatpush2.msra.mxu0 0.0
        %1760 = vmatprep.subr.mxu0 0.0
        %1761 = vmatpush2.msra.mxu0 0.0
        %1762 = vmatprep.subr.mxu0 0.0
        %1763 = vmatpush2.msra.mxu0 0.0
        %1764 = vmatprep.subr.mxu0 0.0
        %1765 = vmatpush2.msra.mxu0 0.0
        %1766 = vmatprep.subr.mxu0 0.0
        %1767 = vmatpush2.msra.mxu0 0.0
        %1768 = vmatprep.mubr.f32.mxu0 0.0
        %1769 = vmatmul.mubr.f32.gmra.mxu0 %v1435
        %v1770 = vpop.f32.mrf.mxu0
        %v1771 = vadd.f32 0.0, %v1770
        %v1772 = vpop.f32.mrf.mxu0
        %v1773 = vadd.f32 0.0, %v1772
        %1774 = vdwg.mxu0
        %v1777 = vunpack.c.l.s4 1983009808
        %v1778 = vunpack.c.0.s8 %v1777
        %v1779 = vlaneseq
        %v1780 = vshrl.u32 %v1779, 7
        %v1781 = vsub.s32 %v1778, %v1780
        %v1782 = vrot.slane %v1440, %v1781
        %v1783 = vcombine.high %v1782, %v1782
        %1786 = vmatprep.subr.mxu0 %v1502
        %1787 = vmatpush1.msra.mxu0 %v1501
        %1788 = vmatprep.subr.mxu0 %v1498
        %1789 = vmatpush1.msra.mxu0 %v1497
        %1790 = vmatprep.subr.mxu0 %v1494
        %1791 = vmatpush1.msra.mxu0 %v1493
        %1792 = vmatprep.subr.mxu0 %v1490
        %1793 = vmatpush1.msra.mxu0 %v1489
        %1794 = vmatprep.subr.mxu0 %v1486
        %1795 = vmatpush1.msra.mxu0 %v1485
        %1796 = vmatprep.subr.mxu0 %v1482
        %1797 = vmatpush1.msra.mxu0 %v1481
        %1798 = vmatprep.subr.mxu0 %v1478
        %1799 = vmatpush1.msra.mxu0 %v1477
        %1800 = vmatprep.subr.mxu0 %v1474
        %1801 = vmatpush1.msra.mxu0 %v1473
        %1802 = vmatprep.subr.mxu0 %v1470
        %1803 = vmatpush1.msra.mxu0 %v1469
        %1804 = vmatprep.subr.mxu0 %v1466
        %1805 = vmatpush1.msra.mxu0 %v1465
        %1806 = vmatprep.subr.mxu0 %v1462
        %1807 = vmatpush1.msra.mxu0 %v1461
        %1808 = vmatprep.subr.mxu0 %v1458
        %1809 = vmatpush1.msra.mxu0 %v1457
        %1810 = vmatprep.subr.mxu0 %v1454
        %1811 = vmatpush1.msra.mxu0 %v1453
        %1812 = vmatprep.subr.mxu0 %v1450
        %1813 = vmatpush1.msra.mxu0 %v1449
        %1814 = vmatprep.subr.mxu0 %v1446
        %1815 = vmatpush1.msra.mxu0 %v1445
        %1816 = vmatprep.subr.mxu0 %v1442
        %1817 = vmatpush1.msra.mxu0 %v1441
        %1818 = vmatprep.subr.mxu0 %v1566
        %1819 = vmatpush2.msra.mxu0 %v1565
        %1820 = vmatprep.subr.mxu0 %v1562
        %1821 = vmatpush2.msra.mxu0 %v1561
        %1822 = vmatprep.subr.mxu0 %v1558
        %1823 = vmatpush2.msra.mxu0 %v1557
        %1824 = vmatprep.subr.mxu0 %v1554
        %1825 = vmatpush2.msra.mxu0 %v1553
        %1826 = vmatprep.subr.mxu0 %v1550
        %1827 = vmatpush2.msra.mxu0 %v1549
        %1828 = vmatprep.subr.mxu0 %v1546
        %1829 = vmatpush2.msra.mxu0 %v1545
        %1830 = vmatprep.subr.mxu0 %v1542
        %1831 = vmatpush2.msra.mxu0 %v1541
        %1832 = vmatprep.subr.mxu0 %v1538
        %1833 = vmatpush2.msra.mxu0 %v1537
        %1834 = vmatprep.subr.mxu0 %v1534
        %1835 = vmatpush2.msra.mxu0 %v1533
        %1836 = vmatprep.subr.mxu0 %v1530
        %1837 = vmatpush2.msra.mxu0 %v1529
        %1838 = vmatprep.subr.mxu0 %v1526
        %1839 = vmatpush2.msra.mxu0 %v1525
        %1840 = vmatprep.subr.mxu0 %v1522
        %1841 = vmatpush2.msra.mxu0 %v1521
        %1842 = vmatprep.subr.mxu0 %v1518
        %1843 = vmatpush2.msra.mxu0 %v1517
        %1844 = vmatprep.subr.mxu0 %v1514
        %1845 = vmatpush2.msra.mxu0 %v1513
        %1846 = vmatprep.subr.mxu0 %v1510
        %1847 = vmatpush2.msra.mxu0 %v1509
        %1848 = vmatprep.subr.mxu0 %v1506
        %1849 = vmatpush2.msra.mxu0 %v1505
        %1850 = vmatprep.mubr.f32.mxu0 %v1783
        %1851 = vmatmul.mubr.f32.gmra.mxu0 %v1782
        %v1852 = vpop.f32.mrf.mxu0
        %v1853 = vadd.f32 %v1700, %v1852
        %v1854 = vpop.f32.mrf.mxu0
        %v1855 = vadd.f32 %v1702, %v1854
        %1856 = vdwg.mxu0
        %1857 = vmatprep.subr.mxu0 %v1504
        %1858 = vmatpush1.msra.mxu0 %v1503
        %1859 = vmatprep.subr.mxu0 %v1500
        %1860 = vmatpush1.msra.mxu0 %v1499
        %1861 = vmatprep.subr.mxu0 %v1496
        %1862 = vmatpush1.msra.mxu0 %v1495
        %1863 = vmatprep.subr.mxu0 %v1492
        %1864 = vmatpush1.msra.mxu0 %v1491
        %1865 = vmatprep.subr.mxu0 %v1488
        %1866 = vmatpush1.msra.mxu0 %v1487
        %1867 = vmatprep.subr.mxu0 %v1484
        %1868 = vmatpush1.msra.mxu0 %v1483
        %1869 = vmatprep.subr.mxu0 %v1480
        %1870 = vmatpush1.msra.mxu0 %v1479
        %1871 = vmatprep.subr.mxu0 %v1476
        %1872 = vmatpush1.msra.mxu0 %v1475
        %1873 = vmatprep.subr.mxu0 %v1472
        %1874 = vmatpush1.msra.mxu0 %v1471
        %1875 = vmatprep.subr.mxu0 %v1468
        %1876 = vmatpush1.msra.mxu0 %v1467
        %1877 = vmatprep.subr.mxu0 %v1464
        %1878 = vmatpush1.msra.mxu0 %v1463
        %1879 = vmatprep.subr.mxu0 %v1460
        %1880 = vmatpush1.msra.mxu0 %v1459
        %1881 = vmatprep.subr.mxu0 %v1456
        %1882 = vmatpush1.msra.mxu0 %v1455
        %1883 = vmatprep.subr.mxu0 %v1452
        %1884 = vmatpush1.msra.mxu0 %v1451
        %1885 = vmatprep.subr.mxu0 %v1448
        %1886 = vmatpush1.msra.mxu0 %v1447
        %1887 = vmatprep.subr.mxu0 %v1444
        %1888 = vmatpush1.msra.mxu0 %v1443
        %1889 = vmatprep.subr.mxu0 %v1568
        %1890 = vmatpush2.msra.mxu0 %v1567
        %1891 = vmatprep.subr.mxu0 %v1564
        %1892 = vmatpush2.msra.mxu0 %v1563
        %1893 = vmatprep.subr.mxu0 %v1560
        %1894 = vmatpush2.msra.mxu0 %v1559
        %1895 = vmatprep.subr.mxu0 %v1556
        %1896 = vmatpush2.msra.mxu0 %v1555
        %1897 = vmatprep.subr.mxu0 %v1552
        %1898 = vmatpush2.msra.mxu0 %v1551
        %1899 = vmatprep.subr.mxu0 %v1548
        %1900 = vmatpush2.msra.mxu0 %v1547
        %1901 = vmatprep.subr.mxu0 %v1544
        %1902 = vmatpush2.msra.mxu0 %v1543
        %1903 = vmatprep.subr.mxu0 %v1540
        %1904 = vmatpush2.msra.mxu0 %v1539
        %1905 = vmatprep.subr.mxu0 %v1536
        %1906 = vmatpush2.msra.mxu0 %v1535
        %1907 = vmatprep.subr.mxu0 %v1532
        %1908 = vmatpush2.msra.mxu0 %v1531
        %1909 = vmatprep.subr.mxu0 %v1528
        %1910 = vmatpush2.msra.mxu0 %v1527
        %1911 = vmatprep.subr.mxu0 %v1524
        %1912 = vmatpush2.msra.mxu0 %v1523
        %1913 = vmatprep.subr.mxu0 %v1520
        %1914 = vmatpush2.msra.mxu0 %v1519
        %1915 = vmatprep.subr.mxu0 %v1516
        %1916 = vmatpush2.msra.mxu0 %v1515
        %1917 = vmatprep.subr.mxu0 %v1512
        %1918 = vmatpush2.msra.mxu0 %v1511
        %1919 = vmatprep.subr.mxu0 %v1508
        %1920 = vmatpush2.msra.mxu0 %v1507
        %1921 = vmatprep.mubr.f32.mxu0 %v1783
        %1922 = vmatmul.mubr.f32.gmra.mxu0 %v1782
        %v1923 = vpop.f32.mrf.mxu0
        %v1924 = vadd.f32 %v1771, %v1923
        %v1925 = vpop.f32.mrf.mxu0
        %v1926 = vadd.f32 %v1773, %v1925
        %1927 = vdwg.mxu0
        %v1928 = vld [vmem:[%s323] sm:$0xf]
        %v1930 = vlaneseq
        %v1931 = vshrl.u32 %v1930, 7
        %v1932 = vsub.s32 0, %v1931
        %v1933 = vrot.slane %v1928, %v1932
        %v1934 = vlaneseq
        %v1935 = vshrl.u32 %v1934, 7
        %v1936 = vsub.s32 1, %v1935
        %v1937 = vrot.slane %v1928, %v1936
        %v1938 = vlaneseq
        %v1939 = vshrl.u32 %v1938, 7
        %v1940 = vsub.s32 2, %v1939
        %v1941 = vrot.slane %v1928, %v1940
        %v1942 = vlaneseq
        %v1943 = vshrl.u32 %v1942, 7
        %v1944 = vsub.s32 3, %v1943
        %v1945 = vrot.slane %v1928, %v1944
        %v1950 = vadd.f32 %v1853, %v1933
        %v1951 = vadd.f32 %v1855, %v1937
        %v1952 = vadd.f32 %v1924, %v1941
        %v1953 = vadd.f32 %v1926, %v1945
        %v1954 = vxor.u32 %v1950, 2147483648
        %v1955 = vmul.f32 %v1954, 1.442695
        %v1956 = vpow.pop %v1955
        %v1957 = vadd.f32 %v1956, 1.0
        %v1958 = vrcp.pop %v1957
        %v1959 = vmul.f32 1.0, %v1958
        %v1960 = vxor.u32 %v1951, 2147483648
        %v1961 = vmul.f32 %v1960, 1.442695
        %v1962 = vpow.pop %v1961
        %v1963 = vadd.f32 %v1962, 1.0
        %v1964 = vrcp.pop %v1963
        %v1965 = vmul.f32 1.0, %v1964
        %v1966 = vtanh.pop %v1952
        %v1967 = vxor.u32 %v1953, 2147483648
        %v1968 = vmul.f32 %v1967, 1.442695
        %v1969 = vpow.pop %v1968
        %v1970 = vadd.f32 %v1969, 1.0
        %v1971 = vrcp.pop %v1970
        %v1972 = vmul.f32 1.0, %v1971
        %v1973 = vmul.f32 %v1965, %v1436
        %v1974 = vmul.f32 %v1959, %v1966
        %v1975 = vadd.f32 %v1973, %v1974
        %v1976 = vtanh.pop %v1975
        %v1977 = vmul.f32 %v1972, %v1976
        %1978 = vst [vmem:[#allocation3] sm:$0x3] %v1975
        %1979 = vst [vmem:[#allocation2] sm:$0x3] %v1977
        %s1980 = scalar_lea.vmem %s299, %s1437 [#allocation6]
        %1981 = vst [vmem:[%s1980] sm:$0x3] %v1977
        %s1982 = smul.u32 %s883, 3
        %v1983 = vld [vmem:[#allocation2] sm:$0x3]
        %v1984 = vld [vmem:[#allocation3] sm:$0x3]
        %s1985 = smul.u32 %s1982, 2
        %s1986 = smul.addr %s1985, 2
        %s1987 = scalar_lea.vmem %s309, %s1986
        %v1988 = vld [vmem:[%s1987] sm:$0xf]
        %v1989 = vld [vmem:[%s257] sm:$0xff]
        %v1990 = vld [vmem:[%s257 + $0x8] sm:$0xff]
        %v1991 = vld [vmem:[%s257 + $0x10] sm:$0xff]
        %v1992 = vld [vmem:[%s257 + $0x18] sm:$0xff]
        %v1993 = vld [vmem:[%s257 + $0x20] sm:$0xff]
        %v1994 = vld [vmem:[%s257 + $0x28] sm:$0xff]
        %v1995 = vld [vmem:[%s257 + $0x30] sm:$0xff]
        %v1996 = vld [vmem:[%s257 + $0x38] sm:$0xff]
        %v1997 = vld [vmem:[%s257 + $0x40] sm:$0xff]
        %v1998 = vld [vmem:[%s257 + $0x48] sm:$0xff]
        %v1999 = vld [vmem:[%s257 + $0x50] sm:$0xff]
        %v2000 = vld [vmem:[%s257 + $0x58] sm:$0xff]
        %v2001 = vld [vmem:[%s257 + $0x60] sm:$0xff]
        %v2002 = vld [vmem:[%s257 + $0x68] sm:$0xff]
        %v2003 = vld [vmem:[%s257 + $0x70] sm:$0xff]
        %v2004 = vld [vmem:[%s257 + $0x78] sm:$0xff]
        %v2005 = vld [vmem:[%s257 + $0x80] sm:$0xff]
        %v2006 = vld [vmem:[%s257 + $0x88] sm:$0xff]
        %v2007 = vld [vmem:[%s257 + $0x90] sm:$0xff]
        %v2008 = vld [vmem:[%s257 + $0x98] sm:$0xff]
        %v2009 = vld [vmem:[%s257 + $0xa0] sm:$0xff]
        %v2010 = vld [vmem:[%s257 + $0xa8] sm:$0xff]
        %v2011 = vld [vmem:[%s257 + $0xb0] sm:$0xff]
        %v2012 = vld [vmem:[%s257 + $0xb8] sm:$0xff]
        %v2013 = vld [vmem:[%s257 + $0xc0] sm:$0xff]
        %v2014 = vld [vmem:[%s257 + $0xc8] sm:$0xff]
        %v2015 = vld [vmem:[%s257 + $0xd0] sm:$0xff]
        %v2016 = vld [vmem:[%s257 + $0xd8] sm:$0xff]
        %v2017 = vld [vmem:[%s257 + $0xe0] sm:$0xff]
        %v2018 = vld [vmem:[%s257 + $0xe8] sm:$0xff]
        %v2019 = vld [vmem:[%s257 + $0xf0] sm:$0xff]
        %v2020 = vld [vmem:[%s257 + $0xf8] sm:$0xff]
        %v2021 = vld [vmem:[%s257 + $0x100] sm:$0xff]
        %v2022 = vld [vmem:[%s257 + $0x108] sm:$0xff]
        %v2023 = vld [vmem:[%s257 + $0x110] sm:$0xff]
        %v2024 = vld [vmem:[%s257 + $0x118] sm:$0xff]
        %v2025 = vld [vmem:[%s257 + $0x120] sm:$0xff]
        %v2026 = vld [vmem:[%s257 + $0x128] sm:$0xff]
        %v2027 = vld [vmem:[%s257 + $0x130] sm:$0xff]
        %v2028 = vld [vmem:[%s257 + $0x138] sm:$0xff]
        %v2029 = vld [vmem:[%s257 + $0x140] sm:$0xff]
        %v2030 = vld [vmem:[%s257 + $0x148] sm:$0xff]
        %v2031 = vld [vmem:[%s257 + $0x150] sm:$0xff]
        %v2032 = vld [vmem:[%s257 + $0x158] sm:$0xff]
        %v2033 = vld [vmem:[%s257 + $0x160] sm:$0xff]
        %v2034 = vld [vmem:[%s257 + $0x168] sm:$0xff]
        %v2035 = vld [vmem:[%s257 + $0x170] sm:$0xff]
        %v2036 = vld [vmem:[%s257 + $0x178] sm:$0xff]
        %v2037 = vld [vmem:[%s257 + $0x180] sm:$0xff]
        %v2038 = vld [vmem:[%s257 + $0x188] sm:$0xff]
        %v2039 = vld [vmem:[%s257 + $0x190] sm:$0xff]
        %v2040 = vld [vmem:[%s257 + $0x198] sm:$0xff]
        %v2041 = vld [vmem:[%s257 + $0x1a0] sm:$0xff]
        %v2042 = vld [vmem:[%s257 + $0x1a8] sm:$0xff]
        %v2043 = vld [vmem:[%s257 + $0x1b0] sm:$0xff]
        %v2044 = vld [vmem:[%s257 + $0x1b8] sm:$0xff]
        %v2045 = vld [vmem:[%s257 + $0x1c0] sm:$0xff]
        %v2046 = vld [vmem:[%s257 + $0x1c8] sm:$0xff]
        %v2047 = vld [vmem:[%s257 + $0x1d0] sm:$0xff]
        %v2048 = vld [vmem:[%s257 + $0x1d8] sm:$0xff]
        %v2049 = vld [vmem:[%s257 + $0x1e0] sm:$0xff]
        %v2050 = vld [vmem:[%s257 + $0x1e8] sm:$0xff]
        %v2051 = vld [vmem:[%s257 + $0x1f0] sm:$0xff]
        %v2052 = vld [vmem:[%s257 + $0x1f8] sm:$0xff]
        %v2053 = vld [vmem:[%s257 + $0x200] sm:$0xff]
        %v2054 = vld [vmem:[%s257 + $0x208] sm:$0xff]
        %v2055 = vld [vmem:[%s257 + $0x210] sm:$0xff]
        %v2056 = vld [vmem:[%s257 + $0x218] sm:$0xff]
        %v2057 = vld [vmem:[%s257 + $0x220] sm:$0xff]
        %v2058 = vld [vmem:[%s257 + $0x228] sm:$0xff]
        %v2059 = vld [vmem:[%s257 + $0x230] sm:$0xff]
        %v2060 = vld [vmem:[%s257 + $0x238] sm:$0xff]
        %v2061 = vld [vmem:[%s257 + $0x240] sm:$0xff]
        %v2062 = vld [vmem:[%s257 + $0x248] sm:$0xff]
        %v2063 = vld [vmem:[%s257 + $0x250] sm:$0xff]
        %v2064 = vld [vmem:[%s257 + $0x258] sm:$0xff]
        %v2065 = vld [vmem:[%s257 + $0x260] sm:$0xff]
        %v2066 = vld [vmem:[%s257 + $0x268] sm:$0xff]
        %v2067 = vld [vmem:[%s257 + $0x270] sm:$0xff]
        %v2068 = vld [vmem:[%s257 + $0x278] sm:$0xff]
        %v2069 = vld [vmem:[%s257 + $0x280] sm:$0xff]
        %v2070 = vld [vmem:[%s257 + $0x288] sm:$0xff]
        %v2071 = vld [vmem:[%s257 + $0x290] sm:$0xff]
        %v2072 = vld [vmem:[%s257 + $0x298] sm:$0xff]
        %v2073 = vld [vmem:[%s257 + $0x2a0] sm:$0xff]
        %v2074 = vld [vmem:[%s257 + $0x2a8] sm:$0xff]
        %v2075 = vld [vmem:[%s257 + $0x2b0] sm:$0xff]
        %v2076 = vld [vmem:[%s257 + $0x2b8] sm:$0xff]
        %v2077 = vld [vmem:[%s257 + $0x2c0] sm:$0xff]
        %v2078 = vld [vmem:[%s257 + $0x2c8] sm:$0xff]
        %v2079 = vld [vmem:[%s257 + $0x2d0] sm:$0xff]
        %v2080 = vld [vmem:[%s257 + $0x2d8] sm:$0xff]
        %v2081 = vld [vmem:[%s257 + $0x2e0] sm:$0xff]
        %v2082 = vld [vmem:[%s257 + $0x2e8] sm:$0xff]
        %v2083 = vld [vmem:[%s257 + $0x2f0] sm:$0xff]
        %v2084 = vld [vmem:[%s257 + $0x2f8] sm:$0xff]
        %v2085 = vld [vmem:[%s257 + $0x300] sm:$0xff]
        %v2086 = vld [vmem:[%s257 + $0x308] sm:$0xff]
        %v2087 = vld [vmem:[%s257 + $0x310] sm:$0xff]
        %v2088 = vld [vmem:[%s257 + $0x318] sm:$0xff]
        %v2089 = vld [vmem:[%s257 + $0x320] sm:$0xff]
        %v2090 = vld [vmem:[%s257 + $0x328] sm:$0xff]
        %v2091 = vld [vmem:[%s257 + $0x330] sm:$0xff]
        %v2092 = vld [vmem:[%s257 + $0x338] sm:$0xff]
        %v2093 = vld [vmem:[%s257 + $0x340] sm:$0xff]
        %v2094 = vld [vmem:[%s257 + $0x348] sm:$0xff]
        %v2095 = vld [vmem:[%s257 + $0x350] sm:$0xff]
        %v2096 = vld [vmem:[%s257 + $0x358] sm:$0xff]
        %v2097 = vld [vmem:[%s257 + $0x360] sm:$0xff]
        %v2098 = vld [vmem:[%s257 + $0x368] sm:$0xff]
        %v2099 = vld [vmem:[%s257 + $0x370] sm:$0xff]
        %v2100 = vld [vmem:[%s257 + $0x378] sm:$0xff]
        %v2101 = vld [vmem:[%s257 + $0x380] sm:$0xff]
        %v2102 = vld [vmem:[%s257 + $0x388] sm:$0xff]
        %v2103 = vld [vmem:[%s257 + $0x390] sm:$0xff]
        %v2104 = vld [vmem:[%s257 + $0x398] sm:$0xff]
        %v2105 = vld [vmem:[%s257 + $0x3a0] sm:$0xff]
        %v2106 = vld [vmem:[%s257 + $0x3a8] sm:$0xff]
        %v2107 = vld [vmem:[%s257 + $0x3b0] sm:$0xff]
        %v2108 = vld [vmem:[%s257 + $0x3b8] sm:$0xff]
        %v2109 = vld [vmem:[%s257 + $0x3c0] sm:$0xff]
        %v2110 = vld [vmem:[%s257 + $0x3c8] sm:$0xff]
        %v2111 = vld [vmem:[%s257 + $0x3d0] sm:$0xff]
        %v2112 = vld [vmem:[%s257 + $0x3d8] sm:$0xff]
        %v2113 = vld [vmem:[%s257 + $0x3e0] sm:$0xff]
        %v2114 = vld [vmem:[%s257 + $0x3e8] sm:$0xff]
        %v2115 = vld [vmem:[%s257 + $0x3f0] sm:$0xff]
        %v2116 = vld [vmem:[%s257 + $0x3f8] sm:$0xff]
        %v2117 = vld [vmem:[%s319] sm:$0xff]
        %v2118 = vld [vmem:[%s319 + $0x8] sm:$0xff]
        %v2119 = vld [vmem:[%s319 + $0x10] sm:$0xff]
        %v2120 = vld [vmem:[%s319 + $0x18] sm:$0xff]
        %v2121 = vld [vmem:[%s319 + $0x20] sm:$0xff]
        %v2122 = vld [vmem:[%s319 + $0x28] sm:$0xff]
        %v2123 = vld [vmem:[%s319 + $0x30] sm:$0xff]
        %v2124 = vld [vmem:[%s319 + $0x38] sm:$0xff]
        %v2125 = vld [vmem:[%s319 + $0x40] sm:$0xff]
        %v2126 = vld [vmem:[%s319 + $0x48] sm:$0xff]
        %v2127 = vld [vmem:[%s319 + $0x50] sm:$0xff]
        %v2128 = vld [vmem:[%s319 + $0x58] sm:$0xff]
        %v2129 = vld [vmem:[%s319 + $0x60] sm:$0xff]
        %v2130 = vld [vmem:[%s319 + $0x68] sm:$0xff]
        %v2131 = vld [vmem:[%s319 + $0x70] sm:$0xff]
        %v2132 = vld [vmem:[%s319 + $0x78] sm:$0xff]
        %v2133 = vld [vmem:[%s319 + $0x80] sm:$0xff]
        %v2134 = vld [vmem:[%s319 + $0x88] sm:$0xff]
        %v2135 = vld [vmem:[%s319 + $0x90] sm:$0xff]
        %v2136 = vld [vmem:[%s319 + $0x98] sm:$0xff]
        %v2137 = vld [vmem:[%s319 + $0xa0] sm:$0xff]
        %v2138 = vld [vmem:[%s319 + $0xa8] sm:$0xff]
        %v2139 = vld [vmem:[%s319 + $0xb0] sm:$0xff]
        %v2140 = vld [vmem:[%s319 + $0xb8] sm:$0xff]
        %v2141 = vld [vmem:[%s319 + $0xc0] sm:$0xff]
        %v2142 = vld [vmem:[%s319 + $0xc8] sm:$0xff]
        %v2143 = vld [vmem:[%s319 + $0xd0] sm:$0xff]
        %v2144 = vld [vmem:[%s319 + $0xd8] sm:$0xff]
        %v2145 = vld [vmem:[%s319 + $0xe0] sm:$0xff]
        %v2146 = vld [vmem:[%s319 + $0xe8] sm:$0xff]
        %v2147 = vld [vmem:[%s319 + $0xf0] sm:$0xff]
        %v2148 = vld [vmem:[%s319 + $0xf8] sm:$0xff]
        %v2149 = vld [vmem:[%s319 + $0x100] sm:$0xff]
        %v2150 = vld [vmem:[%s319 + $0x108] sm:$0xff]
        %v2151 = vld [vmem:[%s319 + $0x110] sm:$0xff]
        %v2152 = vld [vmem:[%s319 + $0x118] sm:$0xff]
        %v2153 = vld [vmem:[%s319 + $0x120] sm:$0xff]
        %v2154 = vld [vmem:[%s319 + $0x128] sm:$0xff]
        %v2155 = vld [vmem:[%s319 + $0x130] sm:$0xff]
        %v2156 = vld [vmem:[%s319 + $0x138] sm:$0xff]
        %v2157 = vld [vmem:[%s319 + $0x140] sm:$0xff]
        %v2158 = vld [vmem:[%s319 + $0x148] sm:$0xff]
        %v2159 = vld [vmem:[%s319 + $0x150] sm:$0xff]
        %v2160 = vld [vmem:[%s319 + $0x158] sm:$0xff]
        %v2161 = vld [vmem:[%s319 + $0x160] sm:$0xff]
        %v2162 = vld [vmem:[%s319 + $0x168] sm:$0xff]
        %v2163 = vld [vmem:[%s319 + $0x170] sm:$0xff]
        %v2164 = vld [vmem:[%s319 + $0x178] sm:$0xff]
        %v2165 = vld [vmem:[%s319 + $0x180] sm:$0xff]
        %v2166 = vld [vmem:[%s319 + $0x188] sm:$0xff]
        %v2167 = vld [vmem:[%s319 + $0x190] sm:$0xff]
        %v2168 = vld [vmem:[%s319 + $0x198] sm:$0xff]
        %v2169 = vld [vmem:[%s319 + $0x1a0] sm:$0xff]
        %v2170 = vld [vmem:[%s319 + $0x1a8] sm:$0xff]
        %v2171 = vld [vmem:[%s319 + $0x1b0] sm:$0xff]
        %v2172 = vld [vmem:[%s319 + $0x1b8] sm:$0xff]
        %v2173 = vld [vmem:[%s319 + $0x1c0] sm:$0xff]
        %v2174 = vld [vmem:[%s319 + $0x1c8] sm:$0xff]
        %v2175 = vld [vmem:[%s319 + $0x1d0] sm:$0xff]
        %v2176 = vld [vmem:[%s319 + $0x1d8] sm:$0xff]
        %v2177 = vld [vmem:[%s319 + $0x1e0] sm:$0xff]
        %v2178 = vld [vmem:[%s319 + $0x1e8] sm:$0xff]
        %v2179 = vld [vmem:[%s319 + $0x1f0] sm:$0xff]
        %v2180 = vld [vmem:[%s319 + $0x1f8] sm:$0xff]
        %2181 = vmatprep.subr.mxu0 %v2178
        %2182 = vmatpush1.msra.mxu0 %v2177
        %2183 = vmatprep.subr.mxu0 %v2174
        %2184 = vmatpush1.msra.mxu0 %v2173
        %2185 = vmatprep.subr.mxu0 %v2170
        %2186 = vmatpush1.msra.mxu0 %v2169
        %2187 = vmatprep.subr.mxu0 %v2166
        %2188 = vmatpush1.msra.mxu0 %v2165
        %2189 = vmatprep.subr.mxu0 %v2162
        %2190 = vmatpush1.msra.mxu0 %v2161
        %2191 = vmatprep.subr.mxu0 %v2158
        %2192 = vmatpush1.msra.mxu0 %v2157
        %2193 = vmatprep.subr.mxu0 %v2154
        %2194 = vmatpush1.msra.mxu0 %v2153
        %2195 = vmatprep.subr.mxu0 %v2150
        %2196 = vmatpush1.msra.mxu0 %v2149
        %2197 = vmatprep.subr.mxu0 %v2146
        %2198 = vmatpush1.msra.mxu0 %v2145
        %2199 = vmatprep.subr.mxu0 %v2142
        %2200 = vmatpush1.msra.mxu0 %v2141
        %2201 = vmatprep.subr.mxu0 %v2138
        %2202 = vmatpush1.msra.mxu0 %v2137
        %2203 = vmatprep.subr.mxu0 %v2134
        %2204 = vmatpush1.msra.mxu0 %v2133
        %2205 = vmatprep.subr.mxu0 %v2130
        %2206 = vmatpush1.msra.mxu0 %v2129
        %2207 = vmatprep.subr.mxu0 %v2126
        %2208 = vmatpush1.msra.mxu0 %v2125
        %2209 = vmatprep.subr.mxu0 %v2122
        %2210 = vmatpush1.msra.mxu0 %v2121
        %2211 = vmatprep.subr.mxu0 %v2118
        %2212 = vmatpush1.msra.mxu0 %v2117
        %2213 = vmatprep.subr.mxu0 0.0
        %2214 = vmatpush2.msra.mxu0 0.0
        %2215 = vmatprep.subr.mxu0 0.0
        %2216 = vmatpush2.msra.mxu0 0.0
        %2217 = vmatprep.subr.mxu0 0.0
        %2218 = vmatpush2.msra.mxu0 0.0
        %2219 = vmatprep.subr.mxu0 0.0
        %2220 = vmatpush2.msra.mxu0 0.0
        %2221 = vmatprep.subr.mxu0 0.0
        %2222 = vmatpush2.msra.mxu0 0.0
        %2223 = vmatprep.subr.mxu0 0.0
        %2224 = vmatpush2.msra.mxu0 0.0
        %2225 = vmatprep.subr.mxu0 0.0
        %2226 = vmatpush2.msra.mxu0 0.0
        %2227 = vmatprep.subr.mxu0 0.0
        %2228 = vmatpush2.msra.mxu0 0.0
        %2229 = vmatprep.subr.mxu0 0.0
        %2230 = vmatpush2.msra.mxu0 0.0
        %2231 = vmatprep.subr.mxu0 0.0
        %2232 = vmatpush2.msra.mxu0 0.0
        %2233 = vmatprep.subr.mxu0 0.0
        %2234 = vmatpush2.msra.mxu0 0.0
        %2235 = vmatprep.subr.mxu0 0.0
        %2236 = vmatpush2.msra.mxu0 0.0
        %2237 = vmatprep.subr.mxu0 0.0
        %2238 = vmatpush2.msra.mxu0 0.0
        %2239 = vmatprep.subr.mxu0 0.0
        %2240 = vmatpush2.msra.mxu0 0.0
        %2241 = vmatprep.subr.mxu0 0.0
        %2242 = vmatpush2.msra.mxu0 0.0
        %2243 = vmatprep.subr.mxu0 0.0
        %2244 = vmatpush2.msra.mxu0 0.0
        %2245 = vmatprep.mubr.f32.mxu0 0.0
        %2246 = vmatmul.mubr.f32.gmra.mxu0 %v1983
        %v2247 = vpop.f32.mrf.mxu0
        %v2248 = vadd.f32 0.0, %v2247
        %v2249 = vpop.f32.mrf.mxu0
        %v2250 = vadd.f32 0.0, %v2249
        %2251 = vdwg.mxu0
        %2252 = vmatprep.subr.mxu0 %v2180
        %2253 = vmatpush1.msra.mxu0 %v2179
        %2254 = vmatprep.subr.mxu0 %v2176
        %2255 = vmatpush1.msra.mxu0 %v2175
        %2256 = vmatprep.subr.mxu0 %v2172
        %2257 = vmatpush1.msra.mxu0 %v2171
        %2258 = vmatprep.subr.mxu0 %v2168
        %2259 = vmatpush1.msra.mxu0 %v2167
        %2260 = vmatprep.subr.mxu0 %v2164
        %2261 = vmatpush1.msra.mxu0 %v2163
        %2262 = vmatprep.subr.mxu0 %v2160
        %2263 = vmatpush1.msra.mxu0 %v2159
        %2264 = vmatprep.subr.mxu0 %v2156
        %2265 = vmatpush1.msra.mxu0 %v2155
        %2266 = vmatprep.subr.mxu0 %v2152
        %2267 = vmatpush1.msra.mxu0 %v2151
        %2268 = vmatprep.subr.mxu0 %v2148
        %2269 = vmatpush1.msra.mxu0 %v2147
        %2270 = vmatprep.subr.mxu0 %v2144
        %2271 = vmatpush1.msra.mxu0 %v2143
        %2272 = vmatprep.subr.mxu0 %v2140
        %2273 = vmatpush1.msra.mxu0 %v2139
        %2274 = vmatprep.subr.mxu0 %v2136
        %2275 = vmatpush1.msra.mxu0 %v2135
        %2276 = vmatprep.subr.mxu0 %v2132
        %2277 = vmatpush1.msra.mxu0 %v2131
        %2278 = vmatprep.subr.mxu0 %v2128
        %2279 = vmatpush1.msra.mxu0 %v2127
        %2280 = vmatprep.subr.mxu0 %v2124
        %2281 = vmatpush1.msra.mxu0 %v2123
        %2282 = vmatprep.subr.mxu0 %v2120
        %2283 = vmatpush1.msra.mxu0 %v2119
        %2284 = vmatprep.subr.mxu0 0.0
        %2285 = vmatpush2.msra.mxu0 0.0
        %2286 = vmatprep.subr.mxu0 0.0
        %2287 = vmatpush2.msra.mxu0 0.0
        %2288 = vmatprep.subr.mxu0 0.0
        %2289 = vmatpush2.msra.mxu0 0.0
        %2290 = vmatprep.subr.mxu0 0.0
        %2291 = vmatpush2.msra.mxu0 0.0
        %2292 = vmatprep.subr.mxu0 0.0
        %2293 = vmatpush2.msra.mxu0 0.0
        %2294 = vmatprep.subr.mxu0 0.0
        %2295 = vmatpush2.msra.mxu0 0.0
        %2296 = vmatprep.subr.mxu0 0.0
        %2297 = vmatpush2.msra.mxu0 0.0
        %2298 = vmatprep.subr.mxu0 0.0
        %2299 = vmatpush2.msra.mxu0 0.0
        %2300 = vmatprep.subr.mxu0 0.0
        %2301 = vmatpush2.msra.mxu0 0.0
        %2302 = vmatprep.subr.mxu0 0.0
        %2303 = vmatpush2.msra.mxu0 0.0
        %2304 = vmatprep.subr.mxu0 0.0
        %2305 = vmatpush2.msra.mxu0 0.0
        %2306 = vmatprep.subr.mxu0 0.0
        %2307 = vmatpush2.msra.mxu0 0.0
        %2308 = vmatprep.subr.mxu0 0.0
        %2309 = vmatpush2.msra.mxu0 0.0
        %2310 = vmatprep.subr.mxu0 0.0
        %2311 = vmatpush2.msra.mxu0 0.0
        %2312 = vmatprep.subr.mxu0 0.0
        %2313 = vmatpush2.msra.mxu0 0.0
        %2314 = vmatprep.subr.mxu0 0.0
        %2315 = vmatpush2.msra.mxu0 0.0
        %2316 = vmatprep.mubr.f32.mxu0 0.0
        %2317 = vmatmul.mubr.f32.gmra.mxu0 %v1983
        %v2318 = vpop.f32.mrf.mxu0
        %v2319 = vadd.f32 0.0, %v2318
        %v2320 = vpop.f32.mrf.mxu0
        %v2321 = vadd.f32 0.0, %v2320
        %2322 = vdwg.mxu0
        %v2325 = vunpack.c.l.s4 1983009808
        %v2326 = vunpack.c.0.s8 %v2325
        %v2327 = vlaneseq
        %v2328 = vshrl.u32 %v2327, 7
        %v2329 = vsub.s32 %v2326, %v2328
        %v2330 = vrot.slane %v1988, %v2329
        %v2331 = vcombine.high %v2330, %v2330
        %2334 = vmatprep.subr.mxu0 %v2050
        %2335 = vmatpush1.msra.mxu0 %v2049
        %2336 = vmatprep.subr.mxu0 %v2046
        %2337 = vmatpush1.msra.mxu0 %v2045
        %2338 = vmatprep.subr.mxu0 %v2042
        %2339 = vmatpush1.msra.mxu0 %v2041
        %2340 = vmatprep.subr.mxu0 %v2038
        %2341 = vmatpush1.msra.mxu0 %v2037
        %2342 = vmatprep.subr.mxu0 %v2034
        %2343 = vmatpush1.msra.mxu0 %v2033
        %2344 = vmatprep.subr.mxu0 %v2030
        %2345 = vmatpush1.msra.mxu0 %v2029
        %2346 = vmatprep.subr.mxu0 %v2026
        %2347 = vmatpush1.msra.mxu0 %v2025
        %2348 = vmatprep.subr.mxu0 %v2022
        %2349 = vmatpush1.msra.mxu0 %v2021
        %2350 = vmatprep.subr.mxu0 %v2018
        %2351 = vmatpush1.msra.mxu0 %v2017
        %2352 = vmatprep.subr.mxu0 %v2014
        %2353 = vmatpush1.msra.mxu0 %v2013
        %2354 = vmatprep.subr.mxu0 %v2010
        %2355 = vmatpush1.msra.mxu0 %v2009
        %2356 = vmatprep.subr.mxu0 %v2006
        %2357 = vmatpush1.msra.mxu0 %v2005
        %2358 = vmatprep.subr.mxu0 %v2002
        %2359 = vmatpush1.msra.mxu0 %v2001
        %2360 = vmatprep.subr.mxu0 %v1998
        %2361 = vmatpush1.msra.mxu0 %v1997
        %2362 = vmatprep.subr.mxu0 %v1994
        %2363 = vmatpush1.msra.mxu0 %v1993
        %2364 = vmatprep.subr.mxu0 %v1990
        %2365 = vmatpush1.msra.mxu0 %v1989
        %2366 = vmatprep.subr.mxu0 %v2114
        %2367 = vmatpush2.msra.mxu0 %v2113
        %2368 = vmatprep.subr.mxu0 %v2110
        %2369 = vmatpush2.msra.mxu0 %v2109
        %2370 = vmatprep.subr.mxu0 %v2106
        %2371 = vmatpush2.msra.mxu0 %v2105
        %2372 = vmatprep.subr.mxu0 %v2102
        %2373 = vmatpush2.msra.mxu0 %v2101
        %2374 = vmatprep.subr.mxu0 %v2098
        %2375 = vmatpush2.msra.mxu0 %v2097
        %2376 = vmatprep.subr.mxu0 %v2094
        %2377 = vmatpush2.msra.mxu0 %v2093
        %2378 = vmatprep.subr.mxu0 %v2090
        %2379 = vmatpush2.msra.mxu0 %v2089
        %2380 = vmatprep.subr.mxu0 %v2086
        %2381 = vmatpush2.msra.mxu0 %v2085
        %2382 = vmatprep.subr.mxu0 %v2082
        %2383 = vmatpush2.msra.mxu0 %v2081
        %2384 = vmatprep.subr.mxu0 %v2078
        %2385 = vmatpush2.msra.mxu0 %v2077
        %2386 = vmatprep.subr.mxu0 %v2074
        %2387 = vmatpush2.msra.mxu0 %v2073
        %2388 = vmatprep.subr.mxu0 %v2070
        %2389 = vmatpush2.msra.mxu0 %v2069
        %2390 = vmatprep.subr.mxu0 %v2066
        %2391 = vmatpush2.msra.mxu0 %v2065
        %2392 = vmatprep.subr.mxu0 %v2062
        %2393 = vmatpush2.msra.mxu0 %v2061
        %2394 = vmatprep.subr.mxu0 %v2058
        %2395 = vmatpush2.msra.mxu0 %v2057
        %2396 = vmatprep.subr.mxu0 %v2054
        %2397 = vmatpush2.msra.mxu0 %v2053
        %2398 = vmatprep.mubr.f32.mxu0 %v2331
        %2399 = vmatmul.mubr.f32.gmra.mxu0 %v2330
        %v2400 = vpop.f32.mrf.mxu0
        %v2401 = vadd.f32 %v2248, %v2400
        %v2402 = vpop.f32.mrf.mxu0
        %v2403 = vadd.f32 %v2250, %v2402
        %2404 = vdwg.mxu0
        %2405 = vmatprep.subr.mxu0 %v2052
        %2406 = vmatpush1.msra.mxu0 %v2051
        %2407 = vmatprep.subr.mxu0 %v2048
        %2408 = vmatpush1.msra.mxu0 %v2047
        %2409 = vmatprep.subr.mxu0 %v2044
        %2410 = vmatpush1.msra.mxu0 %v2043
        %2411 = vmatprep.subr.mxu0 %v2040
        %2412 = vmatpush1.msra.mxu0 %v2039
        %2413 = vmatprep.subr.mxu0 %v2036
        %2414 = vmatpush1.msra.mxu0 %v2035
        %2415 = vmatprep.subr.mxu0 %v2032
        %2416 = vmatpush1.msra.mxu0 %v2031
        %2417 = vmatprep.subr.mxu0 %v2028
        %2418 = vmatpush1.msra.mxu0 %v2027
        %2419 = vmatprep.subr.mxu0 %v2024
        %2420 = vmatpush1.msra.mxu0 %v2023
        %2421 = vmatprep.subr.mxu0 %v2020
        %2422 = vmatpush1.msra.mxu0 %v2019
        %2423 = vmatprep.subr.mxu0 %v2016
        %2424 = vmatpush1.msra.mxu0 %v2015
        %2425 = vmatprep.subr.mxu0 %v2012
        %2426 = vmatpush1.msra.mxu0 %v2011
        %2427 = vmatprep.subr.mxu0 %v2008
        %2428 = vmatpush1.msra.mxu0 %v2007
        %2429 = vmatprep.subr.mxu0 %v2004
        %2430 = vmatpush1.msra.mxu0 %v2003
        %2431 = vmatprep.subr.mxu0 %v2000
        %2432 = vmatpush1.msra.mxu0 %v1999
        %2433 = vmatprep.subr.mxu0 %v1996
        %2434 = vmatpush1.msra.mxu0 %v1995
        %2435 = vmatprep.subr.mxu0 %v1992
        %2436 = vmatpush1.msra.mxu0 %v1991
        %2437 = vmatprep.subr.mxu0 %v2116
        %2438 = vmatpush2.msra.mxu0 %v2115
        %2439 = vmatprep.subr.mxu0 %v2112
        %2440 = vmatpush2.msra.mxu0 %v2111
        %2441 = vmatprep.subr.mxu0 %v2108
        %2442 = vmatpush2.msra.mxu0 %v2107
        %2443 = vmatprep.subr.mxu0 %v2104
        %2444 = vmatpush2.msra.mxu0 %v2103
        %2445 = vmatprep.subr.mxu0 %v2100
        %2446 = vmatpush2.msra.mxu0 %v2099
        %2447 = vmatprep.subr.mxu0 %v2096
        %2448 = vmatpush2.msra.mxu0 %v2095
        %2449 = vmatprep.subr.mxu0 %v2092
        %2450 = vmatpush2.msra.mxu0 %v2091
        %2451 = vmatprep.subr.mxu0 %v2088
        %2452 = vmatpush2.msra.mxu0 %v2087
        %2453 = vmatprep.subr.mxu0 %v2084
        %2454 = vmatpush2.msra.mxu0 %v2083
        %2455 = vmatprep.subr.mxu0 %v2080
        %2456 = vmatpush2.msra.mxu0 %v2079
        %2457 = vmatprep.subr.mxu0 %v2076
        %2458 = vmatpush2.msra.mxu0 %v2075
        %2459 = vmatprep.subr.mxu0 %v2072
        %2460 = vmatpush2.msra.mxu0 %v2071
        %2461 = vmatprep.subr.mxu0 %v2068
        %2462 = vmatpush2.msra.mxu0 %v2067
        %2463 = vmatprep.subr.mxu0 %v2064
        %2464 = vmatpush2.msra.mxu0 %v2063
        %2465 = vmatprep.subr.mxu0 %v2060
        %2466 = vmatpush2.msra.mxu0 %v2059
        %2467 = vmatprep.subr.mxu0 %v2056
        %2468 = vmatpush2.msra.mxu0 %v2055
        %2469 = vmatprep.mubr.f32.mxu0 %v2331
        %2470 = vmatmul.mubr.f32.gmra.mxu0 %v2330
        %v2471 = vpop.f32.mrf.mxu0
        %v2472 = vadd.f32 %v2319, %v2471
        %v2473 = vpop.f32.mrf.mxu0
        %v2474 = vadd.f32 %v2321, %v2473
        %2475 = vdwg.mxu0
        %v2476 = vld [vmem:[%s323] sm:$0xf]
        %v2478 = vlaneseq
        %v2479 = vshrl.u32 %v2478, 7
        %v2480 = vsub.s32 0, %v2479
        %v2481 = vrot.slane %v2476, %v2480
        %v2482 = vlaneseq
        %v2483 = vshrl.u32 %v2482, 7
        %v2484 = vsub.s32 1, %v2483
        %v2485 = vrot.slane %v2476, %v2484
        %v2486 = vlaneseq
        %v2487 = vshrl.u32 %v2486, 7
        %v2488 = vsub.s32 2, %v2487
        %v2489 = vrot.slane %v2476, %v2488
        %v2490 = vlaneseq
        %v2491 = vshrl.u32 %v2490, 7
        %v2492 = vsub.s32 3, %v2491
        %v2493 = vrot.slane %v2476, %v2492
        %v2498 = vadd.f32 %v2401, %v2481
        %v2499 = vadd.f32 %v2403, %v2485
        %v2500 = vadd.f32 %v2472, %v2489
        %v2501 = vadd.f32 %v2474, %v2493
        %v2502 = vxor.u32 %v2498, 2147483648
        %v2503 = vmul.f32 %v2502, 1.442695
        %v2504 = vpow.pop %v2503
        %v2505 = vadd.f32 %v2504, 1.0
        %v2506 = vrcp.pop %v2505
        %v2507 = vmul.f32 1.0, %v2506
        %v2508 = vxor.u32 %v2499, 2147483648
        %v2509 = vmul.f32 %v2508, 1.442695
        %v2510 = vpow.pop %v2509
        %v2511 = vadd.f32 %v2510, 1.0
        %v2512 = vrcp.pop %v2511
        %v2513 = vmul.f32 1.0, %v2512
        %v2514 = vtanh.pop %v2500
        %v2515 = vxor.u32 %v2501, 2147483648
        %v2516 = vmul.f32 %v2515, 1.442695
        %v2517 = vpow.pop %v2516
        %v2518 = vadd.f32 %v2517, 1.0
        %v2519 = vrcp.pop %v2518
        %v2520 = vmul.f32 1.0, %v2519
        %v2521 = vmul.f32 %v2513, %v1984
        %v2522 = vmul.f32 %v2507, %v2514
        %v2523 = vadd.f32 %v2521, %v2522
        %v2524 = vtanh.pop %v2523
        %v2525 = vmul.f32 %v2520, %v2524
        %2526 = vst [vmem:[#allocation3] sm:$0x3] %v2523
        %2527 = vst [vmem:[#allocation2] sm:$0x3] %v2525
        %s2528 = scalar_lea.vmem %s299, %s1985 [#allocation6]
        %2529 = vst [vmem:[%s2528] sm:$0x3] %v2525
        %s2530 = sand.u32 %s160, 1
        %s2531 = sand.u32 %s160, 1
        %s2532 = smul.addr %s2531, 8
        %s2533 = scalar_lea.vmem [#allocation6], %s2532
        // Predicated region
        $region45: #{birnn_forward.6} parent=35 // pred_check
          %p2534 = pneg %p170
        $region46: #{birnn_forward.6} parent=35 // pred_check_branch
          %2536 = sbr.rel (%p2534) target = $region48
        $region47: #{birnn_forward.6} parent=35 // pred_region
          %s2537 = smul.u32 %s22, 2
          %s2538 = ssub.s32 1, %s2537
          %s2539 = smul.u32 %s2538, %s23
          %s2540 = sadd.s32 %s22, %s2539
          %s2541 = smul.u32 4, %s2540
          %s2542 = smul.addr %s2541, 2
          %s2543 = sadd.s32 %s22, %s2542
          %s2544 = smul.addr %s2543, 2
          %s2545 = scalar_lea.vmem %s4, %s2544
          // Predicated region
          $region49: #{birnn_forward.6} parent=47 // pred_check
            _
          $region50: #{birnn_forward.6} parent=47 // pred_check_branch
            %2547 = sbr.rel (0) target = $region52
          $region51: #{birnn_forward.6} parent=47 // pred_region
            // Predicated region
            $region53: #{birnn_forward.6} parent=51 // pred_check
              _
            $region54: #{birnn_forward.6} parent=51 // pred_check_branch
              %2549 = sbr.rel target = $region56
            $region55: #{birnn_forward.6} parent=51 // pred_region
              // Predicated region
              $region68: #{birnn_forward.6} parent=55 // pred_check
                _
              $region69: #{birnn_forward.6} parent=55 // pred_check_branch
                %2571 = sbr.rel (0) target = $region71
              $region70: #{birnn_forward.6} parent=55 // pred_region
                loop: start=0, step=1, limit=1
                $region72: #{birnn_forward.6} parent=70 // loop_pre_header
                  _
                $region73: #{birnn_forward.6} parent=70 // loop_header
                  %s2573 = sphi 0, %s2577
                  %p2574 = scmp.ge.s32.totalorder %s2573, 1
                  %s2578 = sphi %s2533, %s2533
                  %s2579 = sphi %s2545, %s2545
                $region74: #{birnn_forward.6} parent=70 // loop_header_branch
                  %2576 = sbr.rel (%p2574) target = $region78
                $region75: #{birnn_forward.6} parent=70 // loop_body
                  _
                $region76: #{birnn_forward.6} parent=70 // loop_footer
                  %s2577 = sadd.s32 1, %s2573
                $region77: #{birnn_forward.6} parent=70 // loop_footer_branch
                  %2572 = sbr.rel target = $region73
                $region78: #{birnn_forward.6} parent=70 // loop_exit
                  _
                %s2581 = ssub.s32 4, 1
                loop: start=0, step=1, limit=1
                $region79: #{birnn_forward.6} parent=70 // loop_pre_header
                  _
                $region80: #{birnn_forward.6} parent=70 // loop_header
                  %s2583 = sphi 0, %s2587
                  %p2584 = scmp.ge.s32.totalorder %s2583, 1
                  %s2588 = sphi %s2533, %s2533
                  %s2589 = sphi %s2545, %s2545
                $region81: #{birnn_forward.6} parent=70 // loop_header_branch
                  %2586 = sbr.rel (%p2584) target = $region85
                $region82: #{birnn_forward.6} parent=70 // loop_body
                  %v2590 = vld [vmem:[%s2588] sm:%s2581]
                  %2591 = vst [vmem:[%s2589] sm:%s2581] %v2590
                  %v2592 = vld [vmem:[%s2588 + $0x2] sm:%s2581]
                  %2593 = vst [vmem:[%s2589 + $0x4] sm:%s2581] %v2592
                  %v2594 = vld [vmem:[%s2588 + $0x4] sm:%s2581]
                  %2595 = vst [vmem:[%s2589 + $0x8] sm:%s2581] %v2594
                  %v2596 = vld [vmem:[%s2588 + $0x6] sm:%s2581]
                  %2597 = vst [vmem:[%s2589 + $0xc] sm:%s2581] %v2596
                $region83: #{birnn_forward.6} parent=70 // loop_footer
                  %s2587 = sadd.s32 1, %s2583
                $region84: #{birnn_forward.6} parent=70 // loop_footer_branch
                  %2582 = sbr.rel target = $region80
                $region85: #{birnn_forward.6} parent=70 // loop_exit
                  _
              $region71: #{birnn_forward.6} parent=55 // pred_fallthru
                _
            $region56: #{birnn_forward.6} parent=51 // pred_fallthru
              _
            // Predicated region
            $region57: #{birnn_forward.6} parent=51 // pred_check
              _
            $region58: #{birnn_forward.6} parent=51 // pred_check_branch
              %2551 = sbr.rel (0) target = $region60
            $region59: #{birnn_forward.6} parent=51 // pred_region
              %s2553 = ssub.s32 4, 1
              loop: start=0, step=1, limit=1
              $region61: #{birnn_forward.6} parent=59 // loop_pre_header
                _
              $region62: #{birnn_forward.6} parent=59 // loop_header
                %s2555 = sphi 0, %s2559
                %p2556 = scmp.ge.s32.totalorder %s2555, 1
                %s2560 = sphi %s2533, %s2533
                %s2561 = sphi %s2545, %s2545
              $region63: #{birnn_forward.6} parent=59 // loop_header_branch
                %2558 = sbr.rel (%p2556) target = $region67
              $region64: #{birnn_forward.6} parent=59 // loop_body
                %v2562 = vld [vmem:[%s2560] sm:%s2553]
                %2563 = vst [vmem:[%s2561] sm:%s2553] %v2562
                %v2564 = vld [vmem:[%s2560 + $0x2] sm:%s2553]
                %2565 = vst [vmem:[%s2561 + $0x4] sm:%s2553] %v2564
                %v2566 = vld [vmem:[%s2560 + $0x4] sm:%s2553]
                %2567 = vst [vmem:[%s2561 + $0x8] sm:%s2553] %v2566
                %v2568 = vld [vmem:[%s2560 + $0x6] sm:%s2553]
                %2569 = vst [vmem:[%s2561 + $0xc] sm:%s2553] %v2568
              $region65: #{birnn_forward.6} parent=59 // loop_footer
                %s2559 = sadd.s32 1, %s2555
              $region66: #{birnn_forward.6} parent=59 // loop_footer_branch
                %2554 = sbr.rel target = $region62
              $region67: #{birnn_forward.6} parent=59 // loop_exit
                _
            $region60: #{birnn_forward.6} parent=51 // pred_fallthru
              _
          $region52: #{birnn_forward.6} parent=47 // pred_fallthru
            _
          %2598 = vnop
        $region48: #{birnn_forward.6} parent=35 // pred_fallthru
          _
      $region36: #{birnn_forward.6} parent=5 // pred_fallthru
        _
      %p2599 = scmp.le.s32.totalorder 2, %s13
      // Predicated region
      $region86: #{birnn_forward.6} parent=5 // pred_check
        %p2600 = pneg %p2599
      $region87: #{birnn_forward.6} parent=5 // pred_check_branch
        %2602 = sbr.rel (%p2600) target = $region89
      $region88: #{birnn_forward.6} parent=5 // pred_region
        %s2603 = ssub.s32 %s13, 2
        // Predicated region
        $region90: #{birnn_forward.6} parent=88 // pred_check
          %p2604 = pneg %p176
        $region91: #{birnn_forward.6} parent=88 // pred_check_branch
          %2606 = sbr.rel (%p2604) target = $region93
        $region92: #{birnn_forward.6} parent=88 // pred_region
          %s2607 = sand.u32 %s161, 1
          %s2608 = sand.u32 %s161, 1
          %s2609 = smul.addr %s2608, 8
          %s2610 = scalar_lea.vmem [#allocation6], %s2609
        $region93: #{birnn_forward.6} parent=88 // pred_fallthru
          _
      $region89: #{birnn_forward.6} parent=5 // pred_fallthru
        _
    $region6: #{birnn_forward.6} parent=1 // loop_footer
      %s17 = sadd.s32 1, %s13
    $region7: #{birnn_forward.6} parent=1 // loop_footer_branch
      %12 = sbr.rel target = $region3
    $region8: #{birnn_forward.6} parent=1 // loop_exit
      _
    %2611 = vsyncpa [#allocation5], 1
    %s2612 = scalar_lea.sflag [#allocation5], 1
    %2613 = vsyncpa %s2612, 1

</llo_original>
